<compile_context>
chip_gen: v7x
topology: tpu7x:2x2x1
jax: 0.10.0
libtpu: 0.0.40
codegen_flags: <defaults>
</compile_context>

<pallas_src>
import jax
import jax.numpy as jnp
from jax import lax
from jax.experimental import pallas as pl
from jax.experimental.pallas import tpu as pltpu

BN_EPS = 1e-5

# ConvTranspose2d(k=4, s=2, p=1): output row 2*i + a pulls zero-haloed input
# rows (i + a + p), p in {0, 1}, through kernel rows _KSEL[a][p] (same along W).
_KSEL = ((3, 1), (2, 0))


def _hw_budgets():
    """(vmem_limit_bytes, per-call tile budget) keyed by TPU generation."""
    try:
        kind = jax.devices()[0].device_kind.lower()
    except Exception:
        kind = ""
    if "v7" in kind:                       # v7x: 64 MiB VMEM per TensorCore
        return 40 * 1024 * 1024, 12 * 1024 * 1024
    return 64 * 1024 * 1024, 24 * 1024 * 1024   # v5e / v6e: 128 MiB physical


# ----------------------------- Pallas kernels ------------------------------ #
def _layer0_kernel(z_ref, w_ref, y_ref, s1_ref, s2_ref):
    # ConvTranspose2d(z, C, 4, 1, 0) on a 1x1 input == one matmul.  BN partial
    # sums are emitted per output column from the f32 accumulator; the tiny
    # fold over the 16 spatial positions happens on the host.
    acc = jnp.dot(z_ref[...], w_ref[...], preferred_element_type=jnp.float32)
    y_ref[...] = acc.astype(y_ref.dtype)
    s1_ref[...] = jnp.sum(acc, axis=0, keepdims=True)
    s2_ref[...] = jnp.sum(acc * acc, axis=0, keepdims=True)


def _make_deconv_kernel(transposed, final_tanh):
    """Stride-2 ConvTranspose2d(4, 2, 1) fused with the previous layer's
    BatchNorm(batch statistics) + ReLU.

    transposed=True accumulates (Cout, M) via dot_general so the lane axis is
    M = TN*H*W (lane-dense stores when Cout < 128); otherwise (M, Cout).
    final_tanh=True applies tanh and emits f32 (no BN statistics outputs)."""

    def kernel(x_ref, scale_ref, shift_ref, w_ref, *out_refs):
        if final_tanh:
            (y_ref,) = out_refs
        else:
            y_ref, s1_ref, s2_ref = out_refs
        TN, H, W, Cin = x_ref.shape
        HW = H * W
        M = TN * HW
        Cout = w_ref.shape[1] if transposed else w_ref.shape[2]

        # Previous layer's BN (batch stats, gamma=1, beta=0) + ReLU, in f32.
        x = x_ref[...].astype(jnp.float32)
        x = x * scale_ref[...].reshape(1, 1, 1, Cin) \
              + shift_ref[...].reshape(1, 1, 1, Cin)
        x = jnp.maximum(x, 0.0)

        # In-kernel zero halo (the ConvTranspose padding=1 ring).  Built AFTER
        # BN/ReLU so it is exactly zero: no mask input, no host-side pad copy.
        zr = jnp.zeros((TN, 1, W, Cin), jnp.float32)
        x = jnp.concatenate([zr, x, zr], axis=1)
        zc = jnp.zeros((TN, H + 2, 1, Cin), jnp.float32)
        x = jnp.concatenate([zc, x, zc], axis=2)          # (TN, H+2, W+2, Cin)
        x = x.astype(jnp.bfloat16)

        # 9 distinct shifted windows shared by the 4 sub-pixel phases.
        xs = {}
        for dy in range(3):
            for dx in range(3):
                xs[(dy, dx)] = x[:, dy:dy + H, dx:dx + W, :]

        if not final_tanh:
            s_shape = (Cout, 1) if transposed else (1, Cout)
            s1 = jnp.zeros(s_shape, jnp.float32)
            s2 = jnp.zeros(s_shape, jnp.float32)

        for a in (0, 1):
            for b in (0, 1):
                # Concatenate the 4 kernel taps along the contraction axis:
                # ONE (M, 4*Cin) MXU pass per sub-pixel phase.
                slab = jnp.concatenate(
                    [xs[(a + p, b + q)] for p in (0, 1) for q in (0, 1)],
                    axis=-1).reshape(M, 4 * Cin)
                if transposed:
                    acc = lax.dot_general(                  # (Cout, M)
                        w_ref[a * 2 + b], slab, (((1,), (1,)), ((), ())),
                        preferred_element_type=jnp.float32)
                else:
                    acc = jnp.dot(slab, w_ref[a * 2 + b],   # (M, Cout)
                                  preferred_element_type=jnp.float32)
                if final_tanh:
                    out = jnp.tanh(acc).astype(y_ref.dtype)
                else:
                    ax = 1 if transposed else 0
                    s1 = s1 + jnp.sum(acc, axis=ax, keepdims=True)
                    s2 = s2 + jnp.sum(acc * acc, axis=ax, keepdims=True)
                    out = acc.astype(y_ref.dtype)
                if transposed:
                    for n in range(TN):                     # lane-dense stores
                        y_ref[n, a, b] = out[:, n * HW:(n + 1) * HW]
                else:
                    y_ref[:, a, b] = out.reshape(TN, HW, Cout)

        if not final_tanh:
            if transposed:
                s1_ref[...] = s1.reshape(1, Cout, 1)
                s2_ref[...] = s2.reshape(1, Cout, 1)
            else:
                s1_ref[...] = s1.reshape(1, 1, Cout)
                s2_ref[...] = s2.reshape(1, 1, Cout)

    return kernel


# ------------------------------ host-side glue ------------------------------ #
def _prep_deconv_weight_cat(w, transposed):
    # PyTorch ConvTranspose2d weight (Cin, Cout, 4, 4) -> per sub-pixel phase
    # the 4 taps concatenated along the contraction axis:
    #   transposed=False: (4, 4*Cin, Cout);  transposed=True: (4, Cout, 4*Cin).
    phases = []
    for a in (0, 1):
        for b in (0, 1):
            taps = [w[:, :, _KSEL[a][p], _KSEL[b][q]]       # (Cin, Cout)
                    for p in (0, 1) for q in (0, 1)]
            phases.append(jnp.concatenate(taps, axis=0))    # (4*Cin, Cout)
    wc = jnp.stack(phases, axis=0)                          # (4, 4*Cin, Cout)
    if transposed:
        wc = jnp.swapaxes(wc, -1, -2)                       # (4, Cout, 4*Cin)
    return wc.astype(jnp.bfloat16)


def _bn_scale_shift(s1, s2, count):
    # TODO(synk): E[x^2]-E[x]^2 in f32 can lose precision for large means;
    # acceptable for this forward pass.
    mean = s1 / count
    var = jnp.maximum(s2 / count - mean * mean, 0.0)
    scale = lax.rsqrt(var + BN_EPS)
    shift = -mean * scale
    return (scale.reshape(1, -1).astype(jnp.float32),
            shift.reshape(1, -1).astype(jnp.float32))


def _pick_tn(N, H, W, Cin, Cout, vmem_budget, target_rows=1024):
    """Batch-tile size: smallest divisor of N with >= target_rows matmul rows
    that fits the budget, capped at N//2 so the grid has >= 2 steps (megacore
    sharding on v7x + DMA/compute pipelining)."""
    cap = max(1, N // 2)
    divs = [d for d in range(1, cap + 1) if N % d == 0]
    lane = lambda c: -(-c // 128) * 128
    sub = lambda r: -(-r // 8) * 8

    def est(d):
        M = d * H * W
        x_in = 2 * d * H * sub(W) * lane(Cin) * 2            # bf16 in, 2-buf
        y_out = 2 * d * 4 * sub(Cout) * lane(H * W) * 2      # bf16 out, 2-buf
        act = d * (H + 2) * sub(W + 2) * lane(Cin) * 6       # f32 + bf16 copies
        slab = 2 * sub(M) * lane(4 * Cin) * 2                # ~2 live slabs
        acc = sub(Cout) * lane(M) * 4                        # f32 accumulator
        return x_in + y_out + act + slab + acc

    ok = [d for d in divs if est(d) <= vmem_budget]
    if not ok:
        return 1
    for d in ok:
        if d * H * W >= target_rows:
            return d
    return ok[-1]


def _deconv_bn_relu_layer(h, scale, shift, w, vmem_limit, tile_budget):
    # h: (N, H, W, Cin) bf16 pre-BN.  Returns assembled pre-BN output
    # (N, 2H, 2W, Cout) bf16 plus this layer's BN scale/shift for the next one.
    N, H, W, Cin = h.shape
    Cout = w.shape[1]
    HW = H * W
    transposed = Cout < 128
    wc = _prep_deconv_weight_cat(w, transposed)
    TN = _pick_tn(N, H, W, Cin, Cout, tile_budget)
    G = N // TN
    if transposed:
        y_shape, y_block = (N, 2, 2, Cout, HW), (TN, 2, 2, Cout, HW)
        s_shape, s_block = (G, Cout, 1), (1, Cout, 1)
    else:
        y_shape, y_block = (N, 2, 2, HW, Cout), (TN, 2, 2, HW, Cout)
        s_shape, s_block = (G, 1, Cout), (1, 1, Cout)
    y, s1, s2 = pl.pallas_call(
        _make_deconv_kernel(transposed, final_tanh=False),
        out_shape=(jax.ShapeDtypeStruct(y_shape, jnp.bfloat16),
                   jax.ShapeDtypeStruct(s_shape, jnp.float32),
                   jax.ShapeDtypeStruct(s_shape, jnp.float32)),
        grid=(G,),
        in_specs=[pl.BlockSpec((TN, H, W, Cin), lambda i: (i, 0, 0, 0)),
                  pl.BlockSpec((1, Cin), lambda i: (0, 0)),
                  pl.BlockSpec((1, Cin), lambda i: (0, 0)),
                  pl.BlockSpec(wc.shape, lambda i: (0, 0, 0))],
        out_specs=[pl.BlockSpec(y_block, lambda i: (i, 0, 0, 0, 0)),
                   pl.BlockSpec(s_block, lambda i: (i, 0, 0)),
                   pl.BlockSpec(s_block, lambda i: (i, 0, 0))],
        compiler_params=pltpu.CompilerParams(
            dimension_semantics=("parallel",),
            vmem_limit_bytes=vmem_limit),
    )(h, scale, shift, wc)
    count = 4.0 * N * HW
    nscale, nshift = _bn_scale_shift(jnp.sum(s1, axis=0).reshape(-1),
                                     jnp.sum(s2, axis=0).reshape(-1), count)
    # Sub-pixel interleave to NHWC: tiny XLA glue.
    # TODO(synk): fuse this interleave into the consumer kernel (read y in
    # producer layout) to drop one full-activation HBM round trip per layer.
    if transposed:
        out = y.reshape(N, 2, 2, Cout, H, W).transpose(0, 4, 1, 5, 2, 3)
    else:
        out = y.reshape(N, 2, 2, H, W, Cout).transpose(0, 3, 1, 4, 2, 5)
    return out.reshape(N, 2 * H, 2 * W, Cout), nscale, nshift


def _deconv_tanh_layer(h, scale, shift, w, vmem_limit, tile_budget):
    N, H, W, Cin = h.shape
    Cout = w.shape[1]
    HW = H * W
    wc = _prep_deconv_weight_cat(w, transposed=True)        # (4, Cout, 4*Cin)
    TN = _pick_tn(N, H, W, Cin, Cout, tile_budget)
    G = N // TN
    y = pl.pallas_call(
        _make_deconv_kernel(transposed=True, final_tanh=True),
        out_shape=jax.ShapeDtypeStruct((N, 2, 2, Cout, HW), jnp.float32),
        grid=(G,),
        in_specs=[pl.BlockSpec((TN, H, W, Cin), lambda i: (i, 0, 0, 0)),
                  pl.BlockSpec((1, Cin), lambda i: (0, 0)),
                  pl.BlockSpec((1, Cin), lambda i: (0, 0)),
                  pl.BlockSpec(wc.shape, lambda i: (0, 0, 0))],
        out_specs=pl.BlockSpec((TN, 2, 2, Cout, HW),
                               lambda i: (i, 0, 0, 0, 0)),
        compiler_params=pltpu.CompilerParams(
            dimension_semantics=("parallel",),
            vmem_limit_bytes=vmem_limit),
    )(h, scale, shift, wc)
    # (n,a,b,c,(i,j)) -> (n,c,2i+a,2j+b)  (final NCHW like the PyTorch module)
    out = y.reshape(N, 2, 2, Cout, H, W).transpose(0, 3, 4, 1, 5, 2)
    return out.reshape(N, Cout, 2 * H, 2 * W)


def generator_forward(z, params):
    vmem_limit, tile_budget = _hw_budgets()
    N, zdim = z.shape[0], z.shape[1]
    z2 = z.reshape(N, zdim).astype(jnp.bfloat16)

    # layer 0: ConvTranspose2d(z, 8g, 4, 1, 0) on a 1x1 input == one matmul.
    w0 = params["w0"]
    C0 = w0.shape[1]
    w0m = jnp.transpose(w0, (0, 2, 3, 1)).reshape(zdim, 16 * C0).astype(jnp.bfloat16)
    y0, s1, s2 = pl.pallas_call(
        _layer0_kernel,
        out_shape=(jax.ShapeDtypeStruct((N, 16 * C0), jnp.bfloat16),
                   jax.ShapeDtypeStruct((1, 16 * C0), jnp.float32),
                   jax.ShapeDtypeStruct((1, 16 * C0), jnp.float32)),
        grid=(1,),
        in_specs=[pl.BlockSpec((N, zdim), lambda i: (0, 0)),
                  pl.BlockSpec((zdim, 16 * C0), lambda i: (0, 0))],
        out_specs=[pl.BlockSpec((N, 16 * C0), lambda i: (0, 0)),
                   pl.BlockSpec((1, 16 * C0), lambda i: (0, 0)),
                   pl.BlockSpec((1, 16 * C0), lambda i: (0, 0))],
        compiler_params=pltpu.CompilerParams(
            dimension_semantics=("arbitrary",),
            vmem_limit_bytes=vmem_limit),
    )(z2, w0m)
    scale, shift = _bn_scale_shift(s1.reshape(16, C0).sum(axis=0),
                                   s2.reshape(16, C0).sum(axis=0), 16.0 * N)
    h = y0.reshape(N, 4, 4, C0)                              # pre-BN NHWC

    for name in ("w1", "w2", "w3"):
        h, scale, shift = _deconv_bn_relu_layer(h, scale, shift, params[name],
                                                vmem_limit, tile_budget)
    return _deconv_tanh_layer(h, scale, shift, params["w4"],
                              vmem_limit, tile_budget)


def init_params(key, z_dim, c_dim, gf_dim):
    ks = jax.random.split(key, 5)

    def w(k, cin, cout):
        return 0.02 * jax.random.normal(k, (cin, cout, 4, 4), jnp.float32)

    return {
        "w0": w(ks[0], z_dim, gf_dim * 8),
        "w1": w(ks[1], gf_dim * 8, gf_dim * 4),
        "w2": w(ks[2], gf_dim * 4, gf_dim * 2),
        "w3": w(ks[3], gf_dim * 2, gf_dim),
        "w4": w(ks[4], gf_dim, c_dim),
    }
    # TODO(synk): BatchNorm running-stats updates (training-side bookkeeping)
    # are not part of the forward output and are not reproduced.


if __name__ == "__main__":
    z_dim, c_dim, gf_dim, batch = 16, 3, 8, 2
    key = jax.random.PRNGKey(0)
    kz, kp = jax.random.split(key)
    z = jax.random.normal(kz, (batch, z_dim, 1, 1), jnp.float32)
    params = init_params(kp, z_dim, c_dim, gf_dim)

    out = jax.jit(generator_forward)(z, params)
    out = jax.block_until_ready(out)
    assert out.shape == (batch, c_dim, 64, 64), out.shape
    assert bool(jnp.all(jnp.isfinite(out)))
    print("KERNEL_OK")
</pallas_src>

<mosaic_0001>
module attributes {stable_mosaic.version = 11 : i64} {
  func.func @_layer0_kernel(%arg0: i32, %arg1: memref<2x16xbf16, #tpu.memory_space<vmem>>, %arg2: memref<16x1024xbf16, #tpu.memory_space<vmem>>, %arg3: memref<2x1024xbf16, #tpu.memory_space<vmem>>, %arg4: memref<1x1024xf32, #tpu.memory_space<vmem>>, %arg5: memref<1x1024xf32, #tpu.memory_space<vmem>>) attributes {dimension_semantics = [#tpu.dimension_semantics<arbitrary>], iteration_bounds = array<i64: 1>, scalar_prefetch = 0 : i64, scratch_operands = 0 : i64, tpu.core_type = #tpu.core_type<tc>, window_params = [{pipeline_mode = #tpu.pipeline_mode<synchronous>, transform_indices = @transform_0, window_bounds = array<i64: 2, 16>}, {pipeline_mode = #tpu.pipeline_mode<synchronous>, transform_indices = @transform_1, window_bounds = array<i64: 16, 1024>}, {pipeline_mode = #tpu.pipeline_mode<synchronous>, transform_indices = @transform_2, window_bounds = array<i64: 2, 1024>}, {pipeline_mode = #tpu.pipeline_mode<synchronous>, transform_indices = @transform_3, window_bounds = array<i64: 1, 1024>}, {pipeline_mode = #tpu.pipeline_mode<synchronous>, transform_indices = @transform_4, window_bounds = array<i64: 1, 1024>}]} {
    %c0 = arith.constant 0 : index
    %c0_0 = arith.constant 0 : index
    %0 = vector.load %arg1[%c0, %c0_0] : memref<2x16xbf16, #tpu.memory_space<vmem>>, vector<2x16xbf16>
    %c0_1 = arith.constant 0 : index
    %c0_2 = arith.constant 0 : index
    %1 = vector.load %arg2[%c0_1, %c0_2] : memref<16x1024xbf16, #tpu.memory_space<vmem>>, vector<16x1024xbf16>
    %cst = arith.constant dense<0.000000e+00> : vector<2x1024xf32>
    %2 = tpu.matmul %0, %1, %cst {dimension_numbers = #tpu.dot_dimension_numbers<[1], [0], [0], [1], [0, 0, 1, 1], [], []>} : vector<2x16xbf16>, vector<16x1024xbf16>, vector<2x1024xf32> -> vector<2x1024xf32>
    %3 = arith.truncf %2 : vector<2x1024xf32> to vector<2x1024xbf16>
    %c0_3 = arith.constant 0 : index
    %c0_4 = arith.constant 0 : index
    %4 = vector.load %arg3[%c0_3, %c0_4] : memref<2x1024xbf16, #tpu.memory_space<vmem>>, vector<2x1024xbf16>
    tpu.vector_store %arg3[%c0_3, %c0_4], %3 {strides = array<i32>} : memref<2x1024xbf16, #tpu.memory_space<vmem>>, vector<2x1024xbf16>,
    %cst_5 = arith.constant dense<0.000000e+00> : vector<1024xf32>
    %5 = vector.multi_reduction <add>, %2, %cst_5 [0] : vector<2x1024xf32> to vector<1024xf32>
    %6 = vector.shape_cast %5 : vector<1024xf32> to vector<1x1024xf32>
    %c0_6 = arith.constant 0 : index
    %c0_7 = arith.constant 0 : index
    %7 = vector.load %arg4[%c0_6, %c0_7] : memref<1x1024xf32, #tpu.memory_space<vmem>>, vector<1x1024xf32>
    tpu.vector_store %arg4[%c0_6, %c0_7], %6 {strides = array<i32>} : memref<1x1024xf32, #tpu.memory_space<vmem>>, vector<1x1024xf32>,
    %8 = arith.mulf %2, %2 : vector<2x1024xf32>
    %cst_8 = arith.constant dense<0.000000e+00> : vector<1024xf32>
    %9 = vector.multi_reduction <add>, %8, %cst_8 [0] : vector<2x1024xf32> to vector<1024xf32>
    %10 = vector.shape_cast %9 : vector<1024xf32> to vector<1x1024xf32>
    %c0_9 = arith.constant 0 : index
    %c0_10 = arith.constant 0 : index
    %11 = vector.load %arg5[%c0_9, %c0_10] : memref<1x1024xf32, #tpu.memory_space<vmem>>, vector<1x1024xf32>
    tpu.vector_store %arg5[%c0_9, %c0_10], %10 {strides = array<i32>} : memref<1x1024xf32, #tpu.memory_space<vmem>>, vector<1x1024xf32>,
    return
  }
  func.func @transform_0(%arg0: i32) -> (i32, i32) {
    %c0_i32 = arith.constant 0 : i32
    %c0_i32_0 = arith.constant 0 : i32
    %c0_i32_1 = arith.constant 0 : i32
    return %c0_i32, %c0_i32_0 : i32, i32
  }
  func.func @transform_1(%arg0: i32) -> (i32, i32) {
    %c0_i32 = arith.constant 0 : i32
    %c0_i32_0 = arith.constant 0 : i32
    %c0_i32_1 = arith.constant 0 : i32
    return %c0_i32, %c0_i32_0 : i32, i32
  }
  func.func @transform_2(%arg0: i32) -> (i32, i32) {
    %c0_i32 = arith.constant 0 : i32
    %c0_i32_0 = arith.constant 0 : i32
    %c0_i32_1 = arith.constant 0 : i32
    return %c0_i32, %c0_i32_0 : i32, i32
  }
  func.func @transform_3(%arg0: i32) -> (i32, i32) {
    %c0_i32 = arith.constant 0 : i32
    %c0_i32_0 = arith.constant 0 : i32
    %c0_i32_1 = arith.constant 0 : i32
    return %c0_i32, %c0_i32_0 : i32, i32
  }
  func.func @transform_4(%arg0: i32) -> (i32, i32) {
    %c0_i32 = arith.constant 0 : i32
    %c0_i32_0 = arith.constant 0 : i32
    %c0_i32_1 = arith.constant 0 : i32
    return %c0_i32, %c0_i32_0 : i32, i32
  }
}

module attributes {stable_mosaic.version = 11 : i64} {
  func.func @kernel(%arg0: i32, %arg1: memref<1x4x4x64xbf16, #tpu.memory_space<vmem>>, %arg2: memref<1x64xf32, #tpu.memory_space<vmem>>, %arg3: memref<1x64xf32, #tpu.memory_space<vmem>>, %arg4: memref<4x32x256xbf16, #tpu.memory_space<vmem>>, %arg5: memref<1x2x2x32x16xbf16, #tpu.memory_space<vmem>>, %arg6: memref<1x32x1xf32, #tpu.memory_space<vmem>>, %arg7: memref<1x32x1xf32, #tpu.memory_space<vmem>>) attributes {dimension_semantics = [#tpu.dimension_semantics<parallel>], iteration_bounds = array<i64: 2>, scalar_prefetch = 0 : i64, scratch_operands = 0 : i64, tpu.core_type = #tpu.core_type<tc>, window_params = [{transform_indices = @transform_0, window_bounds = array<i64: 1, 4, 4, 64>}, {pipeline_mode = #tpu.pipeline_mode<synchronous>, transform_indices = @transform_1, window_bounds = array<i64: 1, 64>}, {pipeline_mode = #tpu.pipeline_mode<synchronous>, transform_indices = @transform_2, window_bounds = array<i64: 1, 64>}, {pipeline_mode = #tpu.pipeline_mode<synchronous>, transform_indices = @transform_3, window_bounds = array<i64: 4, 32, 256>}, {transform_indices = @transform_4, window_bounds = array<i64: 1, 2, 2, 32, 16>}, {transform_indices = @transform_5, window_bounds = array<i64: 1, 32, 1>}, {transform_indices = @transform_6, window_bounds = array<i64: 1, 32, 1>}]} {
    %c0 = arith.constant 0 : index
    %c0_0 = arith.constant 0 : index
    %c0_1 = arith.constant 0 : index
    %c0_2 = arith.constant 0 : index
    %0 = vector.load %arg1[%c0, %c0_0, %c0_1, %c0_2] : memref<1x4x4x64xbf16, #tpu.memory_space<vmem>>, vector<1x4x4x64xbf16>
    %1 = arith.extf %0 : vector<1x4x4x64xbf16> to vector<1x4x4x64xf32>
    %c0_3 = arith.constant 0 : index
    %c0_4 = arith.constant 0 : index
    %2 = vector.load %arg2[%c0_3, %c0_4] : memref<1x64xf32, #tpu.memory_space<vmem>>, vector<1x64xf32>
    %3 = vector.shape_cast %2 : vector<1x64xf32> to vector<1x1x1x64xf32>
    %4 = vector.broadcast %3 : vector<1x1x1x64xf32> to vector<1x4x4x64xf32>
    %5 = arith.mulf %1, %4 : vector<1x4x4x64xf32>
    %c0_5 = arith.constant 0 : index
    %c0_6 = arith.constant 0 : index
    %6 = vector.load %arg3[%c0_5, %c0_6] : memref<1x64xf32, #tpu.memory_space<vmem>>, vector<1x64xf32>
    %7 = vector.shape_cast %6 : vector<1x64xf32> to vector<1x1x1x64xf32>
    %8 = vector.broadcast %7 : vector<1x1x1x64xf32> to vector<1x4x4x64xf32>
    %9 = arith.addf %5, %8 : vector<1x4x4x64xf32>
    %cst = arith.constant 0.000000e+00 : f32
    %10 = vector.broadcast %cst : f32 to vector<1x4x4x64xf32>
    %11 = arith.maximumf %9, %10 : vector<1x4x4x64xf32>
    %cst_7 = arith.constant 0.000000e+00 : f32
    %12 = vector.broadcast %cst_7 : f32 to vector<1x1x4x64xf32>
    %13 = tpu.concatenate %12, %11, %12 in 1 : vector<1x1x4x64xf32>, vector<1x4x4x64xf32>, vector<1x1x4x64xf32> -> vector<1x6x4x64xf32>
    %cst_8 = arith.constant 0.000000e+00 : f32
    %14 = vector.broadcast %cst_8 : f32 to vector<1x6x1x64xf32>
    %15 = tpu.concatenate %14, %13, %14 in 2 : vector<1x6x1x64xf32>, vector<1x6x4x64xf32>, vector<1x6x1x64xf32> -> vector<1x6x6x64xf32>
    %16 = arith.truncf %15 : vector<1x6x6x64xf32> to vector<1x6x6x64xbf16>
    %17 = vector.extract_strided_slice %16 {offsets = [0, 0, 0, 0], sizes = [1, 4, 4, 64], strides = [1, 1, 1, 1]} : vector<1x6x6x64xbf16> to vector<1x4x4x64xbf16>
    %18 = vector.extract_strided_slice %16 {offsets = [0, 0, 1, 0], sizes = [1, 4, 4, 64], strides = [1, 1, 1, 1]} : vector<1x6x6x64xbf16> to vector<1x4x4x64xbf16>
    %19 = vector.extract_strided_slice %16 {offsets = [0, 0, 2, 0], sizes = [1, 4, 4, 64], strides = [1, 1, 1, 1]} : vector<1x6x6x64xbf16> to vector<1x4x4x64xbf16>
    %20 = vector.extract_strided_slice %16 {offsets = [0, 1, 0, 0], sizes = [1, 4, 4, 64], strides = [1, 1, 1, 1]} : vector<1x6x6x64xbf16> to vector<1x4x4x64xbf16>
    %21 = vector.extract_strided_slice %16 {offsets = [0, 1, 1, 0], sizes = [1, 4, 4, 64], strides = [1, 1, 1, 1]} : vector<1x6x6x64xbf16> to vector<1x4x4x64xbf16>
    %22 = vector.extract_strided_slice %16 {offsets = [0, 1, 2, 0], sizes = [1, 4, 4, 64], strides = [1, 1, 1, 1]} : vector<1x6x6x64xbf16> to vector<1x4x4x64xbf16>
    %23 = vector.extract_strided_slice %16 {offsets = [0, 2, 0, 0], sizes = [1, 4, 4, 64], strides = [1, 1, 1, 1]} : vector<1x6x6x64xbf16> to vector<1x4x4x64xbf16>
    %24 = vector.extract_strided_slice %16 {offsets = [0, 2, 1, 0], sizes = [1, 4, 4, 64], strides = [1, 1, 1, 1]} : vector<1x6x6x64xbf16> to vector<1x4x4x64xbf16>
    %25 = vector.extract_strided_slice %16 {offsets = [0, 2, 2, 0], sizes = [1, 4, 4, 64], strides = [1, 1, 1, 1]} : vector<1x6x6x64xbf16> to vector<1x4x4x64xbf16>
    %cst_9 = arith.constant 0.000000e+00 : f32
    %26 = vector.broadcast %cst_9 : f32 to vector<32x1xf32>
    %cst_10 = arith.constant 0.000000e+00 : f32
    %27 = vector.broadcast %cst_10 : f32 to vector<32x1xf32>
    %28 = tpu.concatenate %17, %18, %20, %21 in 3 : vector<1x4x4x64xbf16>, vector<1x4x4x64xbf16>, vector<1x4x4x64xbf16>, vector<1x4x4x64xbf16> -> vector<1x4x4x256xbf16>
    %29 = vector.shape_cast %28 : vector<1x4x4x256xbf16> to vector<16x256xbf16>
    %c0_11 = arith.constant 0 : index
    %c0_12 = arith.constant 0 : index
    %c0_13 = arith.constant 0 : index
    %30 = vector.load %arg4[%c0_11, %c0_12, %c0_13] : memref<4x32x256xbf16, #tpu.memory_space<vmem>>, vector<1x32x256xbf16>
    %31 = vector.shape_cast %30 : vector<1x32x256xbf16> to vector<32x256xbf16>
    %cst_14 = arith.constant dense<0.000000e+00> : vector<32x16xf32>
    %32 = tpu.matmul %31, %29, %cst_14 {dimension_numbers = #tpu.dot_dimension_numbers<[1], [1], [0], [0], [0, 0, 1, 0], [], []>} : vector<32x256xbf16>, vector<16x256xbf16>, vector<32x16xf32> -> vector<32x16xf32>
    %cst_15 = arith.constant dense<0.000000e+00> : vector<32xf32>
    %33 = vector.multi_reduction <add>, %32, %cst_15 [1] : vector<32x16xf32> to vector<32xf32>
    %34 = vector.shape_cast %33 : vector<32xf32> to vector<32x1xf32>
    %35 = arith.addf %26, %34 : vector<32x1xf32>
    %36 = arith.mulf %32, %32 : vector<32x16xf32>
    %cst_16 = arith.constant dense<0.000000e+00> : vector<32xf32>
    %37 = vector.multi_reduction <add>, %36, %cst_16 [1] : vector<32x16xf32> to vector<32xf32>
    %38 = vector.shape_cast %37 : vector<32xf32> to vector<32x1xf32>
    %39 = arith.addf %27, %38 : vector<32x1xf32>
    %40 = arith.truncf %32 : vector<32x16xf32> to vector<32x16xbf16>
    %c0_17 = arith.constant 0 : index
    %c0_18 = arith.constant 0 : index
    %c0_19 = arith.constant 0 : index
    %c0_20 = arith.constant 0 : index
    %c0_21 = arith.constant 0 : index
    %41 = vector.load %arg5[%c0_17, %c0_18, %c0_19, %c0_20, %c0_21] : memref<1x2x2x32x16xbf16, #tpu.memory_space<vmem>>, vector<1x1x1x32x16xbf16>
    %42 = vector.shape_cast %41 : vector<1x1x1x32x16xbf16> to vector<32x16xbf16>
    %43 = vector.shape_cast %40 : vector<32x16xbf16> to vector<1x1x1x32x16xbf16>
    tpu.vector_store %arg5[%c0_17, %c0_18, %c0_19, %c0_20, %c0_21], %43 {strides = array<i32>} : memref<1x2x2x32x16xbf16, #tpu.memory_space<vmem>>, vector<1x1x1x32x16xbf16>,
    %44 = tpu.concatenate %18, %19, %21, %22 in 3 : vector<1x4x4x64xbf16>, vector<1x4x4x64xbf16>, vector<1x4x4x64xbf16>, vector<1x4x4x64xbf16> -> vector<1x4x4x256xbf16>
    %45 = vector.shape_cast %44 : vector<1x4x4x256xbf16> to vector<16x256xbf16>
    %c1 = arith.constant 1 : index
    %c0_22 = arith.constant 0 : index
    %c0_23 = arith.constant 0 : index
    %46 = vector.load %arg4[%c1, %c0_22, %c0_23] : memref<4x32x256xbf16, #tpu.memory_space<vmem>>, vector<1x32x256xbf16>
    %47 = vector.shape_cast %46 : vector<1x32x256xbf16> to vector<32x256xbf16>
    %cst_24 = arith.constant dense<0.000000e+00> : vector<32x16xf32>
    %48 = tpu.matmul %47, %45, %cst_24 {dimension_numbers = #tpu.dot_dimension_numbers<[1], [1], [0], [0], [0, 0, 1, 0], [], []>} : vector<32x256xbf16>, vector<16x256xbf16>, vector<32x16xf32> -> vector<32x16xf32>
    %cst_25 = arith.constant dense<0.000000e+00> : vector<32xf32>
    %49 = vector.multi_reduction <add>, %48, %cst_25 [1] : vector<32x16xf32> to vector<32xf32>
    %50 = vector.shape_cast %49 : vector<32xf32> to vector<32x1xf32>
    %51 = arith.addf %35, %50 : vector<32x1xf32>
    %52 = arith.mulf %48, %48 : vector<32x16xf32>
    %cst_26 = arith.constant dense<0.000000e+00> : vector<32xf32>
    %53 = vector.multi_reduction <add>, %52, %cst_26 [1] : vector<32x16xf32> to vector<32xf32>
    %54 = vector.shape_cast %53 : vector<32xf32> to vector<32x1xf32>
    %55 = arith.addf %39, %54 : vector<32x1xf32>
    %56 = arith.truncf %48 : vector<32x16xf32> to vector<32x16xbf16>
    %c0_27 = arith.constant 0 : index
    %c0_28 = arith.constant 0 : index
    %c1_29 = arith.constant 1 : index
    %c0_30 = arith.constant 0 : index
    %c0_31 = arith.constant 0 : index
    %57 = vector.load %arg5[%c0_27, %c0_28, %c1_29, %c0_30, %c0_31] : memref<1x2x2x32x16xbf16, #tpu.memory_space<vmem>>, vector<1x1x1x32x16xbf16>
    %58 = vector.shape_cast %57 : vector<1x1x1x32x16xbf16> to vector<32x16xbf16>
    %59 = vector.shape_cast %56 : vector<32x16xbf16> to vector<1x1x1x32x16xbf16>
    tpu.vector_store %arg5[%c0_27, %c0_28, %c1_29, %c0_30, %c0_31], %59 {strides = array<i32>} : memref<1x2x2x32x16xbf16, #tpu.memory_space<vmem>>, vector<1x1x1x32x16xbf16>,
    %60 = tpu.concatenate %20, %21, %23, %24 in 3 : vector<1x4x4x64xbf16>, vector<1x4x4x64xbf16>, vector<1x4x4x64xbf16>, vector<1x4x4x64xbf16> -> vector<1x4x4x256xbf16>
    %61 = vector.shape_cast %60 : vector<1x4x4x256xbf16> to vector<16x256xbf16>
    %c2 = arith.constant 2 : index
    %c0_32 = arith.constant 0 : index
    %c0_33 = arith.constant 0 : index
    %62 = vector.load %arg4[%c2, %c0_32, %c0_33] : memref<4x32x256xbf16, #tpu.memory_space<vmem>>, vector<1x32x256xbf16>
    %63 = vector.shape_cast %62 : vector<1x32x256xbf16> to vector<32x256xbf16>
    %cst_34 = arith.constant dense<0.000000e+00> : vector<32x16xf32>
    %64 = tpu.matmul %63, %61, %cst_34 {dimension_numbers = #tpu.dot_dimension_numbers<[1], [1], [0], [0], [0, 0, 1, 0], [], []>} : vector<32x256xbf16>, vector<16x256xbf16>, vector<32x16xf32> -> vector<32x16xf32>
    %cst_35 = arith.constant dense<0.000000e+00> : vector<32xf32>
    %65 = vector.multi_reduction <add>, %64, %cst_35 [1] : vector<32x16xf32> to vector<32xf32>
    %66 = vector.shape_cast %65 : vector<32xf32> to vector<32x1xf32>
    %67 = arith.addf %51, %66 : vector<32x1xf32>
    %68 = arith.mulf %64, %64 : vector<32x16xf32>
    %cst_36 = arith.constant dense<0.000000e+00> : vector<32xf32>
    %69 = vector.multi_reduction <add>, %68, %cst_36 [1] : vector<32x16xf32> to vector<32xf32>
    %70 = vector.shape_cast %69 : vector<32xf32> to vector<32x1xf32>
    %71 = arith.addf %55, %70 : vector<32x1xf32>
    %72 = arith.truncf %64 : vector<32x16xf32> to vector<32x16xbf16>
    %c0_37 = arith.constant 0 : index
    %c1_38 = arith.constant 1 : index
    %c0_39 = arith.constant 0 : index
    %c0_40 = arith.constant 0 : index
    %c0_41 = arith.constant 0 : index
    %73 = vector.load %arg5[%c0_37, %c1_38, %c0_39, %c0_40, %c0_41] : memref<1x2x2x32x16xbf16, #tpu.memory_space<vmem>>, vector<1x1x1x32x16xbf16>
    %74 = vector.shape_cast %73 : vector<1x1x1x32x16xbf16> to vector<32x16xbf16>
    %75 = vector.shape_cast %72 : vector<32x16xbf16> to vector<1x1x1x32x16xbf16>
    tpu.vector_store %arg5[%c0_37, %c1_38, %c0_39, %c0_40, %c0_41], %75 {strides = array<i32>} : memref<1x2x2x32x16xbf16, #tpu.memory_space<vmem>>, vector<1x1x1x32x16xbf16>,
    %76 = tpu.concatenate %21, %22, %24, %25 in 3 : vector<1x4x4x64xbf16>, vector<1x4x4x64xbf16>, vector<1x4x4x64xbf16>, vector<1x4x4x64xbf16> -> vector<1x4x4x256xbf16>
    %77 = vector.shape_cast %76 : vector<1x4x4x256xbf16> to vector<16x256xbf16>
    %c3 = arith.constant 3 : index
    %c0_42 = arith.constant 0 : index
    %c0_43 = arith.constant 0 : index
    %78 = vector.load %arg4[%c3, %c0_42, %c0_43] : memref<4x32x256xbf16, #tpu.memory_space<vmem>>, vector<1x32x256xbf16>
    %79 = vector.shape_cast %78 : vector<1x32x256xbf16> to vector<32x256xbf16>
    %cst_44 = arith.constant dense<0.000000e+00> : vector<32x16xf32>
    %80 = tpu.matmul %79, %77, %cst_44 {dimension_numbers = #tpu.dot_dimension_numbers<[1], [1], [0], [0], [0, 0, 1, 0], [], []>} : vector<32x256xbf16>, vector<16x256xbf16>, vector<32x16xf32> -> vector<32x16xf32>
    %cst_45 = arith.constant dense<0.000000e+00> : vector<32xf32>
    %81 = vector.multi_reduction <add>, %80, %cst_45 [1] : vector<32x16xf32> to vector<32xf32>
    %82 = vector.shape_cast %81 : vector<32xf32> to vector<32x1xf32>
    %83 = arith.addf %67, %82 : vector<32x1xf32>
    %84 = arith.mulf %80, %80 : vector<32x16xf32>
    %cst_46 = arith.constant dense<0.000000e+00> : vector<32xf32>
    %85 = vector.multi_reduction <add>, %84, %cst_46 [1] : vector<32x16xf32> to vector<32xf32>
    %86 = vector.shape_cast %85 : vector<32xf32> to vector<32x1xf32>
    %87 = arith.addf %71, %86 : vector<32x1xf32>
    %88 = arith.truncf %80 : vector<32x16xf32> to vector<32x16xbf16>
    %c0_47 = arith.constant 0 : index
    %c1_48 = arith.constant 1 : index
    %c1_49 = arith.constant 1 : index
    %c0_50 = arith.constant 0 : index
    %c0_51 = arith.constant 0 : index
    %89 = vector.load %arg5[%c0_47, %c1_48, %c1_49, %c0_50, %c0_51] : memref<1x2x2x32x16xbf16, #tpu.memory_space<vmem>>, vector<1x1x1x32x16xbf16>
    %90 = vector.shape_cast %89 : vector<1x1x1x32x16xbf16> to vector<32x16xbf16>
    %91 = vector.shape_cast %88 : vector<32x16xbf16> to vector<1x1x1x32x16xbf16>
    tpu.vector_store %arg5[%c0_47, %c1_48, %c1_49, %c0_50, %c0_51], %91 {strides = array<i32>} : memref<1x2x2x32x16xbf16, #tpu.memory_space<vmem>>, vector<1x1x1x32x16xbf16>,
    %92 = vector.shape_cast %83 : vector<32x1xf32> to vector<1x32x1xf32>
    %c0_52 = arith.constant 0 : index
    %c0_53 = arith.constant 0 : index
    %c0_54 = arith.constant 0 : index
    %93 = vector.load %arg6[%c0_52, %c0_53, %c0_54] : memref<1x32x1xf32, #tpu.memory_space<vmem>>, vector<1x32x1xf32>
    tpu.vector_store %arg6[%c0_52, %c0_53, %c0_54], %92 {strides = array<i32>} : memref<1x32x1xf32, #tpu.memory_space<vmem>>, vector<1x32x1xf32>,
    %94 = vector.shape_cast %87 : vector<32x1xf32> to vector<1x32x1xf32>
    %c0_55 = arith.constant 0 : index
    %c0_56 = arith.constant 0 : index
    %c0_57 = arith.constant 0 : index
    %95 = vector.load %arg7[%c0_55, %c0_56, %c0_57] : memref<1x32x1xf32, #tpu.memory_space<vmem>>, vector<1x32x1xf32>
    tpu.vector_store %arg7[%c0_55, %c0_56, %c0_57], %94 {strides = array<i32>} : memref<1x32x1xf32, #tpu.memory_space<vmem>>, vector<1x32x1xf32>,
    return
  }
  func.func @transform_0(%arg0: i32) -> (i32, i32, i32, i32) {
    %c0_i32 = arith.constant 0 : i32
    %c0_i32_0 = arith.constant 0 : i32
    %c0_i32_1 = arith.constant 0 : i32
    %c0_i32_2 = arith.constant 0 : i32
    return %arg0, %c0_i32, %c0_i32_0, %c0_i32_1 : i32, i32, i32, i32
  }
  func.func @transform_1(%arg0: i32) -> (i32, i32) {
    %c0_i32 = arith.constant 0 : i32
    %c0_i32_0 = arith.constant 0 : i32
    %c0_i32_1 = arith.constant 0 : i32
    return %c0_i32, %c0_i32_0 : i32, i32
  }
  func.func @transform_2(%arg0: i32) -> (i32, i32) {
    %c0_i32 = arith.constant 0 : i32
    %c0_i32_0 = arith.constant 0 : i32
    %c0_i32_1 = arith.constant 0 : i32
    return %c0_i32, %c0_i32_0 : i32, i32
  }
  func.func @transform_3(%arg0: i32) -> (i32, i32, i32) {
    %c0_i32 = arith.constant 0 : i32
    %c0_i32_0 = arith.constant 0 : i32
    %c0_i32_1 = arith.constant 0 : i32
    %c0_i32_2 = arith.constant 0 : i32
    return %c0_i32, %c0_i32_0, %c0_i32_1 : i32, i32, i32
  }
  func.func @transform_4(%arg0: i32) -> (i32, i32, i32, i32, i32) {
    %c0_i32 = arith.constant 0 : i32
    %c0_i32_0 = arith.constant 0 : i32
    %c0_i32_1 = arith.constant 0 : i32
    %c0_i32_2 = arith.constant 0 : i32
    %c0_i32_3 = arith.constant 0 : i32
    return %arg0, %c0_i32, %c0_i32_0, %c0_i32_1, %c0_i32_2 : i32, i32, i32, i32, i32
  }
  func.func @transform_5(%arg0: i32) -> (i32, i32, i32) {
    %c0_i32 = arith.constant 0 : i32
    %c0_i32_0 = arith.constant 0 : i32
    %c0_i32_1 = arith.constant 0 : i32
    return %arg0, %c0_i32, %c0_i32_0 : i32, i32, i32
  }
  func.func @transform_6(%arg0: i32) -> (i32, i32, i32) {
    %c0_i32 = arith.constant 0 : i32
    %c0_i32_0 = arith.constant 0 : i32
    %c0_i32_1 = arith.constant 0 : i32
    return %arg0, %c0_i32, %c0_i32_0 : i32, i32, i32
  }
}

module attributes {stable_mosaic.version = 11 : i64} {
  func.func @kernel(%arg0: i32, %arg1: memref<1x8x8x32xbf16, #tpu.memory_space<vmem>>, %arg2: memref<1x32xf32, #tpu.memory_space<vmem>>, %arg3: memref<1x32xf32, #tpu.memory_space<vmem>>, %arg4: memref<4x16x128xbf16, #tpu.memory_space<vmem>>, %arg5: memref<1x2x2x16x64xbf16, #tpu.memory_space<vmem>>, %arg6: memref<1x16x1xf32, #tpu.memory_space<vmem>>, %arg7: memref<1x16x1xf32, #tpu.memory_space<vmem>>) attributes {dimension_semantics = [#tpu.dimension_semantics<parallel>], iteration_bounds = array<i64: 2>, scalar_prefetch = 0 : i64, scratch_operands = 0 : i64, tpu.core_type = #tpu.core_type<tc>, window_params = [{transform_indices = @transform_0, window_bounds = array<i64: 1, 8, 8, 32>}, {pipeline_mode = #tpu.pipeline_mode<synchronous>, transform_indices = @transform_1, window_bounds = array<i64: 1, 32>}, {pipeline_mode = #tpu.pipeline_mode<synchronous>, transform_indices = @transform_2, window_bounds = array<i64: 1, 32>}, {pipeline_mode = #tpu.pipeline_mode<synchronous>, transform_indices = @transform_3, window_bounds = array<i64: 4, 16, 128>}, {transform_indices = @transform_4, window_bounds = array<i64: 1, 2, 2, 16, 64>}, {transform_indices = @transform_5, window_bounds = array<i64: 1, 16, 1>}, {transform_indices = @transform_6, window_bounds = array<i64: 1, 16, 1>}]} {
    %c0 = arith.constant 0 : index
    %c0_0 = arith.constant 0 : index
    %c0_1 = arith.constant 0 : index
    %c0_2 = arith.constant 0 : index
    %0 = vector.load %arg1[%c0, %c0_0, %c0_1, %c0_2] : memref<1x8x8x32xbf16, #tpu.memory_space<vmem>>, vector<1x8x8x32xbf16>
    %1 = arith.extf %0 : vector<1x8x8x32xbf16> to vector<1x8x8x32xf32>
    %c0_3 = arith.constant 0 : index
    %c0_4 = arith.constant 0 : index
    %2 = vector.load %arg2[%c0_3, %c0_4] : memref<1x32xf32, #tpu.memory_space<vmem>>, vector<1x32xf32>
    %3 = vector.shape_cast %2 : vector<1x32xf32> to vector<1x1x1x32xf32>
    %4 = vector.broadcast %3 : vector<1x1x1x32xf32> to vector<1x8x8x32xf32>
    %5 = arith.mulf %1, %4 : vector<1x8x8x32xf32>
    %c0_5 = arith.constant 0 : index
    %c0_6 = arith.constant 0 : index
    %6 = vector.load %arg3[%c0_5, %c0_6] : memref<1x32xf32, #tpu.memory_space<vmem>>, vector<1x32xf32>
    %7 = vector.shape_cast %6 : vector<1x32xf32> to vector<1x1x1x32xf32>
    %8 = vector.broadcast %7 : vector<1x1x1x32xf32> to vector<1x8x8x32xf32>
    %9 = arith.addf %5, %8 : vector<1x8x8x32xf32>
    %cst = arith.constant 0.000000e+00 : f32
    %10 = vector.broadcast %cst : f32 to vector<1x8x8x32xf32>
    %11 = arith.maximumf %9, %10 : vector<1x8x8x32xf32>
    %cst_7 = arith.constant 0.000000e+00 : f32
    %12 = vector.broadcast %cst_7 : f32 to vector<1x1x8x32xf32>
    %13 = tpu.concatenate %12, %11, %12 in 1 : vector<1x1x8x32xf32>, vector<1x8x8x32xf32>, vector<1x1x8x32xf32> -> vector<1x10x8x32xf32>
    %cst_8 = arith.constant 0.000000e+00 : f32
    %14 = vector.broadcast %cst_8 : f32 to vector<1x10x1x32xf32>
    %15 = tpu.concatenate %14, %13, %14 in 2 : vector<1x10x1x32xf32>, vector<1x10x8x32xf32>, vector<1x10x1x32xf32> -> vector<1x10x10x32xf32>
    %16 = arith.truncf %15 : vector<1x10x10x32xf32> to vector<1x10x10x32xbf16>
    %17 = vector.extract_strided_slice %16 {offsets = [0, 0, 0, 0], sizes = [1, 8, 8, 32], strides = [1, 1, 1, 1]} : vector<1x10x10x32xbf16> to vector<1x8x8x32xbf16>
    %18 = vector.extract_strided_slice %16 {offsets = [0, 0, 1, 0], sizes = [1, 8, 8, 32], strides = [1, 1, 1, 1]} : vector<1x10x10x32xbf16> to vector<1x8x8x32xbf16>
    %19 = vector.extract_strided_slice %16 {offsets = [0, 0, 2, 0], sizes = [1, 8, 8, 32], strides = [1, 1, 1, 1]} : vector<1x10x10x32xbf16> to vector<1x8x8x32xbf16>
    %20 = vector.extract_strided_slice %16 {offsets = [0, 1, 0, 0], sizes = [1, 8, 8, 32], strides = [1, 1, 1, 1]} : vector<1x10x10x32xbf16> to vector<1x8x8x32xbf16>
    %21 = vector.extract_strided_slice %16 {offsets = [0, 1, 1, 0], sizes = [1, 8, 8, 32], strides = [1, 1, 1, 1]} : vector<1x10x10x32xbf16> to vector<1x8x8x32xbf16>
    %22 = vector.extract_strided_slice %16 {offsets = [0, 1, 2, 0], sizes = [1, 8, 8, 32], strides = [1, 1, 1, 1]} : vector<1x10x10x32xbf16> to vector<1x8x8x32xbf16>
    %23 = vector.extract_strided_slice %16 {offsets = [0, 2, 0, 0], sizes = [1, 8, 8, 32], strides = [1, 1, 1, 1]} : vector<1x10x10x32xbf16> to vector<1x8x8x32xbf16>
    %24 = vector.extract_strided_slice %16 {offsets = [0, 2, 1, 0], sizes = [1, 8, 8, 32], strides = [1, 1, 1, 1]} : vector<1x10x10x32xbf16> to vector<1x8x8x32xbf16>
    %25 = vector.extract_strided_slice %16 {offsets = [0, 2, 2, 0], sizes = [1, 8, 8, 32], strides = [1, 1, 1, 1]} : vector<1x10x10x32xbf16> to vector<1x8x8x32xbf16>
    %cst_9 = arith.constant 0.000000e+00 : f32
    %26 = vector.broadcast %cst_9 : f32 to vector<16x1xf32>
    %cst_10 = arith.constant 0.000000e+00 : f32
    %27 = vector.broadcast %cst_10 : f32 to vector<16x1xf32>
    %28 = tpu.concatenate %17, %18, %20, %21 in 3 : vector<1x8x8x32xbf16>, vector<1x8x8x32xbf16>, vector<1x8x8x32xbf16>, vector<1x8x8x32xbf16> -> vector<1x8x8x128xbf16>
    %29 = vector.shape_cast %28 : vector<1x8x8x128xbf16> to vector<64x128xbf16>
    %c0_11 = arith.constant 0 : index
    %c0_12 = arith.constant 0 : index
    %c0_13 = arith.constant 0 : index
    %30 = vector.load %arg4[%c0_11, %c0_12, %c0_13] : memref<4x16x128xbf16, #tpu.memory_space<vmem>>, vector<1x16x128xbf16>
    %31 = vector.shape_cast %30 : vector<1x16x128xbf16> to vector<16x128xbf16>
    %cst_14 = arith.constant dense<0.000000e+00> : vector<16x64xf32>
    %32 = tpu.matmul %31, %29, %cst_14 {dimension_numbers = #tpu.dot_dimension_numbers<[1], [1], [0], [0], [0, 0, 1, 0], [], []>} : vector<16x128xbf16>, vector<64x128xbf16>, vector<16x64xf32> -> vector<16x64xf32>
    %cst_15 = arith.constant dense<0.000000e+00> : vector<16xf32>
    %33 = vector.multi_reduction <add>, %32, %cst_15 [1] : vector<16x64xf32> to vector<16xf32>
    %34 = vector.shape_cast %33 : vector<16xf32> to vector<16x1xf32>
    %35 = arith.addf %26, %34 : vector<16x1xf32>
    %36 = arith.mulf %32, %32 : vector<16x64xf32>
    %cst_16 = arith.constant dense<0.000000e+00> : vector<16xf32>
    %37 = vector.multi_reduction <add>, %36, %cst_16 [1] : vector<16x64xf32> to vector<16xf32>
    %38 = vector.shape_cast %37 : vector<16xf32> to vector<16x1xf32>
    %39 = arith.addf %27, %38 : vector<16x1xf32>
    %40 = arith.truncf %32 : vector<16x64xf32> to vector<16x64xbf16>
    %c0_17 = arith.constant 0 : index
    %c0_18 = arith.constant 0 : index
    %c0_19 = arith.constant 0 : index
    %c0_20 = arith.constant 0 : index
    %c0_21 = arith.constant 0 : index
    %41 = vector.load %arg5[%c0_17, %c0_18, %c0_19, %c0_20, %c0_21] : memref<1x2x2x16x64xbf16, #tpu.memory_space<vmem>>, vector<1x1x1x16x64xbf16>
    %42 = vector.shape_cast %41 : vector<1x1x1x16x64xbf16> to vector<16x64xbf16>
    %43 = vector.shape_cast %40 : vector<16x64xbf16> to vector<1x1x1x16x64xbf16>
    tpu.vector_store %arg5[%c0_17, %c0_18, %c0_19, %c0_20, %c0_21], %43 {strides = array<i32>} : memref<1x2x2x16x64xbf16, #tpu.memory_space<vmem>>, vector<1x1x1x16x64xbf16>,
    %44 = tpu.concatenate %18, %19, %21, %22 in 3 : vector<1x8x8x32xbf16>, vector<1x8x8x32xbf16>, vector<1x8x8x32xbf16>, vector<1x8x8x32xbf16> -> vector<1x8x8x128xbf16>
    %45 = vector.shape_cast %44 : vector<1x8x8x128xbf16> to vector<64x128xbf16>
    %c1 = arith.constant 1 : index
    %c0_22 = arith.constant 0 : index
    %c0_23 = arith.constant 0 : index
    %46 = vector.load %arg4[%c1, %c0_22, %c0_23] : memref<4x16x128xbf16, #tpu.memory_space<vmem>>, vector<1x16x128xbf16>
    %47 = vector.shape_cast %46 : vector<1x16x128xbf16> to vector<16x128xbf16>
    %cst_24 = arith.constant dense<0.000000e+00> : vector<16x64xf32>
    %48 = tpu.matmul %47, %45, %cst_24 {dimension_numbers = #tpu.dot_dimension_numbers<[1], [1], [0], [0], [0, 0, 1, 0], [], []>} : vector<16x128xbf16>, vector<64x128xbf16>, vector<16x64xf32> -> vector<16x64xf32>
    %cst_25 = arith.constant dense<0.000000e+00> : vector<16xf32>
    %49 = vector.multi_reduction <add>, %48, %cst_25 [1] : vector<16x64xf32> to vector<16xf32>
    %50 = vector.shape_cast %49 : vector<16xf32> to vector<16x1xf32>
    %51 = arith.addf %35, %50 : vector<16x1xf32>
    %52 = arith.mulf %48, %48 : vector<16x64xf32>
    %cst_26 = arith.constant dense<0.000000e+00> : vector<16xf32>
    %53 = vector.multi_reduction <add>, %52, %cst_26 [1] : vector<16x64xf32> to vector<16xf32>
    %54 = vector.shape_cast %53 : vector<16xf32> to vector<16x1xf32>
    %55 = arith.addf %39, %54 : vector<16x1xf32>
    %56 = arith.truncf %48 : vector<16x64xf32> to vector<16x64xbf16>
    %c0_27 = arith.constant 0 : index
    %c0_28 = arith.constant 0 : index
    %c1_29 = arith.constant 1 : index
    %c0_30 = arith.constant 0 : index
    %c0_31 = arith.constant 0 : index
    %57 = vector.load %arg5[%c0_27, %c0_28, %c1_29, %c0_30, %c0_31] : memref<1x2x2x16x64xbf16, #tpu.memory_space<vmem>>, vector<1x1x1x16x64xbf16>
    %58 = vector.shape_cast %57 : vector<1x1x1x16x64xbf16> to vector<16x64xbf16>
    %59 = vector.shape_cast %56 : vector<16x64xbf16> to vector<1x1x1x16x64xbf16>
    tpu.vector_store %arg5[%c0_27, %c0_28, %c1_29, %c0_30, %c0_31], %59 {strides = array<i32>} : memref<1x2x2x16x64xbf16, #tpu.memory_space<vmem>>, vector<1x1x1x16x64xbf16>,
    %60 = tpu.concatenate %20, %21, %23, %24 in 3 : vector<1x8x8x32xbf16>, vector<1x8x8x32xbf16>, vector<1x8x8x32xbf16>, vector<1x8x8x32xbf16> -> vector<1x8x8x128xbf16>
    %61 = vector.shape_cast %60 : vector<1x8x8x128xbf16> to vector<64x128xbf16>
    %c2 = arith.constant 2 : index
    %c0_32 = arith.constant 0 : index
    %c0_33 = arith.constant 0 : index
    %62 = vector.load %arg4[%c2, %c0_32, %c0_33] : memref<4x16x128xbf16, #tpu.memory_space<vmem>>, vector<1x16x128xbf16>
    %63 = vector.shape_cast %62 : vector<1x16x128xbf16> to vector<16x128xbf16>
    %cst_34 = arith.constant dense<0.000000e+00> : vector<16x64xf32>
    %64 = tpu.matmul %63, %61, %cst_34 {dimension_numbers = #tpu.dot_dimension_numbers<[1], [1], [0], [0], [0, 0, 1, 0], [], []>} : vector<16x128xbf16>, vector<64x128xbf16>, vector<16x64xf32> -> vector<16x64xf32>
    %cst_35 = arith.constant dense<0.000000e+00> : vector<16xf32>
    %65 = vector.multi_reduction <add>, %64, %cst_35 [1] : vector<16x64xf32> to vector<16xf32>
    %66 = vector.shape_cast %65 : vector<16xf32> to vector<16x1xf32>
    %67 = arith.addf %51, %66 : vector<16x1xf32>
    %68 = arith.mulf %64, %64 : vector<16x64xf32>
    %cst_36 = arith.constant dense<0.000000e+00> : vector<16xf32>
    %69 = vector.multi_reduction <add>, %68, %cst_36 [1] : vector<16x64xf32> to vector<16xf32>
    %70 = vector.shape_cast %69 : vector<16xf32> to vector<16x1xf32>
    %71 = arith.addf %55, %70 : vector<16x1xf32>
    %72 = arith.truncf %64 : vector<16x64xf32> to vector<16x64xbf16>
    %c0_37 = arith.constant 0 : index
    %c1_38 = arith.constant 1 : index
    %c0_39 = arith.constant 0 : index
    %c0_40 = arith.constant 0 : index
    %c0_41 = arith.constant 0 : index
    %73 = vector.load %arg5[%c0_37, %c1_38, %c0_39, %c0_40, %c0_41] : memref<1x2x2x16x64xbf16, #tpu.memory_space<vmem>>, vector<1x1x1x16x64xbf16>
    %74 = vector.shape_cast %73 : vector<1x1x1x16x64xbf16> to vector<16x64xbf16>
    %75 = vector.shape_cast %72 : vector<16x64xbf16> to vector<1x1x1x16x64xbf16>
    tpu.vector_store %arg5[%c0_37, %c1_38, %c0_39, %c0_40, %c0_41], %75 {strides = array<i32>} : memref<1x2x2x16x64xbf16, #tpu.memory_space<vmem>>, vector<1x1x1x16x64xbf16>,
    %76 = tpu.concatenate %21, %22, %24, %25 in 3 : vector<1x8x8x32xbf16>, vector<1x8x8x32xbf16>, vector<1x8x8x32xbf16>, vector<1x8x8x32xbf16> -> vector<1x8x8x128xbf16>
    %77 = vector.shape_cast %76 : vector<1x8x8x128xbf16> to vector<64x128xbf16>
    %c3 = arith.constant 3 : index
    %c0_42 = arith.constant 0 : index
    %c0_43 = arith.constant 0 : index
    %78 = vector.load %arg4[%c3, %c0_42, %c0_43] : memref<4x16x128xbf16, #tpu.memory_space<vmem>>, vector<1x16x128xbf16>
    %79 = vector.shape_cast %78 : vector<1x16x128xbf16> to vector<16x128xbf16>
    %cst_44 = arith.constant dense<0.000000e+00> : vector<16x64xf32>
    %80 = tpu.matmul %79, %77, %cst_44 {dimension_numbers = #tpu.dot_dimension_numbers<[1], [1], [0], [0], [0, 0, 1, 0], [], []>} : vector<16x128xbf16>, vector<64x128xbf16>, vector<16x64xf32> -> vector<16x64xf32>
    %cst_45 = arith.constant dense<0.000000e+00> : vector<16xf32>
    %81 = vector.multi_reduction <add>, %80, %cst_45 [1] : vector<16x64xf32> to vector<16xf32>
    %82 = vector.shape_cast %81 : vector<16xf32> to vector<16x1xf32>
    %83 = arith.addf %67, %82 : vector<16x1xf32>
    %84 = arith.mulf %80, %80 : vector<16x64xf32>
    %cst_46 = arith.constant dense<0.000000e+00> : vector<16xf32>
    %85 = vector.multi_reduction <add>, %84, %cst_46 [1] : vector<16x64xf32> to vector<16xf32>
    %86 = vector.shape_cast %85 : vector<16xf32> to vector<16x1xf32>
    %87 = arith.addf %71, %86 : vector<16x1xf32>
    %88 = arith.truncf %80 : vector<16x64xf32> to vector<16x64xbf16>
    %c0_47 = arith.constant 0 : index
    %c1_48 = arith.constant 1 : index
    %c1_49 = arith.constant 1 : index
    %c0_50 = arith.constant 0 : index
    %c0_51 = arith.constant 0 : index
    %89 = vector.load %arg5[%c0_47, %c1_48, %c1_49, %c0_50, %c0_51] : memref<1x2x2x16x64xbf16, #tpu.memory_space<vmem>>, vector<1x1x1x16x64xbf16>
    %90 = vector.shape_cast %89 : vector<1x1x1x16x64xbf16> to vector<16x64xbf16>
    %91 = vector.shape_cast %88 : vector<16x64xbf16> to vector<1x1x1x16x64xbf16>
    tpu.vector_store %arg5[%c0_47, %c1_48, %c1_49, %c0_50, %c0_51], %91 {strides = array<i32>} : memref<1x2x2x16x64xbf16, #tpu.memory_space<vmem>>, vector<1x1x1x16x64xbf16>,
    %92 = vector.shape_cast %83 : vector<16x1xf32> to vector<1x16x1xf32>
    %c0_52 = arith.constant 0 : index
    %c0_53 = arith.constant 0 : index
    %c0_54 = arith.constant 0 : index
    %93 = vector.load %arg6[%c0_52, %c0_53, %c0_54] : memref<1x16x1xf32, #tpu.memory_space<vmem>>, vector<1x16x1xf32>
    tpu.vector_store %arg6[%c0_52, %c0_53, %c0_54], %92 {strides = array<i32>} : memref<1x16x1xf32, #tpu.memory_space<vmem>>, vector<1x16x1xf32>,
    %94 = vector.shape_cast %87 : vector<16x1xf32> to vector<1x16x1xf32>
    %c0_55 = arith.constant 0 : index
    %c0_56 = arith.constant 0 : index
    %c0_57 = arith.constant 0 : index
    %95 = vector.load %arg7[%c0_55, %c0_56, %c0_57] : memref<1x16x1xf32, #tpu.memory_space<vmem>>, vector<1x16x1xf32>
    tpu.vector_store %arg7[%c0_55, %c0_56, %c0_57], %94 {strides = array<i32>} : memref<1x16x1xf32, #tpu.memory_space<vmem>>, vector<1x16x1xf32>,
    return
  }
  func.func @transform_0(%arg0: i32) -> (i32, i32, i32, i32) {
    %c0_i32 = arith.constant 0 : i32
    %c0_i32_0 = arith.constant 0 : i32
    %c0_i32_1 = arith.constant 0 : i32
    %c0_i32_2 = arith.constant 0 : i32
    return %arg0, %c0_i32, %c0_i32_0, %c0_i32_1 : i32, i32, i32, i32
  }
  func.func @transform_1(%arg0: i32) -> (i32, i32) {
    %c0_i32 = arith.constant 0 : i32
    %c0_i32_0 = arith.constant 0 : i32
    %c0_i32_1 = arith.constant 0 : i32
    return %c0_i32, %c0_i32_0 : i32, i32
  }
  func.func @transform_2(%arg0: i32) -> (i32, i32) {
    %c0_i32 = arith.constant 0 : i32
    %c0_i32_0 = arith.constant 0 : i32
    %c0_i32_1 = arith.constant 0 : i32
    return %c0_i32, %c0_i32_0 : i32, i32
  }
  func.func @transform_3(%arg0: i32) -> (i32, i32, i32) {
    %c0_i32 = arith.constant 0 : i32
    %c0_i32_0 = arith.constant 0 : i32
    %c0_i32_1 = arith.constant 0 : i32
    %c0_i32_2 = arith.constant 0 : i32
    return %c0_i32, %c0_i32_0, %c0_i32_1 : i32, i32, i32
  }
  func.func @transform_4(%arg0: i32) -> (i32, i32, i32, i32, i32) {
    %c0_i32 = arith.constant 0 : i32
    %c0_i32_0 = arith.constant 0 : i32
    %c0_i32_1 = arith.constant 0 : i32
    %c0_i32_2 = arith.constant 0 : i32
    %c0_i32_3 = arith.constant 0 : i32
    return %arg0, %c0_i32, %c0_i32_0, %c0_i32_1, %c0_i32_2 : i32, i32, i32, i32, i32
  }
  func.func @transform_5(%arg0: i32) -> (i32, i32, i32) {
    %c0_i32 = arith.constant 0 : i32
    %c0_i32_0 = arith.constant 0 : i32
    %c0_i32_1 = arith.constant 0 : i32
    return %arg0, %c0_i32, %c0_i32_0 : i32, i32, i32
  }
  func.func @transform_6(%arg0: i32) -> (i32, i32, i32) {
    %c0_i32 = arith.constant 0 : i32
    %c0_i32_0 = arith.constant 0 : i32
    %c0_i32_1 = arith.constant 0 : i32
    return %arg0, %c0_i32, %c0_i32_0 : i32, i32, i32
  }
}

module attributes {stable_mosaic.version = 11 : i64} {
  func.func @kernel(%arg0: i32, %arg1: memref<1x16x16x16xbf16, #tpu.memory_space<vmem>>, %arg2: memref<1x16xf32, #tpu.memory_space<vmem>>, %arg3: memref<1x16xf32, #tpu.memory_space<vmem>>, %arg4: memref<4x8x64xbf16, #tpu.memory_space<vmem>>, %arg5: memref<1x2x2x8x256xbf16, #tpu.memory_space<vmem>>, %arg6: memref<1x8x1xf32, #tpu.memory_space<vmem>>, %arg7: memref<1x8x1xf32, #tpu.memory_space<vmem>>) attributes {dimension_semantics = [#tpu.dimension_semantics<parallel>], iteration_bounds = array<i64: 2>, scalar_prefetch = 0 : i64, scratch_operands = 0 : i64, tpu.core_type = #tpu.core_type<tc>, window_params = [{transform_indices = @transform_0, window_bounds = array<i64: 1, 16, 16, 16>}, {pipeline_mode = #tpu.pipeline_mode<synchronous>, transform_indices = @transform_1, window_bounds = array<i64: 1, 16>}, {pipeline_mode = #tpu.pipeline_mode<synchronous>, transform_indices = @transform_2, window_bounds = array<i64: 1, 16>}, {pipeline_mode = #tpu.pipeline_mode<synchronous>, transform_indices = @transform_3, window_bounds = array<i64: 4, 8, 64>}, {transform_indices = @transform_4, window_bounds = array<i64: 1, 2, 2, 8, 256>}, {transform_indices = @transform_5, window_bounds = array<i64: 1, 8, 1>}, {transform_indices = @transform_6, window_bounds = array<i64: 1, 8, 1>}]} {
    %c0 = arith.constant 0 : index
    %c0_0 = arith.constant 0 : index
    %c0_1 = arith.constant 0 : index
    %c0_2 = arith.constant 0 : index
    %0 = vector.load %arg1[%c0, %c0_0, %c0_1, %c0_2] : memref<1x16x16x16xbf16, #tpu.memory_space<vmem>>, vector<1x16x16x16xbf16>
    %1 = arith.extf %0 : vector<1x16x16x16xbf16> to vector<1x16x16x16xf32>
    %c0_3 = arith.constant 0 : index
    %c0_4 = arith.constant 0 : index
    %2 = vector.load %arg2[%c0_3, %c0_4] : memref<1x16xf32, #tpu.memory_space<vmem>>, vector<1x16xf32>
    %3 = vector.shape_cast %2 : vector<1x16xf32> to vector<1x1x1x16xf32>
    %4 = vector.broadcast %3 : vector<1x1x1x16xf32> to vector<1x16x16x16xf32>
    %5 = arith.mulf %1, %4 : vector<1x16x16x16xf32>
    %c0_5 = arith.constant 0 : index
    %c0_6 = arith.constant 0 : index
    %6 = vector.load %arg3[%c0_5, %c0_6] : memref<1x16xf32, #tpu.memory_space<vmem>>, vector<1x16xf32>
    %7 = vector.shape_cast %6 : vector<1x16xf32> to vector<1x1x1x16xf32>
    %8 = vector.broadcast %7 : vector<1x1x1x16xf32> to vector<1x16x16x16xf32>
    %9 = arith.addf %5, %8 : vector<1x16x16x16xf32>
    %cst = arith.constant 0.000000e+00 : f32
    %10 = vector.broadcast %cst : f32 to vector<1x16x16x16xf32>
    %11 = arith.maximumf %9, %10 : vector<1x16x16x16xf32>
    %cst_7 = arith.constant 0.000000e+00 : f32
    %12 = vector.broadcast %cst_7 : f32 to vector<1x1x16x16xf32>
    %13 = tpu.concatenate %12, %11, %12 in 1 : vector<1x1x16x16xf32>, vector<1x16x16x16xf32>, vector<1x1x16x16xf32> -> vector<1x18x16x16xf32>
    %cst_8 = arith.constant 0.000000e+00 : f32
    %14 = vector.broadcast %cst_8 : f32 to vector<1x18x1x16xf32>
    %15 = tpu.concatenate %14, %13, %14 in 2 : vector<1x18x1x16xf32>, vector<1x18x16x16xf32>, vector<1x18x1x16xf32> -> vector<1x18x18x16xf32>
    %16 = arith.truncf %15 : vector<1x18x18x16xf32> to vector<1x18x18x16xbf16>
    %17 = vector.extract_strided_slice %16 {offsets = [0, 0, 0, 0], sizes = [1, 16, 16, 16], strides = [1, 1, 1, 1]} : vector<1x18x18x16xbf16> to vector<1x16x16x16xbf16>
    %18 = vector.extract_strided_slice %16 {offsets = [0, 0, 1, 0], sizes = [1, 16, 16, 16], strides = [1, 1, 1, 1]} : vector<1x18x18x16xbf16> to vector<1x16x16x16xbf16>
    %19 = vector.extract_strided_slice %16 {offsets = [0, 0, 2, 0], sizes = [1, 16, 16, 16], strides = [1, 1, 1, 1]} : vector<1x18x18x16xbf16> to vector<1x16x16x16xbf16>
    %20 = vector.extract_strided_slice %16 {offsets = [0, 1, 0, 0], sizes = [1, 16, 16, 16], strides = [1, 1, 1, 1]} : vector<1x18x18x16xbf16> to vector<1x16x16x16xbf16>
    %21 = vector.extract_strided_slice %16 {offsets = [0, 1, 1, 0], sizes = [1, 16, 16, 16], strides = [1, 1, 1, 1]} : vector<1x18x18x16xbf16> to vector<1x16x16x16xbf16>
    %22 = vector.extract_strided_slice %16 {offsets = [0, 1, 2, 0], sizes = [1, 16, 16, 16], strides = [1, 1, 1, 1]} : vector<1x18x18x16xbf16> to vector<1x16x16x16xbf16>
    %23 = vector.extract_strided_slice %16 {offsets = [0, 2, 0, 0], sizes = [1, 16, 16, 16], strides = [1, 1, 1, 1]} : vector<1x18x18x16xbf16> to vector<1x16x16x16xbf16>
    %24 = vector.extract_strided_slice %16 {offsets = [0, 2, 1, 0], sizes = [1, 16, 16, 16], strides = [1, 1, 1, 1]} : vector<1x18x18x16xbf16> to vector<1x16x16x16xbf16>
    %25 = vector.extract_strided_slice %16 {offsets = [0, 2, 2, 0], sizes = [1, 16, 16, 16], strides = [1, 1, 1, 1]} : vector<1x18x18x16xbf16> to vector<1x16x16x16xbf16>
    %cst_9 = arith.constant 0.000000e+00 : f32
    %26 = vector.broadcast %cst_9 : f32 to vector<8x1xf32>
    %cst_10 = arith.constant 0.000000e+00 : f32
    %27 = vector.broadcast %cst_10 : f32 to vector<8x1xf32>
    %28 = tpu.concatenate %17, %18, %20, %21 in 3 : vector<1x16x16x16xbf16>, vector<1x16x16x16xbf16>, vector<1x16x16x16xbf16>, vector<1x16x16x16xbf16> -> vector<1x16x16x64xbf16>
    %29 = vector.shape_cast %28 : vector<1x16x16x64xbf16> to vector<256x64xbf16>
    %c0_11 = arith.constant 0 : index
    %c0_12 = arith.constant 0 : index
    %c0_13 = arith.constant 0 : index
    %30 = vector.load %arg4[%c0_11, %c0_12, %c0_13] : memref<4x8x64xbf16, #tpu.memory_space<vmem>>, vector<1x8x64xbf16>
    %31 = vector.shape_cast %30 : vector<1x8x64xbf16> to vector<8x64xbf16>
    %cst_14 = arith.constant dense<0.000000e+00> : vector<8x256xf32>
    %32 = tpu.matmul %31, %29, %cst_14 {dimension_numbers = #tpu.dot_dimension_numbers<[1], [1], [0], [0], [0, 0, 1, 0], [], []>} : vector<8x64xbf16>, vector<256x64xbf16>, vector<8x256xf32> -> vector<8x256xf32>
    %cst_15 = arith.constant dense<0.000000e+00> : vector<8xf32>
    %33 = vector.multi_reduction <add>, %32, %cst_15 [1] : vector<8x256xf32> to vector<8xf32>
    %34 = vector.shape_cast %33 : vector<8xf32> to vector<8x1xf32>
    %35 = arith.addf %26, %34 : vector<8x1xf32>
    %36 = arith.mulf %32, %32 : vector<8x256xf32>
    %cst_16 = arith.constant dense<0.000000e+00> : vector<8xf32>
    %37 = vector.multi_reduction <add>, %36, %cst_16 [1] : vector<8x256xf32> to vector<8xf32>
    %38 = vector.shape_cast %37 : vector<8xf32> to vector<8x1xf32>
    %39 = arith.addf %27, %38 : vector<8x1xf32>
    %40 = arith.truncf %32 : vector<8x256xf32> to vector<8x256xbf16>
    %c0_17 = arith.constant 0 : index
    %c0_18 = arith.constant 0 : index
    %c0_19 = arith.constant 0 : index
    %c0_20 = arith.constant 0 : index
    %c0_21 = arith.constant 0 : index
    %41 = vector.load %arg5[%c0_17, %c0_18, %c0_19, %c0_20, %c0_21] : memref<1x2x2x8x256xbf16, #tpu.memory_space<vmem>>, vector<1x1x1x8x256xbf16>
    %42 = vector.shape_cast %41 : vector<1x1x1x8x256xbf16> to vector<8x256xbf16>
    %43 = vector.shape_cast %40 : vector<8x256xbf16> to vector<1x1x1x8x256xbf16>
    tpu.vector_store %arg5[%c0_17, %c0_18, %c0_19, %c0_20, %c0_21], %43 {strides = array<i32>} : memref<1x2x2x8x256xbf16, #tpu.memory_space<vmem>>, vector<1x1x1x8x256xbf16>,
    %44 = tpu.concatenate %18, %19, %21, %22 in 3 : vector<1x16x16x16xbf16>, vector<1x16x16x16xbf16>, vector<1x16x16x16xbf16>, vector<1x16x16x16xbf16> -> vector<1x16x16x64xbf16>
    %45 = vector.shape_cast %44 : vector<1x16x16x64xbf16> to vector<256x64xbf16>
    %c1 = arith.constant 1 : index
    %c0_22 = arith.constant 0 : index
    %c0_23 = arith.constant 0 : index
    %46 = vector.load %arg4[%c1, %c0_22, %c0_23] : memref<4x8x64xbf16, #tpu.memory_space<vmem>>, vector<1x8x64xbf16>
    %47 = vector.shape_cast %46 : vector<1x8x64xbf16> to vector<8x64xbf16>
    %cst_24 = arith.constant dense<0.000000e+00> : vector<8x256xf32>
    %48 = tpu.matmul %47, %45, %cst_24 {dimension_numbers = #tpu.dot_dimension_numbers<[1], [1], [0], [0], [0, 0, 1, 0], [], []>} : vector<8x64xbf16>, vector<256x64xbf16>, vector<8x256xf32> -> vector<8x256xf32>
    %cst_25 = arith.constant dense<0.000000e+00> : vector<8xf32>
    %49 = vector.multi_reduction <add>, %48, %cst_25 [1] : vector<8x256xf32> to vector<8xf32>
    %50 = vector.shape_cast %49 : vector<8xf32> to vector<8x1xf32>
    %51 = arith.addf %35, %50 : vector<8x1xf32>
    %52 = arith.mulf %48, %48 : vector<8x256xf32>
    %cst_26 = arith.constant dense<0.000000e+00> : vector<8xf32>
    %53 = vector.multi_reduction <add>, %52, %cst_26 [1] : vector<8x256xf32> to vector<8xf32>
    %54 = vector.shape_cast %53 : vector<8xf32> to vector<8x1xf32>
    %55 = arith.addf %39, %54 : vector<8x1xf32>
    %56 = arith.truncf %48 : vector<8x256xf32> to vector<8x256xbf16>
    %c0_27 = arith.constant 0 : index
    %c0_28 = arith.constant 0 : index
    %c1_29 = arith.constant 1 : index
    %c0_30 = arith.constant 0 : index
    %c0_31 = arith.constant 0 : index
    %57 = vector.load %arg5[%c0_27, %c0_28, %c1_29, %c0_30, %c0_31] : memref<1x2x2x8x256xbf16, #tpu.memory_space<vmem>>, vector<1x1x1x8x256xbf16>
    %58 = vector.shape_cast %57 : vector<1x1x1x8x256xbf16> to vector<8x256xbf16>
    %59 = vector.shape_cast %56 : vector<8x256xbf16> to vector<1x1x1x8x256xbf16>
    tpu.vector_store %arg5[%c0_27, %c0_28, %c1_29, %c0_30, %c0_31], %59 {strides = array<i32>} : memref<1x2x2x8x256xbf16, #tpu.memory_space<vmem>>, vector<1x1x1x8x256xbf16>,
    %60 = tpu.concatenate %20, %21, %23, %24 in 3 : vector<1x16x16x16xbf16>, vector<1x16x16x16xbf16>, vector<1x16x16x16xbf16>, vector<1x16x16x16xbf16> -> vector<1x16x16x64xbf16>
    %61 = vector.shape_cast %60 : vector<1x16x16x64xbf16> to vector<256x64xbf16>
    %c2 = arith.constant 2 : index
    %c0_32 = arith.constant 0 : index
    %c0_33 = arith.constant 0 : index
    %62 = vector.load %arg4[%c2, %c0_32, %c0_33] : memref<4x8x64xbf16, #tpu.memory_space<vmem>>, vector<1x8x64xbf16>
    %63 = vector.shape_cast %62 : vector<1x8x64xbf16> to vector<8x64xbf16>
    %cst_34 = arith.constant dense<0.000000e+00> : vector<8x256xf32>
    %64 = tpu.matmul %63, %61, %cst_34 {dimension_numbers = #tpu.dot_dimension_numbers<[1], [1], [0], [0], [0, 0, 1, 0], [], []>} : vector<8x64xbf16>, vector<256x64xbf16>, vector<8x256xf32> -> vector<8x256xf32>
    %cst_35 = arith.constant dense<0.000000e+00> : vector<8xf32>
    %65 = vector.multi_reduction <add>, %64, %cst_35 [1] : vector<8x256xf32> to vector<8xf32>
    %66 = vector.shape_cast %65 : vector<8xf32> to vector<8x1xf32>
    %67 = arith.addf %51, %66 : vector<8x1xf32>
    %68 = arith.mulf %64, %64 : vector<8x256xf32>
    %cst_36 = arith.constant dense<0.000000e+00> : vector<8xf32>
    %69 = vector.multi_reduction <add>, %68, %cst_36 [1] : vector<8x256xf32> to vector<8xf32>
    %70 = vector.shape_cast %69 : vector<8xf32> to vector<8x1xf32>
    %71 = arith.addf %55, %70 : vector<8x1xf32>
    %72 = arith.truncf %64 : vector<8x256xf32> to vector<8x256xbf16>
    %c0_37 = arith.constant 0 : index
    %c1_38 = arith.constant 1 : index
    %c0_39 = arith.constant 0 : index
    %c0_40 = arith.constant 0 : index
    %c0_41 = arith.constant 0 : index
    %73 = vector.load %arg5[%c0_37, %c1_38, %c0_39, %c0_40, %c0_41] : memref<1x2x2x8x256xbf16, #tpu.memory_space<vmem>>, vector<1x1x1x8x256xbf16>
    %74 = vector.shape_cast %73 : vector<1x1x1x8x256xbf16> to vector<8x256xbf16>
    %75 = vector.shape_cast %72 : vector<8x256xbf16> to vector<1x1x1x8x256xbf16>
    tpu.vector_store %arg5[%c0_37, %c1_38, %c0_39, %c0_40, %c0_41], %75 {strides = array<i32>} : memref<1x2x2x8x256xbf16, #tpu.memory_space<vmem>>, vector<1x1x1x8x256xbf16>,
    %76 = tpu.concatenate %21, %22, %24, %25 in 3 : vector<1x16x16x16xbf16>, vector<1x16x16x16xbf16>, vector<1x16x16x16xbf16>, vector<1x16x16x16xbf16> -> vector<1x16x16x64xbf16>
    %77 = vector.shape_cast %76 : vector<1x16x16x64xbf16> to vector<256x64xbf16>
    %c3 = arith.constant 3 : index
    %c0_42 = arith.constant 0 : index
    %c0_43 = arith.constant 0 : index
    %78 = vector.load %arg4[%c3, %c0_42, %c0_43] : memref<4x8x64xbf16, #tpu.memory_space<vmem>>, vector<1x8x64xbf16>
    %79 = vector.shape_cast %78 : vector<1x8x64xbf16> to vector<8x64xbf16>
    %cst_44 = arith.constant dense<0.000000e+00> : vector<8x256xf32>
    %80 = tpu.matmul %79, %77, %cst_44 {dimension_numbers = #tpu.dot_dimension_numbers<[1], [1], [0], [0], [0, 0, 1, 0], [], []>} : vector<8x64xbf16>, vector<256x64xbf16>, vector<8x256xf32> -> vector<8x256xf32>
    %cst_45 = arith.constant dense<0.000000e+00> : vector<8xf32>
    %81 = vector.multi_reduction <add>, %80, %cst_45 [1] : vector<8x256xf32> to vector<8xf32>
    %82 = vector.shape_cast %81 : vector<8xf32> to vector<8x1xf32>
    %83 = arith.addf %67, %82 : vector<8x1xf32>
    %84 = arith.mulf %80, %80 : vector<8x256xf32>
    %cst_46 = arith.constant dense<0.000000e+00> : vector<8xf32>
    %85 = vector.multi_reduction <add>, %84, %cst_46 [1] : vector<8x256xf32> to vector<8xf32>
    %86 = vector.shape_cast %85 : vector<8xf32> to vector<8x1xf32>
    %87 = arith.addf %71, %86 : vector<8x1xf32>
    %88 = arith.truncf %80 : vector<8x256xf32> to vector<8x256xbf16>
    %c0_47 = arith.constant 0 : index
    %c1_48 = arith.constant 1 : index
    %c1_49 = arith.constant 1 : index
    %c0_50 = arith.constant 0 : index
    %c0_51 = arith.constant 0 : index
    %89 = vector.load %arg5[%c0_47, %c1_48, %c1_49, %c0_50, %c0_51] : memref<1x2x2x8x256xbf16, #tpu.memory_space<vmem>>, vector<1x1x1x8x256xbf16>
    %90 = vector.shape_cast %89 : vector<1x1x1x8x256xbf16> to vector<8x256xbf16>
    %91 = vector.shape_cast %88 : vector<8x256xbf16> to vector<1x1x1x8x256xbf16>
    tpu.vector_store %arg5[%c0_47, %c1_48, %c1_49, %c0_50, %c0_51], %91 {strides = array<i32>} : memref<1x2x2x8x256xbf16, #tpu.memory_space<vmem>>, vector<1x1x1x8x256xbf16>,
    %92 = vector.shape_cast %83 : vector<8x1xf32> to vector<1x8x1xf32>
    %c0_52 = arith.constant 0 : index
    %c0_53 = arith.constant 0 : index
    %c0_54 = arith.constant 0 : index
    %93 = vector.load %arg6[%c0_52, %c0_53, %c0_54] : memref<1x8x1xf32, #tpu.memory_space<vmem>>, vector<1x8x1xf32>
    tpu.vector_store %arg6[%c0_52, %c0_53, %c0_54], %92 {strides = array<i32>} : memref<1x8x1xf32, #tpu.memory_space<vmem>>, vector<1x8x1xf32>,
    %94 = vector.shape_cast %87 : vector<8x1xf32> to vector<1x8x1xf32>
    %c0_55 = arith.constant 0 : index
    %c0_56 = arith.constant 0 : index
    %c0_57 = arith.constant 0 : index
    %95 = vector.load %arg7[%c0_55, %c0_56, %c0_57] : memref<1x8x1xf32, #tpu.memory_space<vmem>>, vector<1x8x1xf32>
    tpu.vector_store %arg7[%c0_55, %c0_56, %c0_57], %94 {strides = array<i32>} : memref<1x8x1xf32, #tpu.memory_space<vmem>>, vector<1x8x1xf32>,
    return
  }
  func.func @transform_0(%arg0: i32) -> (i32, i32, i32, i32) {
    %c0_i32 = arith.constant 0 : i32
    %c0_i32_0 = arith.constant 0 : i32
    %c0_i32_1 = arith.constant 0 : i32
    %c0_i32_2 = arith.constant 0 : i32
    return %arg0, %c0_i32, %c0_i32_0, %c0_i32_1 : i32, i32, i32, i32
  }
  func.func @transform_1(%arg0: i32) -> (i32, i32) {
    %c0_i32 = arith.constant 0 : i32
    %c0_i32_0 = arith.constant 0 : i32
    %c0_i32_1 = arith.constant 0 : i32
    return %c0_i32, %c0_i32_0 : i32, i32
  }
  func.func @transform_2(%arg0: i32) -> (i32, i32) {
    %c0_i32 = arith.constant 0 : i32
    %c0_i32_0 = arith.constant 0 : i32
    %c0_i32_1 = arith.constant 0 : i32
    return %c0_i32, %c0_i32_0 : i32, i32
  }
  func.func @transform_3(%arg0: i32) -> (i32, i32, i32) {
    %c0_i32 = arith.constant 0 : i32
    %c0_i32_0 = arith.constant 0 : i32
    %c0_i32_1 = arith.constant 0 : i32
    %c0_i32_2 = arith.constant 0 : i32
    return %c0_i32, %c0_i32_0, %c0_i32_1 : i32, i32, i32
  }
  func.func @transform_4(%arg0: i32) -> (i32, i32, i32, i32, i32) {
    %c0_i32 = arith.constant 0 : i32
    %c0_i32_0 = arith.constant 0 : i32
    %c0_i32_1 = arith.constant 0 : i32
    %c0_i32_2 = arith.constant 0 : i32
    %c0_i32_3 = arith.constant 0 : i32
    return %arg0, %c0_i32, %c0_i32_0, %c0_i32_1, %c0_i32_2 : i32, i32, i32, i32, i32
  }
  func.func @transform_5(%arg0: i32) -> (i32, i32, i32) {
    %c0_i32 = arith.constant 0 : i32
    %c0_i32_0 = arith.constant 0 : i32
    %c0_i32_1 = arith.constant 0 : i32
    return %arg0, %c0_i32, %c0_i32_0 : i32, i32, i32
  }
  func.func @transform_6(%arg0: i32) -> (i32, i32, i32) {
    %c0_i32 = arith.constant 0 : i32
    %c0_i32_0 = arith.constant 0 : i32
    %c0_i32_1 = arith.constant 0 : i32
    return %arg0, %c0_i32, %c0_i32_0 : i32, i32, i32
  }
}

module attributes {stable_mosaic.version = 11 : i64} {
  func.func @kernel(%arg0: i32, %arg1: memref<1x32x32x8xbf16, #tpu.memory_space<vmem>>, %arg2: memref<1x8xf32, #tpu.memory_space<vmem>>, %arg3: memref<1x8xf32, #tpu.memory_space<vmem>>, %arg4: memref<4x3x32xbf16, #tpu.memory_space<vmem>>, %arg5: memref<1x2x2x3x1024xf32, #tpu.memory_space<vmem>>) attributes {dimension_semantics = [#tpu.dimension_semantics<parallel>], iteration_bounds = array<i64: 2>, scalar_prefetch = 0 : i64, scratch_operands = 0 : i64, tpu.core_type = #tpu.core_type<tc>, window_params = [{transform_indices = @transform_0, window_bounds = array<i64: 1, 32, 32, 8>}, {pipeline_mode = #tpu.pipeline_mode<synchronous>, transform_indices = @transform_1, window_bounds = array<i64: 1, 8>}, {pipeline_mode = #tpu.pipeline_mode<synchronous>, transform_indices = @transform_2, window_bounds = array<i64: 1, 8>}, {pipeline_mode = #tpu.pipeline_mode<synchronous>, transform_indices = @transform_3, window_bounds = array<i64: 4, 3, 32>}, {transform_indices = @transform_4, window_bounds = array<i64: 1, 2, 2, 3, 1024>}]} {
    %c0 = arith.constant 0 : index
    %c0_0 = arith.constant 0 : index
    %c0_1 = arith.constant 0 : index
    %c0_2 = arith.constant 0 : index
    %0 = vector.load %arg1[%c0, %c0_0, %c0_1, %c0_2] : memref<1x32x32x8xbf16, #tpu.memory_space<vmem>>, vector<1x32x32x8xbf16>
    %1 = arith.extf %0 : vector<1x32x32x8xbf16> to vector<1x32x32x8xf32>
    %c0_3 = arith.constant 0 : index
    %c0_4 = arith.constant 0 : index
    %2 = vector.load %arg2[%c0_3, %c0_4] : memref<1x8xf32, #tpu.memory_space<vmem>>, vector<1x8xf32>
    %3 = vector.shape_cast %2 : vector<1x8xf32> to vector<1x1x1x8xf32>
    %4 = vector.broadcast %3 : vector<1x1x1x8xf32> to vector<1x32x32x8xf32>
    %5 = arith.mulf %1, %4 : vector<1x32x32x8xf32>
    %c0_5 = arith.constant 0 : index
    %c0_6 = arith.constant 0 : index
    %6 = vector.load %arg3[%c0_5, %c0_6] : memref<1x8xf32, #tpu.memory_space<vmem>>, vector<1x8xf32>
    %7 = vector.shape_cast %6 : vector<1x8xf32> to vector<1x1x1x8xf32>
    %8 = vector.broadcast %7 : vector<1x1x1x8xf32> to vector<1x32x32x8xf32>
    %9 = arith.addf %5, %8 : vector<1x32x32x8xf32>
    %cst = arith.constant 0.000000e+00 : f32
    %10 = vector.broadcast %cst : f32 to vector<1x32x32x8xf32>
    %11 = arith.maximumf %9, %10 : vector<1x32x32x8xf32>
    %cst_7 = arith.constant 0.000000e+00 : f32
    %12 = vector.broadcast %cst_7 : f32 to vector<1x1x32x8xf32>
    %13 = tpu.concatenate %12, %11, %12 in 1 : vector<1x1x32x8xf32>, vector<1x32x32x8xf32>, vector<1x1x32x8xf32> -> vector<1x34x32x8xf32>
    %cst_8 = arith.constant 0.000000e+00 : f32
    %14 = vector.broadcast %cst_8 : f32 to vector<1x34x1x8xf32>
    %15 = tpu.concatenate %14, %13, %14 in 2 : vector<1x34x1x8xf32>, vector<1x34x32x8xf32>, vector<1x34x1x8xf32> -> vector<1x34x34x8xf32>
    %16 = arith.truncf %15 : vector<1x34x34x8xf32> to vector<1x34x34x8xbf16>
    %17 = vector.extract_strided_slice %16 {offsets = [0, 0, 0, 0], sizes = [1, 32, 32, 8], strides = [1, 1, 1, 1]} : vector<1x34x34x8xbf16> to vector<1x32x32x8xbf16>
    %18 = vector.extract_strided_slice %16 {offsets = [0, 0, 1, 0], sizes = [1, 32, 32, 8], strides = [1, 1, 1, 1]} : vector<1x34x34x8xbf16> to vector<1x32x32x8xbf16>
    %19 = vector.extract_strided_slice %16 {offsets = [0, 0, 2, 0], sizes = [1, 32, 32, 8], strides = [1, 1, 1, 1]} : vector<1x34x34x8xbf16> to vector<1x32x32x8xbf16>
    %20 = vector.extract_strided_slice %16 {offsets = [0, 1, 0, 0], sizes = [1, 32, 32, 8], strides = [1, 1, 1, 1]} : vector<1x34x34x8xbf16> to vector<1x32x32x8xbf16>
    %21 = vector.extract_strided_slice %16 {offsets = [0, 1, 1, 0], sizes = [1, 32, 32, 8], strides = [1, 1, 1, 1]} : vector<1x34x34x8xbf16> to vector<1x32x32x8xbf16>
    %22 = vector.extract_strided_slice %16 {offsets = [0, 1, 2, 0], sizes = [1, 32, 32, 8], strides = [1, 1, 1, 1]} : vector<1x34x34x8xbf16> to vector<1x32x32x8xbf16>
    %23 = vector.extract_strided_slice %16 {offsets = [0, 2, 0, 0], sizes = [1, 32, 32, 8], strides = [1, 1, 1, 1]} : vector<1x34x34x8xbf16> to vector<1x32x32x8xbf16>
    %24 = vector.extract_strided_slice %16 {offsets = [0, 2, 1, 0], sizes = [1, 32, 32, 8], strides = [1, 1, 1, 1]} : vector<1x34x34x8xbf16> to vector<1x32x32x8xbf16>
    %25 = vector.extract_strided_slice %16 {offsets = [0, 2, 2, 0], sizes = [1, 32, 32, 8], strides = [1, 1, 1, 1]} : vector<1x34x34x8xbf16> to vector<1x32x32x8xbf16>
    %26 = tpu.concatenate %17, %18, %20, %21 in 3 : vector<1x32x32x8xbf16>, vector<1x32x32x8xbf16>, vector<1x32x32x8xbf16>, vector<1x32x32x8xbf16> -> vector<1x32x32x32xbf16>
    %27 = vector.shape_cast %26 : vector<1x32x32x32xbf16> to vector<1024x32xbf16>
    %c0_9 = arith.constant 0 : index
    %c0_10 = arith.constant 0 : index
    %c0_11 = arith.constant 0 : index
    %28 = vector.load %arg4[%c0_9, %c0_10, %c0_11] : memref<4x3x32xbf16, #tpu.memory_space<vmem>>, vector<1x3x32xbf16>
    %29 = vector.shape_cast %28 : vector<1x3x32xbf16> to vector<3x32xbf16>
    %cst_12 = arith.constant dense<0.000000e+00> : vector<3x1024xf32>
    %30 = tpu.matmul %29, %27, %cst_12 {dimension_numbers = #tpu.dot_dimension_numbers<[1], [1], [0], [0], [0, 0, 1, 0], [], []>} : vector<3x32xbf16>, vector<1024x32xbf16>, vector<3x1024xf32> -> vector<3x1024xf32>
    %31 = math.tanh %30 : vector<3x1024xf32>
    %c0_13 = arith.constant 0 : index
    %c0_14 = arith.constant 0 : index
    %c0_15 = arith.constant 0 : index
    %c0_16 = arith.constant 0 : index
    %c0_17 = arith.constant 0 : index
    %32 = vector.load %arg5[%c0_13, %c0_14, %c0_15, %c0_16, %c0_17] : memref<1x2x2x3x1024xf32, #tpu.memory_space<vmem>>, vector<1x1x1x3x1024xf32>
    %33 = vector.shape_cast %32 : vector<1x1x1x3x1024xf32> to vector<3x1024xf32>
    %34 = vector.shape_cast %31 : vector<3x1024xf32> to vector<1x1x1x3x1024xf32>
    tpu.vector_store %arg5[%c0_13, %c0_14, %c0_15, %c0_16, %c0_17], %34 {strides = array<i32>} : memref<1x2x2x3x1024xf32, #tpu.memory_space<vmem>>, vector<1x1x1x3x1024xf32>,
    %35 = tpu.concatenate %18, %19, %21, %22 in 3 : vector<1x32x32x8xbf16>, vector<1x32x32x8xbf16>, vector<1x32x32x8xbf16>, vector<1x32x32x8xbf16> -> vector<1x32x32x32xbf16>
    %36 = vector.shape_cast %35 : vector<1x32x32x32xbf16> to vector<1024x32xbf16>
    %c1 = arith.constant 1 : index
    %c0_18 = arith.constant 0 : index
    %c0_19 = arith.constant 0 : index
    %37 = vector.load %arg4[%c1, %c0_18, %c0_19] : memref<4x3x32xbf16, #tpu.memory_space<vmem>>, vector<1x3x32xbf16>
    %38 = vector.shape_cast %37 : vector<1x3x32xbf16> to vector<3x32xbf16>
    %cst_20 = arith.constant dense<0.000000e+00> : vector<3x1024xf32>
    %39 = tpu.matmul %38, %36, %cst_20 {dimension_numbers = #tpu.dot_dimension_numbers<[1], [1], [0], [0], [0, 0, 1, 0], [], []>} : vector<3x32xbf16>, vector<1024x32xbf16>, vector<3x1024xf32> -> vector<3x1024xf32>
    %40 = math.tanh %39 : vector<3x1024xf32>
    %c0_21 = arith.constant 0 : index
    %c0_22 = arith.constant 0 : index
    %c1_23 = arith.constant 1 : index
    %c0_24 = arith.constant 0 : index
    %c0_25 = arith.constant 0 : index
    %41 = vector.load %arg5[%c0_21, %c0_22, %c1_23, %c0_24, %c0_25] : memref<1x2x2x3x1024xf32, #tpu.memory_space<vmem>>, vector<1x1x1x3x1024xf32>
    %42 = vector.shape_cast %41 : vector<1x1x1x3x1024xf32> to vector<3x1024xf32>
    %43 = vector.shape_cast %40 : vector<3x1024xf32> to vector<1x1x1x3x1024xf32>
    tpu.vector_store %arg5[%c0_21, %c0_22, %c1_23, %c0_24, %c0_25], %43 {strides = array<i32>} : memref<1x2x2x3x1024xf32, #tpu.memory_space<vmem>>, vector<1x1x1x3x1024xf32>,
    %44 = tpu.concatenate %20, %21, %23, %24 in 3 : vector<1x32x32x8xbf16>, vector<1x32x32x8xbf16>, vector<1x32x32x8xbf16>, vector<1x32x32x8xbf16> -> vector<1x32x32x32xbf16>
    %45 = vector.shape_cast %44 : vector<1x32x32x32xbf16> to vector<1024x32xbf16>
    %c2 = arith.constant 2 : index
    %c0_26 = arith.constant 0 : index
    %c0_27 = arith.constant 0 : index
    %46 = vector.load %arg4[%c2, %c0_26, %c0_27] : memref<4x3x32xbf16, #tpu.memory_space<vmem>>, vector<1x3x32xbf16>
    %47 = vector.shape_cast %46 : vector<1x3x32xbf16> to vector<3x32xbf16>
    %cst_28 = arith.constant dense<0.000000e+00> : vector<3x1024xf32>
    %48 = tpu.matmul %47, %45, %cst_28 {dimension_numbers = #tpu.dot_dimension_numbers<[1], [1], [0], [0], [0, 0, 1, 0], [], []>} : vector<3x32xbf16>, vector<1024x32xbf16>, vector<3x1024xf32> -> vector<3x1024xf32>
    %49 = math.tanh %48 : vector<3x1024xf32>
    %c0_29 = arith.constant 0 : index
    %c1_30 = arith.constant 1 : index
    %c0_31 = arith.constant 0 : index
    %c0_32 = arith.constant 0 : index
    %c0_33 = arith.constant 0 : index
    %50 = vector.load %arg5[%c0_29, %c1_30, %c0_31, %c0_32, %c0_33] : memref<1x2x2x3x1024xf32, #tpu.memory_space<vmem>>, vector<1x1x1x3x1024xf32>
    %51 = vector.shape_cast %50 : vector<1x1x1x3x1024xf32> to vector<3x1024xf32>
    %52 = vector.shape_cast %49 : vector<3x1024xf32> to vector<1x1x1x3x1024xf32>
    tpu.vector_store %arg5[%c0_29, %c1_30, %c0_31, %c0_32, %c0_33], %52 {strides = array<i32>} : memref<1x2x2x3x1024xf32, #tpu.memory_space<vmem>>, vector<1x1x1x3x1024xf32>,
    %53 = tpu.concatenate %21, %22, %24, %25 in 3 : vector<1x32x32x8xbf16>, vector<1x32x32x8xbf16>, vector<1x32x32x8xbf16>, vector<1x32x32x8xbf16> -> vector<1x32x32x32xbf16>
    %54 = vector.shape_cast %53 : vector<1x32x32x32xbf16> to vector<1024x32xbf16>
    %c3 = arith.constant 3 : index
    %c0_34 = arith.constant 0 : index
    %c0_35 = arith.constant 0 : index
    %55 = vector.load %arg4[%c3, %c0_34, %c0_35] : memref<4x3x32xbf16, #tpu.memory_space<vmem>>, vector<1x3x32xbf16>
    %56 = vector.shape_cast %55 : vector<1x3x32xbf16> to vector<3x32xbf16>
    %cst_36 = arith.constant dense<0.000000e+00> : vector<3x1024xf32>
    %57 = tpu.matmul %56, %54, %cst_36 {dimension_numbers = #tpu.dot_dimension_numbers<[1], [1], [0], [0], [0, 0, 1, 0], [], []>} : vector<3x32xbf16>, vector<1024x32xbf16>, vector<3x1024xf32> -> vector<3x1024xf32>
    %58 = math.tanh %57 : vector<3x1024xf32>
    %c0_37 = arith.constant 0 : index
    %c1_38 = arith.constant 1 : index
    %c1_39 = arith.constant 1 : index
    %c0_40 = arith.constant 0 : index
    %c0_41 = arith.constant 0 : index
    %59 = vector.load %arg5[%c0_37, %c1_38, %c1_39, %c0_40, %c0_41] : memref<1x2x2x3x1024xf32, #tpu.memory_space<vmem>>, vector<1x1x1x3x1024xf32>
    %60 = vector.shape_cast %59 : vector<1x1x1x3x1024xf32> to vector<3x1024xf32>
    %61 = vector.shape_cast %58 : vector<3x1024xf32> to vector<1x1x1x3x1024xf32>
    tpu.vector_store %arg5[%c0_37, %c1_38, %c1_39, %c0_40, %c0_41], %61 {strides = array<i32>} : memref<1x2x2x3x1024xf32, #tpu.memory_space<vmem>>, vector<1x1x1x3x1024xf32>,
    return
  }
  func.func @transform_0(%arg0: i32) -> (i32, i32, i32, i32) {
    %c0_i32 = arith.constant 0 : i32
    %c0_i32_0 = arith.constant 0 : i32
    %c0_i32_1 = arith.constant 0 : i32
    %c0_i32_2 = arith.constant 0 : i32
    return %arg0, %c0_i32, %c0_i32_0, %c0_i32_1 : i32, i32, i32, i32
  }
  func.func @transform_1(%arg0: i32) -> (i32, i32) {
    %c0_i32 = arith.constant 0 : i32
    %c0_i32_0 = arith.constant 0 : i32
    %c0_i32_1 = arith.constant 0 : i32
    return %c0_i32, %c0_i32_0 : i32, i32
  }
  func.func @transform_2(%arg0: i32) -> (i32, i32) {
    %c0_i32 = arith.constant 0 : i32
    %c0_i32_0 = arith.constant 0 : i32
    %c0_i32_1 = arith.constant 0 : i32
    return %c0_i32, %c0_i32_0 : i32, i32
  }
  func.func @transform_3(%arg0: i32) -> (i32, i32, i32) {
    %c0_i32 = arith.constant 0 : i32
    %c0_i32_0 = arith.constant 0 : i32
    %c0_i32_1 = arith.constant 0 : i32
    %c0_i32_2 = arith.constant 0 : i32
    return %c0_i32, %c0_i32_0, %c0_i32_1 : i32, i32, i32
  }
  func.func @transform_4(%arg0: i32) -> (i32, i32, i32, i32, i32) {
    %c0_i32 = arith.constant 0 : i32
    %c0_i32_0 = arith.constant 0 : i32
    %c0_i32_1 = arith.constant 0 : i32
    %c0_i32_2 = arith.constant 0 : i32
    %c0_i32_3 = arith.constant 0 : i32
    return %arg0, %c0_i32, %c0_i32_0, %c0_i32_1, %c0_i32_2 : i32, i32, i32, i32, i32
  }
}

</mosaic_0001>

<llo_original>
// kernel: generator_forward.5
$region0: #{generator_forward.5}
  #allocation0 [shape = 'u32[]', space=smem, size = 0x4, offset = 0x4, fixed_abs, tag = 'smem constant byte address 0x4 - core index']
  #allocation1 [shape = 'u32[144,128]{1,0:T(1,128)}', space=vmem, size = 0x12000, scoped, tag = 'internal scratch']
  %s0 = inlined_call_operand.hbm [shape: bf16[2,16], index: 0, kind: input, shape index: {}]
  %s1 = inlined_call_operand.hbm [shape: bf16[16,1024], index: 1, kind: input, shape index: {}]
  %s2 = inlined_call_operand.hbm [shape: bf16[2,1024], index: 2, kind: output, shape index: {0}]
  %s3 = inlined_call_operand.hbm [shape: f32[1,1024], index: 3, kind: output, shape index: {1}]
  %s4 = inlined_call_operand.hbm [shape: f32[1,1024], index: 4, kind: output, shape index: {2}]
  %5 = xla_tuple %s2, %s3, %s4
  %s6 = sld [smem:[#allocation0]]
  $region42: #{generator_forward.5} parent=0
    _
  %s8 = ssub.s32 1, %s6
  %s9 = scalar_select 0, %s8, %s6
  $region1: #{generator_forward.5} parent=0
    #allocation2 [shape = 'u8[512]{0}', space=vmem, size = 0x400, scoped, tag = 'input window, operand 0, single buffered']
    #allocation3 [shape = 's32[1]{0}', space=sflag, size = 0x4, scoped, tag = 'scoped memory for generator_forward.5']
    #allocation4 [shape = 's32[1]{0}', space=sflag, size = 0x4, scoped, tag = 'scoped memory for generator_forward.5']
    #allocation5 [shape = 'u8[32768]{0}', space=vmem, size = 0x8000, scoped, tag = 'input window, operand 1, single buffered']
    #allocation6 [shape = 's32[1]{0}', space=sflag, size = 0x4, scoped, tag = 'scoped memory for generator_forward.5']
    #allocation7 [shape = 'u8[4096]{0}', space=vmem, size = 0x1000, scoped, tag = 'output window, operand 0, single buffered']
    #allocation8 [shape = 'u8[4096]{0}', space=vmem, size = 0x1000, scoped, tag = 'output window, operand 1, single buffered']
    #allocation9 [shape = 's32[1]{0}', space=sflag, size = 0x4, scoped, tag = 'scoped memory for generator_forward.5']
    #allocation10 [shape = 'u8[4096]{0}', space=vmem, size = 0x1000, scoped, tag = 'output window, operand 2, single buffered']
    %10 = vsyncpa [#allocation3], 0
    %11 = vsyncpa [#allocation6], 0
    %12 = vsyncpa [#allocation4], 0
    %13 = vsyncpa [#allocation9], 0
    // Predicated region
    $region2: #{generator_forward.5} parent=1 // pred_check
      _
    $region3: #{generator_forward.5} parent=1 // pred_check_branch
      %15 = sbr.rel (0) target = $region5
    $region4: #{generator_forward.5} parent=1 // pred_region
      %s17 = ssub.s32 16, 16
      %18 = vsyncadd [#allocation3], %s17
      %s20 = sshll.u32 [#allocation2], 4
      %s21 = int_to_ptr.vmem [resolvable:$true] %s20
      %23 = dma.hbm_to_vmem [thread:$0]  %s0, 16, %s21, [#allocation3]
    $region5: #{generator_forward.5} parent=1 // pred_fallthru
      _
    // Predicated region
    $region6: #{generator_forward.5} parent=1 // pred_check
      _
    $region7: #{generator_forward.5} parent=1 // pred_check_branch
      %25 = sbr.rel (0) target = $region9
    $region8: #{generator_forward.5} parent=1 // pred_region
      %s27 = ssub.s32 1024, 1024
      %28 = vsyncadd [#allocation6], %s27
      %s29 = sshll.u32 [#allocation5], 4
      %s30 = int_to_ptr.vmem [resolvable:$true] %s29
      %35 = dma.hbm_to_vmem [thread:$0]  %s1, 1024, %s30, [#allocation6], 512, 512, 32
    $region9: #{generator_forward.5} parent=1 // pred_fallthru
      _
    // Predicated region
    $region10: #{generator_forward.5} parent=1 // pred_check
      _
    $region11: #{generator_forward.5} parent=1 // pred_check_branch
      %37 = sbr.rel (0) target = $region13
    $region12: #{generator_forward.5} parent=1 // pred_region
      %38 = dma.done [#allocation3], 16
    $region13: #{generator_forward.5} parent=1 // pred_fallthru
      _
    // Predicated region
    $region14: #{generator_forward.5} parent=1 // pred_check
      _
    $region15: #{generator_forward.5} parent=1 // pred_check_branch
      %40 = sbr.rel (0) target = $region17
    $region16: #{generator_forward.5} parent=1 // pred_region
      %41 = dma.done [#allocation6], 1024
    $region17: #{generator_forward.5} parent=1 // pred_fallthru
      _
    %v43 = vld [vmem:[#allocation2] sm:$0x1]
    %v44 = vld [vmem:[#allocation5] sm:$0xff]
    %v45 = vld [vmem:[#allocation5 + $0x8] sm:$0xff]
    %v46 = vld [vmem:[#allocation5 + $0x10] sm:$0xff]
    %v47 = vld [vmem:[#allocation5 + $0x18] sm:$0xff]
    %v48 = vld [vmem:[#allocation5 + $0x20] sm:$0xff]
    %v49 = vld [vmem:[#allocation5 + $0x28] sm:$0xff]
    %v50 = vld [vmem:[#allocation5 + $0x30] sm:$0xff]
    %v51 = vld [vmem:[#allocation5 + $0x38] sm:$0xff]
    %v60 = vunpack.c.l.b16 %v44
    %v61 = vunpack.c.h.b16 %v44
    %v62 = vunpack.c.l.b16 %v45
    %v63 = vunpack.c.h.b16 %v45
    %v64 = vunpack.c.l.b16 %v46
    %v65 = vunpack.c.h.b16 %v46
    %v66 = vunpack.c.l.b16 %v47
    %v67 = vunpack.c.h.b16 %v47
    %v68 = vunpack.c.l.b16 %v48
    %v69 = vunpack.c.h.b16 %v48
    %v70 = vunpack.c.l.b16 %v49
    %v71 = vunpack.c.h.b16 %v49
    %v72 = vunpack.c.l.b16 %v50
    %v73 = vunpack.c.h.b16 %v50
    %v74 = vunpack.c.l.b16 %v51
    %v75 = vunpack.c.h.b16 %v51
    %v76 = vpack.c.b16 %v68, %v60
    %v77 = vpack.c.b16 %v69, %v61
    %v78 = vpack.c.b16 %v70, %v62
    %v79 = vpack.c.b16 %v71, %v63
    %v80 = vpack.c.b16 %v72, %v64
    %v81 = vpack.c.b16 %v73, %v65
    %v82 = vpack.c.b16 %v74, %v66
    %v83 = vpack.c.b16 %v75, %v67
    %vm92 = vcmask 130048
    %v94 = vsel %vm92, %v43, 0
    %96 = vmatprep.subr.bf16.mxu0 %v77
    %97 = vmatpush1.bf16.msra.mxu0 %v76
    %98 = vmatprep.subr.bf16.mxu0 0
    %99 = vmatpush1.bf16.msra.mxu0 0
    %100 = vmatprep.subr.bf16.mxu0 0
    %101 = vmatpush1.bf16.msra.mxu0 0
    %102 = vmatprep.subr.bf16.mxu0 0
    %103 = vmatpush1.bf16.msra.mxu0 0
    %104 = vmatprep.subr.bf16.mxu0 0
    %105 = vmatpush1.bf16.msra.mxu0 0
    %106 = vmatprep.subr.bf16.mxu0 0
    %107 = vmatpush1.bf16.msra.mxu0 0
    %108 = vmatprep.subr.bf16.mxu0 0
    %109 = vmatpush1.bf16.msra.mxu0 0
    %110 = vmatprep.subr.bf16.mxu0 0
    %111 = vmatpush1.bf16.msra.mxu0 0
    %112 = vmatprep.subr.bf16.mxu0 0
    %113 = vmatpush1.bf16.msra.mxu0 0
    %114 = vmatprep.subr.bf16.mxu0 0
    %115 = vmatpush1.bf16.msra.mxu0 0
    %116 = vmatprep.subr.bf16.mxu0 0
    %117 = vmatpush1.bf16.msra.mxu0 0
    %118 = vmatprep.subr.bf16.mxu0 0
    %119 = vmatpush1.bf16.msra.mxu0 0
    %120 = vmatprep.subr.bf16.mxu0 0
    %121 = vmatpush1.bf16.msra.mxu0 0
    %122 = vmatprep.subr.bf16.mxu0 0
    %123 = vmatpush1.bf16.msra.mxu0 0
    %124 = vmatprep.subr.bf16.mxu0 0
    %125 = vmatpush1.bf16.msra.mxu0 0
    %126 = vmatprep.subr.bf16.mxu0 0
    %127 = vmatpush1.bf16.msra.mxu0 0
    %128 = vmatprep.mubr.bf16.mxu0 0
    %129 = vmatmul.mubr.bf16.gmra.mrb[0].mxu0 %v94
    %v130 = vpop.f32.mrb[0].mxu0
    %v131 = vadd.f32 0.0, %v130
    %v132 = vpop.f32.mrb[0].mxu0
    %v133 = vadd.f32 0.0, %v132
    %v134 = vpop.f32.mrb[0].mxu0
    %v135 = vpop.f32.mrb[0].mxu0
    %136 = vdwg.mxu0
    %137 = vmatprep.subr.bf16.mxu0 %v79
    %138 = vmatpush1.bf16.msra.mxu0 %v78
    %139 = vmatprep.subr.bf16.mxu0 0
    %140 = vmatpush1.bf16.msra.mxu0 0
    %141 = vmatprep.subr.bf16.mxu0 0
    %142 = vmatpush1.bf16.msra.mxu0 0
    %143 = vmatprep.subr.bf16.mxu0 0
    %144 = vmatpush1.bf16.msra.mxu0 0
    %145 = vmatprep.subr.bf16.mxu0 0
    %146 = vmatpush1.bf16.msra.mxu0 0
    %147 = vmatprep.subr.bf16.mxu0 0
    %148 = vmatpush1.bf16.msra.mxu0 0
    %149 = vmatprep.subr.bf16.mxu0 0
    %150 = vmatpush1.bf16.msra.mxu0 0
    %151 = vmatprep.subr.bf16.mxu0 0
    %152 = vmatpush1.bf16.msra.mxu0 0
    %153 = vmatprep.subr.bf16.mxu0 0
    %154 = vmatpush1.bf16.msra.mxu0 0
    %155 = vmatprep.subr.bf16.mxu0 0
    %156 = vmatpush1.bf16.msra.mxu0 0
    %157 = vmatprep.subr.bf16.mxu0 0
    %158 = vmatpush1.bf16.msra.mxu0 0
    %159 = vmatprep.subr.bf16.mxu0 0
    %160 = vmatpush1.bf16.msra.mxu0 0
    %161 = vmatprep.subr.bf16.mxu0 0
    %162 = vmatpush1.bf16.msra.mxu0 0
    %163 = vmatprep.subr.bf16.mxu0 0
    %164 = vmatpush1.bf16.msra.mxu0 0
    %165 = vmatprep.subr.bf16.mxu0 0
    %166 = vmatpush1.bf16.msra.mxu0 0
    %167 = vmatprep.subr.bf16.mxu0 0
    %168 = vmatpush1.bf16.msra.mxu0 0
    %169 = vmatprep.mubr.bf16.mxu0 0
    %170 = vmatmul.mubr.bf16.gmra.mrb[0].mxu0 %v94
    %v171 = vpop.f32.mrb[0].mxu0
    %v172 = vadd.f32 0.0, %v171
    %v173 = vpop.f32.mrb[0].mxu0
    %v174 = vadd.f32 0.0, %v173
    %v175 = vpop.f32.mrb[0].mxu0
    %v176 = vpop.f32.mrb[0].mxu0
    %177 = vdwg.mxu0
    %178 = vmatprep.subr.bf16.mxu0 %v81
    %179 = vmatpush1.bf16.msra.mxu0 %v80
    %180 = vmatprep.subr.bf16.mxu0 0
    %181 = vmatpush1.bf16.msra.mxu0 0
    %182 = vmatprep.subr.bf16.mxu0 0
    %183 = vmatpush1.bf16.msra.mxu0 0
    %184 = vmatprep.subr.bf16.mxu0 0
    %185 = vmatpush1.bf16.msra.mxu0 0
    %186 = vmatprep.subr.bf16.mxu0 0
    %187 = vmatpush1.bf16.msra.mxu0 0
    %188 = vmatprep.subr.bf16.mxu0 0
    %189 = vmatpush1.bf16.msra.mxu0 0
    %190 = vmatprep.subr.bf16.mxu0 0
    %191 = vmatpush1.bf16.msra.mxu0 0
    %192 = vmatprep.subr.bf16.mxu0 0
    %193 = vmatpush1.bf16.msra.mxu0 0
    %194 = vmatprep.subr.bf16.mxu0 0
    %195 = vmatpush1.bf16.msra.mxu0 0
    %196 = vmatprep.subr.bf16.mxu0 0
    %197 = vmatpush1.bf16.msra.mxu0 0
    %198 = vmatprep.subr.bf16.mxu0 0
    %199 = vmatpush1.bf16.msra.mxu0 0
    %200 = vmatprep.subr.bf16.mxu0 0
    %201 = vmatpush1.bf16.msra.mxu0 0
    %202 = vmatprep.subr.bf16.mxu0 0
    %203 = vmatpush1.bf16.msra.mxu0 0
    %204 = vmatprep.subr.bf16.mxu0 0
    %205 = vmatpush1.bf16.msra.mxu0 0
    %206 = vmatprep.subr.bf16.mxu0 0
    %207 = vmatpush1.bf16.msra.mxu0 0
    %208 = vmatprep.subr.bf16.mxu0 0
    %209 = vmatpush1.bf16.msra.mxu0 0
    %210 = vmatprep.mubr.bf16.mxu0 0
    %211 = vmatmul.mubr.bf16.gmra.mrb[0].mxu0 %v94
    %v212 = vpop.f32.mrb[0].mxu0
    %v213 = vadd.f32 0.0, %v212
    %v214 = vpop.f32.mrb[0].mxu0
    %v215 = vadd.f32 0.0, %v214
    %v216 = vpop.f32.mrb[0].mxu0
    %v217 = vpop.f32.mrb[0].mxu0
    %218 = vdwg.mxu0
    %219 = vmatprep.subr.bf16.mxu0 %v83
    %220 = vmatpush1.bf16.msra.mxu0 %v82
    %221 = vmatprep.subr.bf16.mxu0 0
    %222 = vmatpush1.bf16.msra.mxu0 0
    %223 = vmatprep.subr.bf16.mxu0 0
    %224 = vmatpush1.bf16.msra.mxu0 0
    %225 = vmatprep.subr.bf16.mxu0 0
    %226 = vmatpush1.bf16.msra.mxu0 0
    %227 = vmatprep.subr.bf16.mxu0 0
    %228 = vmatpush1.bf16.msra.mxu0 0
    %229 = vmatprep.subr.bf16.mxu0 0
    %230 = vmatpush1.bf16.msra.mxu0 0
    %231 = vmatprep.subr.bf16.mxu0 0
    %232 = vmatpush1.bf16.msra.mxu0 0
    %233 = vmatprep.subr.bf16.mxu0 0
    %234 = vmatpush1.bf16.msra.mxu0 0
    %235 = vmatprep.subr.bf16.mxu0 0
    %236 = vmatpush1.bf16.msra.mxu0 0
    %237 = vmatprep.subr.bf16.mxu0 0
    %238 = vmatpush1.bf16.msra.mxu0 0
    %239 = vmatprep.subr.bf16.mxu0 0
    %240 = vmatpush1.bf16.msra.mxu0 0
    %241 = vmatprep.subr.bf16.mxu0 0
    %242 = vmatpush1.bf16.msra.mxu0 0
    %243 = vmatprep.subr.bf16.mxu0 0
    %244 = vmatpush1.bf16.msra.mxu0 0
    %245 = vmatprep.subr.bf16.mxu0 0
    %246 = vmatpush1.bf16.msra.mxu0 0
    %247 = vmatprep.subr.bf16.mxu0 0
    %248 = vmatpush1.bf16.msra.mxu0 0
    %249 = vmatprep.subr.bf16.mxu0 0
    %250 = vmatpush1.bf16.msra.mxu0 0
    %251 = vmatprep.mubr.bf16.mxu0 0
    %252 = vmatmul.mubr.bf16.gmra.mrb[0].mxu0 %v94
    %v253 = vpop.f32.mrb[0].mxu0
    %v254 = vadd.f32 0.0, %v253
    %v255 = vpop.f32.mrb[0].mxu0
    %v256 = vadd.f32 0.0, %v255
    %v257 = vpop.f32.mrb[0].mxu0
    %v258 = vpop.f32.mrb[0].mxu0
    %259 = vdwg.mxu0
    %v260 = vpack.c.bf16 %v131, %v131
    %v261 = vpack.c.bf16 %v133, %v133
    %v262 = vpack.c.bf16 %v172, %v172
    %v263 = vpack.c.bf16 %v174, %v174
    %v264 = vpack.c.bf16 %v213, %v213
    %v265 = vpack.c.bf16 %v215, %v215
    %v266 = vpack.c.bf16 %v254, %v254
    %v267 = vpack.c.bf16 %v256, %v256
    %v276 = vcombine.low %v260, %v261
    %v277 = vcombine.low %v262, %v263
    %v278 = vcombine.low %v264, %v265
    %v279 = vcombine.low %v266, %v267
    %v281 = vunpack.c.l.s4 1966171168
    %v282 = vunpack.c.0.s8 %v281
    %v283 = vlaneseq
    %v284 = vshrl.u32 %v283, 7
    %v285 = vsub.s32 %v282, %v284
    %v286 = vrot.slane %v276, %v285
    %v288 = vunpack.c.l.s4 1966171168
    %v289 = vunpack.c.0.s8 %v288
    %v290 = vlaneseq
    %v291 = vshrl.u32 %v290, 7
    %v292 = vsub.s32 %v289, %v291
    %v293 = vrot.slane %v277, %v292
    %v295 = vunpack.c.l.s4 1966171168
    %v296 = vunpack.c.0.s8 %v295
    %v297 = vlaneseq
    %v298 = vshrl.u32 %v297, 7
    %v299 = vsub.s32 %v296, %v298
    %v300 = vrot.slane %v278, %v299
    %v302 = vunpack.c.l.s4 1966171168
    %v303 = vunpack.c.0.s8 %v302
    %v304 = vlaneseq
    %v305 = vshrl.u32 %v304, 7
    %v306 = vsub.s32 %v303, %v305
    %v307 = vrot.slane %v279, %v306
    %v308 = vcombine.low %v286, %v293
    %v309 = vcombine.low %v300, %v307
    %v311 = vunpack.c.l.s4 1966171168
    %v312 = vunpack.c.0.s8 %v311
    %v313 = vlaneseq
    %v314 = vshrl.u32 %v313, 7
    %v315 = vsub.s32 %v312, %v314
    %v316 = vrot.slane %v308, %v315
    %v318 = vunpack.c.l.s4 1966171168
    %v319 = vunpack.c.0.s8 %v318
    %v320 = vlaneseq
    %v321 = vshrl.u32 %v320, 7
    %v322 = vsub.s32 %v319, %v321
    %v323 = vrot.slane %v309, %v322
    %v324 = vcombine.low %v316, %v323
    %326 = vst [vmem:[#allocation7] sm:$0xff] %v324
    %vm327 = vcmask 1041408
    %v328 = vsel %vm327, %v131, 0.0
    %v329 = vrot.slane %v328, 4
    %v330 = vadd.f32 %v328, %v329
    %v331 = vrot.slane %v330, 2
    %v332 = vadd.f32 %v330, %v331
    %v333 = vrot.slane %v332, 1
    %v334 = vadd.f32 %v332, %v333
    %v335 = vsel %vm327, %v133, 0.0
    %v336 = vrot.slane %v335, 4
    %v337 = vadd.f32 %v335, %v336
    %v338 = vrot.slane %v337, 2
    %v339 = vadd.f32 %v337, %v338
    %v340 = vrot.slane %v339, 1
    %v341 = vadd.f32 %v339, %v340
    %v342 = vsel %vm327, %v172, 0.0
    %v343 = vrot.slane %v342, 4
    %v344 = vadd.f32 %v342, %v343
    %v345 = vrot.slane %v344, 2
    %v346 = vadd.f32 %v344, %v345
    %v347 = vrot.slane %v346, 1
    %v348 = vadd.f32 %v346, %v347
    %v349 = vsel %vm327, %v174, 0.0
    %v350 = vrot.slane %v349, 4
    %v351 = vadd.f32 %v349, %v350
    %v352 = vrot.slane %v351, 2
    %v353 = vadd.f32 %v351, %v352
    %v354 = vrot.slane %v353, 1
    %v355 = vadd.f32 %v353, %v354
    %v356 = vsel %vm327, %v213, 0.0
    %v357 = vrot.slane %v356, 4
    %v358 = vadd.f32 %v356, %v357
    %v359 = vrot.slane %v358, 2
    %v360 = vadd.f32 %v358, %v359
    %v361 = vrot.slane %v360, 1
    %v362 = vadd.f32 %v360, %v361
    %v363 = vsel %vm327, %v215, 0.0
    %v364 = vrot.slane %v363, 4
    %v365 = vadd.f32 %v363, %v364
    %v366 = vrot.slane %v365, 2
    %v367 = vadd.f32 %v365, %v366
    %v368 = vrot.slane %v367, 1
    %v369 = vadd.f32 %v367, %v368
    %v370 = vsel %vm327, %v254, 0.0
    %v371 = vrot.slane %v370, 4
    %v372 = vadd.f32 %v370, %v371
    %v373 = vrot.slane %v372, 2
    %v374 = vadd.f32 %v372, %v373
    %v375 = vrot.slane %v374, 1
    %v376 = vadd.f32 %v374, %v375
    %v377 = vsel %vm327, %v256, 0.0
    %v378 = vrot.slane %v377, 4
    %v379 = vadd.f32 %v377, %v378
    %v380 = vrot.slane %v379, 2
    %v381 = vadd.f32 %v379, %v380
    %v382 = vrot.slane %v381, 1
    %v383 = vadd.f32 %v381, %v382
    %v392 = vcombine.low %v334, %v341
    %v393 = vcombine.low %v348, %v355
    %v394 = vcombine.low %v362, %v369
    %v395 = vcombine.low %v376, %v383
    %v397 = vunpack.c.l.s4 1966171168
    %v398 = vunpack.c.0.s8 %v397
    %v399 = vlaneseq
    %v400 = vshrl.u32 %v399, 7
    %v401 = vsub.s32 %v398, %v400
    %v402 = vrot.slane %v392, %v401
    %v404 = vunpack.c.l.s4 1966171168
    %v405 = vunpack.c.0.s8 %v404
    %v406 = vlaneseq
    %v407 = vshrl.u32 %v406, 7
    %v408 = vsub.s32 %v405, %v407
    %v409 = vrot.slane %v393, %v408
    %v411 = vunpack.c.l.s4 1966171168
    %v412 = vunpack.c.0.s8 %v411
    %v413 = vlaneseq
    %v414 = vshrl.u32 %v413, 7
    %v415 = vsub.s32 %v412, %v414
    %v416 = vrot.slane %v394, %v415
    %v418 = vunpack.c.l.s4 1966171168
    %v419 = vunpack.c.0.s8 %v418
    %v420 = vlaneseq
    %v421 = vshrl.u32 %v420, 7
    %v422 = vsub.s32 %v419, %v421
    %v423 = vrot.slane %v395, %v422
    %v424 = vcombine.low %v402, %v409
    %v425 = vcombine.low %v416, %v423
    %v427 = vunpack.c.l.s4 1966171168
    %v428 = vunpack.c.0.s8 %v427
    %v429 = vlaneseq
    %v430 = vshrl.u32 %v429, 7
    %v431 = vsub.s32 %v428, %v430
    %v432 = vrot.slane %v424, %v431
    %v434 = vunpack.c.l.s4 1966171168
    %v435 = vunpack.c.0.s8 %v434
    %v436 = vlaneseq
    %v437 = vshrl.u32 %v436, 7
    %v438 = vsub.s32 %v435, %v437
    %v439 = vrot.slane %v425, %v438
    %v440 = vcombine.low %v432, %v439
    %442 = vst [vmem:[#allocation8] sm:$0xff] %v440
    %v443 = vmul.f32 %v131, %v131
    %v444 = vmul.f32 %v133, %v133
    %v445 = vmul.f32 %v172, %v172
    %v446 = vmul.f32 %v174, %v174
    %v447 = vmul.f32 %v213, %v213
    %v448 = vmul.f32 %v215, %v215
    %v449 = vmul.f32 %v254, %v254
    %v450 = vmul.f32 %v256, %v256
    %v451 = vsel %vm327, %v443, 0.0
    %v452 = vrot.slane %v451, 4
    %v453 = vadd.f32 %v451, %v452
    %v454 = vrot.slane %v453, 2
    %v455 = vadd.f32 %v453, %v454
    %v456 = vrot.slane %v455, 1
    %v457 = vadd.f32 %v455, %v456
    %v458 = vsel %vm327, %v444, 0.0
    %v459 = vrot.slane %v458, 4
    %v460 = vadd.f32 %v458, %v459
    %v461 = vrot.slane %v460, 2
    %v462 = vadd.f32 %v460, %v461
    %v463 = vrot.slane %v462, 1
    %v464 = vadd.f32 %v462, %v463
    %v465 = vsel %vm327, %v445, 0.0
    %v466 = vrot.slane %v465, 4
    %v467 = vadd.f32 %v465, %v466
    %v468 = vrot.slane %v467, 2
    %v469 = vadd.f32 %v467, %v468
    %v470 = vrot.slane %v469, 1
    %v471 = vadd.f32 %v469, %v470
    %v472 = vsel %vm327, %v446, 0.0
    %v473 = vrot.slane %v472, 4
    %v474 = vadd.f32 %v472, %v473
    %v475 = vrot.slane %v474, 2
    %v476 = vadd.f32 %v474, %v475
    %v477 = vrot.slane %v476, 1
    %v478 = vadd.f32 %v476, %v477
    %v479 = vsel %vm327, %v447, 0.0
    %v480 = vrot.slane %v479, 4
    %v481 = vadd.f32 %v479, %v480
    %v482 = vrot.slane %v481, 2
    %v483 = vadd.f32 %v481, %v482
    %v484 = vrot.slane %v483, 1
    %v485 = vadd.f32 %v483, %v484
    %v486 = vsel %vm327, %v448, 0.0
    %v487 = vrot.slane %v486, 4
    %v488 = vadd.f32 %v486, %v487
    %v489 = vrot.slane %v488, 2
    %v490 = vadd.f32 %v488, %v489
    %v491 = vrot.slane %v490, 1
    %v492 = vadd.f32 %v490, %v491
    %v493 = vsel %vm327, %v449, 0.0
    %v494 = vrot.slane %v493, 4
    %v495 = vadd.f32 %v493, %v494
    %v496 = vrot.slane %v495, 2
    %v497 = vadd.f32 %v495, %v496
    %v498 = vrot.slane %v497, 1
    %v499 = vadd.f32 %v497, %v498
    %v500 = vsel %vm327, %v450, 0.0
    %v501 = vrot.slane %v500, 4
    %v502 = vadd.f32 %v500, %v501
    %v503 = vrot.slane %v502, 2
    %v504 = vadd.f32 %v502, %v503
    %v505 = vrot.slane %v504, 1
    %v506 = vadd.f32 %v504, %v505
    %v515 = vcombine.low %v457, %v464
    %v516 = vcombine.low %v471, %v478
    %v517 = vcombine.low %v485, %v492
    %v518 = vcombine.low %v499, %v506
    %v520 = vunpack.c.l.s4 1966171168
    %v521 = vunpack.c.0.s8 %v520
    %v522 = vlaneseq
    %v523 = vshrl.u32 %v522, 7
    %v524 = vsub.s32 %v521, %v523
    %v525 = vrot.slane %v515, %v524
    %v527 = vunpack.c.l.s4 1966171168
    %v528 = vunpack.c.0.s8 %v527
    %v529 = vlaneseq
    %v530 = vshrl.u32 %v529, 7
    %v531 = vsub.s32 %v528, %v530
    %v532 = vrot.slane %v516, %v531
    %v534 = vunpack.c.l.s4 1966171168
    %v535 = vunpack.c.0.s8 %v534
    %v536 = vlaneseq
    %v537 = vshrl.u32 %v536, 7
    %v538 = vsub.s32 %v535, %v537
    %v539 = vrot.slane %v517, %v538
    %v541 = vunpack.c.l.s4 1966171168
    %v542 = vunpack.c.0.s8 %v541
    %v543 = vlaneseq
    %v544 = vshrl.u32 %v543, 7
    %v545 = vsub.s32 %v542, %v544
    %v546 = vrot.slane %v518, %v545
    %v547 = vcombine.low %v525, %v532
    %v548 = vcombine.low %v539, %v546
    %v550 = vunpack.c.l.s4 1966171168
    %v551 = vunpack.c.0.s8 %v550
    %v552 = vlaneseq
    %v553 = vshrl.u32 %v552, 7
    %v554 = vsub.s32 %v551, %v553
    %v555 = vrot.slane %v547, %v554
    %v557 = vunpack.c.l.s4 1966171168
    %v558 = vunpack.c.0.s8 %v557
    %v559 = vlaneseq
    %v560 = vshrl.u32 %v559, 7
    %v561 = vsub.s32 %v558, %v560
    %v562 = vrot.slane %v548, %v561
    %v563 = vcombine.low %v555, %v562
    %565 = vst [vmem:[#allocation10] sm:$0xff] %v563
    // Predicated region
    $region18: #{generator_forward.5} parent=1 // pred_check
      _
    $region19: #{generator_forward.5} parent=1 // pred_check_branch
      %567 = sbr.rel (0) target = $region21
    $region20: #{generator_forward.5} parent=1 // pred_region
      %s569 = ssub.s32 128, 128
      %570 = vsyncadd [#allocation4], %s569
      %s572 = sshll.u32 [#allocation7], 4
      %s573 = int_to_ptr.vmem [resolvable:$true] %s572
      %575 = dma.vmem_to_hbm [thread:$0]  %s573, 128, %s2, [#allocation4]
    $region21: #{generator_forward.5} parent=1 // pred_fallthru
      _
    // Predicated region
    $region22: #{generator_forward.5} parent=1 // pred_check
      _
    $region23: #{generator_forward.5} parent=1 // pred_check_branch
      %577 = sbr.rel (0) target = $region25
    $region24: #{generator_forward.5} parent=1 // pred_region
      %s579 = ssub.s32 128, 128
      %580 = vsyncadd [#allocation9], %s579
      %s582 = sshll.u32 [#allocation8], 4
      %s583 = int_to_ptr.vmem [resolvable:$true] %s582
      %585 = dma.vmem_to_hbm [thread:$0]  %s583, 128, %s3, [#allocation9]
    $region25: #{generator_forward.5} parent=1 // pred_fallthru
      _
    // Predicated region
    $region26: #{generator_forward.5} parent=1 // pred_check
      _
    $region27: #{generator_forward.5} parent=1 // pred_check_branch
      %587 = sbr.rel (0) target = $region29
    $region28: #{generator_forward.5} parent=1 // pred_region
      %s589 = ssub.s32 128, 128
      %590 = vsyncadd [#allocation9], %s589
      %s592 = sshll.u32 [#allocation10], 4
      %s593 = int_to_ptr.vmem [resolvable:$true] %s592
      %595 = dma.vmem_to_hbm [thread:$0]  %s593, 128, %s4, [#allocation9]
    $region29: #{generator_forward.5} parent=1 // pred_fallthru
      _
    // Predicated region
    $region30: #{generator_forward.5} parent=1 // pred_check
      _
    $region31: #{generator_forward.5} parent=1 // pred_check_branch
      %597 = sbr.rel (0) target = $region33
    $region32: #{generator_forward.5} parent=1 // pred_region
      %598 = dma.done [#allocation4], 128
    $region33: #{generator_forward.5} parent=1 // pred_fallthru
      _
    // Predicated region
    $region34: #{generator_forward.5} parent=1 // pred_check
      _
    $region35: #{generator_forward.5} parent=1 // pred_check_branch
      %600 = sbr.rel (0) target = $region37
    $region36: #{generator_forward.5} parent=1 // pred_region
      %601 = dma.done [#allocation9], 128
    $region37: #{generator_forward.5} parent=1 // pred_fallthru
      _
    // Predicated region
    $region38: #{generator_forward.5} parent=1 // pred_check
      _
    $region39: #{generator_forward.5} parent=1 // pred_check_branch
      %603 = sbr.rel (0) target = $region41
    $region40: #{generator_forward.5} parent=1 // pred_region
      %604 = dma.done [#allocation9], 128
    $region41: #{generator_forward.5} parent=1 // pred_fallthru
      _
    %605 = vsyncpa [#allocation3], 1
    %606 = vsyncpa [#allocation6], 1
    %607 = vsyncpa [#allocation4], 1
    %608 = vsyncpa [#allocation9], 1

// kernel: generator_forward.6
$region0: #{generator_forward.6}
  #allocation0 [shape = 'u32[]', space=smem, size = 0x4, offset = 0x4, fixed_abs, tag = 'smem constant byte address 0x4 - core index']
  #allocation1 [shape = 'u32[144,128]{1,0:T(1,128)}', space=vmem, size = 0x12000, scoped, tag = 'internal scratch']
  %s0 = inlined_call_operand.hbm [shape: bf16[2,4,4,64], index: 0, kind: input, shape index: {}]
  %s1 = inlined_call_operand.hbm [shape: f32[1,64], index: 1, kind: input, shape index: {}]
  %s2 = inlined_call_operand.hbm [shape: f32[1,64], index: 2, kind: input, shape index: {}]
  %s3 = inlined_call_operand.hbm [shape: bf16[4,32,256], index: 3, kind: input, shape index: {}]
  %s4 = inlined_call_operand.hbm [shape: bf16[2,2,2,32,16], index: 4, kind: output, shape index: {0}]
  %s5 = inlined_call_operand.hbm [shape: f32[2,32,1], index: 5, kind: output, shape index: {1}]
  %s6 = inlined_call_operand.hbm [shape: f32[2,32,1], index: 6, kind: output, shape index: {2}]
  %7 = xla_tuple %s4, %s5, %s6
  %s8 = sld [smem:[#allocation0]]
  $region81: #{generator_forward.6} parent=0
    _
  %s10 = ssub.s32 1, %s8
  %s11 = scalar_select 0, %s10, %s8
  $region1: #{generator_forward.6} parent=0
    #allocation2 [shape = 'u8[8192]{0}', space=vmem, size = 0x2000, scoped, tag = 'input window, operand 0']
    #allocation3 [shape = 's32[2]{0}', space=sflag, size = 0x8, scoped, tag = 'scoped memory for generator_forward.6']
    #allocation4 [shape = 's32[2]{0}', space=sflag, size = 0x8, scoped, tag = 'scoped memory for generator_forward.6']
    #allocation5 [shape = 'u8[512]{0}', space=vmem, size = 0x400, scoped, tag = 'input window, operand 1, single buffered']
    #allocation6 [shape = 's32[1]{0}', space=sflag, size = 0x4, scoped, tag = 'scoped memory for generator_forward.6']
    #allocation7 [shape = 'u8[512]{0}', space=vmem, size = 0x400, scoped, tag = 'input window, operand 2, single buffered']
    #allocation8 [shape = 'u8[65536]{0}', space=vmem, size = 0x10000, scoped, tag = 'input window, operand 3, single buffered']
    #allocation9 [shape = 's32[1]{0}', space=sflag, size = 0x4, scoped, tag = 'scoped memory for generator_forward.6']
    #allocation10 [shape = 'u8[65536]{0}', space=vmem, size = 0x10000, scoped, tag = 'output window, operand 0']
    #allocation11 [shape = 'u8[32768]{0}', space=vmem, size = 0x8000, scoped, tag = 'output window, operand 1']
    #allocation12 [shape = 's32[2]{0}', space=sflag, size = 0x8, scoped, tag = 'scoped memory for generator_forward.6']
    #allocation13 [shape = 'u8[32768]{0}', space=vmem, size = 0x8000, scoped, tag = 'output window, operand 2']
    %12 = vsyncpa [#allocation3], 0
    %s13 = scalar_lea.sflag [#allocation3], 1
    %14 = vsyncpa %s13, 0
    %15 = vsyncpa [#allocation6], 0
    %16 = vsyncpa [#allocation9], 0
    %17 = vsyncpa [#allocation4], 0
    %s18 = scalar_lea.sflag [#allocation4], 1
    %19 = vsyncpa %s18, 0
    %20 = vsyncpa [#allocation12], 0
    %s21 = scalar_lea.sflag [#allocation12], 1
    %22 = vsyncpa %s21, 0
    loop: start=0, step=1, limit=4
    $region2: #{generator_forward.6} parent=1 // loop_pre_header
      _
    $region3: #{generator_forward.6} parent=1 // loop_header
      %s24 = sphi 0, %s28
      %p25 = scmp.ge.s32.totalorder %s24, 4
      %s34 = sphi 0, %s36
      %s37 = sphi 0, %s34
      %s38 = sphi 0, %s37
      %s54 = sphi 0, %s38
      %s58 = sphi 0, %s58
      %s60 = sphi 0, %s58
      %s61 = sphi 0, %s60
      %s75 = sphi 0, %s61
      %s79 = sphi 0, %s79
      %s81 = sphi 0, %s79
      %s82 = sphi 0, %s81
      %s96 = sphi 0, %s82
      %s100 = sphi 0, %s100
      %s102 = sphi 0, %s100
      %s103 = sphi 0, %s102
      %s117 = sphi 0, %s103
      %s123 = sphi 0, %s125
      %s126 = sphi 0, %s123
      %s127 = sphi 0, %s126
      %s143 = sphi 0, %s127
      %s149 = sphi 0, %s151
      %s152 = sphi 0, %s149
      %s153 = sphi 0, %s152
      %s169 = sphi 0, %s153
      %s175 = sphi 0, %s177
      %s178 = sphi 0, %s175
      %s179 = sphi 0, %s178
      %s195 = sphi 0, %s179
    $region4: #{generator_forward.6} parent=1 // loop_header_branch
      %27 = sbr.rel (%p25) target = $region8
    $region5: #{generator_forward.6} parent=1 // loop_body
      %s29 = ssub.s32 %s24, 1
      %s30 = ssub.s32 %s24, 2
      %s31 = sadd.s32 %s24, 1
      %s32 = ssub.s32 %s24, %s31
      %p33 = scmp.eq.s32.totalorder %s32, 0
      %s35 = sadd.s32 %s34, 1
      %s36 = scalar_select %p33, %s34, %s35
      %p39 = pneg %p33
      %p40 = scmp.eq.s32.totalorder %s24, 1
      %p41 = por %p39, %p40
      %p42 = scmp.ne.s32.totalorder %s34, %s37
      %p43 = scmp.eq.s32.totalorder %s24, 0
      %p44 = por %p42, %p43
      %p45 = scmp.ne.s32.totalorder %s34, %s37
      %p46 = scmp.eq.s32.totalorder %s29, 1
      %p47 = por %p45, %p46
      %p48 = scmp.ne.s32.totalorder %s37, %s38
      %p49 = scmp.eq.s32.totalorder %s29, 0
      %p50 = por %p48, %p49
      %p51 = scmp.ne.s32.totalorder %s37, %s38
      %p52 = scmp.eq.s32.totalorder %s30, 1
      %p53 = por %p51, %p52
      %p55 = scmp.ne.s32.totalorder %s38, %s54
      %p56 = scmp.eq.s32.totalorder %s30, 0
      %p57 = por %p55, %p56
      %s59 = sadd.s32 %s58, 1
      %p62 = scmp.eq.s32.totalorder %s24, 1
      %p63 = scmp.ne.s32.totalorder %s58, %s60
      %p64 = scmp.eq.s32.totalorder %s24, 0
      %p65 = por %p63, %p64
      %p66 = scmp.ne.s32.totalorder %s58, %s60
      %p67 = scmp.eq.s32.totalorder %s29, 1
      %p68 = por %p66, %p67
      %p69 = scmp.ne.s32.totalorder %s60, %s61
      %p70 = scmp.eq.s32.totalorder %s29, 0
      %p71 = por %p69, %p70
      %p72 = scmp.ne.s32.totalorder %s60, %s61
      %p73 = scmp.eq.s32.totalorder %s30, 1
      %p74 = por %p72, %p73
      %p76 = scmp.ne.s32.totalorder %s61, %s75
      %p77 = scmp.eq.s32.totalorder %s30, 0
      %p78 = por %p76, %p77
      %s80 = sadd.s32 %s79, 1
      %p83 = scmp.eq.s32.totalorder %s24, 1
      %p84 = scmp.ne.s32.totalorder %s79, %s81
      %p85 = scmp.eq.s32.totalorder %s24, 0
      %p86 = por %p84, %p85
      %p87 = scmp.ne.s32.totalorder %s79, %s81
      %p88 = scmp.eq.s32.totalorder %s29, 1
      %p89 = por %p87, %p88
      %p90 = scmp.ne.s32.totalorder %s81, %s82
      %p91 = scmp.eq.s32.totalorder %s29, 0
      %p92 = por %p90, %p91
      %p93 = scmp.ne.s32.totalorder %s81, %s82
      %p94 = scmp.eq.s32.totalorder %s30, 1
      %p95 = por %p93, %p94
      %p97 = scmp.ne.s32.totalorder %s82, %s96
      %p98 = scmp.eq.s32.totalorder %s30, 0
      %p99 = por %p97, %p98
      %s101 = sadd.s32 %s100, 1
      %p104 = scmp.eq.s32.totalorder %s24, 1
      %p105 = scmp.ne.s32.totalorder %s100, %s102
      %p106 = scmp.eq.s32.totalorder %s24, 0
      %p107 = por %p105, %p106
      %p108 = scmp.ne.s32.totalorder %s100, %s102
      %p109 = scmp.eq.s32.totalorder %s29, 1
      %p110 = por %p108, %p109
      %p111 = scmp.ne.s32.totalorder %s102, %s103
      %p112 = scmp.eq.s32.totalorder %s29, 0
      %p113 = por %p111, %p112
      %p114 = scmp.ne.s32.totalorder %s102, %s103
      %p115 = scmp.eq.s32.totalorder %s30, 1
      %p116 = por %p114, %p115
      %p118 = scmp.ne.s32.totalorder %s103, %s117
      %p119 = scmp.eq.s32.totalorder %s30, 0
      %p120 = por %p118, %p119
      %s121 = ssub.s32 %s24, %s31
      %p122 = scmp.eq.s32.totalorder %s121, 0
      %s124 = sadd.s32 %s123, 1
      %s125 = scalar_select %p122, %s123, %s124
      %p128 = pneg %p122
      %p129 = scmp.eq.s32.totalorder %s24, 1
      %p130 = por %p128, %p129
      %p131 = scmp.ne.s32.totalorder %s123, %s126
      %p132 = scmp.eq.s32.totalorder %s24, 0
      %p133 = por %p131, %p132
      %p134 = scmp.ne.s32.totalorder %s123, %s126
      %p135 = scmp.eq.s32.totalorder %s29, 1
      %p136 = por %p134, %p135
      %p137 = scmp.ne.s32.totalorder %s126, %s127
      %p138 = scmp.eq.s32.totalorder %s29, 0
      %p139 = por %p137, %p138
      %p140 = scmp.ne.s32.totalorder %s126, %s127
      %p141 = scmp.eq.s32.totalorder %s30, 1
      %p142 = por %p140, %p141
      %p144 = scmp.ne.s32.totalorder %s127, %s143
      %p145 = scmp.eq.s32.totalorder %s30, 0
      %p146 = por %p144, %p145
      %s147 = ssub.s32 %s24, %s31
      %p148 = scmp.eq.s32.totalorder %s147, 0
      %s150 = sadd.s32 %s149, 1
      %s151 = scalar_select %p148, %s149, %s150
      %p154 = pneg %p148
      %p155 = scmp.eq.s32.totalorder %s24, 1
      %p156 = por %p154, %p155
      %p157 = scmp.ne.s32.totalorder %s149, %s152
      %p158 = scmp.eq.s32.totalorder %s24, 0
      %p159 = por %p157, %p158
      %p160 = scmp.ne.s32.totalorder %s149, %s152
      %p161 = scmp.eq.s32.totalorder %s29, 1
      %p162 = por %p160, %p161
      %p163 = scmp.ne.s32.totalorder %s152, %s153
      %p164 = scmp.eq.s32.totalorder %s29, 0
      %p165 = por %p163, %p164
      %p166 = scmp.ne.s32.totalorder %s152, %s153
      %p167 = scmp.eq.s32.totalorder %s30, 1
      %p168 = por %p166, %p167
      %p170 = scmp.ne.s32.totalorder %s153, %s169
      %p171 = scmp.eq.s32.totalorder %s30, 0
      %p172 = por %p170, %p171
      %s173 = ssub.s32 %s24, %s31
      %p174 = scmp.eq.s32.totalorder %s173, 0
      %s176 = sadd.s32 %s175, 1
      %s177 = scalar_select %p174, %s175, %s176
      %p180 = pneg %p174
      %p181 = scmp.eq.s32.totalorder %s24, 1
      %p182 = por %p180, %p181
      %p183 = scmp.ne.s32.totalorder %s175, %s178
      %p184 = scmp.eq.s32.totalorder %s24, 0
      %p185 = por %p183, %p184
      %p186 = scmp.ne.s32.totalorder %s175, %s178
      %p187 = scmp.eq.s32.totalorder %s29, 1
      %p188 = por %p186, %p187
      %p189 = scmp.ne.s32.totalorder %s178, %s179
      %p190 = scmp.eq.s32.totalorder %s29, 0
      %p191 = por %p189, %p190
      %p192 = scmp.ne.s32.totalorder %s178, %s179
      %p193 = scmp.eq.s32.totalorder %s30, 1
      %p194 = por %p192, %p193
      %p196 = scmp.ne.s32.totalorder %s179, %s195
      %p197 = scmp.eq.s32.totalorder %s30, 0
      %p198 = por %p196, %p197
      %p199 = scmp.le.s32.totalorder 1, %s24
      %p200 = scmp.lt.s32.totalorder %s24, 3
      %p201 = pnand %p199, %p200
      %p202 = pneg %p201
      // Predicated region
      $region9: #{generator_forward.6} parent=5 // pred_check
        _
      $region10: #{generator_forward.6} parent=5 // pred_check_branch
        %204 = sbr.rel (%p201) target = $region12
      $region11: #{generator_forward.6} parent=5 // pred_region
        %s205 = ssub.s32 %s24, 1
        // Predicated region
        $region13: #{generator_forward.6} parent=11 // pred_check
          %p206 = pneg %p71
        $region14: #{generator_forward.6} parent=11 // pred_check_branch
          %208 = sbr.rel (%p206) target = $region16
        $region15: #{generator_forward.6} parent=11 // pred_region
          %s210 = ssub.s32 16, 16
          %211 = vsyncadd [#allocation6], %s210
          %s213 = sshll.u32 [#allocation5], 4
          %s214 = int_to_ptr.vmem [resolvable:$true] %s213
          %216 = dma.hbm_to_vmem [thread:$0]  %s1, 16, %s214, [#allocation6]
        $region16: #{generator_forward.6} parent=11 // pred_fallthru
          _
        // Predicated region
        $region17: #{generator_forward.6} parent=11 // pred_check
          %p217 = pneg %p92
        $region18: #{generator_forward.6} parent=11 // pred_check_branch
          %219 = sbr.rel (%p217) target = $region20
        $region19: #{generator_forward.6} parent=11 // pred_region
          %s221 = ssub.s32 16, 16
          %222 = vsyncadd [#allocation6], %s221
          %s224 = sshll.u32 [#allocation7], 4
          %s225 = int_to_ptr.vmem [resolvable:$true] %s224
          %227 = dma.hbm_to_vmem [thread:$0]  %s2, 16, %s225, [#allocation6]
        $region20: #{generator_forward.6} parent=11 // pred_fallthru
          _
        // Predicated region
        $region21: #{generator_forward.6} parent=11 // pred_check
          %p228 = pneg %p113
        $region22: #{generator_forward.6} parent=11 // pred_check_branch
          %230 = sbr.rel (%p228) target = $region24
        $region23: #{generator_forward.6} parent=11 // pred_region
          %s232 = ssub.s32 2048, 2048
          %233 = vsyncadd [#allocation9], %s232
          %s234 = sshll.u32 [#allocation8], 4
          %s235 = int_to_ptr.vmem [resolvable:$true] %s234
          %240 = dma.hbm_to_vmem [thread:$0]  %s3, 2048, %s235, [#allocation9], 128, 128, 8
        $region24: #{generator_forward.6} parent=11 // pred_fallthru
          _
      $region12: #{generator_forward.6} parent=5 // pred_fallthru
        _
      %p241 = scmp.lt.s32.totalorder %s24, 2
      // Predicated region
      $region25: #{generator_forward.6} parent=5 // pred_check
        %p242 = pneg %p241
      $region26: #{generator_forward.6} parent=5 // pred_check_branch
        %244 = sbr.rel (%p242) target = $region28
      $region27: #{generator_forward.6} parent=5 // pred_region
        // Predicated region
        $region29: #{generator_forward.6} parent=27 // pred_check
          %p245 = pneg %p44
        $region30: #{generator_forward.6} parent=27 // pred_check_branch
          %247 = sbr.rel (%p245) target = $region32
        $region31: #{generator_forward.6} parent=27 // pred_region
          %s248 = sand.u32 %s34, 1
          %s249 = scalar_lea.sflag [#allocation3], %s248
          %s250 = sand.u32 %s34, 1
          %s251 = smul.addr %s250, 8
          %s252 = scalar_lea.vmem [#allocation2], %s251
          %s254 = ssub.s32 128, 128
          %255 = vsyncadd %s249, %s254
          %s256 = smul.addr %s24, 4
          %s257 = smul.addr %s256, 32
          %s258 = scalar_lea.hbm %s0, %s257
          %s259 = sshll.u32 %s252, 4
          %s260 = int_to_ptr.vmem [resolvable:$true] %s259
          %265 = dma.hbm_to_vmem [thread:$0]  %s258, 128, %s260, %s249, 32, 32, 2
        $region32: #{generator_forward.6} parent=27 // pred_fallthru
          _
      $region28: #{generator_forward.6} parent=5 // pred_fallthru
        _
      %p266 = scmp.le.s32.totalorder 1, %s24
      %p267 = scmp.lt.s32.totalorder %s24, 3
      %p268 = pnand %p266, %p267
      %p269 = pneg %p268
      // Predicated region
      $region33: #{generator_forward.6} parent=5 // pred_check
        _
      $region34: #{generator_forward.6} parent=5 // pred_check_branch
        %271 = sbr.rel (%p268) target = $region36
      $region35: #{generator_forward.6} parent=5 // pred_region
        %s272 = ssub.s32 %s24, 1
        %s273 = sand.u32 %s37, 1
        %s274 = scalar_lea.sflag [#allocation3], %s273
        %s275 = sand.u32 %s37, 1
        %s276 = smul.addr %s275, 8
        %s277 = scalar_lea.vmem [#allocation2], %s276
        // Predicated region
        $region37: #{generator_forward.6} parent=35 // pred_check
          %p278 = pneg %p50
        $region38: #{generator_forward.6} parent=35 // pred_check_branch
          %280 = sbr.rel (%p278) target = $region40
        $region39: #{generator_forward.6} parent=35 // pred_region
          %281 = dma.done %s274, 128
        $region40: #{generator_forward.6} parent=35 // pred_fallthru
          _
        // Predicated region
        $region41: #{generator_forward.6} parent=35 // pred_check
          %p282 = pneg %p71
        $region42: #{generator_forward.6} parent=35 // pred_check_branch
          %284 = sbr.rel (%p282) target = $region44
        $region43: #{generator_forward.6} parent=35 // pred_region
          %285 = dma.done [#allocation6], 16
        $region44: #{generator_forward.6} parent=35 // pred_fallthru
          _
        // Predicated region
        $region45: #{generator_forward.6} parent=35 // pred_check
          %p286 = pneg %p92
        $region46: #{generator_forward.6} parent=35 // pred_check_branch
          %288 = sbr.rel (%p286) target = $region48
        $region47: #{generator_forward.6} parent=35 // pred_region
          %289 = dma.done [#allocation6], 16
        $region48: #{generator_forward.6} parent=35 // pred_fallthru
          _
        // Predicated region
        $region49: #{generator_forward.6} parent=35 // pred_check
          %p290 = pneg %p113
        $region50: #{generator_forward.6} parent=35 // pred_check_branch
          %292 = sbr.rel (%p290) target = $region52
        $region51: #{generator_forward.6} parent=35 // pred_region
          %293 = dma.done [#allocation9], 2048
        $region52: #{generator_forward.6} parent=35 // pred_fallthru
          _
        %s294 = sand.u32 %s37, 1
        %s295 = scalar_lea.sflag [#allocation3], %s294
        %s296 = sand.u32 %s37, 1
        %s297 = smul.addr %s296, 8
        %s298 = scalar_lea.vmem [#allocation2], %s297
        %p299 = pneg %p50
        %p300 = pneg %p47
        %p301 = pneg %p71
        %p302 = pneg %p68
        %p303 = pneg %p92
        %p304 = pneg %p89
        %p305 = pneg %p113
        %p306 = pneg %p110
        %p307 = pneg %p139
        %p308 = pneg %p136
        %s309 = sand.u32 %s126, 1
        %s310 = scalar_lea.sflag [#allocation4], %s309
        %s311 = sand.u32 %s126, 1
        %s312 = smul.addr %s311, 64
        %s313 = scalar_lea.vmem [#allocation10], %s312
        %p314 = pneg %p165
        %p315 = pneg %p162
        %s316 = sand.u32 %s29, 1
        %s317 = scalar_lea.sflag [#allocation12], %s316
        %s318 = sand.u32 %s152, 1
        %s319 = smul.addr %s318, 32
        %s320 = scalar_lea.vmem [#allocation11], %s319
        %p321 = pneg %p191
        %p322 = pneg %p188
        %s323 = sand.u32 %s29, 1
        %s324 = scalar_lea.sflag [#allocation12], %s323
        %s325 = sand.u32 %s178, 1
        %s326 = smul.addr %s325, 32
        %s327 = scalar_lea.vmem [#allocation13], %s326
        %v329 = vld [vmem:[%s277] sm:$0x3]
        %v330 = vld [vmem:[%s277 + $0x2] sm:$0x3]
        %v331 = vld [vmem:[%s277 + $0x4] sm:$0x3]
        %v332 = vld [vmem:[%s277 + $0x6] sm:$0x3]
        %v333 = vunpack.c.l.bf16 %v329
        %v334 = vunpack.c.l.bf16 %v330
        %v335 = vunpack.c.l.bf16 %v331
        %v336 = vunpack.c.l.bf16 %v332
        %v337 = vld [vmem:[#allocation5] sm:$0x1]
        %v339 = vlaneseq
        %v340 = vshrl.u32 %v339, 7
        %v341 = vsub.s32 0, %v340
        %v342 = vrot.slane %v337, %v341
        %v344 = vmul.f32 %v333, %v342
        %v345 = vmul.f32 %v334, %v342
        %v346 = vmul.f32 %v335, %v342
        %v347 = vmul.f32 %v336, %v342
        %v348 = vld [vmem:[#allocation7] sm:$0x1]
        %v350 = vlaneseq
        %v351 = vshrl.u32 %v350, 7
        %v352 = vsub.s32 0, %v351
        %v353 = vrot.slane %v348, %v352
        %v355 = vadd.f32 %v344, %v353
        %v356 = vadd.f32 %v345, %v353
        %v357 = vadd.f32 %v346, %v353
        %v358 = vadd.f32 %v347, %v353
        %v359 = vmax.f32 %v355, 0.0
        %v360 = vmax.f32 %v356, 0.0
        %v361 = vmax.f32 %v357, 0.0
        %v362 = vmax.f32 %v358, 0.0
        %v368 = vrot.slane 0.0, 7
        %v369 = vrot.slane %v359, 7
        %v370 = vrot.slane %v360, 7
        %v371 = vrot.slane %v361, 7
        %v372 = vrot.slane %v362, 7
        %vm378 = vcmask 1040384
        %v379 = vsel %vm378, 0.0, %v368
        %v380 = vsel %vm378, 0.0, %v369
        %v381 = vsel %vm378, 0.0, %v370
        %v382 = vsel %vm378, 0.0, %v371
        %v383 = vsel %vm378, 0.0, %v372
        %vm384 = vcmask 1044480
        %v385 = vsel %vm384, %v379, 0.0
        %v386 = vsel %vm384, %v380, 0.0
        %v387 = vsel %vm384, %v381, 0.0
        %v388 = vsel %vm384, %v382, 0.0
        %v389 = vsel %vm384, %v383, 0.0
        %v390 = vpack.c.bf16 %v385, %v385
        %v391 = vpack.c.bf16 %v386, %v386
        %v392 = vpack.c.bf16 %v387, %v387
        %v393 = vpack.c.bf16 %v388, %v388
        %v394 = vpack.c.bf16 %v389, %v389
        %v396 = vshrl.u32 %v390, 16
        %v398 = vshll.u32 %v390, 16
        %v400 = vrot.slane %v398, 1
        %v401 = vor.u32 %v396, %v400
        %v403 = vshrl.u32 %v391, 16
        %v405 = vshll.u32 %v391, 16
        %v407 = vrot.slane %v405, 1
        %v408 = vor.u32 %v403, %v407
        %v410 = vshrl.u32 %v392, 16
        %v412 = vshll.u32 %v392, 16
        %v414 = vrot.slane %v412, 1
        %v415 = vor.u32 %v410, %v414
        %v417 = vshrl.u32 %v393, 16
        %v419 = vshll.u32 %v393, 16
        %v421 = vrot.slane %v419, 1
        %v422 = vor.u32 %v417, %v421
        %423 = vrot.lane.b32.xlu0 %v401, 64
        %v424 = vpop.permute.xlu0 %423
        %425 = vrot.lane.b32.xlu0 %v408, 64
        %v426 = vpop.permute.xlu0 %425
        %427 = vrot.lane.b32.xlu0 %v415, 64
        %v428 = vpop.permute.xlu0 %427
        %429 = vrot.lane.b32.xlu0 %v422, 64
        %v430 = vpop.permute.xlu0 %429
        %v432 = vshrl.u32 %v394, 16
        %v434 = vshll.u32 %v394, 16
        %v436 = vrot.slane %v434, 1
        %v437 = vor.u32 %v432, %v436
        %438 = vrot.lane.b32.xlu0 %v437, 64
        %v439 = vpop.permute.xlu0 %438
        %vm440 = vcmask 523264
        %v442 = vsel %vm440, %v390, %v424
        %v444 = vsel %vm440, %v391, %v426
        %v446 = vsel %vm440, %v392, %v428
        %v448 = vsel %vm440, %v393, %v430
        %v450 = vsel %vm440, %v394, %v439
        %v456 = vcombine.low %v442, %v444
        %v458 = vunpack.c.l.s4 1983009808
        %v459 = vunpack.c.0.s8 %v458
        %v460 = vlaneseq
        %v461 = vshrl.u32 %v460, 7
        %v462 = vsub.s32 %v459, %v461
        %v463 = vrot.slane %v456, %v462
        %v464 = vcombine.low %v444, %v446
        %v466 = vunpack.c.l.s4 1983009808
        %v467 = vunpack.c.0.s8 %v466
        %v468 = vlaneseq
        %v469 = vshrl.u32 %v468, 7
        %v470 = vsub.s32 %v467, %v469
        %v471 = vrot.slane %v464, %v470
        %v472 = vcombine.low %v446, %v448
        %v474 = vunpack.c.l.s4 1983009808
        %v475 = vunpack.c.0.s8 %v474
        %v476 = vlaneseq
        %v477 = vshrl.u32 %v476, 7
        %v478 = vsub.s32 %v475, %v477
        %v479 = vrot.slane %v472, %v478
        %v480 = vcombine.low %v448, %v450
        %v482 = vunpack.c.l.s4 1983009808
        %v483 = vunpack.c.0.s8 %v482
        %v484 = vlaneseq
        %v485 = vshrl.u32 %v484, 7
        %v486 = vsub.s32 %v483, %v485
        %v487 = vrot.slane %v480, %v486
        %v488 = vld [vmem:[#allocation8] sm:$0xff]
        %v489 = vld [vmem:[#allocation8 + $0x8] sm:$0xff]
        %v490 = vld [vmem:[#allocation8 + $0x10] sm:$0xff]
        %v491 = vld [vmem:[#allocation8 + $0x18] sm:$0xff]
        %v496 = vunpack.c.l.b16 %v488
        %v497 = vunpack.c.h.b16 %v488
        %v498 = vunpack.c.l.b16 %v489
        %v499 = vunpack.c.h.b16 %v489
        %v500 = vunpack.c.l.b16 %v490
        %v501 = vunpack.c.h.b16 %v490
        %v502 = vunpack.c.l.b16 %v491
        %v503 = vunpack.c.h.b16 %v491
        %v504 = vpack.c.b16 %v498, %v496
        %v505 = vpack.c.b16 %v499, %v497
        %v506 = vpack.c.b16 %v502, %v500
        %v507 = vpack.c.b16 %v503, %v501
        %v512 = vcombine.low %v463, %v471
        %v513 = vcombine.low %v479, %v487
        %v515 = vunpack.c.l.s4 1983009808
        %v516 = vunpack.c.0.s8 %v515
        %v517 = vlaneseq
        %v518 = vshrl.u32 %v517, 7
        %v519 = vsub.s32 %v516, %v518
        %v520 = vrot.slane %v512, %v519
        %v522 = vunpack.c.l.s4 1983009808
        %v523 = vunpack.c.0.s8 %v522
        %v524 = vlaneseq
        %v525 = vshrl.u32 %v524, 7
        %v526 = vsub.s32 %v523, %v525
        %v527 = vrot.slane %v513, %v526
        %v528 = vcombine.low %v520, %v527
        %v529 = vcombine.high %v520, %v527
        %532 = vmatprep.subr.bf16.mxu0 %v529
        %533 = vmatpush1.bf16.xpose.msra.mxu0 %v528
        %534 = vmatprep.subr.bf16.mxu0 0
        %535 = vmatpush1.bf16.xpose.msra.mxu0 0
        %536 = vmatprep.subr.bf16.mxu0 0
        %537 = vmatpush1.bf16.xpose.msra.mxu0 0
        %538 = vmatprep.subr.bf16.mxu0 0
        %539 = vmatpush1.bf16.xpose.msra.mxu0 0
        %540 = vmatprep.subr.bf16.mxu0 0
        %541 = vmatpush1.bf16.xpose.msra.mxu0 0
        %542 = vmatprep.subr.bf16.mxu0 0
        %543 = vmatpush1.bf16.xpose.msra.mxu0 0
        %544 = vmatprep.subr.bf16.mxu0 0
        %545 = vmatpush1.bf16.xpose.msra.mxu0 0
        %546 = vmatprep.subr.bf16.mxu0 0
        %547 = vmatpush1.bf16.xpose.msra.mxu0 0
        %548 = vmatprep.subr.bf16.mxu0 0
        %549 = vmatpush1.bf16.xpose.msra.mxu0 0
        %550 = vmatprep.subr.bf16.mxu0 0
        %551 = vmatpush1.bf16.xpose.msra.mxu0 0
        %552 = vmatprep.subr.bf16.mxu0 0
        %553 = vmatpush1.bf16.xpose.msra.mxu0 0
        %554 = vmatprep.subr.bf16.mxu0 0
        %555 = vmatpush1.bf16.xpose.msra.mxu0 0
        %556 = vmatprep.subr.bf16.mxu0 0
        %557 = vmatpush1.bf16.xpose.msra.mxu0 0
        %558 = vmatprep.subr.bf16.mxu0 0
        %559 = vmatpush1.bf16.xpose.msra.mxu0 0
        %560 = vmatprep.subr.bf16.mxu0 0
        %561 = vmatpush1.bf16.xpose.msra.mxu0 0
        %562 = vmatprep.subr.bf16.mxu0 0
        %563 = vmatpush1.bf16.xpose.msra.mxu0 0
        %564 = vmatprep.mubr.bf16.mxu0 %v505
        %565 = vmatmul.mubr.bf16.gmra.mrb[0].mxu0 %v504
        %v566 = vpop.f32.mrb[0].mxu0
        %v567 = vadd.f32 0.0, %v566
        %v568 = vpop.f32.mrb[0].mxu0
        %v569 = vpop.f32.mrb[0].mxu0
        %v570 = vadd.f32 0.0, %v569
        %v571 = vpop.f32.mrb[0].mxu0
        %572 = vmatprep.mubr.bf16.mxu0 %v507
        %573 = vmatmul.mubr.bf16.gmra.mrb[0].mxu0 %v506
        %v574 = vpop.f32.mrb[0].mxu0
        %v575 = vadd.f32 0.0, %v574
        %v576 = vpop.f32.mrb[0].mxu0
        %v577 = vpop.f32.mrb[0].mxu0
        %v578 = vadd.f32 0.0, %v577
        %v579 = vpop.f32.mrb[0].mxu0
        %580 = vdwg.mxu0
        %vm581 = vcmask 130048
        %v582 = vsel %vm581, %v567, 0.0
        %583 = vadd.xlane.f32.xlu0 %v582
        %v584 = vpop.xlane.xlu0 %583
        %v585 = vsel %vm581, %v570, 0.0
        %586 = vadd.xlane.f32.xlu0 %v585
        %v587 = vpop.xlane.xlu0 %586
        %v588 = vsel %vm581, %v575, 0.0
        %589 = vadd.xlane.f32.xlu0 %v588
        %v590 = vpop.xlane.xlu0 %589
        %v591 = vsel %vm581, %v578, 0.0
        %592 = vadd.xlane.f32.xlu0 %v591
        %v593 = vpop.xlane.xlu0 %592
        %v594 = vadd.f32 %v584, 0.0
        %v595 = vadd.f32 %v587, 0.0
        %v596 = vadd.f32 %v590, 0.0
        %v597 = vadd.f32 %v593, 0.0
        %v598 = vmul.f32 %v567, %v567
        %v599 = vmul.f32 %v570, %v570
        %v600 = vmul.f32 %v575, %v575
        %v601 = vmul.f32 %v578, %v578
        %v602 = vsel %vm581, %v598, 0.0
        %603 = vadd.xlane.f32.xlu0 %v602
        %v604 = vpop.xlane.xlu0 %603
        %v605 = vsel %vm581, %v599, 0.0
        %606 = vadd.xlane.f32.xlu0 %v605
        %v607 = vpop.xlane.xlu0 %606
        %v608 = vsel %vm581, %v600, 0.0
        %609 = vadd.xlane.f32.xlu0 %v608
        %v610 = vpop.xlane.xlu0 %609
        %v611 = vsel %vm581, %v601, 0.0
        %612 = vadd.xlane.f32.xlu0 %v611
        %v613 = vpop.xlane.xlu0 %612
        %v614 = vadd.f32 %v604, 0.0
        %v615 = vadd.f32 %v607, 0.0
        %v616 = vadd.f32 %v610, 0.0
        %v617 = vadd.f32 %v613, 0.0
        %v618 = vpack.c.bf16 %v570, %v567
        %v619 = vpack.c.bf16 %v578, %v575
        %v622 = vunpack.c.l.b16 %v618
        %v623 = vunpack.c.h.b16 %v618
        %v624 = vunpack.c.l.b16 %v619
        %v625 = vunpack.c.h.b16 %v619
        %v626 = vpack.c.b16 %v622, %v622
        %v627 = vpack.c.b16 %v623, %v623
        %v628 = vpack.c.b16 %v624, %v624
        %v629 = vpack.c.b16 %v625, %v625
        %vm634 = vcmask 125952
        %635 = vst.msk [vmem:[%s313] sm:$0xf] %vm634, %v626
        %636 = vst.msk [vmem:[%s313 + $0x4] sm:$0xf] %vm634, %v627
        %637 = vst.msk [vmem:[%s313 + $0x8] sm:$0xf] %vm634, %v628
        %638 = vst.msk [vmem:[%s313 + $0xc] sm:$0xf] %vm634, %v629
        %v639 = vcombine.high %v463, %v463
        %v640 = vcombine.high %v471, %v471
        %v641 = vcombine.high %v479, %v479
        %v642 = vcombine.high %v487, %v487
        %vm643 = vsmask.f32 1280
        %vm644 = vsmask.f32 3336
        %vm645 = vmor %vm643, %vm644
        %vm646 = vsmask.f32 5392
        %vm647 = vmor %vm645, %vm646
        %vm648 = vsmask.f32 7448
        %vm649 = vmor %vm647, %vm648
        %v651 = vshrl.u32 %v463, 16
        %v653 = vrot.slane %v651, 6
        %v654 = vshll.u32 %v463, 16
        %v656 = vrot.slane %v654, 7
        %v657 = vor.u32 %v653, %v656
        %v658 = vrot.slane %v657, 2
        %v660 = vshll.u32 %v639, 16
        %v662 = vrot.slane %v660, 7
        %v663 = vsel %vm649, %v658, %v662
        %v665 = vshrl.u32 %v471, 16
        %v667 = vrot.slane %v665, 6
        %v668 = vshll.u32 %v471, 16
        %v670 = vrot.slane %v668, 7
        %v671 = vor.u32 %v667, %v670
        %v672 = vrot.slane %v671, 2
        %v674 = vshll.u32 %v640, 16
        %v676 = vrot.slane %v674, 7
        %v677 = vsel %vm649, %v672, %v676
        %v679 = vshrl.u32 %v479, 16
        %v681 = vrot.slane %v679, 6
        %v682 = vshll.u32 %v479, 16
        %v684 = vrot.slane %v682, 7
        %v685 = vor.u32 %v681, %v684
        %v686 = vrot.slane %v685, 2
        %v688 = vshll.u32 %v641, 16
        %v690 = vrot.slane %v688, 7
        %v691 = vsel %vm649, %v686, %v690
        %v693 = vshrl.u32 %v487, 16
        %v695 = vrot.slane %v693, 6
        %v696 = vshll.u32 %v487, 16
        %v698 = vrot.slane %v696, 7
        %v699 = vor.u32 %v695, %v698
        %v700 = vrot.slane %v699, 2
        %v702 = vshll.u32 %v642, 16
        %v704 = vrot.slane %v702, 7
        %v705 = vsel %vm649, %v700, %v704
        %s706 = scalar_lea.vmem [#allocation8], 32
        %v707 = vld [vmem:[%s706] sm:$0xff]
        %v708 = vld [vmem:[%s706 + $0x8] sm:$0xff]
        %v709 = vld [vmem:[%s706 + $0x10] sm:$0xff]
        %v710 = vld [vmem:[%s706 + $0x18] sm:$0xff]
        %v715 = vunpack.c.l.b16 %v707
        %v716 = vunpack.c.h.b16 %v707
        %v717 = vunpack.c.l.b16 %v708
        %v718 = vunpack.c.h.b16 %v708
        %v719 = vunpack.c.l.b16 %v709
        %v720 = vunpack.c.h.b16 %v709
        %v721 = vunpack.c.l.b16 %v710
        %v722 = vunpack.c.h.b16 %v710
        %v723 = vpack.c.b16 %v717, %v715
        %v724 = vpack.c.b16 %v718, %v716
        %v725 = vpack.c.b16 %v721, %v719
        %v726 = vpack.c.b16 %v722, %v720
        %v731 = vcombine.low %v663, %v677
        %v732 = vcombine.low %v691, %v705
        %v734 = vunpack.c.l.s4 1983009808
        %v735 = vunpack.c.0.s8 %v734
        %v736 = vlaneseq
        %v737 = vshrl.u32 %v736, 7
        %v738 = vsub.s32 %v735, %v737
        %v739 = vrot.slane %v731, %v738
        %v741 = vunpack.c.l.s4 1983009808
        %v742 = vunpack.c.0.s8 %v741
        %v743 = vlaneseq
        %v744 = vshrl.u32 %v743, 7
        %v745 = vsub.s32 %v742, %v744
        %v746 = vrot.slane %v732, %v745
        %v747 = vcombine.low %v739, %v746
        %v748 = vcombine.high %v739, %v746
        %751 = vmatprep.subr.bf16.mxu0 %v748
        %752 = vmatpush1.bf16.xpose.msra.mxu0 %v747
        %753 = vmatprep.subr.bf16.mxu0 0
        %754 = vmatpush1.bf16.xpose.msra.mxu0 0
        %755 = vmatprep.subr.bf16.mxu0 0
        %756 = vmatpush1.bf16.xpose.msra.mxu0 0
        %757 = vmatprep.subr.bf16.mxu0 0
        %758 = vmatpush1.bf16.xpose.msra.mxu0 0
        %759 = vmatprep.subr.bf16.mxu0 0
        %760 = vmatpush1.bf16.xpose.msra.mxu0 0
        %761 = vmatprep.subr.bf16.mxu0 0
        %762 = vmatpush1.bf16.xpose.msra.mxu0 0
        %763 = vmatprep.subr.bf16.mxu0 0
        %764 = vmatpush1.bf16.xpose.msra.mxu0 0
        %765 = vmatprep.subr.bf16.mxu0 0
        %766 = vmatpush1.bf16.xpose.msra.mxu0 0
        %767 = vmatprep.subr.bf16.mxu0 0
        %768 = vmatpush1.bf16.xpose.msra.mxu0 0
        %769 = vmatprep.subr.bf16.mxu0 0
        %770 = vmatpush1.bf16.xpose.msra.mxu0 0
        %771 = vmatprep.subr.bf16.mxu0 0
        %772 = vmatpush1.bf16.xpose.msra.mxu0 0
        %773 = vmatprep.subr.bf16.mxu0 0
        %774 = vmatpush1.bf16.xpose.msra.mxu0 0
        %775 = vmatprep.subr.bf16.mxu0 0
        %776 = vmatpush1.bf16.xpose.msra.mxu0 0
        %777 = vmatprep.subr.bf16.mxu0 0
        %778 = vmatpush1.bf16.xpose.msra.mxu0 0
        %779 = vmatprep.subr.bf16.mxu0 0
        %780 = vmatpush1.bf16.xpose.msra.mxu0 0
        %781 = vmatprep.subr.bf16.mxu0 0
        %782 = vmatpush1.bf16.xpose.msra.mxu0 0
        %783 = vmatprep.mubr.bf16.mxu0 %v724
        %784 = vmatmul.mubr.bf16.gmra.mrb[0].mxu0 %v723
        %v785 = vpop.f32.mrb[0].mxu0
        %v786 = vadd.f32 0.0, %v785
        %v787 = vpop.f32.mrb[0].mxu0
        %v788 = vpop.f32.mrb[0].mxu0
        %v789 = vadd.f32 0.0, %v788
        %v790 = vpop.f32.mrb[0].mxu0
        %791 = vmatprep.mubr.bf16.mxu0 %v726
        %792 = vmatmul.mubr.bf16.gmra.mrb[0].mxu0 %v725
        %v793 = vpop.f32.mrb[0].mxu0
        %v794 = vadd.f32 0.0, %v793
        %v795 = vpop.f32.mrb[0].mxu0
        %v796 = vpop.f32.mrb[0].mxu0
        %v797 = vadd.f32 0.0, %v796
        %v798 = vpop.f32.mrb[0].mxu0
        %799 = vdwg.mxu0
        %v800 = vsel %vm581, %v786, 0.0
        %801 = vadd.xlane.f32.xlu0 %v800
        %v802 = vpop.xlane.xlu0 %801
        %v803 = vsel %vm581, %v789, 0.0
        %804 = vadd.xlane.f32.xlu0 %v803
        %v805 = vpop.xlane.xlu0 %804
        %v806 = vsel %vm581, %v794, 0.0
        %807 = vadd.xlane.f32.xlu0 %v806
        %v808 = vpop.xlane.xlu0 %807
        %v809 = vsel %vm581, %v797, 0.0
        %810 = vadd.xlane.f32.xlu0 %v809
        %v811 = vpop.xlane.xlu0 %810
        %v812 = vadd.f32 %v594, %v802
        %v813 = vadd.f32 %v595, %v805
        %v814 = vadd.f32 %v596, %v808
        %v815 = vadd.f32 %v597, %v811
        %v816 = vmul.f32 %v786, %v786
        %v817 = vmul.f32 %v789, %v789
        %v818 = vmul.f32 %v794, %v794
        %v819 = vmul.f32 %v797, %v797
        %v820 = vsel %vm581, %v816, 0.0
        %821 = vadd.xlane.f32.xlu0 %v820
        %v822 = vpop.xlane.xlu0 %821
        %v823 = vsel %vm581, %v817, 0.0
        %824 = vadd.xlane.f32.xlu0 %v823
        %v825 = vpop.xlane.xlu0 %824
        %v826 = vsel %vm581, %v818, 0.0
        %827 = vadd.xlane.f32.xlu0 %v826
        %v828 = vpop.xlane.xlu0 %827
        %v829 = vsel %vm581, %v819, 0.0
        %830 = vadd.xlane.f32.xlu0 %v829
        %v831 = vpop.xlane.xlu0 %830
        %v832 = vadd.f32 %v614, %v822
        %v833 = vadd.f32 %v615, %v825
        %v834 = vadd.f32 %v616, %v828
        %v835 = vadd.f32 %v617, %v831
        %v836 = vpack.c.bf16 %v789, %v786
        %v837 = vpack.c.bf16 %v797, %v794
        %v840 = vunpack.c.l.b16 %v836
        %v841 = vunpack.c.h.b16 %v836
        %v842 = vunpack.c.l.b16 %v837
        %v843 = vunpack.c.h.b16 %v837
        %v844 = vpack.c.b16 %v840, %v840
        %v845 = vpack.c.b16 %v841, %v841
        %v846 = vpack.c.b16 %v842, %v842
        %v847 = vpack.c.b16 %v843, %v843
        %s852 = scalar_lea.vmem %s313, 16 [#allocation10]
        %853 = vst.msk [vmem:[%s852] sm:$0xf] %vm634, %v844
        %854 = vst.msk [vmem:[%s852 + $0x4] sm:$0xf] %vm634, %v845
        %855 = vst.msk [vmem:[%s852 + $0x8] sm:$0xf] %vm634, %v846
        %856 = vst.msk [vmem:[%s852 + $0xc] sm:$0xf] %vm634, %v847
        %v857 = vcombine.low %v450, %v442
        %v859 = vunpack.c.l.s4 1983009808
        %v860 = vunpack.c.0.s8 %v859
        %v861 = vlaneseq
        %v862 = vshrl.u32 %v861, 7
        %v863 = vsub.s32 %v860, %v862
        %v864 = vrot.slane %v857, %v863
        %s865 = scalar_lea.vmem [#allocation8], 64
        %v866 = vld [vmem:[%s865] sm:$0xff]
        %v867 = vld [vmem:[%s865 + $0x8] sm:$0xff]
        %v868 = vld [vmem:[%s865 + $0x10] sm:$0xff]
        %v869 = vld [vmem:[%s865 + $0x18] sm:$0xff]
        %v874 = vunpack.c.l.b16 %v866
        %v875 = vunpack.c.h.b16 %v866
        %v876 = vunpack.c.l.b16 %v867
        %v877 = vunpack.c.h.b16 %v867
        %v878 = vunpack.c.l.b16 %v868
        %v879 = vunpack.c.h.b16 %v868
        %v880 = vunpack.c.l.b16 %v869
        %v881 = vunpack.c.h.b16 %v869
        %v882 = vpack.c.b16 %v876, %v874
        %v883 = vpack.c.b16 %v877, %v875
        %v884 = vpack.c.b16 %v880, %v878
        %v885 = vpack.c.b16 %v881, %v879
        %v890 = vcombine.low %v471, %v479
        %v891 = vcombine.low %v487, %v864
        %v893 = vunpack.c.l.s4 1983009808
        %v894 = vunpack.c.0.s8 %v893
        %v895 = vlaneseq
        %v896 = vshrl.u32 %v895, 7
        %v897 = vsub.s32 %v894, %v896
        %v898 = vrot.slane %v890, %v897
        %v900 = vunpack.c.l.s4 1983009808
        %v901 = vunpack.c.0.s8 %v900
        %v902 = vlaneseq
        %v903 = vshrl.u32 %v902, 7
        %v904 = vsub.s32 %v901, %v903
        %v905 = vrot.slane %v891, %v904
        %v906 = vcombine.low %v898, %v905
        %v907 = vcombine.high %v898, %v905
        %910 = vmatprep.subr.bf16.mxu0 %v907
        %911 = vmatpush1.bf16.xpose.msra.mxu0 %v906
        %912 = vmatprep.subr.bf16.mxu0 0
        %913 = vmatpush1.bf16.xpose.msra.mxu0 0
        %914 = vmatprep.subr.bf16.mxu0 0
        %915 = vmatpush1.bf16.xpose.msra.mxu0 0
        %916 = vmatprep.subr.bf16.mxu0 0
        %917 = vmatpush1.bf16.xpose.msra.mxu0 0
        %918 = vmatprep.subr.bf16.mxu0 0
        %919 = vmatpush1.bf16.xpose.msra.mxu0 0
        %920 = vmatprep.subr.bf16.mxu0 0
        %921 = vmatpush1.bf16.xpose.msra.mxu0 0
        %922 = vmatprep.subr.bf16.mxu0 0
        %923 = vmatpush1.bf16.xpose.msra.mxu0 0
        %924 = vmatprep.subr.bf16.mxu0 0
        %925 = vmatpush1.bf16.xpose.msra.mxu0 0
        %926 = vmatprep.subr.bf16.mxu0 0
        %927 = vmatpush1.bf16.xpose.msra.mxu0 0
        %928 = vmatprep.subr.bf16.mxu0 0
        %929 = vmatpush1.bf16.xpose.msra.mxu0 0
        %930 = vmatprep.subr.bf16.mxu0 0
        %931 = vmatpush1.bf16.xpose.msra.mxu0 0
        %932 = vmatprep.subr.bf16.mxu0 0
        %933 = vmatpush1.bf16.xpose.msra.mxu0 0
        %934 = vmatprep.subr.bf16.mxu0 0
        %935 = vmatpush1.bf16.xpose.msra.mxu0 0
        %936 = vmatprep.subr.bf16.mxu0 0
        %937 = vmatpush1.bf16.xpose.msra.mxu0 0
        %938 = vmatprep.subr.bf16.mxu0 0
        %939 = vmatpush1.bf16.xpose.msra.mxu0 0
        %940 = vmatprep.subr.bf16.mxu0 0
        %941 = vmatpush1.bf16.xpose.msra.mxu0 0
        %942 = vmatprep.mubr.bf16.mxu0 %v883
        %943 = vmatmul.mubr.bf16.gmra.mrb[0].mxu0 %v882
        %v944 = vpop.f32.mrb[0].mxu0
        %v945 = vadd.f32 0.0, %v944
        %v946 = vpop.f32.mrb[0].mxu0
        %v947 = vpop.f32.mrb[0].mxu0
        %v948 = vadd.f32 0.0, %v947
        %v949 = vpop.f32.mrb[0].mxu0
        %950 = vmatprep.mubr.bf16.mxu0 %v885
        %951 = vmatmul.mubr.bf16.gmra.mrb[0].mxu0 %v884
        %v952 = vpop.f32.mrb[0].mxu0
        %v953 = vadd.f32 0.0, %v952
        %v954 = vpop.f32.mrb[0].mxu0
        %v955 = vpop.f32.mrb[0].mxu0
        %v956 = vadd.f32 0.0, %v955
        %v957 = vpop.f32.mrb[0].mxu0
        %958 = vdwg.mxu0
        %v959 = vsel %vm581, %v945, 0.0
        %960 = vadd.xlane.f32.xlu0 %v959
        %v961 = vpop.xlane.xlu0 %960
        %v962 = vsel %vm581, %v948, 0.0
        %963 = vadd.xlane.f32.xlu0 %v962
        %v964 = vpop.xlane.xlu0 %963
        %v965 = vsel %vm581, %v953, 0.0
        %966 = vadd.xlane.f32.xlu0 %v965
        %v967 = vpop.xlane.xlu0 %966
        %v968 = vsel %vm581, %v956, 0.0
        %969 = vadd.xlane.f32.xlu0 %v968
        %v970 = vpop.xlane.xlu0 %969
        %v971 = vadd.f32 %v812, %v961
        %v972 = vadd.f32 %v813, %v964
        %v973 = vadd.f32 %v814, %v967
        %v974 = vadd.f32 %v815, %v970
        %v975 = vmul.f32 %v945, %v945
        %v976 = vmul.f32 %v948, %v948
        %v977 = vmul.f32 %v953, %v953
        %v978 = vmul.f32 %v956, %v956
        %v979 = vsel %vm581, %v975, 0.0
        %980 = vadd.xlane.f32.xlu0 %v979
        %v981 = vpop.xlane.xlu0 %980
        %v982 = vsel %vm581, %v976, 0.0
        %983 = vadd.xlane.f32.xlu0 %v982
        %v984 = vpop.xlane.xlu0 %983
        %v985 = vsel %vm581, %v977, 0.0
        %986 = vadd.xlane.f32.xlu0 %v985
        %v987 = vpop.xlane.xlu0 %986
        %v988 = vsel %vm581, %v978, 0.0
        %989 = vadd.xlane.f32.xlu0 %v988
        %v990 = vpop.xlane.xlu0 %989
        %v991 = vadd.f32 %v832, %v981
        %v992 = vadd.f32 %v833, %v984
        %v993 = vadd.f32 %v834, %v987
        %v994 = vadd.f32 %v835, %v990
        %v995 = vpack.c.bf16 %v948, %v945
        %v996 = vpack.c.bf16 %v956, %v953
        %v999 = vunpack.c.l.b16 %v995
        %v1000 = vunpack.c.h.b16 %v995
        %v1001 = vunpack.c.l.b16 %v996
        %v1002 = vunpack.c.h.b16 %v996
        %v1003 = vpack.c.b16 %v999, %v999
        %v1004 = vpack.c.b16 %v1000, %v1000
        %v1005 = vpack.c.b16 %v1001, %v1001
        %v1006 = vpack.c.b16 %v1002, %v1002
        %s1011 = scalar_lea.vmem %s313, 32 [#allocation10]
        %1012 = vst.msk [vmem:[%s1011] sm:$0xf] %vm634, %v1003
        %1013 = vst.msk [vmem:[%s1011 + $0x4] sm:$0xf] %vm634, %v1004
        %1014 = vst.msk [vmem:[%s1011 + $0x8] sm:$0xf] %vm634, %v1005
        %1015 = vst.msk [vmem:[%s1011 + $0xc] sm:$0xf] %vm634, %v1006
        %v1016 = vcombine.high %v864, %v864
        %v1018 = vshrl.u32 %v864, 16
        %v1020 = vrot.slane %v1018, 6
        %v1021 = vshll.u32 %v864, 16
        %v1023 = vrot.slane %v1021, 7
        %v1024 = vor.u32 %v1020, %v1023
        %v1025 = vrot.slane %v1024, 2
        %v1027 = vshll.u32 %v1016, 16
        %v1029 = vrot.slane %v1027, 7
        %v1030 = vsel %vm649, %v1025, %v1029
        %s1031 = scalar_lea.vmem [#allocation8], 96
        %v1032 = vld [vmem:[%s1031] sm:$0xff]
        %v1033 = vld [vmem:[%s1031 + $0x8] sm:$0xff]
        %v1034 = vld [vmem:[%s1031 + $0x10] sm:$0xff]
        %v1035 = vld [vmem:[%s1031 + $0x18] sm:$0xff]
        %v1040 = vunpack.c.l.b16 %v1032
        %v1041 = vunpack.c.h.b16 %v1032
        %v1042 = vunpack.c.l.b16 %v1033
        %v1043 = vunpack.c.h.b16 %v1033
        %v1044 = vunpack.c.l.b16 %v1034
        %v1045 = vunpack.c.h.b16 %v1034
        %v1046 = vunpack.c.l.b16 %v1035
        %v1047 = vunpack.c.h.b16 %v1035
        %v1048 = vpack.c.b16 %v1042, %v1040
        %v1049 = vpack.c.b16 %v1043, %v1041
        %v1050 = vpack.c.b16 %v1046, %v1044
        %v1051 = vpack.c.b16 %v1047, %v1045
        %v1056 = vcombine.low %v677, %v691
        %v1057 = vcombine.low %v705, %v1030
        %v1059 = vunpack.c.l.s4 1983009808
        %v1060 = vunpack.c.0.s8 %v1059
        %v1061 = vlaneseq
        %v1062 = vshrl.u32 %v1061, 7
        %v1063 = vsub.s32 %v1060, %v1062
        %v1064 = vrot.slane %v1056, %v1063
        %v1066 = vunpack.c.l.s4 1983009808
        %v1067 = vunpack.c.0.s8 %v1066
        %v1068 = vlaneseq
        %v1069 = vshrl.u32 %v1068, 7
        %v1070 = vsub.s32 %v1067, %v1069
        %v1071 = vrot.slane %v1057, %v1070
        %v1072 = vcombine.low %v1064, %v1071
        %v1073 = vcombine.high %v1064, %v1071
        %1076 = vmatprep.subr.bf16.mxu0 %v1073
        %1077 = vmatpush1.bf16.xpose.msra.mxu0 %v1072
        %1078 = vmatprep.subr.bf16.mxu0 0
        %1079 = vmatpush1.bf16.xpose.msra.mxu0 0
        %1080 = vmatprep.subr.bf16.mxu0 0
        %1081 = vmatpush1.bf16.xpose.msra.mxu0 0
        %1082 = vmatprep.subr.bf16.mxu0 0
        %1083 = vmatpush1.bf16.xpose.msra.mxu0 0
        %1084 = vmatprep.subr.bf16.mxu0 0
        %1085 = vmatpush1.bf16.xpose.msra.mxu0 0
        %1086 = vmatprep.subr.bf16.mxu0 0
        %1087 = vmatpush1.bf16.xpose.msra.mxu0 0
        %1088 = vmatprep.subr.bf16.mxu0 0
        %1089 = vmatpush1.bf16.xpose.msra.mxu0 0
        %1090 = vmatprep.subr.bf16.mxu0 0
        %1091 = vmatpush1.bf16.xpose.msra.mxu0 0
        %1092 = vmatprep.subr.bf16.mxu0 0
        %1093 = vmatpush1.bf16.xpose.msra.mxu0 0
        %1094 = vmatprep.subr.bf16.mxu0 0
        %1095 = vmatpush1.bf16.xpose.msra.mxu0 0
        %1096 = vmatprep.subr.bf16.mxu0 0
        %1097 = vmatpush1.bf16.xpose.msra.mxu0 0
        %1098 = vmatprep.subr.bf16.mxu0 0
        %1099 = vmatpush1.bf16.xpose.msra.mxu0 0
        %1100 = vmatprep.subr.bf16.mxu0 0
        %1101 = vmatpush1.bf16.xpose.msra.mxu0 0
        %1102 = vmatprep.subr.bf16.mxu0 0
        %1103 = vmatpush1.bf16.xpose.msra.mxu0 0
        %1104 = vmatprep.subr.bf16.mxu0 0
        %1105 = vmatpush1.bf16.xpose.msra.mxu0 0
        %1106 = vmatprep.subr.bf16.mxu0 0
        %1107 = vmatpush1.bf16.xpose.msra.mxu0 0
        %1108 = vmatprep.mubr.bf16.mxu0 %v1049
        %1109 = vmatmul.mubr.bf16.gmra.mrb[0].mxu0 %v1048
        %v1110 = vpop.f32.mrb[0].mxu0
        %v1111 = vadd.f32 0.0, %v1110
        %v1112 = vpop.f32.mrb[0].mxu0
        %v1113 = vpop.f32.mrb[0].mxu0
        %v1114 = vadd.f32 0.0, %v1113
        %v1115 = vpop.f32.mrb[0].mxu0
        %1116 = vmatprep.mubr.bf16.mxu0 %v1051
        %1117 = vmatmul.mubr.bf16.gmra.mrb[0].mxu0 %v1050
        %v1118 = vpop.f32.mrb[0].mxu0
        %v1119 = vadd.f32 0.0, %v1118
        %v1120 = vpop.f32.mrb[0].mxu0
        %v1121 = vpop.f32.mrb[0].mxu0
        %v1122 = vadd.f32 0.0, %v1121
        %v1123 = vpop.f32.mrb[0].mxu0
        %1124 = vdwg.mxu0
        %v1125 = vsel %vm581, %v1111, 0.0
        %1126 = vadd.xlane.f32.xlu0 %v1125
        %v1127 = vpop.xlane.xlu0 %1126
        %v1128 = vsel %vm581, %v1114, 0.0
        %1129 = vadd.xlane.f32.xlu0 %v1128
        %v1130 = vpop.xlane.xlu0 %1129
        %v1131 = vsel %vm581, %v1119, 0.0
        %1132 = vadd.xlane.f32.xlu0 %v1131
        %v1133 = vpop.xlane.xlu0 %1132
        %v1134 = vsel %vm581, %v1122, 0.0
        %1135 = vadd.xlane.f32.xlu0 %v1134
        %v1136 = vpop.xlane.xlu0 %1135
        %v1137 = vadd.f32 %v971, %v1127
        %v1138 = vadd.f32 %v972, %v1130
        %v1139 = vadd.f32 %v973, %v1133
        %v1140 = vadd.f32 %v974, %v1136
        %v1141 = vmul.f32 %v1111, %v1111
        %v1142 = vmul.f32 %v1114, %v1114
        %v1143 = vmul.f32 %v1119, %v1119
        %v1144 = vmul.f32 %v1122, %v1122
        %v1145 = vsel %vm581, %v1141, 0.0
        %1146 = vadd.xlane.f32.xlu0 %v1145
        %v1147 = vpop.xlane.xlu0 %1146
        %v1148 = vsel %vm581, %v1142, 0.0
        %1149 = vadd.xlane.f32.xlu0 %v1148
        %v1150 = vpop.xlane.xlu0 %1149
        %v1151 = vsel %vm581, %v1143, 0.0
        %1152 = vadd.xlane.f32.xlu0 %v1151
        %v1153 = vpop.xlane.xlu0 %1152
        %v1154 = vsel %vm581, %v1144, 0.0
        %1155 = vadd.xlane.f32.xlu0 %v1154
        %v1156 = vpop.xlane.xlu0 %1155
        %v1157 = vadd.f32 %v991, %v1147
        %v1158 = vadd.f32 %v992, %v1150
        %v1159 = vadd.f32 %v993, %v1153
        %v1160 = vadd.f32 %v994, %v1156
        %v1161 = vpack.c.bf16 %v1114, %v1111
        %v1162 = vpack.c.bf16 %v1122, %v1119
        %v1165 = vunpack.c.l.b16 %v1161
        %v1166 = vunpack.c.h.b16 %v1161
        %v1167 = vunpack.c.l.b16 %v1162
        %v1168 = vunpack.c.h.b16 %v1162
        %v1169 = vpack.c.b16 %v1165, %v1165
        %v1170 = vpack.c.b16 %v1166, %v1166
        %v1171 = vpack.c.b16 %v1167, %v1167
        %v1172 = vpack.c.b16 %v1168, %v1168
        %s1177 = scalar_lea.vmem %s313, 48 [#allocation10]
        %1178 = vst.msk [vmem:[%s1177] sm:$0xf] %vm634, %v1169
        %1179 = vst.msk [vmem:[%s1177 + $0x4] sm:$0xf] %vm634, %v1170
        %1180 = vst.msk [vmem:[%s1177 + $0x8] sm:$0xf] %vm634, %v1171
        %1181 = vst.msk [vmem:[%s1177 + $0xc] sm:$0xf] %vm634, %v1172
        %vm1182 = vcmask 7168
        %1183 = vst.msk [vmem:[%s320] sm:$0xff] %vm1182, %v1137
        %1184 = vst.msk [vmem:[%s320 + $0x8] sm:$0xff] %vm1182, %v1138
        %1185 = vst.msk [vmem:[%s320 + $0x10] sm:$0xff] %vm1182, %v1139
        %1186 = vst.msk [vmem:[%s320 + $0x18] sm:$0xff] %vm1182, %v1140
        %1187 = vst.msk [vmem:[%s327] sm:$0xff] %vm1182, %v1157
        %1188 = vst.msk [vmem:[%s327 + $0x8] sm:$0xff] %vm1182, %v1158
        %1189 = vst.msk [vmem:[%s327 + $0x10] sm:$0xff] %vm1182, %v1159
        %1190 = vst.msk [vmem:[%s327 + $0x18] sm:$0xff] %vm1182, %v1160
        %s1191 = sand.u32 %s126, 1
        %s1192 = scalar_lea.sflag [#allocation4], %s1191
        %s1193 = sand.u32 %s126, 1
        %s1194 = smul.addr %s1193, 64
        %s1195 = scalar_lea.vmem [#allocation10], %s1194
        %s1196 = sand.u32 %s29, 1
        %s1197 = scalar_lea.sflag [#allocation12], %s1196
        %s1198 = sand.u32 %s152, 1
        %s1199 = smul.addr %s1198, 32
        %s1200 = scalar_lea.vmem [#allocation11], %s1199
        %s1201 = sand.u32 %s29, 1
        %s1202 = scalar_lea.sflag [#allocation12], %s1201
        %s1203 = sand.u32 %s178, 1
        %s1204 = smul.addr %s1203, 32
        %s1205 = scalar_lea.vmem [#allocation13], %s1204
        // Predicated region
        $region53: #{generator_forward.6} parent=35 // pred_check
          %p1206 = pneg %p136
        $region54: #{generator_forward.6} parent=35 // pred_check_branch
          %1208 = sbr.rel (%p1206) target = $region56
        $region55: #{generator_forward.6} parent=35 // pred_region
          %s1210 = ssub.s32 1024, 1024
          %1211 = vsyncadd %s1192, %s1210
          %s1212 = smul.addr %s29, 16
          %s1213 = smul.addr %s1212, 64
          %s1214 = scalar_lea.hbm %s4, %s1213
          %s1215 = sshll.u32 %s1195, 4
          %s1216 = int_to_ptr.vmem [resolvable:$true] %s1215
          %1221 = dma.vmem_to_hbm [thread:$0]  %s1216, 1024, %s1214, %s1192, 64, 64, 4
        $region56: #{generator_forward.6} parent=35 // pred_fallthru
          _
        // Predicated region
        $region57: #{generator_forward.6} parent=35 // pred_check
          %p1222 = pneg %p162
        $region58: #{generator_forward.6} parent=35 // pred_check_branch
          %1224 = sbr.rel (%p1222) target = $region60
        $region59: #{generator_forward.6} parent=35 // pred_region
          %s1226 = ssub.s32 512, 512
          %1227 = vsyncadd %s1197, %s1226
          %s1228 = smul.addr %s29, 4
          %s1229 = smul.addr %s1228, 128
          %s1230 = scalar_lea.hbm %s5, %s1229
          %s1231 = sshll.u32 %s1200, 4
          %s1232 = int_to_ptr.vmem [resolvable:$true] %s1231
          %1237 = dma.vmem_to_hbm [thread:$0]  %s1232, 512, %s1230, %s1197, 128, 128, 8
        $region60: #{generator_forward.6} parent=35 // pred_fallthru
          _
        // Predicated region
        $region61: #{generator_forward.6} parent=35 // pred_check
          %p1238 = pneg %p188
        $region62: #{generator_forward.6} parent=35 // pred_check_branch
          %1240 = sbr.rel (%p1238) target = $region64
        $region63: #{generator_forward.6} parent=35 // pred_region
          %s1242 = ssub.s32 512, 512
          %1243 = vsyncadd %s1202, %s1242
          %s1244 = smul.addr %s29, 4
          %s1245 = smul.addr %s1244, 128
          %s1246 = scalar_lea.hbm %s6, %s1245
          %s1247 = sshll.u32 %s1205, 4
          %s1248 = int_to_ptr.vmem [resolvable:$true] %s1247
          %1253 = dma.vmem_to_hbm [thread:$0]  %s1248, 512, %s1246, %s1202, 128, 128, 8
        $region64: #{generator_forward.6} parent=35 // pred_fallthru
          _
      $region36: #{generator_forward.6} parent=5 // pred_fallthru
        _
      %p1254 = scmp.le.s32.totalorder 2, %s24
      // Predicated region
      $region65: #{generator_forward.6} parent=5 // pred_check
        %p1255 = pneg %p1254
      $region66: #{generator_forward.6} parent=5 // pred_check_branch
        %1257 = sbr.rel (%p1255) target = $region68
      $region67: #{generator_forward.6} parent=5 // pred_region
        %s1258 = ssub.s32 %s24, 2
        // Predicated region
        $region69: #{generator_forward.6} parent=67 // pred_check
          %p1259 = pneg %p142
        $region70: #{generator_forward.6} parent=67 // pred_check_branch
          %1261 = sbr.rel (%p1259) target = $region72
        $region71: #{generator_forward.6} parent=67 // pred_region
          %s1262 = sand.u32 %s127, 1
          %s1263 = scalar_lea.sflag [#allocation4], %s1262
          %s1264 = sand.u32 %s127, 1
          %s1265 = smul.addr %s1264, 64
          %s1266 = scalar_lea.vmem [#allocation10], %s1265
          %1267 = dma.done %s1263, 1024
        $region72: #{generator_forward.6} parent=67 // pred_fallthru
          _
        // Predicated region
        $region73: #{generator_forward.6} parent=67 // pred_check
          %p1268 = pneg %p168
        $region74: #{generator_forward.6} parent=67 // pred_check_branch
          %1270 = sbr.rel (%p1268) target = $region76
        $region75: #{generator_forward.6} parent=67 // pred_region
          %s1271 = sand.u32 %s30, 1
          %s1272 = scalar_lea.sflag [#allocation12], %s1271
          %s1273 = sand.u32 %s153, 1
          %s1274 = smul.addr %s1273, 32
          %s1275 = scalar_lea.vmem [#allocation11], %s1274
          %1276 = dma.done %s1272, 512
        $region76: #{generator_forward.6} parent=67 // pred_fallthru
          _
        // Predicated region
        $region77: #{generator_forward.6} parent=67 // pred_check
          %p1277 = pneg %p194
        $region78: #{generator_forward.6} parent=67 // pred_check_branch
          %1279 = sbr.rel (%p1277) target = $region80
        $region79: #{generator_forward.6} parent=67 // pred_region
          %s1280 = sand.u32 %s30, 1
          %s1281 = scalar_lea.sflag [#allocation12], %s1280
          %s1282 = sand.u32 %s179, 1
          %s1283 = smul.addr %s1282, 32
          %s1284 = scalar_lea.vmem [#allocation13], %s1283
          %1285 = dma.done %s1281, 512
        $region80: #{generator_forward.6} parent=67 // pred_fallthru
          _
      $region68: #{generator_forward.6} parent=5 // pred_fallthru
        _
    $region6: #{generator_forward.6} parent=1 // loop_footer
      %s28 = sadd.s32 1, %s24
    $region7: #{generator_forward.6} parent=1 // loop_footer_branch
      %23 = sbr.rel target = $region3
    $region8: #{generator_forward.6} parent=1 // loop_exit
      _
    %1286 = vsyncpa [#allocation3], 1
    %s1287 = scalar_lea.sflag [#allocation3], 1
    %1288 = vsyncpa %s1287, 1
    %1289 = vsyncpa [#allocation6], 1
    %1290 = vsyncpa [#allocation9], 1
    %1291 = vsyncpa [#allocation4], 1
    %s1292 = scalar_lea.sflag [#allocation4], 1
    %1293 = vsyncpa %s1292, 1
    %1294 = vsyncpa [#allocation12], 1
    %s1295 = scalar_lea.sflag [#allocation12], 1
    %1296 = vsyncpa %s1295, 1

// kernel: generator_forward.7
$region0: #{generator_forward.7}
  #allocation0 [shape = 'u32[]', space=smem, size = 0x4, offset = 0x4, fixed_abs, tag = 'smem constant byte address 0x4 - core index']
  #allocation1 [shape = 'u32[144,128]{1,0:T(1,128)}', space=vmem, size = 0x12000, scoped, tag = 'internal scratch']
  %s0 = inlined_call_operand.hbm [shape: bf16[2,8,8,32], index: 0, kind: input, shape index: {}]
  %s1 = inlined_call_operand.hbm [shape: f32[1,32], index: 1, kind: input, shape index: {}]
  %s2 = inlined_call_operand.hbm [shape: f32[1,32], index: 2, kind: input, shape index: {}]
  %s3 = inlined_call_operand.hbm [shape: bf16[4,16,128], index: 3, kind: input, shape index: {}]
  %s4 = inlined_call_operand.hbm [shape: bf16[2,2,2,16,64], index: 4, kind: output, shape index: {0}]
  %s5 = inlined_call_operand.hbm [shape: f32[2,16,1], index: 5, kind: output, shape index: {1}]
  %s6 = inlined_call_operand.hbm [shape: f32[2,16,1], index: 6, kind: output, shape index: {2}]
  %7 = xla_tuple %s4, %s5, %s6
  %s8 = sld [smem:[#allocation0]]
  $region81: #{generator_forward.7} parent=0
    _
  %s10 = ssub.s32 1, %s8
  %s11 = scalar_select 0, %s10, %s8
  $region1: #{generator_forward.7} parent=0
    #allocation2 [shape = 'u8[32768]{0}', space=vmem, size = 0x8000, scoped, tag = 'input window, operand 0']
    #allocation3 [shape = 's32[2]{0}', space=sflag, size = 0x8, scoped, tag = 'scoped memory for generator_forward.7']
    #allocation4 [shape = 's32[2]{0}', space=sflag, size = 0x8, scoped, tag = 'scoped memory for generator_forward.7']
    #allocation5 [shape = 'u8[512]{0}', space=vmem, size = 0x400, scoped, tag = 'input window, operand 1, single buffered']
    #allocation6 [shape = 's32[1]{0}', space=sflag, size = 0x4, scoped, tag = 'scoped memory for generator_forward.7']
    #allocation7 [shape = 'u8[512]{0}', space=vmem, size = 0x400, scoped, tag = 'input window, operand 2, single buffered']
    #allocation8 [shape = 'u8[16384]{0}', space=vmem, size = 0x4000, scoped, tag = 'input window, operand 3, single buffered']
    #allocation9 [shape = 's32[1]{0}', space=sflag, size = 0x4, scoped, tag = 'scoped memory for generator_forward.7']
    #allocation10 [shape = 'u8[32768]{0}', space=vmem, size = 0x8000, scoped, tag = 'output window, operand 0']
    #allocation11 [shape = 'u8[16384]{0}', space=vmem, size = 0x4000, scoped, tag = 'output window, operand 1']
    #allocation12 [shape = 's32[2]{0}', space=sflag, size = 0x8, scoped, tag = 'scoped memory for generator_forward.7']
    #allocation13 [shape = 'u8[16384]{0}', space=vmem, size = 0x4000, scoped, tag = 'output window, operand 2']
    %12 = vsyncpa [#allocation3], 0
    %s13 = scalar_lea.sflag [#allocation3], 1
    %14 = vsyncpa %s13, 0
    %15 = vsyncpa [#allocation6], 0
    %16 = vsyncpa [#allocation9], 0
    %17 = vsyncpa [#allocation4], 0
    %s18 = scalar_lea.sflag [#allocation4], 1
    %19 = vsyncpa %s18, 0
    %20 = vsyncpa [#allocation12], 0
    %s21 = scalar_lea.sflag [#allocation12], 1
    %22 = vsyncpa %s21, 0
    loop: start=0, step=1, limit=4
    $region2: #{generator_forward.7} parent=1 // loop_pre_header
      _
    $region3: #{generator_forward.7} parent=1 // loop_header
      %s24 = sphi 0, %s28
      %p25 = scmp.ge.s32.totalorder %s24, 4
      %s34 = sphi 0, %s36
      %s37 = sphi 0, %s34
      %s38 = sphi 0, %s37
      %s54 = sphi 0, %s38
      %s58 = sphi 0, %s58
      %s60 = sphi 0, %s58
      %s61 = sphi 0, %s60
      %s75 = sphi 0, %s61
      %s79 = sphi 0, %s79
      %s81 = sphi 0, %s79
      %s82 = sphi 0, %s81
      %s96 = sphi 0, %s82
      %s100 = sphi 0, %s100
      %s102 = sphi 0, %s100
      %s103 = sphi 0, %s102
      %s117 = sphi 0, %s103
      %s123 = sphi 0, %s125
      %s126 = sphi 0, %s123
      %s127 = sphi 0, %s126
      %s143 = sphi 0, %s127
      %s149 = sphi 0, %s151
      %s152 = sphi 0, %s149
      %s153 = sphi 0, %s152
      %s169 = sphi 0, %s153
      %s175 = sphi 0, %s177
      %s178 = sphi 0, %s175
      %s179 = sphi 0, %s178
      %s195 = sphi 0, %s179
    $region4: #{generator_forward.7} parent=1 // loop_header_branch
      %27 = sbr.rel (%p25) target = $region8
    $region5: #{generator_forward.7} parent=1 // loop_body
      %s29 = ssub.s32 %s24, 1
      %s30 = ssub.s32 %s24, 2
      %s31 = sadd.s32 %s24, 1
      %s32 = ssub.s32 %s24, %s31
      %p33 = scmp.eq.s32.totalorder %s32, 0
      %s35 = sadd.s32 %s34, 1
      %s36 = scalar_select %p33, %s34, %s35
      %p39 = pneg %p33
      %p40 = scmp.eq.s32.totalorder %s24, 1
      %p41 = por %p39, %p40
      %p42 = scmp.ne.s32.totalorder %s34, %s37
      %p43 = scmp.eq.s32.totalorder %s24, 0
      %p44 = por %p42, %p43
      %p45 = scmp.ne.s32.totalorder %s34, %s37
      %p46 = scmp.eq.s32.totalorder %s29, 1
      %p47 = por %p45, %p46
      %p48 = scmp.ne.s32.totalorder %s37, %s38
      %p49 = scmp.eq.s32.totalorder %s29, 0
      %p50 = por %p48, %p49
      %p51 = scmp.ne.s32.totalorder %s37, %s38
      %p52 = scmp.eq.s32.totalorder %s30, 1
      %p53 = por %p51, %p52
      %p55 = scmp.ne.s32.totalorder %s38, %s54
      %p56 = scmp.eq.s32.totalorder %s30, 0
      %p57 = por %p55, %p56
      %s59 = sadd.s32 %s58, 1
      %p62 = scmp.eq.s32.totalorder %s24, 1
      %p63 = scmp.ne.s32.totalorder %s58, %s60
      %p64 = scmp.eq.s32.totalorder %s24, 0
      %p65 = por %p63, %p64
      %p66 = scmp.ne.s32.totalorder %s58, %s60
      %p67 = scmp.eq.s32.totalorder %s29, 1
      %p68 = por %p66, %p67
      %p69 = scmp.ne.s32.totalorder %s60, %s61
      %p70 = scmp.eq.s32.totalorder %s29, 0
      %p71 = por %p69, %p70
      %p72 = scmp.ne.s32.totalorder %s60, %s61
      %p73 = scmp.eq.s32.totalorder %s30, 1
      %p74 = por %p72, %p73
      %p76 = scmp.ne.s32.totalorder %s61, %s75
      %p77 = scmp.eq.s32.totalorder %s30, 0
      %p78 = por %p76, %p77
      %s80 = sadd.s32 %s79, 1
      %p83 = scmp.eq.s32.totalorder %s24, 1
      %p84 = scmp.ne.s32.totalorder %s79, %s81
      %p85 = scmp.eq.s32.totalorder %s24, 0
      %p86 = por %p84, %p85
      %p87 = scmp.ne.s32.totalorder %s79, %s81
      %p88 = scmp.eq.s32.totalorder %s29, 1
      %p89 = por %p87, %p88
      %p90 = scmp.ne.s32.totalorder %s81, %s82
      %p91 = scmp.eq.s32.totalorder %s29, 0
      %p92 = por %p90, %p91
      %p93 = scmp.ne.s32.totalorder %s81, %s82
      %p94 = scmp.eq.s32.totalorder %s30, 1
      %p95 = por %p93, %p94
      %p97 = scmp.ne.s32.totalorder %s82, %s96
      %p98 = scmp.eq.s32.totalorder %s30, 0
      %p99 = por %p97, %p98
      %s101 = sadd.s32 %s100, 1
      %p104 = scmp.eq.s32.totalorder %s24, 1
      %p105 = scmp.ne.s32.totalorder %s100, %s102
      %p106 = scmp.eq.s32.totalorder %s24, 0
      %p107 = por %p105, %p106
      %p108 = scmp.ne.s32.totalorder %s100, %s102
      %p109 = scmp.eq.s32.totalorder %s29, 1
      %p110 = por %p108, %p109
      %p111 = scmp.ne.s32.totalorder %s102, %s103
      %p112 = scmp.eq.s32.totalorder %s29, 0
      %p113 = por %p111, %p112
      %p114 = scmp.ne.s32.totalorder %s102, %s103
      %p115 = scmp.eq.s32.totalorder %s30, 1
      %p116 = por %p114, %p115
      %p118 = scmp.ne.s32.totalorder %s103, %s117
      %p119 = scmp.eq.s32.totalorder %s30, 0
      %p120 = por %p118, %p119
      %s121 = ssub.s32 %s24, %s31
      %p122 = scmp.eq.s32.totalorder %s121, 0
      %s124 = sadd.s32 %s123, 1
      %s125 = scalar_select %p122, %s123, %s124
      %p128 = pneg %p122
      %p129 = scmp.eq.s32.totalorder %s24, 1
      %p130 = por %p128, %p129
      %p131 = scmp.ne.s32.totalorder %s123, %s126
      %p132 = scmp.eq.s32.totalorder %s24, 0
      %p133 = por %p131, %p132
      %p134 = scmp.ne.s32.totalorder %s123, %s126
      %p135 = scmp.eq.s32.totalorder %s29, 1
      %p136 = por %p134, %p135
      %p137 = scmp.ne.s32.totalorder %s126, %s127
      %p138 = scmp.eq.s32.totalorder %s29, 0
      %p139 = por %p137, %p138
      %p140 = scmp.ne.s32.totalorder %s126, %s127
      %p141 = scmp.eq.s32.totalorder %s30, 1
      %p142 = por %p140, %p141
      %p144 = scmp.ne.s32.totalorder %s127, %s143
      %p145 = scmp.eq.s32.totalorder %s30, 0
      %p146 = por %p144, %p145
      %s147 = ssub.s32 %s24, %s31
      %p148 = scmp.eq.s32.totalorder %s147, 0
      %s150 = sadd.s32 %s149, 1
      %s151 = scalar_select %p148, %s149, %s150
      %p154 = pneg %p148
      %p155 = scmp.eq.s32.totalorder %s24, 1
      %p156 = por %p154, %p155
      %p157 = scmp.ne.s32.totalorder %s149, %s152
      %p158 = scmp.eq.s32.totalorder %s24, 0
      %p159 = por %p157, %p158
      %p160 = scmp.ne.s32.totalorder %s149, %s152
      %p161 = scmp.eq.s32.totalorder %s29, 1
      %p162 = por %p160, %p161
      %p163 = scmp.ne.s32.totalorder %s152, %s153
      %p164 = scmp.eq.s32.totalorder %s29, 0
      %p165 = por %p163, %p164
      %p166 = scmp.ne.s32.totalorder %s152, %s153
      %p167 = scmp.eq.s32.totalorder %s30, 1
      %p168 = por %p166, %p167
      %p170 = scmp.ne.s32.totalorder %s153, %s169
      %p171 = scmp.eq.s32.totalorder %s30, 0
      %p172 = por %p170, %p171
      %s173 = ssub.s32 %s24, %s31
      %p174 = scmp.eq.s32.totalorder %s173, 0
      %s176 = sadd.s32 %s175, 1
      %s177 = scalar_select %p174, %s175, %s176
      %p180 = pneg %p174
      %p181 = scmp.eq.s32.totalorder %s24, 1
      %p182 = por %p180, %p181
      %p183 = scmp.ne.s32.totalorder %s175, %s178
      %p184 = scmp.eq.s32.totalorder %s24, 0
      %p185 = por %p183, %p184
      %p186 = scmp.ne.s32.totalorder %s175, %s178
      %p187 = scmp.eq.s32.totalorder %s29, 1
      %p188 = por %p186, %p187
      %p189 = scmp.ne.s32.totalorder %s178, %s179
      %p190 = scmp.eq.s32.totalorder %s29, 0
      %p191 = por %p189, %p190
      %p192 = scmp.ne.s32.totalorder %s178, %s179
      %p193 = scmp.eq.s32.totalorder %s30, 1
      %p194 = por %p192, %p193
      %p196 = scmp.ne.s32.totalorder %s179, %s195
      %p197 = scmp.eq.s32.totalorder %s30, 0
      %p198 = por %p196, %p197
      %p199 = scmp.le.s32.totalorder 1, %s24
      %p200 = scmp.lt.s32.totalorder %s24, 3
      %p201 = pnand %p199, %p200
      %p202 = pneg %p201
      // Predicated region
      $region9: #{generator_forward.7} parent=5 // pred_check
        _
      $region10: #{generator_forward.7} parent=5 // pred_check_branch
        %204 = sbr.rel (%p201) target = $region12
      $region11: #{generator_forward.7} parent=5 // pred_region
        %s205 = ssub.s32 %s24, 1
        // Predicated region
        $region13: #{generator_forward.7} parent=11 // pred_check
          %p206 = pneg %p71
        $region14: #{generator_forward.7} parent=11 // pred_check_branch
          %208 = sbr.rel (%p206) target = $region16
        $region15: #{generator_forward.7} parent=11 // pred_region
          %s210 = ssub.s32 16, 16
          %211 = vsyncadd [#allocation6], %s210
          %s213 = sshll.u32 [#allocation5], 4
          %s214 = int_to_ptr.vmem [resolvable:$true] %s213
          %216 = dma.hbm_to_vmem [thread:$0]  %s1, 16, %s214, [#allocation6]
        $region16: #{generator_forward.7} parent=11 // pred_fallthru
          _
        // Predicated region
        $region17: #{generator_forward.7} parent=11 // pred_check
          %p217 = pneg %p92
        $region18: #{generator_forward.7} parent=11 // pred_check_branch
          %219 = sbr.rel (%p217) target = $region20
        $region19: #{generator_forward.7} parent=11 // pred_region
          %s221 = ssub.s32 16, 16
          %222 = vsyncadd [#allocation6], %s221
          %s224 = sshll.u32 [#allocation7], 4
          %s225 = int_to_ptr.vmem [resolvable:$true] %s224
          %227 = dma.hbm_to_vmem [thread:$0]  %s2, 16, %s225, [#allocation6]
        $region20: #{generator_forward.7} parent=11 // pred_fallthru
          _
        // Predicated region
        $region21: #{generator_forward.7} parent=11 // pred_check
          %p228 = pneg %p113
        $region22: #{generator_forward.7} parent=11 // pred_check_branch
          %230 = sbr.rel (%p228) target = $region24
        $region23: #{generator_forward.7} parent=11 // pred_region
          %s232 = ssub.s32 512, 512
          %233 = vsyncadd [#allocation9], %s232
          %s234 = sshll.u32 [#allocation8], 4
          %s235 = int_to_ptr.vmem [resolvable:$true] %s234
          %240 = dma.hbm_to_vmem [thread:$0]  %s3, 512, %s235, [#allocation9], 64, 64, 4
        $region24: #{generator_forward.7} parent=11 // pred_fallthru
          _
      $region12: #{generator_forward.7} parent=5 // pred_fallthru
        _
      %p241 = scmp.lt.s32.totalorder %s24, 2
      // Predicated region
      $region25: #{generator_forward.7} parent=5 // pred_check
        %p242 = pneg %p241
      $region26: #{generator_forward.7} parent=5 // pred_check_branch
        %244 = sbr.rel (%p242) target = $region28
      $region27: #{generator_forward.7} parent=5 // pred_region
        // Predicated region
        $region29: #{generator_forward.7} parent=27 // pred_check
          %p245 = pneg %p44
        $region30: #{generator_forward.7} parent=27 // pred_check_branch
          %247 = sbr.rel (%p245) target = $region32
        $region31: #{generator_forward.7} parent=27 // pred_region
          %s248 = sand.u32 %s34, 1
          %s249 = scalar_lea.sflag [#allocation3], %s248
          %s250 = sand.u32 %s34, 1
          %s251 = smul.addr %s250, 32
          %s252 = scalar_lea.vmem [#allocation2], %s251
          %s254 = ssub.s32 512, 512
          %255 = vsyncadd %s249, %s254
          %s256 = smul.addr %s24, 8
          %s257 = smul.addr %s256, 64
          %s258 = scalar_lea.hbm %s0, %s257
          %s259 = sshll.u32 %s252, 4
          %s260 = int_to_ptr.vmem [resolvable:$true] %s259
          %265 = dma.hbm_to_vmem [thread:$0]  %s258, 512, %s260, %s249, 64, 64, 4
        $region32: #{generator_forward.7} parent=27 // pred_fallthru
          _
      $region28: #{generator_forward.7} parent=5 // pred_fallthru
        _
      %p266 = scmp.le.s32.totalorder 1, %s24
      %p267 = scmp.lt.s32.totalorder %s24, 3
      %p268 = pnand %p266, %p267
      %p269 = pneg %p268
      // Predicated region
      $region33: #{generator_forward.7} parent=5 // pred_check
        _
      $region34: #{generator_forward.7} parent=5 // pred_check_branch
        %271 = sbr.rel (%p268) target = $region36
      $region35: #{generator_forward.7} parent=5 // pred_region
        %s272 = ssub.s32 %s24, 1
        %s273 = sand.u32 %s37, 1
        %s274 = scalar_lea.sflag [#allocation3], %s273
        %s275 = sand.u32 %s37, 1
        %s276 = smul.addr %s275, 32
        %s277 = scalar_lea.vmem [#allocation2], %s276
        // Predicated region
        $region37: #{generator_forward.7} parent=35 // pred_check
          %p278 = pneg %p50
        $region38: #{generator_forward.7} parent=35 // pred_check_branch
          %280 = sbr.rel (%p278) target = $region40
        $region39: #{generator_forward.7} parent=35 // pred_region
          %281 = dma.done %s274, 512
        $region40: #{generator_forward.7} parent=35 // pred_fallthru
          _
        // Predicated region
        $region41: #{generator_forward.7} parent=35 // pred_check
          %p282 = pneg %p71
        $region42: #{generator_forward.7} parent=35 // pred_check_branch
          %284 = sbr.rel (%p282) target = $region44
        $region43: #{generator_forward.7} parent=35 // pred_region
          %285 = dma.done [#allocation6], 16
        $region44: #{generator_forward.7} parent=35 // pred_fallthru
          _
        // Predicated region
        $region45: #{generator_forward.7} parent=35 // pred_check
          %p286 = pneg %p92
        $region46: #{generator_forward.7} parent=35 // pred_check_branch
          %288 = sbr.rel (%p286) target = $region48
        $region47: #{generator_forward.7} parent=35 // pred_region
          %289 = dma.done [#allocation6], 16
        $region48: #{generator_forward.7} parent=35 // pred_fallthru
          _
        // Predicated region
        $region49: #{generator_forward.7} parent=35 // pred_check
          %p290 = pneg %p113
        $region50: #{generator_forward.7} parent=35 // pred_check_branch
          %292 = sbr.rel (%p290) target = $region52
        $region51: #{generator_forward.7} parent=35 // pred_region
          %293 = dma.done [#allocation9], 512
        $region52: #{generator_forward.7} parent=35 // pred_fallthru
          _
        %s294 = sand.u32 %s37, 1
        %s295 = scalar_lea.sflag [#allocation3], %s294
        %s296 = sand.u32 %s37, 1
        %s297 = smul.addr %s296, 32
        %s298 = scalar_lea.vmem [#allocation2], %s297
        %p299 = pneg %p50
        %p300 = pneg %p47
        %p301 = pneg %p71
        %p302 = pneg %p68
        %p303 = pneg %p92
        %p304 = pneg %p89
        %p305 = pneg %p113
        %p306 = pneg %p110
        %p307 = pneg %p139
        %p308 = pneg %p136
        %s309 = sand.u32 %s126, 1
        %s310 = scalar_lea.sflag [#allocation4], %s309
        %s311 = sand.u32 %s126, 1
        %s312 = smul.addr %s311, 32
        %s313 = scalar_lea.vmem [#allocation10], %s312
        %p314 = pneg %p165
        %p315 = pneg %p162
        %s316 = sand.u32 %s29, 1
        %s317 = scalar_lea.sflag [#allocation12], %s316
        %s318 = sand.u32 %s152, 1
        %s319 = smul.addr %s318, 16
        %s320 = scalar_lea.vmem [#allocation11], %s319
        %p321 = pneg %p191
        %p322 = pneg %p188
        %s323 = sand.u32 %s29, 1
        %s324 = scalar_lea.sflag [#allocation12], %s323
        %s325 = sand.u32 %s178, 1
        %s326 = smul.addr %s325, 16
        %s327 = scalar_lea.vmem [#allocation13], %s326
        %v329 = vld [vmem:[%s277] sm:$0xf]
        %v330 = vld [vmem:[%s277 + $0x4] sm:$0xf]
        %v331 = vld [vmem:[%s277 + $0x8] sm:$0xf]
        %v332 = vld [vmem:[%s277 + $0xc] sm:$0xf]
        %v333 = vld [vmem:[%s277 + $0x10] sm:$0xf]
        %v334 = vld [vmem:[%s277 + $0x14] sm:$0xf]
        %v335 = vld [vmem:[%s277 + $0x18] sm:$0xf]
        %v336 = vld [vmem:[%s277 + $0x1c] sm:$0xf]
        %v337 = vunpack.c.l.bf16 %v329
        %v338 = vunpack.c.l.bf16 %v330
        %v339 = vunpack.c.l.bf16 %v331
        %v340 = vunpack.c.l.bf16 %v332
        %v341 = vunpack.c.l.bf16 %v333
        %v342 = vunpack.c.l.bf16 %v334
        %v343 = vunpack.c.l.bf16 %v335
        %v344 = vunpack.c.l.bf16 %v336
        %v345 = vld [vmem:[#allocation5] sm:$0x1]
        %v347 = vlaneseq
        %v348 = vshrl.u32 %v347, 7
        %v349 = vsub.s32 0, %v348
        %v350 = vrot.slane %v345, %v349
        %v352 = vmul.f32 %v337, %v350
        %v353 = vmul.f32 %v338, %v350
        %v354 = vmul.f32 %v339, %v350
        %v355 = vmul.f32 %v340, %v350
        %v356 = vmul.f32 %v341, %v350
        %v357 = vmul.f32 %v342, %v350
        %v358 = vmul.f32 %v343, %v350
        %v359 = vmul.f32 %v344, %v350
        %v360 = vld [vmem:[#allocation7] sm:$0x1]
        %v362 = vlaneseq
        %v363 = vshrl.u32 %v362, 7
        %v364 = vsub.s32 0, %v363
        %v365 = vrot.slane %v360, %v364
        %v367 = vadd.f32 %v352, %v365
        %v368 = vadd.f32 %v353, %v365
        %v369 = vadd.f32 %v354, %v365
        %v370 = vadd.f32 %v355, %v365
        %v371 = vadd.f32 %v356, %v365
        %v372 = vadd.f32 %v357, %v365
        %v373 = vadd.f32 %v358, %v365
        %v374 = vadd.f32 %v359, %v365
        %v375 = vmax.f32 %v367, 0.0
        %v376 = vmax.f32 %v368, 0.0
        %v377 = vmax.f32 %v369, 0.0
        %v378 = vmax.f32 %v370, 0.0
        %v379 = vmax.f32 %v371, 0.0
        %v380 = vmax.f32 %v372, 0.0
        %v381 = vmax.f32 %v373, 0.0
        %v382 = vmax.f32 %v374, 0.0
        %v392 = vrot.slane 0.0, 7
        %v393 = vrot.slane %v375, 7
        %v394 = vrot.slane %v376, 7
        %v395 = vrot.slane %v377, 7
        %v396 = vrot.slane %v378, 7
        %v397 = vrot.slane %v379, 7
        %v398 = vrot.slane %v380, 7
        %v399 = vrot.slane %v381, 7
        %v400 = vrot.slane %v382, 7
        %vm410 = vcmask 1040384
        %v411 = vsel %vm410, 0.0, %v392
        %v412 = vsel %vm410, 0.0, %v393
        %v413 = vsel %vm410, 0.0, %v394
        %v414 = vsel %vm410, 0.0, %v395
        %v415 = vsel %vm410, 0.0, %v396
        %v416 = vsel %vm410, 0.0, %v397
        %v417 = vsel %vm410, 0.0, %v398
        %v418 = vsel %vm410, 0.0, %v399
        %v419 = vsel %vm410, 0.0, %v400
        %v420 = vsel %vm410, %v392, 0.0
        %v421 = vsel %vm410, %v393, 0.0
        %v422 = vsel %vm410, %v394, 0.0
        %v423 = vsel %vm410, %v395, 0.0
        %v424 = vsel %vm410, %v396, 0.0
        %v425 = vsel %vm410, %v397, 0.0
        %v426 = vsel %vm410, %v398, 0.0
        %v427 = vsel %vm410, %v399, 0.0
        %v428 = vsel %vm410, %v400, 0.0
        %v429 = vpack.c.bf16 %v420, %v411
        %v430 = vpack.c.bf16 %v421, %v412
        %v431 = vpack.c.bf16 %v422, %v413
        %v432 = vpack.c.bf16 %v423, %v414
        %v433 = vpack.c.bf16 %v424, %v415
        %v434 = vpack.c.bf16 %v425, %v416
        %v435 = vpack.c.bf16 %v426, %v417
        %v436 = vpack.c.bf16 %v427, %v418
        %v437 = vpack.c.bf16 %v428, %v419
        %v439 = vshrl.u32 %v429, 16
        %v441 = vshll.u32 %v429, 16
        %v443 = vrot.slane %v441, 1
        %v444 = vor.u32 %v439, %v443
        %v446 = vshrl.u32 %v430, 16
        %v448 = vshll.u32 %v430, 16
        %v450 = vrot.slane %v448, 1
        %v451 = vor.u32 %v446, %v450
        %v453 = vshrl.u32 %v431, 16
        %v455 = vshll.u32 %v431, 16
        %v457 = vrot.slane %v455, 1
        %v458 = vor.u32 %v453, %v457
        %v460 = vshrl.u32 %v432, 16
        %v462 = vshll.u32 %v432, 16
        %v464 = vrot.slane %v462, 1
        %v465 = vor.u32 %v460, %v464
        %v467 = vshrl.u32 %v433, 16
        %v469 = vshll.u32 %v433, 16
        %v471 = vrot.slane %v469, 1
        %v472 = vor.u32 %v467, %v471
        %v474 = vshrl.u32 %v434, 16
        %v476 = vshll.u32 %v434, 16
        %v478 = vrot.slane %v476, 1
        %v479 = vor.u32 %v474, %v478
        %v481 = vshrl.u32 %v435, 16
        %v483 = vshll.u32 %v435, 16
        %v485 = vrot.slane %v483, 1
        %v486 = vor.u32 %v481, %v485
        %v488 = vshrl.u32 %v436, 16
        %v490 = vshll.u32 %v436, 16
        %v492 = vrot.slane %v490, 1
        %v493 = vor.u32 %v488, %v492
        %494 = vrot.lane.b32.xlu0 %v444, 32
        %v495 = vpop.permute.xlu0 %494
        %496 = vrot.lane.b32.xlu0 %v451, 32
        %v497 = vpop.permute.xlu0 %496
        %498 = vrot.lane.b32.xlu0 %v458, 32
        %v499 = vpop.permute.xlu0 %498
        %500 = vrot.lane.b32.xlu0 %v465, 32
        %v501 = vpop.permute.xlu0 %500
        %502 = vrot.lane.b32.xlu0 %v472, 32
        %v503 = vpop.permute.xlu0 %502
        %504 = vrot.lane.b32.xlu0 %v479, 32
        %v505 = vpop.permute.xlu0 %504
        %506 = vrot.lane.b32.xlu0 %v486, 32
        %v507 = vpop.permute.xlu0 %506
        %508 = vrot.lane.b32.xlu0 %v493, 32
        %v509 = vpop.permute.xlu0 %508
        %518 = vrot.lane.b32.xlu0 %v430, 64
        %v519 = vpop.permute.xlu0 %518
        %520 = vrot.lane.b32.xlu0 %v431, 64
        %v521 = vpop.permute.xlu0 %520
        %522 = vrot.lane.b32.xlu0 %v432, 64
        %v523 = vpop.permute.xlu0 %522
        %524 = vrot.lane.b32.xlu0 %v433, 64
        %v525 = vpop.permute.xlu0 %524
        %526 = vrot.lane.b32.xlu0 %v434, 64
        %v527 = vpop.permute.xlu0 %526
        %528 = vrot.lane.b32.xlu0 %v435, 64
        %v529 = vpop.permute.xlu0 %528
        %530 = vrot.lane.b32.xlu0 %v436, 64
        %v531 = vpop.permute.xlu0 %530
        %532 = vrot.lane.b32.xlu0 %v437, 64
        %v533 = vpop.permute.xlu0 %532
        %v535 = vshrl.u32 %v437, 16
        %v537 = vshll.u32 %v437, 16
        %v539 = vrot.slane %v537, 1
        %v540 = vor.u32 %v535, %v539
        %541 = vrot.lane.b32.xlu0 %v451, 96
        %v542 = vpop.permute.xlu0 %541
        %543 = vrot.lane.b32.xlu0 %v458, 96
        %v544 = vpop.permute.xlu0 %543
        %545 = vrot.lane.b32.xlu0 %v465, 96
        %v546 = vpop.permute.xlu0 %545
        %547 = vrot.lane.b32.xlu0 %v472, 96
        %v548 = vpop.permute.xlu0 %547
        %549 = vrot.lane.b32.xlu0 %v479, 96
        %v550 = vpop.permute.xlu0 %549
        %551 = vrot.lane.b32.xlu0 %v486, 96
        %v552 = vpop.permute.xlu0 %551
        %553 = vrot.lane.b32.xlu0 %v493, 96
        %v554 = vpop.permute.xlu0 %553
        %555 = vrot.lane.b32.xlu0 %v540, 96
        %v556 = vpop.permute.xlu0 %555
        %vm557 = vcmask 261120
        %v559 = vsel %vm557, %v429, %v495
        %v561 = vsel %vm557, %v430, %v497
        %v563 = vsel %vm557, %v431, %v499
        %v565 = vsel %vm557, %v432, %v501
        %v567 = vsel %vm557, %v433, %v503
        %v569 = vsel %vm557, %v434, %v505
        %v571 = vsel %vm557, %v435, %v507
        %v573 = vsel %vm557, %v436, %v509
        %vm574 = vcmask 523264
        %v576 = vsel %vm574, %v559, %v519
        %v578 = vsel %vm574, %v561, %v521
        %v580 = vsel %vm574, %v563, %v523
        %v582 = vsel %vm574, %v565, %v525
        %v584 = vsel %vm574, %v567, %v527
        %v586 = vsel %vm574, %v569, %v529
        %v588 = vsel %vm574, %v571, %v531
        %v590 = vsel %vm574, %v573, %v533
        %vm591 = vcmask 785408
        %v593 = vsel %vm591, %v576, %v542
        %v595 = vsel %vm591, %v578, %v544
        %v597 = vsel %vm591, %v580, %v546
        %v599 = vsel %vm591, %v582, %v548
        %v601 = vsel %vm591, %v584, %v550
        %v603 = vsel %vm591, %v586, %v552
        %v605 = vsel %vm591, %v588, %v554
        %v607 = vsel %vm591, %v590, %v556
        %v608 = vld [vmem:[#allocation8] sm:$0xf]
        %v609 = vld [vmem:[#allocation8 + $0x4] sm:$0xf]
        %v612 = vunpack.c.l.b16 %v608
        %v613 = vunpack.c.l.b16 %v609
        %v614 = vpack.c.b16 %v613, %v612
        %v624 = vunpack.c.l.b16 %v593
        %v625 = vunpack.c.l.b16 %v595
        %v626 = vunpack.c.l.b16 %v597
        %v627 = vunpack.c.l.b16 %v599
        %v628 = vunpack.c.l.b16 %v601
        %v629 = vunpack.c.l.b16 %v603
        %v630 = vunpack.c.l.b16 %v605
        %v631 = vunpack.c.l.b16 %v607
        %v632 = vpack.c.b16 %v625, %v624
        %v633 = vpack.c.b16 %v627, %v626
        %v634 = vpack.c.b16 %v629, %v628
        %v635 = vpack.c.b16 %v631, %v630
        %640 = vmatprep.subr.bf16.mxu0 0
        %641 = vmatpush1.bf16.xpose.msra.mxu0 %v632
        %642 = vmatprep.subr.bf16.mxu0 0
        %643 = vmatpush1.bf16.xpose.msra.mxu0 %v633
        %644 = vmatprep.subr.bf16.mxu0 0
        %645 = vmatpush1.bf16.xpose.msra.mxu0 %v634
        %646 = vmatprep.subr.bf16.mxu0 0
        %647 = vmatpush1.bf16.xpose.msra.mxu0 %v635
        %648 = vmatprep.subr.bf16.mxu0 0
        %649 = vmatpush1.bf16.xpose.msra.mxu0 0
        %650 = vmatprep.subr.bf16.mxu0 0
        %651 = vmatpush1.bf16.xpose.msra.mxu0 0
        %652 = vmatprep.subr.bf16.mxu0 0
        %653 = vmatpush1.bf16.xpose.msra.mxu0 0
        %654 = vmatprep.subr.bf16.mxu0 0
        %655 = vmatpush1.bf16.xpose.msra.mxu0 0
        %656 = vmatprep.subr.bf16.mxu0 0
        %657 = vmatpush1.bf16.xpose.msra.mxu0 0
        %658 = vmatprep.subr.bf16.mxu0 0
        %659 = vmatpush1.bf16.xpose.msra.mxu0 0
        %660 = vmatprep.subr.bf16.mxu0 0
        %661 = vmatpush1.bf16.xpose.msra.mxu0 0
        %662 = vmatprep.subr.bf16.mxu0 0
        %663 = vmatpush1.bf16.xpose.msra.mxu0 0
        %664 = vmatprep.subr.bf16.mxu0 0
        %665 = vmatpush1.bf16.xpose.msra.mxu0 0
        %666 = vmatprep.subr.bf16.mxu0 0
        %667 = vmatpush1.bf16.xpose.msra.mxu0 0
        %668 = vmatprep.subr.bf16.mxu0 0
        %669 = vmatpush1.bf16.xpose.msra.mxu0 0
        %670 = vmatprep.subr.bf16.mxu0 0
        %671 = vmatpush1.bf16.xpose.msra.mxu0 0
        %672 = vmatprep.mubr.bf16.mxu0 0
        %673 = vmatmul.mubr.bf16.gmra.mrb[0].mxu0 %v614
        %v674 = vpop.f32.mrb[0].mxu0
        %v675 = vadd.f32 0.0, %v674
        %v676 = vpop.f32.mrb[0].mxu0
        %v677 = vpop.f32.mrb[0].mxu0
        %v678 = vadd.f32 0.0, %v677
        %v679 = vpop.f32.mrb[0].mxu0
        %680 = vdwg.mxu0
        %v681 = vsel %vm574, %v675, 0.0
        %682 = vadd.xlane.f32.xlu0 %v681
        %v683 = vpop.xlane.xlu0 %682
        %v684 = vsel %vm574, %v678, 0.0
        %685 = vadd.xlane.f32.xlu0 %v684
        %v686 = vpop.xlane.xlu0 %685
        %v687 = vadd.f32 %v683, 0.0
        %v688 = vadd.f32 %v686, 0.0
        %v689 = vmul.f32 %v675, %v675
        %v690 = vmul.f32 %v678, %v678
        %v691 = vsel %vm574, %v689, 0.0
        %692 = vadd.xlane.f32.xlu0 %v691
        %v693 = vpop.xlane.xlu0 %692
        %v694 = vsel %vm574, %v690, 0.0
        %695 = vadd.xlane.f32.xlu0 %v694
        %v696 = vpop.xlane.xlu0 %695
        %v697 = vadd.f32 %v693, 0.0
        %v698 = vadd.f32 %v696, 0.0
        %v699 = vpack.c.bf16 %v678, %v675
        %v701 = vunpack.c.l.b16 %v699
        %v702 = vunpack.c.h.b16 %v699
        %v703 = vpack.c.b16 %v701, %v701
        %v704 = vpack.c.b16 %v702, %v702
        %vm707 = vcmask 519168
        %708 = vst.msk [vmem:[%s313] sm:$0xf] %vm707, %v703
        %709 = vst.msk [vmem:[%s313 + $0x4] sm:$0xf] %vm707, %v704
        %v710 = vunpack.c.h.b16 %v593
        %v711 = vunpack.c.h.b16 %v595
        %v712 = vunpack.c.h.b16 %v597
        %v713 = vunpack.c.h.b16 %v599
        %v714 = vunpack.c.h.b16 %v601
        %v715 = vunpack.c.h.b16 %v603
        %v716 = vunpack.c.h.b16 %v605
        %v717 = vunpack.c.h.b16 %v607
        %v718 = vpack.c.b16 %v624, %v624
        %v719 = vpack.c.b16 %v710, %v710
        %v720 = vpack.c.b16 %v625, %v625
        %v721 = vpack.c.b16 %v711, %v711
        %v722 = vpack.c.b16 %v626, %v626
        %v723 = vpack.c.b16 %v712, %v712
        %v724 = vpack.c.b16 %v627, %v627
        %v725 = vpack.c.b16 %v713, %v713
        %v726 = vpack.c.b16 %v628, %v628
        %v727 = vpack.c.b16 %v714, %v714
        %v728 = vpack.c.b16 %v629, %v629
        %v729 = vpack.c.b16 %v715, %v715
        %v730 = vpack.c.b16 %v630, %v630
        %v731 = vpack.c.b16 %v716, %v716
        %v732 = vpack.c.b16 %v631, %v631
        %v733 = vpack.c.b16 %v717, %v717
        %vm734 = vsmask.f32 3328
        %vm735 = vsmask.f32 7440
        %vm736 = vmor %vm734, %vm735
        %v738 = vshrl.u32 %v718, 16
        %v740 = vrot.slane %v738, 4
        %v741 = vshll.u32 %v718, 16
        %v743 = vrot.slane %v741, 5
        %v744 = vor.u32 %v740, %v743
        %v745 = vrot.slane %v744, 4
        %v747 = vshll.u32 %v719, 16
        %v749 = vrot.slane %v747, 5
        %v750 = vsel %vm736, %v745, %v749
        %v752 = vshrl.u32 %v720, 16
        %v754 = vrot.slane %v752, 4
        %v755 = vshll.u32 %v720, 16
        %v757 = vrot.slane %v755, 5
        %v758 = vor.u32 %v754, %v757
        %v759 = vrot.slane %v758, 4
        %v761 = vshll.u32 %v721, 16
        %v763 = vrot.slane %v761, 5
        %v764 = vsel %vm736, %v759, %v763
        %v766 = vshrl.u32 %v722, 16
        %v768 = vrot.slane %v766, 4
        %v769 = vshll.u32 %v722, 16
        %v771 = vrot.slane %v769, 5
        %v772 = vor.u32 %v768, %v771
        %v773 = vrot.slane %v772, 4
        %v775 = vshll.u32 %v723, 16
        %v777 = vrot.slane %v775, 5
        %v778 = vsel %vm736, %v773, %v777
        %v780 = vshrl.u32 %v724, 16
        %v782 = vrot.slane %v780, 4
        %v783 = vshll.u32 %v724, 16
        %v785 = vrot.slane %v783, 5
        %v786 = vor.u32 %v782, %v785
        %v787 = vrot.slane %v786, 4
        %v789 = vshll.u32 %v725, 16
        %v791 = vrot.slane %v789, 5
        %v792 = vsel %vm736, %v787, %v791
        %v794 = vshrl.u32 %v726, 16
        %v796 = vrot.slane %v794, 4
        %v797 = vshll.u32 %v726, 16
        %v799 = vrot.slane %v797, 5
        %v800 = vor.u32 %v796, %v799
        %v801 = vrot.slane %v800, 4
        %v803 = vshll.u32 %v727, 16
        %v805 = vrot.slane %v803, 5
        %v806 = vsel %vm736, %v801, %v805
        %v808 = vshrl.u32 %v728, 16
        %v810 = vrot.slane %v808, 4
        %v811 = vshll.u32 %v728, 16
        %v813 = vrot.slane %v811, 5
        %v814 = vor.u32 %v810, %v813
        %v815 = vrot.slane %v814, 4
        %v817 = vshll.u32 %v729, 16
        %v819 = vrot.slane %v817, 5
        %v820 = vsel %vm736, %v815, %v819
        %v822 = vshrl.u32 %v730, 16
        %v824 = vrot.slane %v822, 4
        %v825 = vshll.u32 %v730, 16
        %v827 = vrot.slane %v825, 5
        %v828 = vor.u32 %v824, %v827
        %v829 = vrot.slane %v828, 4
        %v831 = vshll.u32 %v731, 16
        %v833 = vrot.slane %v831, 5
        %v834 = vsel %vm736, %v829, %v833
        %v836 = vshrl.u32 %v732, 16
        %v838 = vrot.slane %v836, 4
        %v839 = vshll.u32 %v732, 16
        %v841 = vrot.slane %v839, 5
        %v842 = vor.u32 %v838, %v841
        %v843 = vrot.slane %v842, 4
        %v845 = vshll.u32 %v733, 16
        %v847 = vrot.slane %v845, 5
        %v848 = vsel %vm736, %v843, %v847
        %s849 = scalar_lea.vmem [#allocation8], 8
        %v850 = vld [vmem:[%s849] sm:$0xf]
        %v851 = vld [vmem:[%s849 + $0x4] sm:$0xf]
        %v854 = vunpack.c.l.b16 %v850
        %v855 = vunpack.c.l.b16 %v851
        %v856 = vpack.c.b16 %v855, %v854
        %v858 = vunpack.c.l.b16 %v750
        %v859 = vunpack.c.l.b16 %v764
        %v860 = vunpack.c.l.b16 %v778
        %v861 = vunpack.c.l.b16 %v792
        %v862 = vunpack.c.l.b16 %v806
        %v863 = vunpack.c.l.b16 %v820
        %v864 = vunpack.c.l.b16 %v834
        %v865 = vunpack.c.l.b16 %v848
        %v866 = vpack.c.b16 %v859, %v858
        %v867 = vpack.c.b16 %v861, %v860
        %v868 = vpack.c.b16 %v863, %v862
        %v869 = vpack.c.b16 %v865, %v864
        %874 = vmatprep.subr.bf16.mxu0 0
        %875 = vmatpush1.bf16.xpose.msra.mxu0 %v866
        %876 = vmatprep.subr.bf16.mxu0 0
        %877 = vmatpush1.bf16.xpose.msra.mxu0 %v867
        %878 = vmatprep.subr.bf16.mxu0 0
        %879 = vmatpush1.bf16.xpose.msra.mxu0 %v868
        %880 = vmatprep.subr.bf16.mxu0 0
        %881 = vmatpush1.bf16.xpose.msra.mxu0 %v869
        %882 = vmatprep.subr.bf16.mxu0 0
        %883 = vmatpush1.bf16.xpose.msra.mxu0 0
        %884 = vmatprep.subr.bf16.mxu0 0
        %885 = vmatpush1.bf16.xpose.msra.mxu0 0
        %886 = vmatprep.subr.bf16.mxu0 0
        %887 = vmatpush1.bf16.xpose.msra.mxu0 0
        %888 = vmatprep.subr.bf16.mxu0 0
        %889 = vmatpush1.bf16.xpose.msra.mxu0 0
        %890 = vmatprep.subr.bf16.mxu0 0
        %891 = vmatpush1.bf16.xpose.msra.mxu0 0
        %892 = vmatprep.subr.bf16.mxu0 0
        %893 = vmatpush1.bf16.xpose.msra.mxu0 0
        %894 = vmatprep.subr.bf16.mxu0 0
        %895 = vmatpush1.bf16.xpose.msra.mxu0 0
        %896 = vmatprep.subr.bf16.mxu0 0
        %897 = vmatpush1.bf16.xpose.msra.mxu0 0
        %898 = vmatprep.subr.bf16.mxu0 0
        %899 = vmatpush1.bf16.xpose.msra.mxu0 0
        %900 = vmatprep.subr.bf16.mxu0 0
        %901 = vmatpush1.bf16.xpose.msra.mxu0 0
        %902 = vmatprep.subr.bf16.mxu0 0
        %903 = vmatpush1.bf16.xpose.msra.mxu0 0
        %904 = vmatprep.subr.bf16.mxu0 0
        %905 = vmatpush1.bf16.xpose.msra.mxu0 0
        %906 = vmatprep.mubr.bf16.mxu0 0
        %907 = vmatmul.mubr.bf16.gmra.mrb[0].mxu0 %v856
        %v908 = vpop.f32.mrb[0].mxu0
        %v909 = vadd.f32 0.0, %v908
        %v910 = vpop.f32.mrb[0].mxu0
        %v911 = vpop.f32.mrb[0].mxu0
        %v912 = vadd.f32 0.0, %v911
        %v913 = vpop.f32.mrb[0].mxu0
        %914 = vdwg.mxu0
        %v915 = vsel %vm574, %v909, 0.0
        %916 = vadd.xlane.f32.xlu0 %v915
        %v917 = vpop.xlane.xlu0 %916
        %v918 = vsel %vm574, %v912, 0.0
        %919 = vadd.xlane.f32.xlu0 %v918
        %v920 = vpop.xlane.xlu0 %919
        %v921 = vadd.f32 %v687, %v917
        %v922 = vadd.f32 %v688, %v920
        %v923 = vmul.f32 %v909, %v909
        %v924 = vmul.f32 %v912, %v912
        %v925 = vsel %vm574, %v923, 0.0
        %926 = vadd.xlane.f32.xlu0 %v925
        %v927 = vpop.xlane.xlu0 %926
        %v928 = vsel %vm574, %v924, 0.0
        %929 = vadd.xlane.f32.xlu0 %v928
        %v930 = vpop.xlane.xlu0 %929
        %v931 = vadd.f32 %v697, %v927
        %v932 = vadd.f32 %v698, %v930
        %v933 = vpack.c.bf16 %v912, %v909
        %v935 = vunpack.c.l.b16 %v933
        %v936 = vunpack.c.h.b16 %v933
        %v937 = vpack.c.b16 %v935, %v935
        %v938 = vpack.c.b16 %v936, %v936
        %s941 = scalar_lea.vmem %s313, 8 [#allocation10]
        %942 = vst.msk [vmem:[%s941] sm:$0xf] %vm707, %v937
        %943 = vst.msk [vmem:[%s941 + $0x4] sm:$0xf] %vm707, %v938
        %944 = vrot.lane.b32.xlu0 %v540, 32
        %v945 = vpop.permute.xlu0 %944
        %947 = vrot.lane.b32.xlu0 %v429, 64
        %v948 = vpop.permute.xlu0 %947
        %949 = vrot.lane.b32.xlu0 %v444, 96
        %v950 = vpop.permute.xlu0 %949
        %v952 = vsel %vm557, %v437, %v945
        %v954 = vsel %vm574, %v952, %v948
        %v956 = vsel %vm591, %v954, %v950
        %s957 = scalar_lea.vmem [#allocation8], 16
        %v958 = vld [vmem:[%s957] sm:$0xf]
        %v959 = vld [vmem:[%s957 + $0x4] sm:$0xf]
        %v962 = vunpack.c.l.b16 %v958
        %v963 = vunpack.c.l.b16 %v959
        %v964 = vpack.c.b16 %v963, %v962
        %v967 = vunpack.c.l.b16 %v956
        %v968 = vpack.c.b16 %v626, %v625
        %v969 = vpack.c.b16 %v628, %v627
        %v970 = vpack.c.b16 %v630, %v629
        %v971 = vpack.c.b16 %v967, %v631
        %976 = vmatprep.subr.bf16.mxu0 0
        %977 = vmatpush1.bf16.xpose.msra.mxu0 %v968
        %978 = vmatprep.subr.bf16.mxu0 0
        %979 = vmatpush1.bf16.xpose.msra.mxu0 %v969
        %980 = vmatprep.subr.bf16.mxu0 0
        %981 = vmatpush1.bf16.xpose.msra.mxu0 %v970
        %982 = vmatprep.subr.bf16.mxu0 0
        %983 = vmatpush1.bf16.xpose.msra.mxu0 %v971
        %984 = vmatprep.subr.bf16.mxu0 0
        %985 = vmatpush1.bf16.xpose.msra.mxu0 0
        %986 = vmatprep.subr.bf16.mxu0 0
        %987 = vmatpush1.bf16.xpose.msra.mxu0 0
        %988 = vmatprep.subr.bf16.mxu0 0
        %989 = vmatpush1.bf16.xpose.msra.mxu0 0
        %990 = vmatprep.subr.bf16.mxu0 0
        %991 = vmatpush1.bf16.xpose.msra.mxu0 0
        %992 = vmatprep.subr.bf16.mxu0 0
        %993 = vmatpush1.bf16.xpose.msra.mxu0 0
        %994 = vmatprep.subr.bf16.mxu0 0
        %995 = vmatpush1.bf16.xpose.msra.mxu0 0
        %996 = vmatprep.subr.bf16.mxu0 0
        %997 = vmatpush1.bf16.xpose.msra.mxu0 0
        %998 = vmatprep.subr.bf16.mxu0 0
        %999 = vmatpush1.bf16.xpose.msra.mxu0 0
        %1000 = vmatprep.subr.bf16.mxu0 0
        %1001 = vmatpush1.bf16.xpose.msra.mxu0 0
        %1002 = vmatprep.subr.bf16.mxu0 0
        %1003 = vmatpush1.bf16.xpose.msra.mxu0 0
        %1004 = vmatprep.subr.bf16.mxu0 0
        %1005 = vmatpush1.bf16.xpose.msra.mxu0 0
        %1006 = vmatprep.subr.bf16.mxu0 0
        %1007 = vmatpush1.bf16.xpose.msra.mxu0 0
        %1008 = vmatprep.mubr.bf16.mxu0 0
        %1009 = vmatmul.mubr.bf16.gmra.mrb[0].mxu0 %v964
        %v1010 = vpop.f32.mrb[0].mxu0
        %v1011 = vadd.f32 0.0, %v1010
        %v1012 = vpop.f32.mrb[0].mxu0
        %v1013 = vpop.f32.mrb[0].mxu0
        %v1014 = vadd.f32 0.0, %v1013
        %v1015 = vpop.f32.mrb[0].mxu0
        %1016 = vdwg.mxu0
        %v1017 = vsel %vm574, %v1011, 0.0
        %1018 = vadd.xlane.f32.xlu0 %v1017
        %v1019 = vpop.xlane.xlu0 %1018
        %v1020 = vsel %vm574, %v1014, 0.0
        %1021 = vadd.xlane.f32.xlu0 %v1020
        %v1022 = vpop.xlane.xlu0 %1021
        %v1023 = vadd.f32 %v921, %v1019
        %v1024 = vadd.f32 %v922, %v1022
        %v1025 = vmul.f32 %v1011, %v1011
        %v1026 = vmul.f32 %v1014, %v1014
        %v1027 = vsel %vm574, %v1025, 0.0
        %1028 = vadd.xlane.f32.xlu0 %v1027
        %v1029 = vpop.xlane.xlu0 %1028
        %v1030 = vsel %vm574, %v1026, 0.0
        %1031 = vadd.xlane.f32.xlu0 %v1030
        %v1032 = vpop.xlane.xlu0 %1031
        %v1033 = vadd.f32 %v931, %v1029
        %v1034 = vadd.f32 %v932, %v1032
        %v1035 = vpack.c.bf16 %v1014, %v1011
        %v1037 = vunpack.c.l.b16 %v1035
        %v1038 = vunpack.c.h.b16 %v1035
        %v1039 = vpack.c.b16 %v1037, %v1037
        %v1040 = vpack.c.b16 %v1038, %v1038
        %s1043 = scalar_lea.vmem %s313, 16 [#allocation10]
        %1044 = vst.msk [vmem:[%s1043] sm:$0xf] %vm707, %v1039
        %1045 = vst.msk [vmem:[%s1043 + $0x4] sm:$0xf] %vm707, %v1040
        %v1046 = vunpack.c.h.b16 %v956
        %v1047 = vpack.c.b16 %v967, %v967
        %v1048 = vpack.c.b16 %v1046, %v1046
        %v1050 = vshrl.u32 %v1047, 16
        %v1052 = vrot.slane %v1050, 4
        %v1053 = vshll.u32 %v1047, 16
        %v1055 = vrot.slane %v1053, 5
        %v1056 = vor.u32 %v1052, %v1055
        %v1057 = vrot.slane %v1056, 4
        %v1059 = vshll.u32 %v1048, 16
        %v1061 = vrot.slane %v1059, 5
        %v1062 = vsel %vm736, %v1057, %v1061
        %s1063 = scalar_lea.vmem [#allocation8], 24
        %v1064 = vld [vmem:[%s1063] sm:$0xf]
        %v1065 = vld [vmem:[%s1063 + $0x4] sm:$0xf]
        %v1068 = vunpack.c.l.b16 %v1064
        %v1069 = vunpack.c.l.b16 %v1065
        %v1070 = vpack.c.b16 %v1069, %v1068
        %v1072 = vunpack.c.l.b16 %v1062
        %v1073 = vpack.c.b16 %v860, %v859
        %v1074 = vpack.c.b16 %v862, %v861
        %v1075 = vpack.c.b16 %v864, %v863
        %v1076 = vpack.c.b16 %v1072, %v865
        %1081 = vmatprep.subr.bf16.mxu0 0
        %1082 = vmatpush1.bf16.xpose.msra.mxu0 %v1073
        %1083 = vmatprep.subr.bf16.mxu0 0
        %1084 = vmatpush1.bf16.xpose.msra.mxu0 %v1074
        %1085 = vmatprep.subr.bf16.mxu0 0
        %1086 = vmatpush1.bf16.xpose.msra.mxu0 %v1075
        %1087 = vmatprep.subr.bf16.mxu0 0
        %1088 = vmatpush1.bf16.xpose.msra.mxu0 %v1076
        %1089 = vmatprep.subr.bf16.mxu0 0
        %1090 = vmatpush1.bf16.xpose.msra.mxu0 0
        %1091 = vmatprep.subr.bf16.mxu0 0
        %1092 = vmatpush1.bf16.xpose.msra.mxu0 0
        %1093 = vmatprep.subr.bf16.mxu0 0
        %1094 = vmatpush1.bf16.xpose.msra.mxu0 0
        %1095 = vmatprep.subr.bf16.mxu0 0
        %1096 = vmatpush1.bf16.xpose.msra.mxu0 0
        %1097 = vmatprep.subr.bf16.mxu0 0
        %1098 = vmatpush1.bf16.xpose.msra.mxu0 0
        %1099 = vmatprep.subr.bf16.mxu0 0
        %1100 = vmatpush1.bf16.xpose.msra.mxu0 0
        %1101 = vmatprep.subr.bf16.mxu0 0
        %1102 = vmatpush1.bf16.xpose.msra.mxu0 0
        %1103 = vmatprep.subr.bf16.mxu0 0
        %1104 = vmatpush1.bf16.xpose.msra.mxu0 0
        %1105 = vmatprep.subr.bf16.mxu0 0
        %1106 = vmatpush1.bf16.xpose.msra.mxu0 0
        %1107 = vmatprep.subr.bf16.mxu0 0
        %1108 = vmatpush1.bf16.xpose.msra.mxu0 0
        %1109 = vmatprep.subr.bf16.mxu0 0
        %1110 = vmatpush1.bf16.xpose.msra.mxu0 0
        %1111 = vmatprep.subr.bf16.mxu0 0
        %1112 = vmatpush1.bf16.xpose.msra.mxu0 0
        %1113 = vmatprep.mubr.bf16.mxu0 0
        %1114 = vmatmul.mubr.bf16.gmra.mrb[0].mxu0 %v1070
        %v1115 = vpop.f32.mrb[0].mxu0
        %v1116 = vadd.f32 0.0, %v1115
        %v1117 = vpop.f32.mrb[0].mxu0
        %v1118 = vpop.f32.mrb[0].mxu0
        %v1119 = vadd.f32 0.0, %v1118
        %v1120 = vpop.f32.mrb[0].mxu0
        %1121 = vdwg.mxu0
        %v1122 = vsel %vm574, %v1116, 0.0
        %1123 = vadd.xlane.f32.xlu0 %v1122
        %v1124 = vpop.xlane.xlu0 %1123
        %v1125 = vsel %vm574, %v1119, 0.0
        %1126 = vadd.xlane.f32.xlu0 %v1125
        %v1127 = vpop.xlane.xlu0 %1126
        %v1128 = vadd.f32 %v1023, %v1124
        %v1129 = vadd.f32 %v1024, %v1127
        %v1130 = vmul.f32 %v1116, %v1116
        %v1131 = vmul.f32 %v1119, %v1119
        %v1132 = vsel %vm574, %v1130, 0.0
        %1133 = vadd.xlane.f32.xlu0 %v1132
        %v1134 = vpop.xlane.xlu0 %1133
        %v1135 = vsel %vm574, %v1131, 0.0
        %1136 = vadd.xlane.f32.xlu0 %v1135
        %v1137 = vpop.xlane.xlu0 %1136
        %v1138 = vadd.f32 %v1033, %v1134
        %v1139 = vadd.f32 %v1034, %v1137
        %v1140 = vpack.c.bf16 %v1119, %v1116
        %v1142 = vunpack.c.l.b16 %v1140
        %v1143 = vunpack.c.h.b16 %v1140
        %v1144 = vpack.c.b16 %v1142, %v1142
        %v1145 = vpack.c.b16 %v1143, %v1143
        %s1148 = scalar_lea.vmem %s313, 24 [#allocation10]
        %1149 = vst.msk [vmem:[%s1148] sm:$0xf] %vm707, %v1144
        %1150 = vst.msk [vmem:[%s1148 + $0x4] sm:$0xf] %vm707, %v1145
        %vm1151 = vcmask 7168
        %1152 = vst.msk [vmem:[%s320] sm:$0xff] %vm1151, %v1128
        %1153 = vst.msk [vmem:[%s320 + $0x8] sm:$0xff] %vm1151, %v1129
        %1154 = vst.msk [vmem:[%s327] sm:$0xff] %vm1151, %v1138
        %1155 = vst.msk [vmem:[%s327 + $0x8] sm:$0xff] %vm1151, %v1139
        %s1156 = sand.u32 %s126, 1
        %s1157 = scalar_lea.sflag [#allocation4], %s1156
        %s1158 = sand.u32 %s126, 1
        %s1159 = smul.addr %s1158, 32
        %s1160 = scalar_lea.vmem [#allocation10], %s1159
        %s1161 = sand.u32 %s29, 1
        %s1162 = scalar_lea.sflag [#allocation12], %s1161
        %s1163 = sand.u32 %s152, 1
        %s1164 = smul.addr %s1163, 16
        %s1165 = scalar_lea.vmem [#allocation11], %s1164
        %s1166 = sand.u32 %s29, 1
        %s1167 = scalar_lea.sflag [#allocation12], %s1166
        %s1168 = sand.u32 %s178, 1
        %s1169 = smul.addr %s1168, 16
        %s1170 = scalar_lea.vmem [#allocation13], %s1169
        // Predicated region
        $region53: #{generator_forward.7} parent=35 // pred_check
          %p1171 = pneg %p136
        $region54: #{generator_forward.7} parent=35 // pred_check_branch
          %1173 = sbr.rel (%p1171) target = $region56
        $region55: #{generator_forward.7} parent=35 // pred_region
          %s1175 = ssub.s32 512, 512
          %1176 = vsyncadd %s1157, %s1175
          %s1177 = smul.addr %s29, 8
          %s1178 = smul.addr %s1177, 64
          %s1179 = scalar_lea.hbm %s4, %s1178
          %s1180 = sshll.u32 %s1160, 4
          %s1181 = int_to_ptr.vmem [resolvable:$true] %s1180
          %1186 = dma.vmem_to_hbm [thread:$0]  %s1181, 512, %s1179, %s1157, 64, 64, 4
        $region56: #{generator_forward.7} parent=35 // pred_fallthru
          _
        // Predicated region
        $region57: #{generator_forward.7} parent=35 // pred_check
          %p1187 = pneg %p162
        $region58: #{generator_forward.7} parent=35 // pred_check_branch
          %1189 = sbr.rel (%p1187) target = $region60
        $region59: #{generator_forward.7} parent=35 // pred_region
          %s1191 = ssub.s32 256, 256
          %1192 = vsyncadd %s1162, %s1191
          %s1193 = smul.addr %s29, 2
          %s1194 = smul.addr %s1193, 128
          %s1195 = scalar_lea.hbm %s5, %s1194
          %s1196 = sshll.u32 %s1165, 4
          %s1197 = int_to_ptr.vmem [resolvable:$true] %s1196
          %1202 = dma.vmem_to_hbm [thread:$0]  %s1197, 256, %s1195, %s1162, 128, 128, 8
        $region60: #{generator_forward.7} parent=35 // pred_fallthru
          _
        // Predicated region
        $region61: #{generator_forward.7} parent=35 // pred_check
          %p1203 = pneg %p188
        $region62: #{generator_forward.7} parent=35 // pred_check_branch
          %1205 = sbr.rel (%p1203) target = $region64
        $region63: #{generator_forward.7} parent=35 // pred_region
          %s1207 = ssub.s32 256, 256
          %1208 = vsyncadd %s1167, %s1207
          %s1209 = smul.addr %s29, 2
          %s1210 = smul.addr %s1209, 128
          %s1211 = scalar_lea.hbm %s6, %s1210
          %s1212 = sshll.u32 %s1170, 4
          %s1213 = int_to_ptr.vmem [resolvable:$true] %s1212
          %1218 = dma.vmem_to_hbm [thread:$0]  %s1213, 256, %s1211, %s1167, 128, 128, 8
        $region64: #{generator_forward.7} parent=35 // pred_fallthru
          _
      $region36: #{generator_forward.7} parent=5 // pred_fallthru
        _
      %p1219 = scmp.le.s32.totalorder 2, %s24
      // Predicated region
      $region65: #{generator_forward.7} parent=5 // pred_check
        %p1220 = pneg %p1219
      $region66: #{generator_forward.7} parent=5 // pred_check_branch
        %1222 = sbr.rel (%p1220) target = $region68
      $region67: #{generator_forward.7} parent=5 // pred_region
        %s1223 = ssub.s32 %s24, 2
        // Predicated region
        $region69: #{generator_forward.7} parent=67 // pred_check
          %p1224 = pneg %p142
        $region70: #{generator_forward.7} parent=67 // pred_check_branch
          %1226 = sbr.rel (%p1224) target = $region72
        $region71: #{generator_forward.7} parent=67 // pred_region
          %s1227 = sand.u32 %s127, 1
          %s1228 = scalar_lea.sflag [#allocation4], %s1227
          %s1229 = sand.u32 %s127, 1
          %s1230 = smul.addr %s1229, 32
          %s1231 = scalar_lea.vmem [#allocation10], %s1230
          %1232 = dma.done %s1228, 512
        $region72: #{generator_forward.7} parent=67 // pred_fallthru
          _
        // Predicated region
        $region73: #{generator_forward.7} parent=67 // pred_check
          %p1233 = pneg %p168
        $region74: #{generator_forward.7} parent=67 // pred_check_branch
          %1235 = sbr.rel (%p1233) target = $region76
        $region75: #{generator_forward.7} parent=67 // pred_region
          %s1236 = sand.u32 %s30, 1
          %s1237 = scalar_lea.sflag [#allocation12], %s1236
          %s1238 = sand.u32 %s153, 1
          %s1239 = smul.addr %s1238, 16
          %s1240 = scalar_lea.vmem [#allocation11], %s1239
          %1241 = dma.done %s1237, 256
        $region76: #{generator_forward.7} parent=67 // pred_fallthru
          _
        // Predicated region
        $region77: #{generator_forward.7} parent=67 // pred_check
          %p1242 = pneg %p194
        $region78: #{generator_forward.7} parent=67 // pred_check_branch
          %1244 = sbr.rel (%p1242) target = $region80
        $region79: #{generator_forward.7} parent=67 // pred_region
          %s1245 = sand.u32 %s30, 1
          %s1246 = scalar_lea.sflag [#allocation12], %s1245
          %s1247 = sand.u32 %s179, 1
          %s1248 = smul.addr %s1247, 16
          %s1249 = scalar_lea.vmem [#allocation13], %s1248
          %1250 = dma.done %s1246, 256
        $region80: #{generator_forward.7} parent=67 // pred_fallthru
          _
      $region68: #{generator_forward.7} parent=5 // pred_fallthru
        _
    $region6: #{generator_forward.7} parent=1 // loop_footer
      %s28 = sadd.s32 1, %s24
    $region7: #{generator_forward.7} parent=1 // loop_footer_branch
      %23 = sbr.rel target = $region3
    $region8: #{generator_forward.7} parent=1 // loop_exit
      _
    %1251 = vsyncpa [#allocation3], 1
    %s1252 = scalar_lea.sflag [#allocation3], 1
    %1253 = vsyncpa %s1252, 1
    %1254 = vsyncpa [#allocation6], 1
    %1255 = vsyncpa [#allocation9], 1
    %1256 = vsyncpa [#allocation4], 1
    %s1257 = scalar_lea.sflag [#allocation4], 1
    %1258 = vsyncpa %s1257, 1
    %1259 = vsyncpa [#allocation12], 1
    %s1260 = scalar_lea.sflag [#allocation12], 1
    %1261 = vsyncpa %s1260, 1

// kernel: generator_forward.8
$region0: #{generator_forward.8}
  #allocation0 [shape = 'u32[]', space=smem, size = 0x4, offset = 0x4, fixed_abs, tag = 'smem constant byte address 0x4 - core index']
  #allocation1 [shape = 'u32[144,128]{1,0:T(1,128)}', space=vmem, size = 0x12000, scoped, tag = 'internal scratch']
  %s0 = inlined_call_operand.hbm [shape: bf16[2,16,16,16], index: 0, kind: input, shape index: {}]
  %s1 = inlined_call_operand.hbm [shape: f32[1,16], index: 1, kind: input, shape index: {}]
  %s2 = inlined_call_operand.hbm [shape: f32[1,16], index: 2, kind: input, shape index: {}]
  %s3 = inlined_call_operand.hbm [shape: bf16[4,8,64], index: 3, kind: input, shape index: {}]
  %s4 = inlined_call_operand.hbm [shape: bf16[2,2,2,8,256], index: 4, kind: output, shape index: {0}]
  %s5 = inlined_call_operand.hbm [shape: f32[2,8,1], index: 5, kind: output, shape index: {1}]
  %s6 = inlined_call_operand.hbm [shape: f32[2,8,1], index: 6, kind: output, shape index: {2}]
  %7 = xla_tuple %s4, %s5, %s6
  %s8 = sld [smem:[#allocation0]]
  $region81: #{generator_forward.8} parent=0
    _
  %s10 = ssub.s32 1, %s8
  %s11 = scalar_select 0, %s10, %s8
  $region1: #{generator_forward.8} parent=0
    #allocation2 [shape = 'u8[131072]{0}', space=vmem, size = 0x20000, scoped, tag = 'input window, operand 0']
    #allocation3 [shape = 's32[2]{0}', space=sflag, size = 0x8, scoped, tag = 'scoped memory for generator_forward.8']
    #allocation4 [shape = 's32[2]{0}', space=sflag, size = 0x8, scoped, tag = 'scoped memory for generator_forward.8']
    #allocation5 [shape = 'u8[512]{0}', space=vmem, size = 0x400, scoped, tag = 'input window, operand 1, single buffered']
    #allocation6 [shape = 's32[1]{0}', space=sflag, size = 0x4, scoped, tag = 'scoped memory for generator_forward.8']
    #allocation7 [shape = 'u8[512]{0}', space=vmem, size = 0x400, scoped, tag = 'input window, operand 2, single buffered']
    #allocation8 [shape = 'u8[8192]{0}', space=vmem, size = 0x2000, scoped, tag = 'input window, operand 3, single buffered']
    #allocation9 [shape = 's32[1]{0}', space=sflag, size = 0x4, scoped, tag = 'scoped memory for generator_forward.8']
    #allocation10 [shape = 'u8[32768]{0}', space=vmem, size = 0x8000, scoped, tag = 'output window, operand 0']
    #allocation11 [shape = 'u8[8192]{0}', space=vmem, size = 0x2000, scoped, tag = 'output window, operand 1']
    #allocation12 [shape = 's32[2]{0}', space=sflag, size = 0x8, scoped, tag = 'scoped memory for generator_forward.8']
    #allocation13 [shape = 'u8[8192]{0}', space=vmem, size = 0x2000, scoped, tag = 'output window, operand 2']
    %12 = vsyncpa [#allocation3], 0
    %s13 = scalar_lea.sflag [#allocation3], 1
    %14 = vsyncpa %s13, 0
    %15 = vsyncpa [#allocation6], 0
    %16 = vsyncpa [#allocation9], 0
    %17 = vsyncpa [#allocation4], 0
    %s18 = scalar_lea.sflag [#allocation4], 1
    %19 = vsyncpa %s18, 0
    %20 = vsyncpa [#allocation12], 0
    %s21 = scalar_lea.sflag [#allocation12], 1
    %22 = vsyncpa %s21, 0
    loop: start=0, step=1, limit=4
    $region2: #{generator_forward.8} parent=1 // loop_pre_header
      _
    $region3: #{generator_forward.8} parent=1 // loop_header
      %s24 = sphi 0, %s28
      %p25 = scmp.ge.s32.totalorder %s24, 4
      %s34 = sphi 0, %s36
      %s37 = sphi 0, %s34
      %s38 = sphi 0, %s37
      %s54 = sphi 0, %s38
      %s58 = sphi 0, %s58
      %s60 = sphi 0, %s58
      %s61 = sphi 0, %s60
      %s75 = sphi 0, %s61
      %s79 = sphi 0, %s79
      %s81 = sphi 0, %s79
      %s82 = sphi 0, %s81
      %s96 = sphi 0, %s82
      %s100 = sphi 0, %s100
      %s102 = sphi 0, %s100
      %s103 = sphi 0, %s102
      %s117 = sphi 0, %s103
      %s123 = sphi 0, %s125
      %s126 = sphi 0, %s123
      %s127 = sphi 0, %s126
      %s143 = sphi 0, %s127
      %s149 = sphi 0, %s151
      %s152 = sphi 0, %s149
      %s153 = sphi 0, %s152
      %s169 = sphi 0, %s153
      %s175 = sphi 0, %s177
      %s178 = sphi 0, %s175
      %s179 = sphi 0, %s178
      %s195 = sphi 0, %s179
    $region4: #{generator_forward.8} parent=1 // loop_header_branch
      %27 = sbr.rel (%p25) target = $region8
    $region5: #{generator_forward.8} parent=1 // loop_body
      %s29 = ssub.s32 %s24, 1
      %s30 = ssub.s32 %s24, 2
      %s31 = sadd.s32 %s24, 1
      %s32 = ssub.s32 %s24, %s31
      %p33 = scmp.eq.s32.totalorder %s32, 0
      %s35 = sadd.s32 %s34, 1
      %s36 = scalar_select %p33, %s34, %s35
      %p39 = pneg %p33
      %p40 = scmp.eq.s32.totalorder %s24, 1
      %p41 = por %p39, %p40
      %p42 = scmp.ne.s32.totalorder %s34, %s37
      %p43 = scmp.eq.s32.totalorder %s24, 0
      %p44 = por %p42, %p43
      %p45 = scmp.ne.s32.totalorder %s34, %s37
      %p46 = scmp.eq.s32.totalorder %s29, 1
      %p47 = por %p45, %p46
      %p48 = scmp.ne.s32.totalorder %s37, %s38
      %p49 = scmp.eq.s32.totalorder %s29, 0
      %p50 = por %p48, %p49
      %p51 = scmp.ne.s32.totalorder %s37, %s38
      %p52 = scmp.eq.s32.totalorder %s30, 1
      %p53 = por %p51, %p52
      %p55 = scmp.ne.s32.totalorder %s38, %s54
      %p56 = scmp.eq.s32.totalorder %s30, 0
      %p57 = por %p55, %p56
      %s59 = sadd.s32 %s58, 1
      %p62 = scmp.eq.s32.totalorder %s24, 1
      %p63 = scmp.ne.s32.totalorder %s58, %s60
      %p64 = scmp.eq.s32.totalorder %s24, 0
      %p65 = por %p63, %p64
      %p66 = scmp.ne.s32.totalorder %s58, %s60
      %p67 = scmp.eq.s32.totalorder %s29, 1
      %p68 = por %p66, %p67
      %p69 = scmp.ne.s32.totalorder %s60, %s61
      %p70 = scmp.eq.s32.totalorder %s29, 0
      %p71 = por %p69, %p70
      %p72 = scmp.ne.s32.totalorder %s60, %s61
      %p73 = scmp.eq.s32.totalorder %s30, 1
      %p74 = por %p72, %p73
      %p76 = scmp.ne.s32.totalorder %s61, %s75
      %p77 = scmp.eq.s32.totalorder %s30, 0
      %p78 = por %p76, %p77
      %s80 = sadd.s32 %s79, 1
      %p83 = scmp.eq.s32.totalorder %s24, 1
      %p84 = scmp.ne.s32.totalorder %s79, %s81
      %p85 = scmp.eq.s32.totalorder %s24, 0
      %p86 = por %p84, %p85
      %p87 = scmp.ne.s32.totalorder %s79, %s81
      %p88 = scmp.eq.s32.totalorder %s29, 1
      %p89 = por %p87, %p88
      %p90 = scmp.ne.s32.totalorder %s81, %s82
      %p91 = scmp.eq.s32.totalorder %s29, 0
      %p92 = por %p90, %p91
      %p93 = scmp.ne.s32.totalorder %s81, %s82
      %p94 = scmp.eq.s32.totalorder %s30, 1
      %p95 = por %p93, %p94
      %p97 = scmp.ne.s32.totalorder %s82, %s96
      %p98 = scmp.eq.s32.totalorder %s30, 0
      %p99 = por %p97, %p98
      %s101 = sadd.s32 %s100, 1
      %p104 = scmp.eq.s32.totalorder %s24, 1
      %p105 = scmp.ne.s32.totalorder %s100, %s102
      %p106 = scmp.eq.s32.totalorder %s24, 0
      %p107 = por %p105, %p106
      %p108 = scmp.ne.s32.totalorder %s100, %s102
      %p109 = scmp.eq.s32.totalorder %s29, 1
      %p110 = por %p108, %p109
      %p111 = scmp.ne.s32.totalorder %s102, %s103
      %p112 = scmp.eq.s32.totalorder %s29, 0
      %p113 = por %p111, %p112
      %p114 = scmp.ne.s32.totalorder %s102, %s103
      %p115 = scmp.eq.s32.totalorder %s30, 1
      %p116 = por %p114, %p115
      %p118 = scmp.ne.s32.totalorder %s103, %s117
      %p119 = scmp.eq.s32.totalorder %s30, 0
      %p120 = por %p118, %p119
      %s121 = ssub.s32 %s24, %s31
      %p122 = scmp.eq.s32.totalorder %s121, 0
      %s124 = sadd.s32 %s123, 1
      %s125 = scalar_select %p122, %s123, %s124
      %p128 = pneg %p122
      %p129 = scmp.eq.s32.totalorder %s24, 1
      %p130 = por %p128, %p129
      %p131 = scmp.ne.s32.totalorder %s123, %s126
      %p132 = scmp.eq.s32.totalorder %s24, 0
      %p133 = por %p131, %p132
      %p134 = scmp.ne.s32.totalorder %s123, %s126
      %p135 = scmp.eq.s32.totalorder %s29, 1
      %p136 = por %p134, %p135
      %p137 = scmp.ne.s32.totalorder %s126, %s127
      %p138 = scmp.eq.s32.totalorder %s29, 0
      %p139 = por %p137, %p138
      %p140 = scmp.ne.s32.totalorder %s126, %s127
      %p141 = scmp.eq.s32.totalorder %s30, 1
      %p142 = por %p140, %p141
      %p144 = scmp.ne.s32.totalorder %s127, %s143
      %p145 = scmp.eq.s32.totalorder %s30, 0
      %p146 = por %p144, %p145
      %s147 = ssub.s32 %s24, %s31
      %p148 = scmp.eq.s32.totalorder %s147, 0
      %s150 = sadd.s32 %s149, 1
      %s151 = scalar_select %p148, %s149, %s150
      %p154 = pneg %p148
      %p155 = scmp.eq.s32.totalorder %s24, 1
      %p156 = por %p154, %p155
      %p157 = scmp.ne.s32.totalorder %s149, %s152
      %p158 = scmp.eq.s32.totalorder %s24, 0
      %p159 = por %p157, %p158
      %p160 = scmp.ne.s32.totalorder %s149, %s152
      %p161 = scmp.eq.s32.totalorder %s29, 1
      %p162 = por %p160, %p161
      %p163 = scmp.ne.s32.totalorder %s152, %s153
      %p164 = scmp.eq.s32.totalorder %s29, 0
      %p165 = por %p163, %p164
      %p166 = scmp.ne.s32.totalorder %s152, %s153
      %p167 = scmp.eq.s32.totalorder %s30, 1
      %p168 = por %p166, %p167
      %p170 = scmp.ne.s32.totalorder %s153, %s169
      %p171 = scmp.eq.s32.totalorder %s30, 0
      %p172 = por %p170, %p171
      %s173 = ssub.s32 %s24, %s31
      %p174 = scmp.eq.s32.totalorder %s173, 0
      %s176 = sadd.s32 %s175, 1
      %s177 = scalar_select %p174, %s175, %s176
      %p180 = pneg %p174
      %p181 = scmp.eq.s32.totalorder %s24, 1
      %p182 = por %p180, %p181
      %p183 = scmp.ne.s32.totalorder %s175, %s178
      %p184 = scmp.eq.s32.totalorder %s24, 0
      %p185 = por %p183, %p184
      %p186 = scmp.ne.s32.totalorder %s175, %s178
      %p187 = scmp.eq.s32.totalorder %s29, 1
      %p188 = por %p186, %p187
      %p189 = scmp.ne.s32.totalorder %s178, %s179
      %p190 = scmp.eq.s32.totalorder %s29, 0
      %p191 = por %p189, %p190
      %p192 = scmp.ne.s32.totalorder %s178, %s179
      %p193 = scmp.eq.s32.totalorder %s30, 1
      %p194 = por %p192, %p193
      %p196 = scmp.ne.s32.totalorder %s179, %s195
      %p197 = scmp.eq.s32.totalorder %s30, 0
      %p198 = por %p196, %p197
      %p199 = scmp.le.s32.totalorder 1, %s24
      %p200 = scmp.lt.s32.totalorder %s24, 3
      %p201 = pnand %p199, %p200
      %p202 = pneg %p201
      // Predicated region
      $region9: #{generator_forward.8} parent=5 // pred_check
        _
      $region10: #{generator_forward.8} parent=5 // pred_check_branch
        %204 = sbr.rel (%p201) target = $region12
      $region11: #{generator_forward.8} parent=5 // pred_region
        %s205 = ssub.s32 %s24, 1
        // Predicated region
        $region13: #{generator_forward.8} parent=11 // pred_check
          %p206 = pneg %p71
        $region14: #{generator_forward.8} parent=11 // pred_check_branch
          %208 = sbr.rel (%p206) target = $region16
        $region15: #{generator_forward.8} parent=11 // pred_region
          %s210 = ssub.s32 16, 16
          %211 = vsyncadd [#allocation6], %s210
          %s213 = sshll.u32 [#allocation5], 4
          %s214 = int_to_ptr.vmem [resolvable:$true] %s213
          %216 = dma.hbm_to_vmem [thread:$0]  %s1, 16, %s214, [#allocation6]
        $region16: #{generator_forward.8} parent=11 // pred_fallthru
          _
        // Predicated region
        $region17: #{generator_forward.8} parent=11 // pred_check
          %p217 = pneg %p92
        $region18: #{generator_forward.8} parent=11 // pred_check_branch
          %219 = sbr.rel (%p217) target = $region20
        $region19: #{generator_forward.8} parent=11 // pred_region
          %s221 = ssub.s32 16, 16
          %222 = vsyncadd [#allocation6], %s221
          %s224 = sshll.u32 [#allocation7], 4
          %s225 = int_to_ptr.vmem [resolvable:$true] %s224
          %227 = dma.hbm_to_vmem [thread:$0]  %s2, 16, %s225, [#allocation6]
        $region20: #{generator_forward.8} parent=11 // pred_fallthru
          _
        // Predicated region
        $region21: #{generator_forward.8} parent=11 // pred_check
          %p228 = pneg %p113
        $region22: #{generator_forward.8} parent=11 // pred_check_branch
          %230 = sbr.rel (%p228) target = $region24
        $region23: #{generator_forward.8} parent=11 // pred_region
          %s232 = ssub.s32 256, 256
          %233 = vsyncadd [#allocation9], %s232
          %s234 = sshll.u32 [#allocation8], 4
          %s235 = int_to_ptr.vmem [resolvable:$true] %s234
          %240 = dma.hbm_to_vmem [thread:$0]  %s3, 256, %s235, [#allocation9], 64, 64, 4
        $region24: #{generator_forward.8} parent=11 // pred_fallthru
          _
      $region12: #{generator_forward.8} parent=5 // pred_fallthru
        _
      %p241 = scmp.lt.s32.totalorder %s24, 2
      // Predicated region
      $region25: #{generator_forward.8} parent=5 // pred_check
        %p242 = pneg %p241
      $region26: #{generator_forward.8} parent=5 // pred_check_branch
        %244 = sbr.rel (%p242) target = $region28
      $region27: #{generator_forward.8} parent=5 // pred_region
        // Predicated region
        $region29: #{generator_forward.8} parent=27 // pred_check
          %p245 = pneg %p44
        $region30: #{generator_forward.8} parent=27 // pred_check_branch
          %247 = sbr.rel (%p245) target = $region32
        $region31: #{generator_forward.8} parent=27 // pred_region
          %s248 = sand.u32 %s34, 1
          %s249 = scalar_lea.sflag [#allocation3], %s248
          %s250 = sand.u32 %s34, 1
          %s251 = smul.addr %s250, 128
          %s252 = scalar_lea.vmem [#allocation2], %s251
          %s254 = ssub.s32 2048, 2048
          %255 = vsyncadd %s249, %s254
          %s256 = smul.addr %s24, 32
          %s257 = smul.addr %s256, 64
          %s258 = scalar_lea.hbm %s0, %s257
          %s259 = sshll.u32 %s252, 4
          %s260 = int_to_ptr.vmem [resolvable:$true] %s259
          %265 = dma.hbm_to_vmem [thread:$0]  %s258, 2048, %s260, %s249, 64, 64, 4
        $region32: #{generator_forward.8} parent=27 // pred_fallthru
          _
      $region28: #{generator_forward.8} parent=5 // pred_fallthru
        _
      %p266 = scmp.le.s32.totalorder 1, %s24
      %p267 = scmp.lt.s32.totalorder %s24, 3
      %p268 = pnand %p266, %p267
      %p269 = pneg %p268
      // Predicated region
      $region33: #{generator_forward.8} parent=5 // pred_check
        _
      $region34: #{generator_forward.8} parent=5 // pred_check_branch
        %271 = sbr.rel (%p268) target = $region36
      $region35: #{generator_forward.8} parent=5 // pred_region
        %s272 = ssub.s32 %s24, 1
        %s273 = sand.u32 %s37, 1
        %s274 = scalar_lea.sflag [#allocation3], %s273
        %s275 = sand.u32 %s37, 1
        %s276 = smul.addr %s275, 128
        %s277 = scalar_lea.vmem [#allocation2], %s276
        // Predicated region
        $region37: #{generator_forward.8} parent=35 // pred_check
          %p278 = pneg %p50
        $region38: #{generator_forward.8} parent=35 // pred_check_branch
          %280 = sbr.rel (%p278) target = $region40
        $region39: #{generator_forward.8} parent=35 // pred_region
          %281 = dma.done %s274, 2048
        $region40: #{generator_forward.8} parent=35 // pred_fallthru
          _
        // Predicated region
        $region41: #{generator_forward.8} parent=35 // pred_check
          %p282 = pneg %p71
        $region42: #{generator_forward.8} parent=35 // pred_check_branch
          %284 = sbr.rel (%p282) target = $region44
        $region43: #{generator_forward.8} parent=35 // pred_region
          %285 = dma.done [#allocation6], 16
        $region44: #{generator_forward.8} parent=35 // pred_fallthru
          _
        // Predicated region
        $region45: #{generator_forward.8} parent=35 // pred_check
          %p286 = pneg %p92
        $region46: #{generator_forward.8} parent=35 // pred_check_branch
          %288 = sbr.rel (%p286) target = $region48
        $region47: #{generator_forward.8} parent=35 // pred_region
          %289 = dma.done [#allocation6], 16
        $region48: #{generator_forward.8} parent=35 // pred_fallthru
          _
        // Predicated region
        $region49: #{generator_forward.8} parent=35 // pred_check
          %p290 = pneg %p113
        $region50: #{generator_forward.8} parent=35 // pred_check_branch
          %292 = sbr.rel (%p290) target = $region52
        $region51: #{generator_forward.8} parent=35 // pred_region
          %293 = dma.done [#allocation9], 256
        $region52: #{generator_forward.8} parent=35 // pred_fallthru
          _
        %s294 = sand.u32 %s37, 1
        %s295 = scalar_lea.sflag [#allocation3], %s294
        %s296 = sand.u32 %s37, 1
        %s297 = smul.addr %s296, 128
        %s298 = scalar_lea.vmem [#allocation2], %s297
        %p299 = pneg %p50
        %p300 = pneg %p47
        %p301 = pneg %p71
        %p302 = pneg %p68
        %p303 = pneg %p92
        %p304 = pneg %p89
        %p305 = pneg %p113
        %p306 = pneg %p110
        %p307 = pneg %p139
        %p308 = pneg %p136
        %s309 = sand.u32 %s126, 1
        %s310 = scalar_lea.sflag [#allocation4], %s309
        %s311 = sand.u32 %s126, 1
        %s312 = smul.addr %s311, 32
        %s313 = scalar_lea.vmem [#allocation10], %s312
        %p314 = pneg %p165
        %p315 = pneg %p162
        %s316 = sand.u32 %s29, 1
        %s317 = scalar_lea.sflag [#allocation12], %s316
        %s318 = sand.u32 %s152, 1
        %s319 = smul.addr %s318, 8
        %s320 = scalar_lea.vmem [#allocation11], %s319
        %p321 = pneg %p191
        %p322 = pneg %p188
        %s323 = sand.u32 %s29, 1
        %s324 = scalar_lea.sflag [#allocation12], %s323
        %s325 = sand.u32 %s178, 1
        %s326 = smul.addr %s325, 8
        %s327 = scalar_lea.vmem [#allocation13], %s326
        %v329 = vld [vmem:[%s277] sm:$0xf]
        %v330 = vld [vmem:[%s277 + $0x4] sm:$0xf]
        %v331 = vld [vmem:[%s277 + $0x8] sm:$0xf]
        %v332 = vld [vmem:[%s277 + $0xc] sm:$0xf]
        %v333 = vld [vmem:[%s277 + $0x10] sm:$0xf]
        %v334 = vld [vmem:[%s277 + $0x14] sm:$0xf]
        %v335 = vld [vmem:[%s277 + $0x18] sm:$0xf]
        %v336 = vld [vmem:[%s277 + $0x1c] sm:$0xf]
        %v337 = vld [vmem:[%s277 + $0x20] sm:$0xf]
        %v338 = vld [vmem:[%s277 + $0x24] sm:$0xf]
        %v339 = vld [vmem:[%s277 + $0x28] sm:$0xf]
        %v340 = vld [vmem:[%s277 + $0x2c] sm:$0xf]
        %v341 = vld [vmem:[%s277 + $0x30] sm:$0xf]
        %v342 = vld [vmem:[%s277 + $0x34] sm:$0xf]
        %v343 = vld [vmem:[%s277 + $0x38] sm:$0xf]
        %v344 = vld [vmem:[%s277 + $0x3c] sm:$0xf]
        %v345 = vld [vmem:[%s277 + $0x40] sm:$0xf]
        %v346 = vld [vmem:[%s277 + $0x44] sm:$0xf]
        %v347 = vld [vmem:[%s277 + $0x48] sm:$0xf]
        %v348 = vld [vmem:[%s277 + $0x4c] sm:$0xf]
        %v349 = vld [vmem:[%s277 + $0x50] sm:$0xf]
        %v350 = vld [vmem:[%s277 + $0x54] sm:$0xf]
        %v351 = vld [vmem:[%s277 + $0x58] sm:$0xf]
        %v352 = vld [vmem:[%s277 + $0x5c] sm:$0xf]
        %v353 = vld [vmem:[%s277 + $0x60] sm:$0xf]
        %v354 = vld [vmem:[%s277 + $0x64] sm:$0xf]
        %v355 = vld [vmem:[%s277 + $0x68] sm:$0xf]
        %v356 = vld [vmem:[%s277 + $0x6c] sm:$0xf]
        %v357 = vld [vmem:[%s277 + $0x70] sm:$0xf]
        %v358 = vld [vmem:[%s277 + $0x74] sm:$0xf]
        %v359 = vld [vmem:[%s277 + $0x78] sm:$0xf]
        %v360 = vld [vmem:[%s277 + $0x7c] sm:$0xf]
        %v361 = vunpack.c.l.bf16 %v329
        %v362 = vunpack.c.l.bf16 %v330
        %v363 = vunpack.c.l.bf16 %v331
        %v364 = vunpack.c.l.bf16 %v332
        %v365 = vunpack.c.l.bf16 %v333
        %v366 = vunpack.c.l.bf16 %v334
        %v367 = vunpack.c.l.bf16 %v335
        %v368 = vunpack.c.l.bf16 %v336
        %v369 = vunpack.c.l.bf16 %v337
        %v370 = vunpack.c.l.bf16 %v338
        %v371 = vunpack.c.l.bf16 %v339
        %v372 = vunpack.c.l.bf16 %v340
        %v373 = vunpack.c.l.bf16 %v341
        %v374 = vunpack.c.l.bf16 %v342
        %v375 = vunpack.c.l.bf16 %v343
        %v376 = vunpack.c.l.bf16 %v344
        %v377 = vunpack.c.l.bf16 %v345
        %v378 = vunpack.c.l.bf16 %v346
        %v379 = vunpack.c.l.bf16 %v347
        %v380 = vunpack.c.l.bf16 %v348
        %v381 = vunpack.c.l.bf16 %v349
        %v382 = vunpack.c.l.bf16 %v350
        %v383 = vunpack.c.l.bf16 %v351
        %v384 = vunpack.c.l.bf16 %v352
        %v385 = vunpack.c.l.bf16 %v353
        %v386 = vunpack.c.l.bf16 %v354
        %v387 = vunpack.c.l.bf16 %v355
        %v388 = vunpack.c.l.bf16 %v356
        %v389 = vunpack.c.l.bf16 %v357
        %v390 = vunpack.c.l.bf16 %v358
        %v391 = vunpack.c.l.bf16 %v359
        %v392 = vunpack.c.l.bf16 %v360
        %v393 = vld [vmem:[#allocation5] sm:$0x1]
        %v395 = vlaneseq
        %v396 = vshrl.u32 %v395, 7
        %v397 = vsub.s32 0, %v396
        %v398 = vrot.slane %v393, %v397
        %v400 = vmul.f32 %v361, %v398
        %v401 = vmul.f32 %v362, %v398
        %v402 = vmul.f32 %v363, %v398
        %v403 = vmul.f32 %v364, %v398
        %v404 = vmul.f32 %v365, %v398
        %v405 = vmul.f32 %v366, %v398
        %v406 = vmul.f32 %v367, %v398
        %v407 = vmul.f32 %v368, %v398
        %v408 = vmul.f32 %v369, %v398
        %v409 = vmul.f32 %v370, %v398
        %v410 = vmul.f32 %v371, %v398
        %v411 = vmul.f32 %v372, %v398
        %v412 = vmul.f32 %v373, %v398
        %v413 = vmul.f32 %v374, %v398
        %v414 = vmul.f32 %v375, %v398
        %v415 = vmul.f32 %v376, %v398
        %v416 = vmul.f32 %v377, %v398
        %v417 = vmul.f32 %v378, %v398
        %v418 = vmul.f32 %v379, %v398
        %v419 = vmul.f32 %v380, %v398
        %v420 = vmul.f32 %v381, %v398
        %v421 = vmul.f32 %v382, %v398
        %v422 = vmul.f32 %v383, %v398
        %v423 = vmul.f32 %v384, %v398
        %v424 = vmul.f32 %v385, %v398
        %v425 = vmul.f32 %v386, %v398
        %v426 = vmul.f32 %v387, %v398
        %v427 = vmul.f32 %v388, %v398
        %v428 = vmul.f32 %v389, %v398
        %v429 = vmul.f32 %v390, %v398
        %v430 = vmul.f32 %v391, %v398
        %v431 = vmul.f32 %v392, %v398
        %v432 = vld [vmem:[#allocation7] sm:$0x1]
        %v434 = vlaneseq
        %v435 = vshrl.u32 %v434, 7
        %v436 = vsub.s32 0, %v435
        %v437 = vrot.slane %v432, %v436
        %v439 = vadd.f32 %v400, %v437
        %v440 = vadd.f32 %v401, %v437
        %v441 = vadd.f32 %v402, %v437
        %v442 = vadd.f32 %v403, %v437
        %v443 = vadd.f32 %v404, %v437
        %v444 = vadd.f32 %v405, %v437
        %v445 = vadd.f32 %v406, %v437
        %v446 = vadd.f32 %v407, %v437
        %v447 = vadd.f32 %v408, %v437
        %v448 = vadd.f32 %v409, %v437
        %v449 = vadd.f32 %v410, %v437
        %v450 = vadd.f32 %v411, %v437
        %v451 = vadd.f32 %v412, %v437
        %v452 = vadd.f32 %v413, %v437
        %v453 = vadd.f32 %v414, %v437
        %v454 = vadd.f32 %v415, %v437
        %v455 = vadd.f32 %v416, %v437
        %v456 = vadd.f32 %v417, %v437
        %v457 = vadd.f32 %v418, %v437
        %v458 = vadd.f32 %v419, %v437
        %v459 = vadd.f32 %v420, %v437
        %v460 = vadd.f32 %v421, %v437
        %v461 = vadd.f32 %v422, %v437
        %v462 = vadd.f32 %v423, %v437
        %v463 = vadd.f32 %v424, %v437
        %v464 = vadd.f32 %v425, %v437
        %v465 = vadd.f32 %v426, %v437
        %v466 = vadd.f32 %v427, %v437
        %v467 = vadd.f32 %v428, %v437
        %v468 = vadd.f32 %v429, %v437
        %v469 = vadd.f32 %v430, %v437
        %v470 = vadd.f32 %v431, %v437
        %v471 = vmax.f32 %v439, 0.0
        %v472 = vmax.f32 %v440, 0.0
        %v473 = vmax.f32 %v441, 0.0
        %v474 = vmax.f32 %v442, 0.0
        %v475 = vmax.f32 %v443, 0.0
        %v476 = vmax.f32 %v444, 0.0
        %v477 = vmax.f32 %v445, 0.0
        %v478 = vmax.f32 %v446, 0.0
        %v479 = vmax.f32 %v447, 0.0
        %v480 = vmax.f32 %v448, 0.0
        %v481 = vmax.f32 %v449, 0.0
        %v482 = vmax.f32 %v450, 0.0
        %v483 = vmax.f32 %v451, 0.0
        %v484 = vmax.f32 %v452, 0.0
        %v485 = vmax.f32 %v453, 0.0
        %v486 = vmax.f32 %v454, 0.0
        %v487 = vmax.f32 %v455, 0.0
        %v488 = vmax.f32 %v456, 0.0
        %v489 = vmax.f32 %v457, 0.0
        %v490 = vmax.f32 %v458, 0.0
        %v491 = vmax.f32 %v459, 0.0
        %v492 = vmax.f32 %v460, 0.0
        %v493 = vmax.f32 %v461, 0.0
        %v494 = vmax.f32 %v462, 0.0
        %v495 = vmax.f32 %v463, 0.0
        %v496 = vmax.f32 %v464, 0.0
        %v497 = vmax.f32 %v465, 0.0
        %v498 = vmax.f32 %v466, 0.0
        %v499 = vmax.f32 %v467, 0.0
        %v500 = vmax.f32 %v468, 0.0
        %v501 = vmax.f32 %v469, 0.0
        %v502 = vmax.f32 %v470, 0.0
        %vm536 = vcmask 1040384
        %v537 = vrot.slane 0.0, 7
        %v538 = vsel %vm536, %v537, %v537
        %v539 = vrot.slane %v471, 7
        %v540 = vrot.slane %v472, 7
        %v541 = vsel %vm536, %v539, %v540
        %v542 = vrot.slane %v473, 7
        %v543 = vrot.slane %v474, 7
        %v544 = vsel %vm536, %v542, %v543
        %v545 = vrot.slane %v475, 7
        %v546 = vrot.slane %v476, 7
        %v547 = vsel %vm536, %v545, %v546
        %v548 = vrot.slane %v477, 7
        %v549 = vrot.slane %v478, 7
        %v550 = vsel %vm536, %v548, %v549
        %v551 = vrot.slane %v479, 7
        %v552 = vrot.slane %v480, 7
        %v553 = vsel %vm536, %v551, %v552
        %v554 = vrot.slane %v481, 7
        %v555 = vrot.slane %v482, 7
        %v556 = vsel %vm536, %v554, %v555
        %v557 = vrot.slane %v483, 7
        %v558 = vrot.slane %v484, 7
        %v559 = vsel %vm536, %v557, %v558
        %v560 = vrot.slane %v485, 7
        %v561 = vrot.slane %v486, 7
        %v562 = vsel %vm536, %v560, %v561
        %v563 = vrot.slane %v487, 7
        %v564 = vrot.slane %v488, 7
        %v565 = vsel %vm536, %v563, %v564
        %v566 = vrot.slane %v489, 7
        %v567 = vrot.slane %v490, 7
        %v568 = vsel %vm536, %v566, %v567
        %v569 = vrot.slane %v491, 7
        %v570 = vrot.slane %v492, 7
        %v571 = vsel %vm536, %v569, %v570
        %v572 = vrot.slane %v493, 7
        %v573 = vrot.slane %v494, 7
        %v574 = vsel %vm536, %v572, %v573
        %v575 = vrot.slane %v495, 7
        %v576 = vrot.slane %v496, 7
        %v577 = vsel %vm536, %v575, %v576
        %v578 = vrot.slane %v497, 7
        %v579 = vrot.slane %v498, 7
        %v580 = vsel %vm536, %v578, %v579
        %v581 = vrot.slane %v499, 7
        %v582 = vrot.slane %v500, 7
        %v583 = vsel %vm536, %v581, %v582
        %v584 = vrot.slane %v501, 7
        %v585 = vrot.slane %v502, 7
        %v586 = vsel %vm536, %v584, %v585
        %v637 = vsel %vm536, 0.0, %v537
        %v638 = vsel %vm536, 0.0, %v539
        %v639 = vsel %vm536, 0.0, %v542
        %v640 = vsel %vm536, 0.0, %v545
        %v641 = vsel %vm536, 0.0, %v548
        %v642 = vsel %vm536, 0.0, %v551
        %v643 = vsel %vm536, 0.0, %v554
        %v644 = vsel %vm536, 0.0, %v557
        %v645 = vsel %vm536, 0.0, %v560
        %v646 = vsel %vm536, 0.0, %v563
        %v647 = vsel %vm536, 0.0, %v566
        %v648 = vsel %vm536, 0.0, %v569
        %v649 = vsel %vm536, 0.0, %v572
        %v650 = vsel %vm536, 0.0, %v575
        %v651 = vsel %vm536, 0.0, %v578
        %v652 = vsel %vm536, 0.0, %v581
        %v653 = vsel %vm536, 0.0, %v584
        %v654 = vsel %vm536, %v537, 0.0
        %v655 = vsel %vm536, %v540, 0.0
        %v656 = vsel %vm536, %v543, 0.0
        %v657 = vsel %vm536, %v546, 0.0
        %v658 = vsel %vm536, %v549, 0.0
        %v659 = vsel %vm536, %v552, 0.0
        %v660 = vsel %vm536, %v555, 0.0
        %v661 = vsel %vm536, %v558, 0.0
        %v662 = vsel %vm536, %v561, 0.0
        %v663 = vsel %vm536, %v564, 0.0
        %v664 = vsel %vm536, %v567, 0.0
        %v665 = vsel %vm536, %v570, 0.0
        %v666 = vsel %vm536, %v573, 0.0
        %v667 = vsel %vm536, %v576, 0.0
        %v668 = vsel %vm536, %v579, 0.0
        %v669 = vsel %vm536, %v582, 0.0
        %v670 = vsel %vm536, %v585, 0.0
        %v671 = vpack.c.bf16 %v538, %v637
        %v672 = vpack.c.bf16 %v654, %v654
        %v673 = vpack.c.bf16 %v541, %v638
        %v674 = vpack.c.bf16 %v655, %v655
        %v675 = vpack.c.bf16 %v544, %v639
        %v676 = vpack.c.bf16 %v656, %v656
        %v677 = vpack.c.bf16 %v547, %v640
        %v678 = vpack.c.bf16 %v657, %v657
        %v679 = vpack.c.bf16 %v550, %v641
        %v680 = vpack.c.bf16 %v658, %v658
        %v681 = vpack.c.bf16 %v553, %v642
        %v682 = vpack.c.bf16 %v659, %v659
        %v683 = vpack.c.bf16 %v556, %v643
        %v684 = vpack.c.bf16 %v660, %v660
        %v685 = vpack.c.bf16 %v559, %v644
        %v686 = vpack.c.bf16 %v661, %v661
        %v687 = vpack.c.bf16 %v562, %v645
        %v688 = vpack.c.bf16 %v662, %v662
        %v689 = vpack.c.bf16 %v565, %v646
        %v690 = vpack.c.bf16 %v663, %v663
        %v691 = vpack.c.bf16 %v568, %v647
        %v692 = vpack.c.bf16 %v664, %v664
        %v693 = vpack.c.bf16 %v571, %v648
        %v694 = vpack.c.bf16 %v665, %v665
        %v695 = vpack.c.bf16 %v574, %v649
        %v696 = vpack.c.bf16 %v666, %v666
        %v697 = vpack.c.bf16 %v577, %v650
        %v698 = vpack.c.bf16 %v667, %v667
        %v699 = vpack.c.bf16 %v580, %v651
        %v700 = vpack.c.bf16 %v668, %v668
        %v701 = vpack.c.bf16 %v583, %v652
        %v702 = vpack.c.bf16 %v669, %v669
        %v703 = vpack.c.bf16 %v586, %v653
        %v704 = vpack.c.bf16 %v670, %v670
        %vm705 = vsmask.f32 7424
        %v707 = vshrl.u32 %v671, 16
        %v709 = vshll.u32 %v671, 16
        %v711 = vrot.slane %v709, 1
        %v712 = vor.u32 %v707, %v711
        %v714 = vshll.u32 %v672, 16
        %v716 = vrot.slane %v714, 1
        %v717 = vsel %vm705, %v712, %v716
        %v719 = vshrl.u32 %v673, 16
        %v721 = vshll.u32 %v673, 16
        %v723 = vrot.slane %v721, 1
        %v724 = vor.u32 %v719, %v723
        %v726 = vshll.u32 %v674, 16
        %v728 = vrot.slane %v726, 1
        %v729 = vsel %vm705, %v724, %v728
        %v731 = vshrl.u32 %v675, 16
        %v733 = vshll.u32 %v675, 16
        %v735 = vrot.slane %v733, 1
        %v736 = vor.u32 %v731, %v735
        %v738 = vshll.u32 %v676, 16
        %v740 = vrot.slane %v738, 1
        %v741 = vsel %vm705, %v736, %v740
        %v743 = vshrl.u32 %v677, 16
        %v745 = vshll.u32 %v677, 16
        %v747 = vrot.slane %v745, 1
        %v748 = vor.u32 %v743, %v747
        %v750 = vshll.u32 %v678, 16
        %v752 = vrot.slane %v750, 1
        %v753 = vsel %vm705, %v748, %v752
        %v755 = vshrl.u32 %v679, 16
        %v757 = vshll.u32 %v679, 16
        %v759 = vrot.slane %v757, 1
        %v760 = vor.u32 %v755, %v759
        %v762 = vshll.u32 %v680, 16
        %v764 = vrot.slane %v762, 1
        %v765 = vsel %vm705, %v760, %v764
        %v767 = vshrl.u32 %v681, 16
        %v769 = vshll.u32 %v681, 16
        %v771 = vrot.slane %v769, 1
        %v772 = vor.u32 %v767, %v771
        %v774 = vshll.u32 %v682, 16
        %v776 = vrot.slane %v774, 1
        %v777 = vsel %vm705, %v772, %v776
        %v779 = vshrl.u32 %v683, 16
        %v781 = vshll.u32 %v683, 16
        %v783 = vrot.slane %v781, 1
        %v784 = vor.u32 %v779, %v783
        %v786 = vshll.u32 %v684, 16
        %v788 = vrot.slane %v786, 1
        %v789 = vsel %vm705, %v784, %v788
        %v791 = vshrl.u32 %v685, 16
        %v793 = vshll.u32 %v685, 16
        %v795 = vrot.slane %v793, 1
        %v796 = vor.u32 %v791, %v795
        %v798 = vshll.u32 %v686, 16
        %v800 = vrot.slane %v798, 1
        %v801 = vsel %vm705, %v796, %v800
        %v803 = vshrl.u32 %v687, 16
        %v805 = vshll.u32 %v687, 16
        %v807 = vrot.slane %v805, 1
        %v808 = vor.u32 %v803, %v807
        %v810 = vshll.u32 %v688, 16
        %v812 = vrot.slane %v810, 1
        %v813 = vsel %vm705, %v808, %v812
        %v815 = vshrl.u32 %v689, 16
        %v817 = vshll.u32 %v689, 16
        %v819 = vrot.slane %v817, 1
        %v820 = vor.u32 %v815, %v819
        %v822 = vshll.u32 %v690, 16
        %v824 = vrot.slane %v822, 1
        %v825 = vsel %vm705, %v820, %v824
        %v827 = vshrl.u32 %v691, 16
        %v829 = vshll.u32 %v691, 16
        %v831 = vrot.slane %v829, 1
        %v832 = vor.u32 %v827, %v831
        %v834 = vshll.u32 %v692, 16
        %v836 = vrot.slane %v834, 1
        %v837 = vsel %vm705, %v832, %v836
        %v839 = vshrl.u32 %v693, 16
        %v841 = vshll.u32 %v693, 16
        %v843 = vrot.slane %v841, 1
        %v844 = vor.u32 %v839, %v843
        %v846 = vshll.u32 %v694, 16
        %v848 = vrot.slane %v846, 1
        %v849 = vsel %vm705, %v844, %v848
        %v851 = vshrl.u32 %v695, 16
        %v853 = vshll.u32 %v695, 16
        %v855 = vrot.slane %v853, 1
        %v856 = vor.u32 %v851, %v855
        %v858 = vshll.u32 %v696, 16
        %v860 = vrot.slane %v858, 1
        %v861 = vsel %vm705, %v856, %v860
        %v863 = vshrl.u32 %v697, 16
        %v865 = vshll.u32 %v697, 16
        %v867 = vrot.slane %v865, 1
        %v868 = vor.u32 %v863, %v867
        %v870 = vshll.u32 %v698, 16
        %v872 = vrot.slane %v870, 1
        %v873 = vsel %vm705, %v868, %v872
        %v875 = vshrl.u32 %v699, 16
        %v877 = vshll.u32 %v699, 16
        %v879 = vrot.slane %v877, 1
        %v880 = vor.u32 %v875, %v879
        %v882 = vshll.u32 %v700, 16
        %v884 = vrot.slane %v882, 1
        %v885 = vsel %vm705, %v880, %v884
        %v887 = vshrl.u32 %v701, 16
        %v889 = vshll.u32 %v701, 16
        %v891 = vrot.slane %v889, 1
        %v892 = vor.u32 %v887, %v891
        %v894 = vshll.u32 %v702, 16
        %v896 = vrot.slane %v894, 1
        %v897 = vsel %vm705, %v892, %v896
        %898 = vrot.lane.b32.xlu0 %v717, 16
        %v899 = vpop.permute.xlu0 %898
        %900 = vrot.lane.b32.xlu0 %v729, 16
        %v901 = vpop.permute.xlu0 %900
        %902 = vrot.lane.b32.xlu0 %v741, 16
        %v903 = vpop.permute.xlu0 %902
        %904 = vrot.lane.b32.xlu0 %v753, 16
        %v905 = vpop.permute.xlu0 %904
        %906 = vrot.lane.b32.xlu0 %v765, 16
        %v907 = vpop.permute.xlu0 %906
        %908 = vrot.lane.b32.xlu0 %v777, 16
        %v909 = vpop.permute.xlu0 %908
        %910 = vrot.lane.b32.xlu0 %v789, 16
        %v911 = vpop.permute.xlu0 %910
        %912 = vrot.lane.b32.xlu0 %v801, 16
        %v913 = vpop.permute.xlu0 %912
        %914 = vrot.lane.b32.xlu0 %v813, 16
        %v915 = vpop.permute.xlu0 %914
        %916 = vrot.lane.b32.xlu0 %v825, 16
        %v917 = vpop.permute.xlu0 %916
        %918 = vrot.lane.b32.xlu0 %v837, 16
        %v919 = vpop.permute.xlu0 %918
        %920 = vrot.lane.b32.xlu0 %v849, 16
        %v921 = vpop.permute.xlu0 %920
        %922 = vrot.lane.b32.xlu0 %v861, 16
        %v923 = vpop.permute.xlu0 %922
        %924 = vrot.lane.b32.xlu0 %v873, 16
        %v925 = vpop.permute.xlu0 %924
        %926 = vrot.lane.b32.xlu0 %v885, 16
        %v927 = vpop.permute.xlu0 %926
        %928 = vrot.lane.b32.xlu0 %v897, 16
        %v929 = vpop.permute.xlu0 %928
        %946 = vrot.lane.b32.xlu0 %v673, 32
        %v947 = vpop.permute.xlu0 %946
        %948 = vrot.lane.b32.xlu0 %v675, 32
        %v949 = vpop.permute.xlu0 %948
        %950 = vrot.lane.b32.xlu0 %v677, 32
        %v951 = vpop.permute.xlu0 %950
        %952 = vrot.lane.b32.xlu0 %v679, 32
        %v953 = vpop.permute.xlu0 %952
        %954 = vrot.lane.b32.xlu0 %v681, 32
        %v955 = vpop.permute.xlu0 %954
        %956 = vrot.lane.b32.xlu0 %v683, 32
        %v957 = vpop.permute.xlu0 %956
        %958 = vrot.lane.b32.xlu0 %v685, 32
        %v959 = vpop.permute.xlu0 %958
        %960 = vrot.lane.b32.xlu0 %v687, 32
        %v961 = vpop.permute.xlu0 %960
        %962 = vrot.lane.b32.xlu0 %v689, 32
        %v963 = vpop.permute.xlu0 %962
        %964 = vrot.lane.b32.xlu0 %v691, 32
        %v965 = vpop.permute.xlu0 %964
        %966 = vrot.lane.b32.xlu0 %v693, 32
        %v967 = vpop.permute.xlu0 %966
        %968 = vrot.lane.b32.xlu0 %v695, 32
        %v969 = vpop.permute.xlu0 %968
        %970 = vrot.lane.b32.xlu0 %v697, 32
        %v971 = vpop.permute.xlu0 %970
        %972 = vrot.lane.b32.xlu0 %v699, 32
        %v973 = vpop.permute.xlu0 %972
        %974 = vrot.lane.b32.xlu0 %v701, 32
        %v975 = vpop.permute.xlu0 %974
        %976 = vrot.lane.b32.xlu0 %v703, 32
        %v977 = vpop.permute.xlu0 %976
        %v979 = vshrl.u32 %v703, 16
        %v981 = vshll.u32 %v703, 16
        %v983 = vrot.slane %v981, 1
        %v984 = vor.u32 %v979, %v983
        %v986 = vshll.u32 %v704, 16
        %v988 = vrot.slane %v986, 1
        %v989 = vsel %vm705, %v984, %v988
        %990 = vrot.lane.b32.xlu0 %v729, 48
        %v991 = vpop.permute.xlu0 %990
        %992 = vrot.lane.b32.xlu0 %v741, 48
        %v993 = vpop.permute.xlu0 %992
        %994 = vrot.lane.b32.xlu0 %v753, 48
        %v995 = vpop.permute.xlu0 %994
        %996 = vrot.lane.b32.xlu0 %v765, 48
        %v997 = vpop.permute.xlu0 %996
        %998 = vrot.lane.b32.xlu0 %v777, 48
        %v999 = vpop.permute.xlu0 %998
        %1000 = vrot.lane.b32.xlu0 %v789, 48
        %v1001 = vpop.permute.xlu0 %1000
        %1002 = vrot.lane.b32.xlu0 %v801, 48
        %v1003 = vpop.permute.xlu0 %1002
        %1004 = vrot.lane.b32.xlu0 %v813, 48
        %v1005 = vpop.permute.xlu0 %1004
        %1006 = vrot.lane.b32.xlu0 %v825, 48
        %v1007 = vpop.permute.xlu0 %1006
        %1008 = vrot.lane.b32.xlu0 %v837, 48
        %v1009 = vpop.permute.xlu0 %1008
        %1010 = vrot.lane.b32.xlu0 %v849, 48
        %v1011 = vpop.permute.xlu0 %1010
        %1012 = vrot.lane.b32.xlu0 %v861, 48
        %v1013 = vpop.permute.xlu0 %1012
        %1014 = vrot.lane.b32.xlu0 %v873, 48
        %v1015 = vpop.permute.xlu0 %1014
        %1016 = vrot.lane.b32.xlu0 %v885, 48
        %v1017 = vpop.permute.xlu0 %1016
        %1018 = vrot.lane.b32.xlu0 %v897, 48
        %v1019 = vpop.permute.xlu0 %1018
        %1020 = vrot.lane.b32.xlu0 %v989, 48
        %v1021 = vpop.permute.xlu0 %1020
        %vm1022 = vcmask 130048
        %v1024 = vsel %vm1022, %v671, %v899
        %v1026 = vsel %vm1022, %v673, %v901
        %v1028 = vsel %vm1022, %v675, %v903
        %v1030 = vsel %vm1022, %v677, %v905
        %v1032 = vsel %vm1022, %v679, %v907
        %v1034 = vsel %vm1022, %v681, %v909
        %v1036 = vsel %vm1022, %v683, %v911
        %v1038 = vsel %vm1022, %v685, %v913
        %v1040 = vsel %vm1022, %v687, %v915
        %v1042 = vsel %vm1022, %v689, %v917
        %v1044 = vsel %vm1022, %v691, %v919
        %v1046 = vsel %vm1022, %v693, %v921
        %v1048 = vsel %vm1022, %v695, %v923
        %v1050 = vsel %vm1022, %v697, %v925
        %v1052 = vsel %vm1022, %v699, %v927
        %v1054 = vsel %vm1022, %v701, %v929
        %vm1055 = vcmask 261120
        %v1057 = vsel %vm1055, %v1024, %v947
        %v1059 = vsel %vm1055, %v1026, %v949
        %v1061 = vsel %vm1055, %v1028, %v951
        %v1063 = vsel %vm1055, %v1030, %v953
        %v1065 = vsel %vm1055, %v1032, %v955
        %v1067 = vsel %vm1055, %v1034, %v957
        %v1069 = vsel %vm1055, %v1036, %v959
        %v1071 = vsel %vm1055, %v1038, %v961
        %v1073 = vsel %vm1055, %v1040, %v963
        %v1075 = vsel %vm1055, %v1042, %v965
        %v1077 = vsel %vm1055, %v1044, %v967
        %v1079 = vsel %vm1055, %v1046, %v969
        %v1081 = vsel %vm1055, %v1048, %v971
        %v1083 = vsel %vm1055, %v1050, %v973
        %v1085 = vsel %vm1055, %v1052, %v975
        %v1087 = vsel %vm1055, %v1054, %v977
        %vm1088 = vcmask 392192
        %v1090 = vsel %vm1088, %v1057, %v991
        %v1092 = vsel %vm1088, %v1059, %v993
        %v1094 = vsel %vm1088, %v1061, %v995
        %v1096 = vsel %vm1088, %v1063, %v997
        %v1098 = vsel %vm1088, %v1065, %v999
        %v1100 = vsel %vm1088, %v1067, %v1001
        %v1102 = vsel %vm1088, %v1069, %v1003
        %v1104 = vsel %vm1088, %v1071, %v1005
        %v1106 = vsel %vm1088, %v1073, %v1007
        %v1108 = vsel %vm1088, %v1075, %v1009
        %v1110 = vsel %vm1088, %v1077, %v1011
        %v1112 = vsel %vm1088, %v1079, %v1013
        %v1114 = vsel %vm1088, %v1081, %v1015
        %v1116 = vsel %vm1088, %v1083, %v1017
        %v1118 = vsel %vm1088, %v1085, %v1019
        %v1120 = vsel %vm1088, %v1087, %v1021
        %v1121 = vld [vmem:[#allocation8] sm:$0xf]
        %vm1122 = vcmask 523264
        %v1124 = vsel %vm1122, %v1121, 0
        %v1126 = vsel %vm1122, %v1090, 0
        %v1128 = vsel %vm1122, %v1092, 0
        %v1130 = vsel %vm1122, %v1094, 0
        %v1132 = vsel %vm1122, %v1096, 0
        %v1134 = vsel %vm1122, %v1098, 0
        %v1136 = vsel %vm1122, %v1100, 0
        %v1138 = vsel %vm1122, %v1102, 0
        %v1140 = vsel %vm1122, %v1104, 0
        %v1142 = vsel %vm1122, %v1106, 0
        %v1144 = vsel %vm1122, %v1108, 0
        %v1146 = vsel %vm1122, %v1110, 0
        %v1148 = vsel %vm1122, %v1112, 0
        %v1150 = vsel %vm1122, %v1114, 0
        %v1152 = vsel %vm1122, %v1116, 0
        %v1154 = vsel %vm1122, %v1118, 0
        %v1156 = vsel %vm1122, %v1120, 0
        %1158 = vmatprep.subr.bf16.mxu0 0
        %1159 = vmatpush1.bf16.xpose.msra.mxu0 %v1126
        %1160 = vmatprep.subr.bf16.mxu0 0
        %1161 = vmatpush1.bf16.xpose.msra.mxu0 %v1128
        %1162 = vmatprep.subr.bf16.mxu0 0
        %1163 = vmatpush1.bf16.xpose.msra.mxu0 %v1130
        %1164 = vmatprep.subr.bf16.mxu0 0
        %1165 = vmatpush1.bf16.xpose.msra.mxu0 %v1132
        %1166 = vmatprep.subr.bf16.mxu0 0
        %1167 = vmatpush1.bf16.xpose.msra.mxu0 %v1134
        %1168 = vmatprep.subr.bf16.mxu0 0
        %1169 = vmatpush1.bf16.xpose.msra.mxu0 %v1136
        %1170 = vmatprep.subr.bf16.mxu0 0
        %1171 = vmatpush1.bf16.xpose.msra.mxu0 %v1138
        %1172 = vmatprep.subr.bf16.mxu0 0
        %1173 = vmatpush1.bf16.xpose.msra.mxu0 %v1140
        %1174 = vmatprep.subr.bf16.mxu0 0
        %1175 = vmatpush1.bf16.xpose.msra.mxu0 %v1142
        %1176 = vmatprep.subr.bf16.mxu0 0
        %1177 = vmatpush1.bf16.xpose.msra.mxu0 %v1144
        %1178 = vmatprep.subr.bf16.mxu0 0
        %1179 = vmatpush1.bf16.xpose.msra.mxu0 %v1146
        %1180 = vmatprep.subr.bf16.mxu0 0
        %1181 = vmatpush1.bf16.xpose.msra.mxu0 %v1148
        %1182 = vmatprep.subr.bf16.mxu0 0
        %1183 = vmatpush1.bf16.xpose.msra.mxu0 %v1150
        %1184 = vmatprep.subr.bf16.mxu0 0
        %1185 = vmatpush1.bf16.xpose.msra.mxu0 %v1152
        %1186 = vmatprep.subr.bf16.mxu0 0
        %1187 = vmatpush1.bf16.xpose.msra.mxu0 %v1154
        %1188 = vmatprep.subr.bf16.mxu0 0
        %1189 = vmatpush1.bf16.xpose.msra.mxu0 %v1156
        %1190 = vmatprep.mubr.bf16.mxu0 0
        %1191 = vmatmul.mubr.bf16.gmra.mrb[0].mxu0 %v1124
        %v1192 = vpop.f32.mrb[0].mxu0
        %v1193 = vadd.f32 0.0, %v1192
        %v1194 = vpop.f32.mrb[0].mxu0
        %v1195 = vadd.f32 0.0, %v1194
        %v1196 = vpop.f32.mrb[0].mxu0
        %v1197 = vpop.f32.mrb[0].mxu0
        %1198 = vdwg.mxu0
        %v1199 = vadd.f32 %v1193, %v1195
        %1200 = vadd.xlane.f32.xlu0 %v1199
        %v1201 = vpop.xlane.xlu0 %1200
        %v1202 = vadd.f32 %v1201, 0.0
        %v1203 = vmul.f32 %v1193, %v1193
        %v1204 = vmul.f32 %v1195, %v1195
        %v1205 = vadd.f32 %v1203, %v1204
        %1206 = vadd.xlane.f32.xlu0 %v1205
        %v1207 = vpop.xlane.xlu0 %1206
        %v1208 = vadd.f32 %v1207, 0.0
        %v1209 = vpack.c.bf16 %v1193, %v1193
        %v1210 = vpack.c.bf16 %v1195, %v1195
        %v1213 = vunpack.c.l.b16 %v1209
        %v1214 = vunpack.c.l.b16 %v1210
        %v1215 = vpack.c.b16 %v1214, %v1213
        %1217 = vst [vmem:[%s313] sm:$0xff] %v1215
        %v1218 = vshrl.u32 %v672, 16
        %v1220 = vshrl.u32 %v674, 16
        %v1222 = vshrl.u32 %v676, 16
        %v1224 = vshrl.u32 %v678, 16
        %v1226 = vshrl.u32 %v680, 16
        %v1228 = vshrl.u32 %v682, 16
        %v1230 = vshrl.u32 %v684, 16
        %v1232 = vshrl.u32 %v686, 16
        %v1234 = vshrl.u32 %v688, 16
        %v1236 = vshrl.u32 %v690, 16
        %v1238 = vshrl.u32 %v692, 16
        %v1240 = vshrl.u32 %v694, 16
        %v1242 = vshrl.u32 %v696, 16
        %v1244 = vshrl.u32 %v698, 16
        %v1246 = vshrl.u32 %v700, 16
        %v1248 = vshrl.u32 %v702, 16
        %1250 = vrot.lane.b32.xlu0 %v1218, 16
        %v1251 = vpop.permute.xlu0 %1250
        %1252 = vrot.lane.b32.xlu0 %v1220, 16
        %v1253 = vpop.permute.xlu0 %1252
        %1254 = vrot.lane.b32.xlu0 %v1222, 16
        %v1255 = vpop.permute.xlu0 %1254
        %1256 = vrot.lane.b32.xlu0 %v1224, 16
        %v1257 = vpop.permute.xlu0 %1256
        %1258 = vrot.lane.b32.xlu0 %v1226, 16
        %v1259 = vpop.permute.xlu0 %1258
        %1260 = vrot.lane.b32.xlu0 %v1228, 16
        %v1261 = vpop.permute.xlu0 %1260
        %1262 = vrot.lane.b32.xlu0 %v1230, 16
        %v1263 = vpop.permute.xlu0 %1262
        %1264 = vrot.lane.b32.xlu0 %v1232, 16
        %v1265 = vpop.permute.xlu0 %1264
        %1266 = vrot.lane.b32.xlu0 %v1234, 16
        %v1267 = vpop.permute.xlu0 %1266
        %1268 = vrot.lane.b32.xlu0 %v1236, 16
        %v1269 = vpop.permute.xlu0 %1268
        %1270 = vrot.lane.b32.xlu0 %v1238, 16
        %v1271 = vpop.permute.xlu0 %1270
        %1272 = vrot.lane.b32.xlu0 %v1240, 16
        %v1273 = vpop.permute.xlu0 %1272
        %1274 = vrot.lane.b32.xlu0 %v1242, 16
        %v1275 = vpop.permute.xlu0 %1274
        %1276 = vrot.lane.b32.xlu0 %v1244, 16
        %v1277 = vpop.permute.xlu0 %1276
        %1278 = vrot.lane.b32.xlu0 %v1246, 16
        %v1279 = vpop.permute.xlu0 %1278
        %1280 = vrot.lane.b32.xlu0 %v1248, 16
        %v1281 = vpop.permute.xlu0 %1280
        %1298 = vrot.lane.b32.xlu0 %v674, 32
        %v1299 = vpop.permute.xlu0 %1298
        %1300 = vrot.lane.b32.xlu0 %v676, 32
        %v1301 = vpop.permute.xlu0 %1300
        %1302 = vrot.lane.b32.xlu0 %v678, 32
        %v1303 = vpop.permute.xlu0 %1302
        %1304 = vrot.lane.b32.xlu0 %v680, 32
        %v1305 = vpop.permute.xlu0 %1304
        %1306 = vrot.lane.b32.xlu0 %v682, 32
        %v1307 = vpop.permute.xlu0 %1306
        %1308 = vrot.lane.b32.xlu0 %v684, 32
        %v1309 = vpop.permute.xlu0 %1308
        %1310 = vrot.lane.b32.xlu0 %v686, 32
        %v1311 = vpop.permute.xlu0 %1310
        %1312 = vrot.lane.b32.xlu0 %v688, 32
        %v1313 = vpop.permute.xlu0 %1312
        %1314 = vrot.lane.b32.xlu0 %v690, 32
        %v1315 = vpop.permute.xlu0 %1314
        %1316 = vrot.lane.b32.xlu0 %v692, 32
        %v1317 = vpop.permute.xlu0 %1316
        %1318 = vrot.lane.b32.xlu0 %v694, 32
        %v1319 = vpop.permute.xlu0 %1318
        %1320 = vrot.lane.b32.xlu0 %v696, 32
        %v1321 = vpop.permute.xlu0 %1320
        %1322 = vrot.lane.b32.xlu0 %v698, 32
        %v1323 = vpop.permute.xlu0 %1322
        %1324 = vrot.lane.b32.xlu0 %v700, 32
        %v1325 = vpop.permute.xlu0 %1324
        %1326 = vrot.lane.b32.xlu0 %v702, 32
        %v1327 = vpop.permute.xlu0 %1326
        %1328 = vrot.lane.b32.xlu0 %v704, 32
        %v1329 = vpop.permute.xlu0 %1328
        %v1330 = vshrl.u32 %v704, 16
        %1332 = vrot.lane.b32.xlu0 %v1220, 48
        %v1333 = vpop.permute.xlu0 %1332
        %1334 = vrot.lane.b32.xlu0 %v1222, 48
        %v1335 = vpop.permute.xlu0 %1334
        %1336 = vrot.lane.b32.xlu0 %v1224, 48
        %v1337 = vpop.permute.xlu0 %1336
        %1338 = vrot.lane.b32.xlu0 %v1226, 48
        %v1339 = vpop.permute.xlu0 %1338
        %1340 = vrot.lane.b32.xlu0 %v1228, 48
        %v1341 = vpop.permute.xlu0 %1340
        %1342 = vrot.lane.b32.xlu0 %v1230, 48
        %v1343 = vpop.permute.xlu0 %1342
        %1344 = vrot.lane.b32.xlu0 %v1232, 48
        %v1345 = vpop.permute.xlu0 %1344
        %1346 = vrot.lane.b32.xlu0 %v1234, 48
        %v1347 = vpop.permute.xlu0 %1346
        %1348 = vrot.lane.b32.xlu0 %v1236, 48
        %v1349 = vpop.permute.xlu0 %1348
        %1350 = vrot.lane.b32.xlu0 %v1238, 48
        %v1351 = vpop.permute.xlu0 %1350
        %1352 = vrot.lane.b32.xlu0 %v1240, 48
        %v1353 = vpop.permute.xlu0 %1352
        %1354 = vrot.lane.b32.xlu0 %v1242, 48
        %v1355 = vpop.permute.xlu0 %1354
        %1356 = vrot.lane.b32.xlu0 %v1244, 48
        %v1357 = vpop.permute.xlu0 %1356
        %1358 = vrot.lane.b32.xlu0 %v1246, 48
        %v1359 = vpop.permute.xlu0 %1358
        %1360 = vrot.lane.b32.xlu0 %v1248, 48
        %v1361 = vpop.permute.xlu0 %1360
        %1362 = vrot.lane.b32.xlu0 %v1330, 48
        %v1363 = vpop.permute.xlu0 %1362
        %v1365 = vsel %vm1022, %v672, %v1251
        %v1367 = vsel %vm1022, %v674, %v1253
        %v1369 = vsel %vm1022, %v676, %v1255
        %v1371 = vsel %vm1022, %v678, %v1257
        %v1373 = vsel %vm1022, %v680, %v1259
        %v1375 = vsel %vm1022, %v682, %v1261
        %v1377 = vsel %vm1022, %v684, %v1263
        %v1379 = vsel %vm1022, %v686, %v1265
        %v1381 = vsel %vm1022, %v688, %v1267
        %v1383 = vsel %vm1022, %v690, %v1269
        %v1385 = vsel %vm1022, %v692, %v1271
        %v1387 = vsel %vm1022, %v694, %v1273
        %v1389 = vsel %vm1022, %v696, %v1275
        %v1391 = vsel %vm1022, %v698, %v1277
        %v1393 = vsel %vm1022, %v700, %v1279
        %v1395 = vsel %vm1022, %v702, %v1281
        %v1397 = vsel %vm1055, %v1365, %v1299
        %v1399 = vsel %vm1055, %v1367, %v1301
        %v1401 = vsel %vm1055, %v1369, %v1303
        %v1403 = vsel %vm1055, %v1371, %v1305
        %v1405 = vsel %vm1055, %v1373, %v1307
        %v1407 = vsel %vm1055, %v1375, %v1309
        %v1409 = vsel %vm1055, %v1377, %v1311
        %v1411 = vsel %vm1055, %v1379, %v1313
        %v1413 = vsel %vm1055, %v1381, %v1315
        %v1415 = vsel %vm1055, %v1383, %v1317
        %v1417 = vsel %vm1055, %v1385, %v1319
        %v1419 = vsel %vm1055, %v1387, %v1321
        %v1421 = vsel %vm1055, %v1389, %v1323
        %v1423 = vsel %vm1055, %v1391, %v1325
        %v1425 = vsel %vm1055, %v1393, %v1327
        %v1427 = vsel %vm1055, %v1395, %v1329
        %v1429 = vsel %vm1088, %v1397, %v1333
        %v1431 = vsel %vm1088, %v1399, %v1335
        %v1433 = vsel %vm1088, %v1401, %v1337
        %v1435 = vsel %vm1088, %v1403, %v1339
        %v1437 = vsel %vm1088, %v1405, %v1341
        %v1439 = vsel %vm1088, %v1407, %v1343
        %v1441 = vsel %vm1088, %v1409, %v1345
        %v1443 = vsel %vm1088, %v1411, %v1347
        %v1445 = vsel %vm1088, %v1413, %v1349
        %v1447 = vsel %vm1088, %v1415, %v1351
        %v1449 = vsel %vm1088, %v1417, %v1353
        %v1451 = vsel %vm1088, %v1419, %v1355
        %v1453 = vsel %vm1088, %v1421, %v1357
        %v1455 = vsel %vm1088, %v1423, %v1359
        %v1457 = vsel %vm1088, %v1425, %v1361
        %v1459 = vsel %vm1088, %v1427, %v1363
        %v1460 = vshrl.u32 %v1090, 16
        %v1462 = vshll.u32 %v1090, 16
        %v1464 = vrot.slane %v1462, 1
        %v1465 = vor.u32 %v1460, %v1464
        %v1466 = vshll.u32 %v1429, 16
        %v1468 = vrot.slane %v1466, 1
        %v1469 = vsel %vm705, %v1465, %v1468
        %v1470 = vshrl.u32 %v1092, 16
        %v1472 = vshll.u32 %v1092, 16
        %v1474 = vrot.slane %v1472, 1
        %v1475 = vor.u32 %v1470, %v1474
        %v1476 = vshll.u32 %v1431, 16
        %v1478 = vrot.slane %v1476, 1
        %v1479 = vsel %vm705, %v1475, %v1478
        %v1480 = vshrl.u32 %v1094, 16
        %v1482 = vshll.u32 %v1094, 16
        %v1484 = vrot.slane %v1482, 1
        %v1485 = vor.u32 %v1480, %v1484
        %v1486 = vshll.u32 %v1433, 16
        %v1488 = vrot.slane %v1486, 1
        %v1489 = vsel %vm705, %v1485, %v1488
        %v1490 = vshrl.u32 %v1096, 16
        %v1492 = vshll.u32 %v1096, 16
        %v1494 = vrot.slane %v1492, 1
        %v1495 = vor.u32 %v1490, %v1494
        %v1496 = vshll.u32 %v1435, 16
        %v1498 = vrot.slane %v1496, 1
        %v1499 = vsel %vm705, %v1495, %v1498
        %v1500 = vshrl.u32 %v1098, 16
        %v1502 = vshll.u32 %v1098, 16
        %v1504 = vrot.slane %v1502, 1
        %v1505 = vor.u32 %v1500, %v1504
        %v1506 = vshll.u32 %v1437, 16
        %v1508 = vrot.slane %v1506, 1
        %v1509 = vsel %vm705, %v1505, %v1508
        %v1510 = vshrl.u32 %v1100, 16
        %v1512 = vshll.u32 %v1100, 16
        %v1514 = vrot.slane %v1512, 1
        %v1515 = vor.u32 %v1510, %v1514
        %v1516 = vshll.u32 %v1439, 16
        %v1518 = vrot.slane %v1516, 1
        %v1519 = vsel %vm705, %v1515, %v1518
        %v1520 = vshrl.u32 %v1102, 16
        %v1522 = vshll.u32 %v1102, 16
        %v1524 = vrot.slane %v1522, 1
        %v1525 = vor.u32 %v1520, %v1524
        %v1526 = vshll.u32 %v1441, 16
        %v1528 = vrot.slane %v1526, 1
        %v1529 = vsel %vm705, %v1525, %v1528
        %v1530 = vshrl.u32 %v1104, 16
        %v1532 = vshll.u32 %v1104, 16
        %v1534 = vrot.slane %v1532, 1
        %v1535 = vor.u32 %v1530, %v1534
        %v1536 = vshll.u32 %v1443, 16
        %v1538 = vrot.slane %v1536, 1
        %v1539 = vsel %vm705, %v1535, %v1538
        %v1540 = vshrl.u32 %v1106, 16
        %v1542 = vshll.u32 %v1106, 16
        %v1544 = vrot.slane %v1542, 1
        %v1545 = vor.u32 %v1540, %v1544
        %v1546 = vshll.u32 %v1445, 16
        %v1548 = vrot.slane %v1546, 1
        %v1549 = vsel %vm705, %v1545, %v1548
        %v1550 = vshrl.u32 %v1108, 16
        %v1552 = vshll.u32 %v1108, 16
        %v1554 = vrot.slane %v1552, 1
        %v1555 = vor.u32 %v1550, %v1554
        %v1556 = vshll.u32 %v1447, 16
        %v1558 = vrot.slane %v1556, 1
        %v1559 = vsel %vm705, %v1555, %v1558
        %v1560 = vshrl.u32 %v1110, 16
        %v1562 = vshll.u32 %v1110, 16
        %v1564 = vrot.slane %v1562, 1
        %v1565 = vor.u32 %v1560, %v1564
        %v1566 = vshll.u32 %v1449, 16
        %v1568 = vrot.slane %v1566, 1
        %v1569 = vsel %vm705, %v1565, %v1568
        %v1570 = vshrl.u32 %v1112, 16
        %v1572 = vshll.u32 %v1112, 16
        %v1574 = vrot.slane %v1572, 1
        %v1575 = vor.u32 %v1570, %v1574
        %v1576 = vshll.u32 %v1451, 16
        %v1578 = vrot.slane %v1576, 1
        %v1579 = vsel %vm705, %v1575, %v1578
        %v1580 = vshrl.u32 %v1114, 16
        %v1582 = vshll.u32 %v1114, 16
        %v1584 = vrot.slane %v1582, 1
        %v1585 = vor.u32 %v1580, %v1584
        %v1586 = vshll.u32 %v1453, 16
        %v1588 = vrot.slane %v1586, 1
        %v1589 = vsel %vm705, %v1585, %v1588
        %v1590 = vshrl.u32 %v1116, 16
        %v1592 = vshll.u32 %v1116, 16
        %v1594 = vrot.slane %v1592, 1
        %v1595 = vor.u32 %v1590, %v1594
        %v1596 = vshll.u32 %v1455, 16
        %v1598 = vrot.slane %v1596, 1
        %v1599 = vsel %vm705, %v1595, %v1598
        %v1600 = vshrl.u32 %v1118, 16
        %v1602 = vshll.u32 %v1118, 16
        %v1604 = vrot.slane %v1602, 1
        %v1605 = vor.u32 %v1600, %v1604
        %v1606 = vshll.u32 %v1457, 16
        %v1608 = vrot.slane %v1606, 1
        %v1609 = vsel %vm705, %v1605, %v1608
        %v1610 = vshrl.u32 %v1120, 16
        %v1612 = vshll.u32 %v1120, 16
        %v1614 = vrot.slane %v1612, 1
        %v1615 = vor.u32 %v1610, %v1614
        %v1616 = vshll.u32 %v1459, 16
        %v1618 = vrot.slane %v1616, 1
        %v1619 = vsel %vm705, %v1615, %v1618
        %s1620 = scalar_lea.vmem [#allocation8], 4
        %v1621 = vld [vmem:[%s1620] sm:$0xf]
        %v1623 = vsel %vm1122, %v1621, 0
        %v1626 = vsel %vm1122, %v1469, 0
        %v1629 = vsel %vm1122, %v1479, 0
        %v1632 = vsel %vm1122, %v1489, 0
        %v1635 = vsel %vm1122, %v1499, 0
        %v1638 = vsel %vm1122, %v1509, 0
        %v1641 = vsel %vm1122, %v1519, 0
        %v1644 = vsel %vm1122, %v1529, 0
        %v1647 = vsel %vm1122, %v1539, 0
        %v1650 = vsel %vm1122, %v1549, 0
        %v1653 = vsel %vm1122, %v1559, 0
        %v1656 = vsel %vm1122, %v1569, 0
        %v1659 = vsel %vm1122, %v1579, 0
        %v1662 = vsel %vm1122, %v1589, 0
        %v1665 = vsel %vm1122, %v1599, 0
        %v1668 = vsel %vm1122, %v1609, 0
        %v1671 = vsel %vm1122, %v1619, 0
        %1673 = vmatprep.subr.bf16.mxu0 0
        %1674 = vmatpush1.bf16.xpose.msra.mxu0 %v1626
        %1675 = vmatprep.subr.bf16.mxu0 0
        %1676 = vmatpush1.bf16.xpose.msra.mxu0 %v1629
        %1677 = vmatprep.subr.bf16.mxu0 0
        %1678 = vmatpush1.bf16.xpose.msra.mxu0 %v1632
        %1679 = vmatprep.subr.bf16.mxu0 0
        %1680 = vmatpush1.bf16.xpose.msra.mxu0 %v1635
        %1681 = vmatprep.subr.bf16.mxu0 0
        %1682 = vmatpush1.bf16.xpose.msra.mxu0 %v1638
        %1683 = vmatprep.subr.bf16.mxu0 0
        %1684 = vmatpush1.bf16.xpose.msra.mxu0 %v1641
        %1685 = vmatprep.subr.bf16.mxu0 0
        %1686 = vmatpush1.bf16.xpose.msra.mxu0 %v1644
        %1687 = vmatprep.subr.bf16.mxu0 0
        %1688 = vmatpush1.bf16.xpose.msra.mxu0 %v1647
        %1689 = vmatprep.subr.bf16.mxu0 0
        %1690 = vmatpush1.bf16.xpose.msra.mxu0 %v1650
        %1691 = vmatprep.subr.bf16.mxu0 0
        %1692 = vmatpush1.bf16.xpose.msra.mxu0 %v1653
        %1693 = vmatprep.subr.bf16.mxu0 0
        %1694 = vmatpush1.bf16.xpose.msra.mxu0 %v1656
        %1695 = vmatprep.subr.bf16.mxu0 0
        %1696 = vmatpush1.bf16.xpose.msra.mxu0 %v1659
        %1697 = vmatprep.subr.bf16.mxu0 0
        %1698 = vmatpush1.bf16.xpose.msra.mxu0 %v1662
        %1699 = vmatprep.subr.bf16.mxu0 0
        %1700 = vmatpush1.bf16.xpose.msra.mxu0 %v1665
        %1701 = vmatprep.subr.bf16.mxu0 0
        %1702 = vmatpush1.bf16.xpose.msra.mxu0 %v1668
        %1703 = vmatprep.subr.bf16.mxu0 0
        %1704 = vmatpush1.bf16.xpose.msra.mxu0 %v1671
        %1705 = vmatprep.mubr.bf16.mxu0 0
        %1706 = vmatmul.mubr.bf16.gmra.mrb[0].mxu0 %v1623
        %v1707 = vpop.f32.mrb[0].mxu0
        %v1708 = vadd.f32 0.0, %v1707
        %v1709 = vpop.f32.mrb[0].mxu0
        %v1710 = vadd.f32 0.0, %v1709
        %v1711 = vpop.f32.mrb[0].mxu0
        %v1712 = vpop.f32.mrb[0].mxu0
        %1713 = vdwg.mxu0
        %v1714 = vadd.f32 %v1708, %v1710
        %1715 = vadd.xlane.f32.xlu0 %v1714
        %v1716 = vpop.xlane.xlu0 %1715
        %v1717 = vadd.f32 %v1202, %v1716
        %v1718 = vmul.f32 %v1708, %v1708
        %v1719 = vmul.f32 %v1710, %v1710
        %v1720 = vadd.f32 %v1718, %v1719
        %1721 = vadd.xlane.f32.xlu0 %v1720
        %v1722 = vpop.xlane.xlu0 %1721
        %v1723 = vadd.f32 %v1208, %v1722
        %v1724 = vpack.c.bf16 %v1708, %v1708
        %v1725 = vpack.c.bf16 %v1710, %v1710
        %v1728 = vunpack.c.l.b16 %v1724
        %v1729 = vunpack.c.l.b16 %v1725
        %v1730 = vpack.c.b16 %v1729, %v1728
        %s1732 = scalar_lea.vmem %s313, 8 [#allocation10]
        %1733 = vst [vmem:[%s1732] sm:$0xff] %v1730
        %1734 = vrot.lane.b32.xlu0 %v989, 16
        %v1735 = vpop.permute.xlu0 %1734
        %1737 = vrot.lane.b32.xlu0 %v671, 32
        %v1738 = vpop.permute.xlu0 %1737
        %1739 = vrot.lane.b32.xlu0 %v717, 48
        %v1740 = vpop.permute.xlu0 %1739
        %v1742 = vsel %vm1022, %v703, %v1735
        %v1744 = vsel %vm1055, %v1742, %v1738
        %v1746 = vsel %vm1088, %v1744, %v1740
        %s1747 = scalar_lea.vmem [#allocation8], 8
        %v1748 = vld [vmem:[%s1747] sm:$0xf]
        %v1750 = vsel %vm1122, %v1748, 0
        %v1752 = vsel %vm1122, %v1746, 0
        %1754 = vmatprep.subr.bf16.mxu0 0
        %1755 = vmatpush1.bf16.xpose.msra.mxu0 %v1128
        %1756 = vmatprep.subr.bf16.mxu0 0
        %1757 = vmatpush1.bf16.xpose.msra.mxu0 %v1130
        %1758 = vmatprep.subr.bf16.mxu0 0
        %1759 = vmatpush1.bf16.xpose.msra.mxu0 %v1132
        %1760 = vmatprep.subr.bf16.mxu0 0
        %1761 = vmatpush1.bf16.xpose.msra.mxu0 %v1134
        %1762 = vmatprep.subr.bf16.mxu0 0
        %1763 = vmatpush1.bf16.xpose.msra.mxu0 %v1136
        %1764 = vmatprep.subr.bf16.mxu0 0
        %1765 = vmatpush1.bf16.xpose.msra.mxu0 %v1138
        %1766 = vmatprep.subr.bf16.mxu0 0
        %1767 = vmatpush1.bf16.xpose.msra.mxu0 %v1140
        %1768 = vmatprep.subr.bf16.mxu0 0
        %1769 = vmatpush1.bf16.xpose.msra.mxu0 %v1142
        %1770 = vmatprep.subr.bf16.mxu0 0
        %1771 = vmatpush1.bf16.xpose.msra.mxu0 %v1144
        %1772 = vmatprep.subr.bf16.mxu0 0
        %1773 = vmatpush1.bf16.xpose.msra.mxu0 %v1146
        %1774 = vmatprep.subr.bf16.mxu0 0
        %1775 = vmatpush1.bf16.xpose.msra.mxu0 %v1148
        %1776 = vmatprep.subr.bf16.mxu0 0
        %1777 = vmatpush1.bf16.xpose.msra.mxu0 %v1150
        %1778 = vmatprep.subr.bf16.mxu0 0
        %1779 = vmatpush1.bf16.xpose.msra.mxu0 %v1152
        %1780 = vmatprep.subr.bf16.mxu0 0
        %1781 = vmatpush1.bf16.xpose.msra.mxu0 %v1154
        %1782 = vmatprep.subr.bf16.mxu0 0
        %1783 = vmatpush1.bf16.xpose.msra.mxu0 %v1156
        %1784 = vmatprep.subr.bf16.mxu0 0
        %1785 = vmatpush1.bf16.xpose.msra.mxu0 %v1752
        %1786 = vmatprep.mubr.bf16.mxu0 0
        %1787 = vmatmul.mubr.bf16.gmra.mrb[0].mxu0 %v1750
        %v1788 = vpop.f32.mrb[0].mxu0
        %v1789 = vadd.f32 0.0, %v1788
        %v1790 = vpop.f32.mrb[0].mxu0
        %v1791 = vadd.f32 0.0, %v1790
        %v1792 = vpop.f32.mrb[0].mxu0
        %v1793 = vpop.f32.mrb[0].mxu0
        %1794 = vdwg.mxu0
        %v1795 = vadd.f32 %v1789, %v1791
        %1796 = vadd.xlane.f32.xlu0 %v1795
        %v1797 = vpop.xlane.xlu0 %1796
        %v1798 = vadd.f32 %v1717, %v1797
        %v1799 = vmul.f32 %v1789, %v1789
        %v1800 = vmul.f32 %v1791, %v1791
        %v1801 = vadd.f32 %v1799, %v1800
        %1802 = vadd.xlane.f32.xlu0 %v1801
        %v1803 = vpop.xlane.xlu0 %1802
        %v1804 = vadd.f32 %v1723, %v1803
        %v1805 = vpack.c.bf16 %v1789, %v1789
        %v1806 = vpack.c.bf16 %v1791, %v1791
        %v1809 = vunpack.c.l.b16 %v1805
        %v1810 = vunpack.c.l.b16 %v1806
        %v1811 = vpack.c.b16 %v1810, %v1809
        %s1813 = scalar_lea.vmem %s313, 16 [#allocation10]
        %1814 = vst [vmem:[%s1813] sm:$0xff] %v1811
        %1815 = vrot.lane.b32.xlu0 %v1330, 16
        %v1816 = vpop.permute.xlu0 %1815
        %1818 = vrot.lane.b32.xlu0 %v672, 32
        %v1819 = vpop.permute.xlu0 %1818
        %1820 = vrot.lane.b32.xlu0 %v1218, 48
        %v1821 = vpop.permute.xlu0 %1820
        %v1823 = vsel %vm1022, %v704, %v1816
        %v1825 = vsel %vm1055, %v1823, %v1819
        %v1827 = vsel %vm1088, %v1825, %v1821
        %v1828 = vshrl.u32 %v1746, 16
        %v1830 = vshll.u32 %v1746, 16
        %v1832 = vrot.slane %v1830, 1
        %v1833 = vor.u32 %v1828, %v1832
        %v1834 = vshll.u32 %v1827, 16
        %v1836 = vrot.slane %v1834, 1
        %v1837 = vsel %vm705, %v1833, %v1836
        %s1838 = scalar_lea.vmem [#allocation8], 12
        %v1839 = vld [vmem:[%s1838] sm:$0xf]
        %v1841 = vsel %vm1122, %v1839, 0
        %v1844 = vsel %vm1122, %v1837, 0
        %1846 = vmatprep.subr.bf16.mxu0 0
        %1847 = vmatpush1.bf16.xpose.msra.mxu0 %v1629
        %1848 = vmatprep.subr.bf16.mxu0 0
        %1849 = vmatpush1.bf16.xpose.msra.mxu0 %v1632
        %1850 = vmatprep.subr.bf16.mxu0 0
        %1851 = vmatpush1.bf16.xpose.msra.mxu0 %v1635
        %1852 = vmatprep.subr.bf16.mxu0 0
        %1853 = vmatpush1.bf16.xpose.msra.mxu0 %v1638
        %1854 = vmatprep.subr.bf16.mxu0 0
        %1855 = vmatpush1.bf16.xpose.msra.mxu0 %v1641
        %1856 = vmatprep.subr.bf16.mxu0 0
        %1857 = vmatpush1.bf16.xpose.msra.mxu0 %v1644
        %1858 = vmatprep.subr.bf16.mxu0 0
        %1859 = vmatpush1.bf16.xpose.msra.mxu0 %v1647
        %1860 = vmatprep.subr.bf16.mxu0 0
        %1861 = vmatpush1.bf16.xpose.msra.mxu0 %v1650
        %1862 = vmatprep.subr.bf16.mxu0 0
        %1863 = vmatpush1.bf16.xpose.msra.mxu0 %v1653
        %1864 = vmatprep.subr.bf16.mxu0 0
        %1865 = vmatpush1.bf16.xpose.msra.mxu0 %v1656
        %1866 = vmatprep.subr.bf16.mxu0 0
        %1867 = vmatpush1.bf16.xpose.msra.mxu0 %v1659
        %1868 = vmatprep.subr.bf16.mxu0 0
        %1869 = vmatpush1.bf16.xpose.msra.mxu0 %v1662
        %1870 = vmatprep.subr.bf16.mxu0 0
        %1871 = vmatpush1.bf16.xpose.msra.mxu0 %v1665
        %1872 = vmatprep.subr.bf16.mxu0 0
        %1873 = vmatpush1.bf16.xpose.msra.mxu0 %v1668
        %1874 = vmatprep.subr.bf16.mxu0 0
        %1875 = vmatpush1.bf16.xpose.msra.mxu0 %v1671
        %1876 = vmatprep.subr.bf16.mxu0 0
        %1877 = vmatpush1.bf16.xpose.msra.mxu0 %v1844
        %1878 = vmatprep.mubr.bf16.mxu0 0
        %1879 = vmatmul.mubr.bf16.gmra.mrb[0].mxu0 %v1841
        %v1880 = vpop.f32.mrb[0].mxu0
        %v1881 = vadd.f32 0.0, %v1880
        %v1882 = vpop.f32.mrb[0].mxu0
        %v1883 = vadd.f32 0.0, %v1882
        %v1884 = vpop.f32.mrb[0].mxu0
        %v1885 = vpop.f32.mrb[0].mxu0
        %1886 = vdwg.mxu0
        %v1887 = vadd.f32 %v1881, %v1883
        %1888 = vadd.xlane.f32.xlu0 %v1887
        %v1889 = vpop.xlane.xlu0 %1888
        %v1890 = vadd.f32 %v1798, %v1889
        %v1891 = vmul.f32 %v1881, %v1881
        %v1892 = vmul.f32 %v1883, %v1883
        %v1893 = vadd.f32 %v1891, %v1892
        %1894 = vadd.xlane.f32.xlu0 %v1893
        %v1895 = vpop.xlane.xlu0 %1894
        %v1896 = vadd.f32 %v1804, %v1895
        %v1897 = vpack.c.bf16 %v1881, %v1881
        %v1898 = vpack.c.bf16 %v1883, %v1883
        %v1901 = vunpack.c.l.b16 %v1897
        %v1902 = vunpack.c.l.b16 %v1898
        %v1903 = vpack.c.b16 %v1902, %v1901
        %s1905 = scalar_lea.vmem %s313, 24 [#allocation10]
        %1906 = vst [vmem:[%s1905] sm:$0xff] %v1903
        %vm1907 = vcmask 7168
        %1908 = vst.msk [vmem:[%s320] sm:$0xff] %vm1907, %v1890
        %1909 = vst.msk [vmem:[%s327] sm:$0xff] %vm1907, %v1896
        %s1910 = sand.u32 %s126, 1
        %s1911 = scalar_lea.sflag [#allocation4], %s1910
        %s1912 = sand.u32 %s126, 1
        %s1913 = smul.addr %s1912, 32
        %s1914 = scalar_lea.vmem [#allocation10], %s1913
        %s1915 = sand.u32 %s29, 1
        %s1916 = scalar_lea.sflag [#allocation12], %s1915
        %s1917 = sand.u32 %s152, 1
        %s1918 = smul.addr %s1917, 8
        %s1919 = scalar_lea.vmem [#allocation11], %s1918
        %s1920 = sand.u32 %s29, 1
        %s1921 = scalar_lea.sflag [#allocation12], %s1920
        %s1922 = sand.u32 %s178, 1
        %s1923 = smul.addr %s1922, 8
        %s1924 = scalar_lea.vmem [#allocation13], %s1923
        // Predicated region
        $region53: #{generator_forward.8} parent=35 // pred_check
          %p1925 = pneg %p136
        $region54: #{generator_forward.8} parent=35 // pred_check_branch
          %1927 = sbr.rel (%p1925) target = $region56
        $region55: #{generator_forward.8} parent=35 // pred_region
          %s1929 = ssub.s32 512, 512
          %1930 = vsyncadd %s1911, %s1929
          %s1931 = smul.addr %s29, 8
          %s1932 = smul.addr %s1931, 64
          %s1933 = scalar_lea.hbm %s4, %s1932
          %s1934 = sshll.u32 %s1914, 4
          %s1935 = int_to_ptr.vmem [resolvable:$true] %s1934
          %1940 = dma.vmem_to_hbm [thread:$0]  %s1935, 512, %s1933, %s1911, 128, 128, 8
        $region56: #{generator_forward.8} parent=35 // pred_fallthru
          _
        // Predicated region
        $region57: #{generator_forward.8} parent=35 // pred_check
          %p1941 = pneg %p162
        $region58: #{generator_forward.8} parent=35 // pred_check_branch
          %1943 = sbr.rel (%p1941) target = $region60
        $region59: #{generator_forward.8} parent=35 // pred_region
          %s1945 = ssub.s32 128, 128
          %1946 = vsyncadd %s1916, %s1945
          %s1947 = smul.addr %s29, 128
          %s1948 = scalar_lea.hbm %s5, %s1947
          %s1950 = sshll.u32 %s1919, 4
          %s1951 = int_to_ptr.vmem [resolvable:$true] %s1950
          %1953 = dma.vmem_to_hbm [thread:$0]  %s1951, 128, %s1948, %s1916
        $region60: #{generator_forward.8} parent=35 // pred_fallthru
          _
        // Predicated region
        $region61: #{generator_forward.8} parent=35 // pred_check
          %p1954 = pneg %p188
        $region62: #{generator_forward.8} parent=35 // pred_check_branch
          %1956 = sbr.rel (%p1954) target = $region64
        $region63: #{generator_forward.8} parent=35 // pred_region
          %s1958 = ssub.s32 128, 128
          %1959 = vsyncadd %s1921, %s1958
          %s1960 = smul.addr %s29, 128
          %s1961 = scalar_lea.hbm %s6, %s1960
          %s1963 = sshll.u32 %s1924, 4
          %s1964 = int_to_ptr.vmem [resolvable:$true] %s1963
          %1966 = dma.vmem_to_hbm [thread:$0]  %s1964, 128, %s1961, %s1921
        $region64: #{generator_forward.8} parent=35 // pred_fallthru
          _
      $region36: #{generator_forward.8} parent=5 // pred_fallthru
        _
      %p1967 = scmp.le.s32.totalorder 2, %s24
      // Predicated region
      $region65: #{generator_forward.8} parent=5 // pred_check
        %p1968 = pneg %p1967
      $region66: #{generator_forward.8} parent=5 // pred_check_branch
        %1970 = sbr.rel (%p1968) target = $region68
      $region67: #{generator_forward.8} parent=5 // pred_region
        %s1971 = ssub.s32 %s24, 2
        // Predicated region
        $region69: #{generator_forward.8} parent=67 // pred_check
          %p1972 = pneg %p142
        $region70: #{generator_forward.8} parent=67 // pred_check_branch
          %1974 = sbr.rel (%p1972) target = $region72
        $region71: #{generator_forward.8} parent=67 // pred_region
          %s1975 = sand.u32 %s127, 1
          %s1976 = scalar_lea.sflag [#allocation4], %s1975
          %s1977 = sand.u32 %s127, 1
          %s1978 = smul.addr %s1977, 32
          %s1979 = scalar_lea.vmem [#allocation10], %s1978
          %1980 = dma.done %s1976, 512
        $region72: #{generator_forward.8} parent=67 // pred_fallthru
          _
        // Predicated region
        $region73: #{generator_forward.8} parent=67 // pred_check
          %p1981 = pneg %p168
        $region74: #{generator_forward.8} parent=67 // pred_check_branch
          %1983 = sbr.rel (%p1981) target = $region76
        $region75: #{generator_forward.8} parent=67 // pred_region
          %s1984 = sand.u32 %s30, 1
          %s1985 = scalar_lea.sflag [#allocation12], %s1984
          %s1986 = sand.u32 %s153, 1
          %s1987 = smul.addr %s1986, 8
          %s1988 = scalar_lea.vmem [#allocation11], %s1987
          %1989 = dma.done %s1985, 128
        $region76: #{generator_forward.8} parent=67 // pred_fallthru
          _
        // Predicated region
        $region77: #{generator_forward.8} parent=67 // pred_check
          %p1990 = pneg %p194
        $region78: #{generator_forward.8} parent=67 // pred_check_branch
          %1992 = sbr.rel (%p1990) target = $region80
        $region79: #{generator_forward.8} parent=67 // pred_region
          %s1993 = sand.u32 %s30, 1
          %s1994 = scalar_lea.sflag [#allocation12], %s1993
          %s1995 = sand.u32 %s179, 1
          %s1996 = smul.addr %s1995, 8
          %s1997 = scalar_lea.vmem [#allocation13], %s1996
          %1998 = dma.done %s1994, 128
        $region80: #{generator_forward.8} parent=67 // pred_fallthru
          _
      $region68: #{generator_forward.8} parent=5 // pred_fallthru
        _
    $region6: #{generator_forward.8} parent=1 // loop_footer
      %s28 = sadd.s32 1, %s24
    $region7: #{generator_forward.8} parent=1 // loop_footer_branch
      %23 = sbr.rel target = $region3
    $region8: #{generator_forward.8} parent=1 // loop_exit
      _
    %1999 = vsyncpa [#allocation3], 1
    %s2000 = scalar_lea.sflag [#allocation3], 1
    %2001 = vsyncpa %s2000, 1
    %2002 = vsyncpa [#allocation6], 1
    %2003 = vsyncpa [#allocation9], 1
    %2004 = vsyncpa [#allocation4], 1
    %s2005 = scalar_lea.sflag [#allocation4], 1
    %2006 = vsyncpa %s2005, 1
    %2007 = vsyncpa [#allocation12], 1
    %s2008 = scalar_lea.sflag [#allocation12], 1
    %2009 = vsyncpa %s2008, 1

// kernel: generator_forward.9
$region0: #{generator_forward.9}
  #allocation0 [shape = 'u32[]', space=smem, size = 0x4, offset = 0x4, fixed_abs, tag = 'smem constant byte address 0x4 - core index']
  #allocation1 [shape = 'u32[144,128]{1,0:T(1,128)}', space=vmem, size = 0x12000, scoped, tag = 'internal scratch']
  %s0 = inlined_call_operand.hbm [shape: bf16[2,32,32,8], index: 0, kind: input, shape index: {}]
  %s1 = inlined_call_operand.hbm [shape: f32[1,8], index: 1, kind: input, shape index: {}]
  %s2 = inlined_call_operand.hbm [shape: f32[1,8], index: 2, kind: input, shape index: {}]
  %s3 = inlined_call_operand.hbm [shape: bf16[4,3,32], index: 3, kind: input, shape index: {}]
  %s4 = inlined_call_operand.hbm [shape: f32[2,2,2,3,1024], index: 4, kind: output, shape index: {}]
  %s5 = sld [smem:[#allocation0]]
  $region65: #{generator_forward.9} parent=0
    _
  %s7 = ssub.s32 1, %s5
  %s8 = scalar_select 0, %s7, %s5
  $region1: #{generator_forward.9} parent=0
    #allocation2 [shape = 'u8[524288]{0}', space=vmem, size = 0x80000, scoped, tag = 'input window, operand 0']
    #allocation3 [shape = 's32[2]{0}', space=sflag, size = 0x8, scoped, tag = 'scoped memory for generator_forward.9']
    #allocation4 [shape = 's32[2]{0}', space=sflag, size = 0x8, scoped, tag = 'scoped memory for generator_forward.9']
    #allocation5 [shape = 'u8[512]{0}', space=vmem, size = 0x400, scoped, tag = 'input window, operand 1, single buffered']
    #allocation6 [shape = 's32[1]{0}', space=sflag, size = 0x4, scoped, tag = 'scoped memory for generator_forward.9']
    #allocation7 [shape = 'u8[512]{0}', space=vmem, size = 0x400, scoped, tag = 'input window, operand 2, single buffered']
    #allocation8 [shape = 'u8[4096]{0}', space=vmem, size = 0x1000, scoped, tag = 'input window, operand 3, single buffered']
    #allocation9 [shape = 's32[1]{0}', space=sflag, size = 0x4, scoped, tag = 'scoped memory for generator_forward.9']
    #allocation10 [shape = 'u8[131072]{0}', space=vmem, size = 0x20000, scoped, tag = 'output window, operand 0']
    %9 = vsyncpa [#allocation3], 0
    %s10 = scalar_lea.sflag [#allocation3], 1
    %11 = vsyncpa %s10, 0
    %12 = vsyncpa [#allocation6], 0
    %13 = vsyncpa [#allocation9], 0
    %14 = vsyncpa [#allocation4], 0
    %s15 = scalar_lea.sflag [#allocation4], 1
    %16 = vsyncpa %s15, 0
    loop: start=0, step=1, limit=4
    $region2: #{generator_forward.9} parent=1 // loop_pre_header
      _
    $region3: #{generator_forward.9} parent=1 // loop_header
      %s18 = sphi 0, %s22
      %p19 = scmp.ge.s32.totalorder %s18, 4
      %s28 = sphi 0, %s30
      %s31 = sphi 0, %s28
      %s32 = sphi 0, %s31
      %s48 = sphi 0, %s32
      %s52 = sphi 0, %s52
      %s54 = sphi 0, %s52
      %s55 = sphi 0, %s54
      %s69 = sphi 0, %s55
      %s73 = sphi 0, %s73
      %s75 = sphi 0, %s73
      %s76 = sphi 0, %s75
      %s90 = sphi 0, %s76
      %s94 = sphi 0, %s94
      %s96 = sphi 0, %s94
      %s97 = sphi 0, %s96
      %s111 = sphi 0, %s97
      %s117 = sphi 0, %s119
      %s120 = sphi 0, %s117
      %s121 = sphi 0, %s120
      %s137 = sphi 0, %s121
    $region4: #{generator_forward.9} parent=1 // loop_header_branch
      %21 = sbr.rel (%p19) target = $region8
    $region5: #{generator_forward.9} parent=1 // loop_body
      %s23 = ssub.s32 %s18, 1
      %s24 = ssub.s32 %s18, 2
      %s25 = sadd.s32 %s18, 1
      %s26 = ssub.s32 %s18, %s25
      %p27 = scmp.eq.s32.totalorder %s26, 0
      %s29 = sadd.s32 %s28, 1
      %s30 = scalar_select %p27, %s28, %s29
      %p33 = pneg %p27
      %p34 = scmp.eq.s32.totalorder %s18, 1
      %p35 = por %p33, %p34
      %p36 = scmp.ne.s32.totalorder %s28, %s31
      %p37 = scmp.eq.s32.totalorder %s18, 0
      %p38 = por %p36, %p37
      %p39 = scmp.ne.s32.totalorder %s28, %s31
      %p40 = scmp.eq.s32.totalorder %s23, 1
      %p41 = por %p39, %p40
      %p42 = scmp.ne.s32.totalorder %s31, %s32
      %p43 = scmp.eq.s32.totalorder %s23, 0
      %p44 = por %p42, %p43
      %p45 = scmp.ne.s32.totalorder %s31, %s32
      %p46 = scmp.eq.s32.totalorder %s24, 1
      %p47 = por %p45, %p46
      %p49 = scmp.ne.s32.totalorder %s32, %s48
      %p50 = scmp.eq.s32.totalorder %s24, 0
      %p51 = por %p49, %p50
      %s53 = sadd.s32 %s52, 1
      %p56 = scmp.eq.s32.totalorder %s18, 1
      %p57 = scmp.ne.s32.totalorder %s52, %s54
      %p58 = scmp.eq.s32.totalorder %s18, 0
      %p59 = por %p57, %p58
      %p60 = scmp.ne.s32.totalorder %s52, %s54
      %p61 = scmp.eq.s32.totalorder %s23, 1
      %p62 = por %p60, %p61
      %p63 = scmp.ne.s32.totalorder %s54, %s55
      %p64 = scmp.eq.s32.totalorder %s23, 0
      %p65 = por %p63, %p64
      %p66 = scmp.ne.s32.totalorder %s54, %s55
      %p67 = scmp.eq.s32.totalorder %s24, 1
      %p68 = por %p66, %p67
      %p70 = scmp.ne.s32.totalorder %s55, %s69
      %p71 = scmp.eq.s32.totalorder %s24, 0
      %p72 = por %p70, %p71
      %s74 = sadd.s32 %s73, 1
      %p77 = scmp.eq.s32.totalorder %s18, 1
      %p78 = scmp.ne.s32.totalorder %s73, %s75
      %p79 = scmp.eq.s32.totalorder %s18, 0
      %p80 = por %p78, %p79
      %p81 = scmp.ne.s32.totalorder %s73, %s75
      %p82 = scmp.eq.s32.totalorder %s23, 1
      %p83 = por %p81, %p82
      %p84 = scmp.ne.s32.totalorder %s75, %s76
      %p85 = scmp.eq.s32.totalorder %s23, 0
      %p86 = por %p84, %p85
      %p87 = scmp.ne.s32.totalorder %s75, %s76
      %p88 = scmp.eq.s32.totalorder %s24, 1
      %p89 = por %p87, %p88
      %p91 = scmp.ne.s32.totalorder %s76, %s90
      %p92 = scmp.eq.s32.totalorder %s24, 0
      %p93 = por %p91, %p92
      %s95 = sadd.s32 %s94, 1
      %p98 = scmp.eq.s32.totalorder %s18, 1
      %p99 = scmp.ne.s32.totalorder %s94, %s96
      %p100 = scmp.eq.s32.totalorder %s18, 0
      %p101 = por %p99, %p100
      %p102 = scmp.ne.s32.totalorder %s94, %s96
      %p103 = scmp.eq.s32.totalorder %s23, 1
      %p104 = por %p102, %p103
      %p105 = scmp.ne.s32.totalorder %s96, %s97
      %p106 = scmp.eq.s32.totalorder %s23, 0
      %p107 = por %p105, %p106
      %p108 = scmp.ne.s32.totalorder %s96, %s97
      %p109 = scmp.eq.s32.totalorder %s24, 1
      %p110 = por %p108, %p109
      %p112 = scmp.ne.s32.totalorder %s97, %s111
      %p113 = scmp.eq.s32.totalorder %s24, 0
      %p114 = por %p112, %p113
      %s115 = ssub.s32 %s18, %s25
      %p116 = scmp.eq.s32.totalorder %s115, 0
      %s118 = sadd.s32 %s117, 1
      %s119 = scalar_select %p116, %s117, %s118
      %p122 = pneg %p116
      %p123 = scmp.eq.s32.totalorder %s18, 1
      %p124 = por %p122, %p123
      %p125 = scmp.ne.s32.totalorder %s117, %s120
      %p126 = scmp.eq.s32.totalorder %s18, 0
      %p127 = por %p125, %p126
      %p128 = scmp.ne.s32.totalorder %s117, %s120
      %p129 = scmp.eq.s32.totalorder %s23, 1
      %p130 = por %p128, %p129
      %p131 = scmp.ne.s32.totalorder %s120, %s121
      %p132 = scmp.eq.s32.totalorder %s23, 0
      %p133 = por %p131, %p132
      %p134 = scmp.ne.s32.totalorder %s120, %s121
      %p135 = scmp.eq.s32.totalorder %s24, 1
      %p136 = por %p134, %p135
      %p138 = scmp.ne.s32.totalorder %s121, %s137
      %p139 = scmp.eq.s32.totalorder %s24, 0
      %p140 = por %p138, %p139
      %p141 = scmp.le.s32.totalorder 1, %s18
      %p142 = scmp.lt.s32.totalorder %s18, 3
      %p143 = pnand %p141, %p142
      %p144 = pneg %p143
      // Predicated region
      $region9: #{generator_forward.9} parent=5 // pred_check
        _
      $region10: #{generator_forward.9} parent=5 // pred_check_branch
        %146 = sbr.rel (%p143) target = $region12
      $region11: #{generator_forward.9} parent=5 // pred_region
        %s147 = ssub.s32 %s18, 1
        // Predicated region
        $region13: #{generator_forward.9} parent=11 // pred_check
          %p148 = pneg %p65
        $region14: #{generator_forward.9} parent=11 // pred_check_branch
          %150 = sbr.rel (%p148) target = $region16
        $region15: #{generator_forward.9} parent=11 // pred_region
          %s152 = ssub.s32 16, 16
          %153 = vsyncadd [#allocation6], %s152
          %s155 = sshll.u32 [#allocation5], 4
          %s156 = int_to_ptr.vmem [resolvable:$true] %s155
          %158 = dma.hbm_to_vmem [thread:$0]  %s1, 16, %s156, [#allocation6]
        $region16: #{generator_forward.9} parent=11 // pred_fallthru
          _
        // Predicated region
        $region17: #{generator_forward.9} parent=11 // pred_check
          %p159 = pneg %p86
        $region18: #{generator_forward.9} parent=11 // pred_check_branch
          %161 = sbr.rel (%p159) target = $region20
        $region19: #{generator_forward.9} parent=11 // pred_region
          %s163 = ssub.s32 16, 16
          %164 = vsyncadd [#allocation6], %s163
          %s166 = sshll.u32 [#allocation7], 4
          %s167 = int_to_ptr.vmem [resolvable:$true] %s166
          %169 = dma.hbm_to_vmem [thread:$0]  %s2, 16, %s167, [#allocation6]
        $region20: #{generator_forward.9} parent=11 // pred_fallthru
          _
        // Predicated region
        $region21: #{generator_forward.9} parent=11 // pred_check
          %p170 = pneg %p107
        $region22: #{generator_forward.9} parent=11 // pred_check_branch
          %172 = sbr.rel (%p170) target = $region24
        $region23: #{generator_forward.9} parent=11 // pred_region
          %s174 = ssub.s32 128, 128
          %175 = vsyncadd [#allocation9], %s174
          %s176 = sshll.u32 [#allocation8], 4
          %s177 = int_to_ptr.vmem [resolvable:$true] %s176
          %182 = dma.hbm_to_vmem [thread:$0]  %s3, 128, %s177, [#allocation9], 32, 32, 2
        $region24: #{generator_forward.9} parent=11 // pred_fallthru
          _
      $region12: #{generator_forward.9} parent=5 // pred_fallthru
        _
      %p183 = scmp.lt.s32.totalorder %s18, 2
      // Predicated region
      $region25: #{generator_forward.9} parent=5 // pred_check
        %p184 = pneg %p183
      $region26: #{generator_forward.9} parent=5 // pred_check_branch
        %186 = sbr.rel (%p184) target = $region28
      $region27: #{generator_forward.9} parent=5 // pred_region
        // Predicated region
        $region29: #{generator_forward.9} parent=27 // pred_check
          %p187 = pneg %p38
        $region30: #{generator_forward.9} parent=27 // pred_check_branch
          %189 = sbr.rel (%p187) target = $region32
        $region31: #{generator_forward.9} parent=27 // pred_region
          %s190 = sand.u32 %s28, 1
          %s191 = scalar_lea.sflag [#allocation3], %s190
          %s192 = sand.u32 %s28, 1
          %s193 = smul.addr %s192, 512
          %s194 = scalar_lea.vmem [#allocation2], %s193
          %s196 = ssub.s32 8192, 8192
          %197 = vsyncadd %s191, %s196
          %s198 = smul.addr %s18, 128
          %s199 = smul.addr %s198, 64
          %s200 = scalar_lea.hbm %s0, %s199
          %s201 = sshll.u32 %s194, 4
          %s202 = int_to_ptr.vmem [resolvable:$true] %s201
          %207 = dma.hbm_to_vmem [thread:$0]  %s200, 8192, %s202, %s191, 64, 64, 4
        $region32: #{generator_forward.9} parent=27 // pred_fallthru
          _
      $region28: #{generator_forward.9} parent=5 // pred_fallthru
        _
      %p208 = scmp.le.s32.totalorder 1, %s18
      %p209 = scmp.lt.s32.totalorder %s18, 3
      %p210 = pnand %p208, %p209
      %p211 = pneg %p210
      // Predicated region
      $region33: #{generator_forward.9} parent=5 // pred_check
        _
      $region34: #{generator_forward.9} parent=5 // pred_check_branch
        %213 = sbr.rel (%p210) target = $region36
      $region35: #{generator_forward.9} parent=5 // pred_region
        %s214 = ssub.s32 %s18, 1
        %s215 = sand.u32 %s31, 1
        %s216 = scalar_lea.sflag [#allocation3], %s215
        %s217 = sand.u32 %s31, 1
        %s218 = smul.addr %s217, 512
        %s219 = scalar_lea.vmem [#allocation2], %s218
        // Predicated region
        $region37: #{generator_forward.9} parent=35 // pred_check
          %p220 = pneg %p44
        $region38: #{generator_forward.9} parent=35 // pred_check_branch
          %222 = sbr.rel (%p220) target = $region40
        $region39: #{generator_forward.9} parent=35 // pred_region
          %223 = dma.done %s216, 8192
        $region40: #{generator_forward.9} parent=35 // pred_fallthru
          _
        // Predicated region
        $region41: #{generator_forward.9} parent=35 // pred_check
          %p224 = pneg %p65
        $region42: #{generator_forward.9} parent=35 // pred_check_branch
          %226 = sbr.rel (%p224) target = $region44
        $region43: #{generator_forward.9} parent=35 // pred_region
          %227 = dma.done [#allocation6], 16
        $region44: #{generator_forward.9} parent=35 // pred_fallthru
          _
        // Predicated region
        $region45: #{generator_forward.9} parent=35 // pred_check
          %p228 = pneg %p86
        $region46: #{generator_forward.9} parent=35 // pred_check_branch
          %230 = sbr.rel (%p228) target = $region48
        $region47: #{generator_forward.9} parent=35 // pred_region
          %231 = dma.done [#allocation6], 16
        $region48: #{generator_forward.9} parent=35 // pred_fallthru
          _
        // Predicated region
        $region49: #{generator_forward.9} parent=35 // pred_check
          %p232 = pneg %p107
        $region50: #{generator_forward.9} parent=35 // pred_check_branch
          %234 = sbr.rel (%p232) target = $region52
        $region51: #{generator_forward.9} parent=35 // pred_region
          %235 = dma.done [#allocation9], 128
        $region52: #{generator_forward.9} parent=35 // pred_fallthru
          _
        %s236 = sand.u32 %s31, 1
        %s237 = scalar_lea.sflag [#allocation3], %s236
        %s238 = sand.u32 %s31, 1
        %s239 = smul.addr %s238, 512
        %s240 = scalar_lea.vmem [#allocation2], %s239
        %p241 = pneg %p44
        %p242 = pneg %p41
        %p243 = pneg %p65
        %p244 = pneg %p62
        %p245 = pneg %p86
        %p246 = pneg %p83
        %p247 = pneg %p107
        %p248 = pneg %p104
        %p249 = pneg %p133
        %p250 = pneg %p130
        %s251 = sand.u32 %s120, 1
        %s252 = scalar_lea.sflag [#allocation4], %s251
        %s253 = sand.u32 %s120, 1
        %s254 = smul.addr %s253, 128
        %s255 = scalar_lea.vmem [#allocation10], %s254
        %v257 = vld [vmem:[%s219] sm:$0xf]
        %v258 = vld [vmem:[%s219 + $0x4] sm:$0xf]
        %v259 = vld [vmem:[%s219 + $0x8] sm:$0xf]
        %v260 = vld [vmem:[%s219 + $0xc] sm:$0xf]
        %v261 = vld [vmem:[%s219 + $0x10] sm:$0xf]
        %v262 = vld [vmem:[%s219 + $0x14] sm:$0xf]
        %v263 = vld [vmem:[%s219 + $0x18] sm:$0xf]
        %v264 = vld [vmem:[%s219 + $0x1c] sm:$0xf]
        %v265 = vld [vmem:[%s219 + $0x20] sm:$0xf]
        %v266 = vld [vmem:[%s219 + $0x24] sm:$0xf]
        %v267 = vld [vmem:[%s219 + $0x28] sm:$0xf]
        %v268 = vld [vmem:[%s219 + $0x2c] sm:$0xf]
        %v269 = vld [vmem:[%s219 + $0x30] sm:$0xf]
        %v270 = vld [vmem:[%s219 + $0x34] sm:$0xf]
        %v271 = vld [vmem:[%s219 + $0x38] sm:$0xf]
        %v272 = vld [vmem:[%s219 + $0x3c] sm:$0xf]
        %v273 = vld [vmem:[%s219 + $0x40] sm:$0xf]
        %v274 = vld [vmem:[%s219 + $0x44] sm:$0xf]
        %v275 = vld [vmem:[%s219 + $0x48] sm:$0xf]
        %v276 = vld [vmem:[%s219 + $0x4c] sm:$0xf]
        %v277 = vld [vmem:[%s219 + $0x50] sm:$0xf]
        %v278 = vld [vmem:[%s219 + $0x54] sm:$0xf]
        %v279 = vld [vmem:[%s219 + $0x58] sm:$0xf]
        %v280 = vld [vmem:[%s219 + $0x5c] sm:$0xf]
        %v281 = vld [vmem:[%s219 + $0x60] sm:$0xf]
        %v282 = vld [vmem:[%s219 + $0x64] sm:$0xf]
        %v283 = vld [vmem:[%s219 + $0x68] sm:$0xf]
        %v284 = vld [vmem:[%s219 + $0x6c] sm:$0xf]
        %v285 = vld [vmem:[%s219 + $0x70] sm:$0xf]
        %v286 = vld [vmem:[%s219 + $0x74] sm:$0xf]
        %v287 = vld [vmem:[%s219 + $0x78] sm:$0xf]
        %v288 = vld [vmem:[%s219 + $0x7c] sm:$0xf]
        %v289 = vld [vmem:[%s219 + $0x80] sm:$0xf]
        %v290 = vld [vmem:[%s219 + $0x84] sm:$0xf]
        %v291 = vld [vmem:[%s219 + $0x88] sm:$0xf]
        %v292 = vld [vmem:[%s219 + $0x8c] sm:$0xf]
        %v293 = vld [vmem:[%s219 + $0x90] sm:$0xf]
        %v294 = vld [vmem:[%s219 + $0x94] sm:$0xf]
        %v295 = vld [vmem:[%s219 + $0x98] sm:$0xf]
        %v296 = vld [vmem:[%s219 + $0x9c] sm:$0xf]
        %v297 = vld [vmem:[%s219 + $0xa0] sm:$0xf]
        %v298 = vld [vmem:[%s219 + $0xa4] sm:$0xf]
        %v299 = vld [vmem:[%s219 + $0xa8] sm:$0xf]
        %v300 = vld [vmem:[%s219 + $0xac] sm:$0xf]
        %v301 = vld [vmem:[%s219 + $0xb0] sm:$0xf]
        %v302 = vld [vmem:[%s219 + $0xb4] sm:$0xf]
        %v303 = vld [vmem:[%s219 + $0xb8] sm:$0xf]
        %v304 = vld [vmem:[%s219 + $0xbc] sm:$0xf]
        %v305 = vld [vmem:[%s219 + $0xc0] sm:$0xf]
        %v306 = vld [vmem:[%s219 + $0xc4] sm:$0xf]
        %v307 = vld [vmem:[%s219 + $0xc8] sm:$0xf]
        %v308 = vld [vmem:[%s219 + $0xcc] sm:$0xf]
        %v309 = vld [vmem:[%s219 + $0xd0] sm:$0xf]
        %v310 = vld [vmem:[%s219 + $0xd4] sm:$0xf]
        %v311 = vld [vmem:[%s219 + $0xd8] sm:$0xf]
        %v312 = vld [vmem:[%s219 + $0xdc] sm:$0xf]
        %v313 = vld [vmem:[%s219 + $0xe0] sm:$0xf]
        %v314 = vld [vmem:[%s219 + $0xe4] sm:$0xf]
        %v315 = vld [vmem:[%s219 + $0xe8] sm:$0xf]
        %v316 = vld [vmem:[%s219 + $0xec] sm:$0xf]
        %v317 = vld [vmem:[%s219 + $0xf0] sm:$0xf]
        %v318 = vld [vmem:[%s219 + $0xf4] sm:$0xf]
        %v319 = vld [vmem:[%s219 + $0xf8] sm:$0xf]
        %v320 = vld [vmem:[%s219 + $0xfc] sm:$0xf]
        %v321 = vld [vmem:[%s219 + $0x100] sm:$0xf]
        %v322 = vld [vmem:[%s219 + $0x104] sm:$0xf]
        %v323 = vld [vmem:[%s219 + $0x108] sm:$0xf]
        %v324 = vld [vmem:[%s219 + $0x10c] sm:$0xf]
        %v325 = vld [vmem:[%s219 + $0x110] sm:$0xf]
        %v326 = vld [vmem:[%s219 + $0x114] sm:$0xf]
        %v327 = vld [vmem:[%s219 + $0x118] sm:$0xf]
        %v328 = vld [vmem:[%s219 + $0x11c] sm:$0xf]
        %v329 = vld [vmem:[%s219 + $0x120] sm:$0xf]
        %v330 = vld [vmem:[%s219 + $0x124] sm:$0xf]
        %v331 = vld [vmem:[%s219 + $0x128] sm:$0xf]
        %v332 = vld [vmem:[%s219 + $0x12c] sm:$0xf]
        %v333 = vld [vmem:[%s219 + $0x130] sm:$0xf]
        %v334 = vld [vmem:[%s219 + $0x134] sm:$0xf]
        %v335 = vld [vmem:[%s219 + $0x138] sm:$0xf]
        %v336 = vld [vmem:[%s219 + $0x13c] sm:$0xf]
        %v337 = vld [vmem:[%s219 + $0x140] sm:$0xf]
        %v338 = vld [vmem:[%s219 + $0x144] sm:$0xf]
        %v339 = vld [vmem:[%s219 + $0x148] sm:$0xf]
        %v340 = vld [vmem:[%s219 + $0x14c] sm:$0xf]
        %v341 = vld [vmem:[%s219 + $0x150] sm:$0xf]
        %v342 = vld [vmem:[%s219 + $0x154] sm:$0xf]
        %v343 = vld [vmem:[%s219 + $0x158] sm:$0xf]
        %v344 = vld [vmem:[%s219 + $0x15c] sm:$0xf]
        %v345 = vld [vmem:[%s219 + $0x160] sm:$0xf]
        %v346 = vld [vmem:[%s219 + $0x164] sm:$0xf]
        %v347 = vld [vmem:[%s219 + $0x168] sm:$0xf]
        %v348 = vld [vmem:[%s219 + $0x16c] sm:$0xf]
        %v349 = vld [vmem:[%s219 + $0x170] sm:$0xf]
        %v350 = vld [vmem:[%s219 + $0x174] sm:$0xf]
        %v351 = vld [vmem:[%s219 + $0x178] sm:$0xf]
        %v352 = vld [vmem:[%s219 + $0x17c] sm:$0xf]
        %v353 = vld [vmem:[%s219 + $0x180] sm:$0xf]
        %v354 = vld [vmem:[%s219 + $0x184] sm:$0xf]
        %v355 = vld [vmem:[%s219 + $0x188] sm:$0xf]
        %v356 = vld [vmem:[%s219 + $0x18c] sm:$0xf]
        %v357 = vld [vmem:[%s219 + $0x190] sm:$0xf]
        %v358 = vld [vmem:[%s219 + $0x194] sm:$0xf]
        %v359 = vld [vmem:[%s219 + $0x198] sm:$0xf]
        %v360 = vld [vmem:[%s219 + $0x19c] sm:$0xf]
        %v361 = vld [vmem:[%s219 + $0x1a0] sm:$0xf]
        %v362 = vld [vmem:[%s219 + $0x1a4] sm:$0xf]
        %v363 = vld [vmem:[%s219 + $0x1a8] sm:$0xf]
        %v364 = vld [vmem:[%s219 + $0x1ac] sm:$0xf]
        %v365 = vld [vmem:[%s219 + $0x1b0] sm:$0xf]
        %v366 = vld [vmem:[%s219 + $0x1b4] sm:$0xf]
        %v367 = vld [vmem:[%s219 + $0x1b8] sm:$0xf]
        %v368 = vld [vmem:[%s219 + $0x1bc] sm:$0xf]
        %v369 = vld [vmem:[%s219 + $0x1c0] sm:$0xf]
        %v370 = vld [vmem:[%s219 + $0x1c4] sm:$0xf]
        %v371 = vld [vmem:[%s219 + $0x1c8] sm:$0xf]
        %v372 = vld [vmem:[%s219 + $0x1cc] sm:$0xf]
        %v373 = vld [vmem:[%s219 + $0x1d0] sm:$0xf]
        %v374 = vld [vmem:[%s219 + $0x1d4] sm:$0xf]
        %v375 = vld [vmem:[%s219 + $0x1d8] sm:$0xf]
        %v376 = vld [vmem:[%s219 + $0x1dc] sm:$0xf]
        %v377 = vld [vmem:[%s219 + $0x1e0] sm:$0xf]
        %v378 = vld [vmem:[%s219 + $0x1e4] sm:$0xf]
        %v379 = vld [vmem:[%s219 + $0x1e8] sm:$0xf]
        %v380 = vld [vmem:[%s219 + $0x1ec] sm:$0xf]
        %v381 = vld [vmem:[%s219 + $0x1f0] sm:$0xf]
        %v382 = vld [vmem:[%s219 + $0x1f4] sm:$0xf]
        %v383 = vld [vmem:[%s219 + $0x1f8] sm:$0xf]
        %v384 = vld [vmem:[%s219 + $0x1fc] sm:$0xf]
        %v385 = vunpack.c.l.bf16 %v257
        %v386 = vunpack.c.l.bf16 %v258
        %v387 = vunpack.c.l.bf16 %v259
        %v388 = vunpack.c.l.bf16 %v260
        %v389 = vunpack.c.l.bf16 %v261
        %v390 = vunpack.c.l.bf16 %v262
        %v391 = vunpack.c.l.bf16 %v263
        %v392 = vunpack.c.l.bf16 %v264
        %v393 = vunpack.c.l.bf16 %v265
        %v394 = vunpack.c.l.bf16 %v266
        %v395 = vunpack.c.l.bf16 %v267
        %v396 = vunpack.c.l.bf16 %v268
        %v397 = vunpack.c.l.bf16 %v269
        %v398 = vunpack.c.l.bf16 %v270
        %v399 = vunpack.c.l.bf16 %v271
        %v400 = vunpack.c.l.bf16 %v272
        %v401 = vunpack.c.l.bf16 %v273
        %v402 = vunpack.c.l.bf16 %v274
        %v403 = vunpack.c.l.bf16 %v275
        %v404 = vunpack.c.l.bf16 %v276
        %v405 = vunpack.c.l.bf16 %v277
        %v406 = vunpack.c.l.bf16 %v278
        %v407 = vunpack.c.l.bf16 %v279
        %v408 = vunpack.c.l.bf16 %v280
        %v409 = vunpack.c.l.bf16 %v281
        %v410 = vunpack.c.l.bf16 %v282
        %v411 = vunpack.c.l.bf16 %v283
        %v412 = vunpack.c.l.bf16 %v284
        %v413 = vunpack.c.l.bf16 %v285
        %v414 = vunpack.c.l.bf16 %v286
        %v415 = vunpack.c.l.bf16 %v287
        %v416 = vunpack.c.l.bf16 %v288
        %v417 = vunpack.c.l.bf16 %v289
        %v418 = vunpack.c.l.bf16 %v290
        %v419 = vunpack.c.l.bf16 %v291
        %v420 = vunpack.c.l.bf16 %v292
        %v421 = vunpack.c.l.bf16 %v293
        %v422 = vunpack.c.l.bf16 %v294
        %v423 = vunpack.c.l.bf16 %v295
        %v424 = vunpack.c.l.bf16 %v296
        %v425 = vunpack.c.l.bf16 %v297
        %v426 = vunpack.c.l.bf16 %v298
        %v427 = vunpack.c.l.bf16 %v299
        %v428 = vunpack.c.l.bf16 %v300
        %v429 = vunpack.c.l.bf16 %v301
        %v430 = vunpack.c.l.bf16 %v302
        %v431 = vunpack.c.l.bf16 %v303
        %v432 = vunpack.c.l.bf16 %v304
        %v433 = vunpack.c.l.bf16 %v305
        %v434 = vunpack.c.l.bf16 %v306
        %v435 = vunpack.c.l.bf16 %v307
        %v436 = vunpack.c.l.bf16 %v308
        %v437 = vunpack.c.l.bf16 %v309
        %v438 = vunpack.c.l.bf16 %v310
        %v439 = vunpack.c.l.bf16 %v311
        %v440 = vunpack.c.l.bf16 %v312
        %v441 = vunpack.c.l.bf16 %v313
        %v442 = vunpack.c.l.bf16 %v314
        %v443 = vunpack.c.l.bf16 %v315
        %v444 = vunpack.c.l.bf16 %v316
        %v445 = vunpack.c.l.bf16 %v317
        %v446 = vunpack.c.l.bf16 %v318
        %v447 = vunpack.c.l.bf16 %v319
        %v448 = vunpack.c.l.bf16 %v320
        %v449 = vunpack.c.l.bf16 %v321
        %v450 = vunpack.c.l.bf16 %v322
        %v451 = vunpack.c.l.bf16 %v323
        %v452 = vunpack.c.l.bf16 %v324
        %v453 = vunpack.c.l.bf16 %v325
        %v454 = vunpack.c.l.bf16 %v326
        %v455 = vunpack.c.l.bf16 %v327
        %v456 = vunpack.c.l.bf16 %v328
        %v457 = vunpack.c.l.bf16 %v329
        %v458 = vunpack.c.l.bf16 %v330
        %v459 = vunpack.c.l.bf16 %v331
        %v460 = vunpack.c.l.bf16 %v332
        %v461 = vunpack.c.l.bf16 %v333
        %v462 = vunpack.c.l.bf16 %v334
        %v463 = vunpack.c.l.bf16 %v335
        %v464 = vunpack.c.l.bf16 %v336
        %v465 = vunpack.c.l.bf16 %v337
        %v466 = vunpack.c.l.bf16 %v338
        %v467 = vunpack.c.l.bf16 %v339
        %v468 = vunpack.c.l.bf16 %v340
        %v469 = vunpack.c.l.bf16 %v341
        %v470 = vunpack.c.l.bf16 %v342
        %v471 = vunpack.c.l.bf16 %v343
        %v472 = vunpack.c.l.bf16 %v344
        %v473 = vunpack.c.l.bf16 %v345
        %v474 = vunpack.c.l.bf16 %v346
        %v475 = vunpack.c.l.bf16 %v347
        %v476 = vunpack.c.l.bf16 %v348
        %v477 = vunpack.c.l.bf16 %v349
        %v478 = vunpack.c.l.bf16 %v350
        %v479 = vunpack.c.l.bf16 %v351
        %v480 = vunpack.c.l.bf16 %v352
        %v481 = vunpack.c.l.bf16 %v353
        %v482 = vunpack.c.l.bf16 %v354
        %v483 = vunpack.c.l.bf16 %v355
        %v484 = vunpack.c.l.bf16 %v356
        %v485 = vunpack.c.l.bf16 %v357
        %v486 = vunpack.c.l.bf16 %v358
        %v487 = vunpack.c.l.bf16 %v359
        %v488 = vunpack.c.l.bf16 %v360
        %v489 = vunpack.c.l.bf16 %v361
        %v490 = vunpack.c.l.bf16 %v362
        %v491 = vunpack.c.l.bf16 %v363
        %v492 = vunpack.c.l.bf16 %v364
        %v493 = vunpack.c.l.bf16 %v365
        %v494 = vunpack.c.l.bf16 %v366
        %v495 = vunpack.c.l.bf16 %v367
        %v496 = vunpack.c.l.bf16 %v368
        %v497 = vunpack.c.l.bf16 %v369
        %v498 = vunpack.c.l.bf16 %v370
        %v499 = vunpack.c.l.bf16 %v371
        %v500 = vunpack.c.l.bf16 %v372
        %v501 = vunpack.c.l.bf16 %v373
        %v502 = vunpack.c.l.bf16 %v374
        %v503 = vunpack.c.l.bf16 %v375
        %v504 = vunpack.c.l.bf16 %v376
        %v505 = vunpack.c.l.bf16 %v377
        %v506 = vunpack.c.l.bf16 %v378
        %v507 = vunpack.c.l.bf16 %v379
        %v508 = vunpack.c.l.bf16 %v380
        %v509 = vunpack.c.l.bf16 %v381
        %v510 = vunpack.c.l.bf16 %v382
        %v511 = vunpack.c.l.bf16 %v383
        %v512 = vunpack.c.l.bf16 %v384
        %v513 = vld [vmem:[#allocation5] sm:$0x1]
        %v515 = vlaneseq
        %v516 = vshrl.u32 %v515, 7
        %v517 = vsub.s32 0, %v516
        %v518 = vrot.slane %v513, %v517
        %v520 = vmul.f32 %v385, %v518
        %v521 = vmul.f32 %v386, %v518
        %v522 = vmul.f32 %v387, %v518
        %v523 = vmul.f32 %v388, %v518
        %v524 = vmul.f32 %v389, %v518
        %v525 = vmul.f32 %v390, %v518
        %v526 = vmul.f32 %v391, %v518
        %v527 = vmul.f32 %v392, %v518
        %v528 = vmul.f32 %v393, %v518
        %v529 = vmul.f32 %v394, %v518
        %v530 = vmul.f32 %v395, %v518
        %v531 = vmul.f32 %v396, %v518
        %v532 = vmul.f32 %v397, %v518
        %v533 = vmul.f32 %v398, %v518
        %v534 = vmul.f32 %v399, %v518
        %v535 = vmul.f32 %v400, %v518
        %v536 = vmul.f32 %v401, %v518
        %v537 = vmul.f32 %v402, %v518
        %v538 = vmul.f32 %v403, %v518
        %v539 = vmul.f32 %v404, %v518
        %v540 = vmul.f32 %v405, %v518
        %v541 = vmul.f32 %v406, %v518
        %v542 = vmul.f32 %v407, %v518
        %v543 = vmul.f32 %v408, %v518
        %v544 = vmul.f32 %v409, %v518
        %v545 = vmul.f32 %v410, %v518
        %v546 = vmul.f32 %v411, %v518
        %v547 = vmul.f32 %v412, %v518
        %v548 = vmul.f32 %v413, %v518
        %v549 = vmul.f32 %v414, %v518
        %v550 = vmul.f32 %v415, %v518
        %v551 = vmul.f32 %v416, %v518
        %v552 = vmul.f32 %v417, %v518
        %v553 = vmul.f32 %v418, %v518
        %v554 = vmul.f32 %v419, %v518
        %v555 = vmul.f32 %v420, %v518
        %v556 = vmul.f32 %v421, %v518
        %v557 = vmul.f32 %v422, %v518
        %v558 = vmul.f32 %v423, %v518
        %v559 = vmul.f32 %v424, %v518
        %v560 = vmul.f32 %v425, %v518
        %v561 = vmul.f32 %v426, %v518
        %v562 = vmul.f32 %v427, %v518
        %v563 = vmul.f32 %v428, %v518
        %v564 = vmul.f32 %v429, %v518
        %v565 = vmul.f32 %v430, %v518
        %v566 = vmul.f32 %v431, %v518
        %v567 = vmul.f32 %v432, %v518
        %v568 = vmul.f32 %v433, %v518
        %v569 = vmul.f32 %v434, %v518
        %v570 = vmul.f32 %v435, %v518
        %v571 = vmul.f32 %v436, %v518
        %v572 = vmul.f32 %v437, %v518
        %v573 = vmul.f32 %v438, %v518
        %v574 = vmul.f32 %v439, %v518
        %v575 = vmul.f32 %v440, %v518
        %v576 = vmul.f32 %v441, %v518
        %v577 = vmul.f32 %v442, %v518
        %v578 = vmul.f32 %v443, %v518
        %v579 = vmul.f32 %v444, %v518
        %v580 = vmul.f32 %v445, %v518
        %v581 = vmul.f32 %v446, %v518
        %v582 = vmul.f32 %v447, %v518
        %v583 = vmul.f32 %v448, %v518
        %v584 = vmul.f32 %v449, %v518
        %v585 = vmul.f32 %v450, %v518
        %v586 = vmul.f32 %v451, %v518
        %v587 = vmul.f32 %v452, %v518
        %v588 = vmul.f32 %v453, %v518
        %v589 = vmul.f32 %v454, %v518
        %v590 = vmul.f32 %v455, %v518
        %v591 = vmul.f32 %v456, %v518
        %v592 = vmul.f32 %v457, %v518
        %v593 = vmul.f32 %v458, %v518
        %v594 = vmul.f32 %v459, %v518
        %v595 = vmul.f32 %v460, %v518
        %v596 = vmul.f32 %v461, %v518
        %v597 = vmul.f32 %v462, %v518
        %v598 = vmul.f32 %v463, %v518
        %v599 = vmul.f32 %v464, %v518
        %v600 = vmul.f32 %v465, %v518
        %v601 = vmul.f32 %v466, %v518
        %v602 = vmul.f32 %v467, %v518
        %v603 = vmul.f32 %v468, %v518
        %v604 = vmul.f32 %v469, %v518
        %v605 = vmul.f32 %v470, %v518
        %v606 = vmul.f32 %v471, %v518
        %v607 = vmul.f32 %v472, %v518
        %v608 = vmul.f32 %v473, %v518
        %v609 = vmul.f32 %v474, %v518
        %v610 = vmul.f32 %v475, %v518
        %v611 = vmul.f32 %v476, %v518
        %v612 = vmul.f32 %v477, %v518
        %v613 = vmul.f32 %v478, %v518
        %v614 = vmul.f32 %v479, %v518
        %v615 = vmul.f32 %v480, %v518
        %v616 = vmul.f32 %v481, %v518
        %v617 = vmul.f32 %v482, %v518
        %v618 = vmul.f32 %v483, %v518
        %v619 = vmul.f32 %v484, %v518
        %v620 = vmul.f32 %v485, %v518
        %v621 = vmul.f32 %v486, %v518
        %v622 = vmul.f32 %v487, %v518
        %v623 = vmul.f32 %v488, %v518
        %v624 = vmul.f32 %v489, %v518
        %v625 = vmul.f32 %v490, %v518
        %v626 = vmul.f32 %v491, %v518
        %v627 = vmul.f32 %v492, %v518
        %v628 = vmul.f32 %v493, %v518
        %v629 = vmul.f32 %v494, %v518
        %v630 = vmul.f32 %v495, %v518
        %v631 = vmul.f32 %v496, %v518
        %v632 = vmul.f32 %v497, %v518
        %v633 = vmul.f32 %v498, %v518
        %v634 = vmul.f32 %v499, %v518
        %v635 = vmul.f32 %v500, %v518
        %v636 = vmul.f32 %v501, %v518
        %v637 = vmul.f32 %v502, %v518
        %v638 = vmul.f32 %v503, %v518
        %v639 = vmul.f32 %v504, %v518
        %v640 = vmul.f32 %v505, %v518
        %v641 = vmul.f32 %v506, %v518
        %v642 = vmul.f32 %v507, %v518
        %v643 = vmul.f32 %v508, %v518
        %v644 = vmul.f32 %v509, %v518
        %v645 = vmul.f32 %v510, %v518
        %v646 = vmul.f32 %v511, %v518
        %v647 = vmul.f32 %v512, %v518
        %v648 = vld [vmem:[#allocation7] sm:$0x1]
        %v650 = vlaneseq
        %v651 = vshrl.u32 %v650, 7
        %v652 = vsub.s32 0, %v651
        %v653 = vrot.slane %v648, %v652
        %v655 = vadd.f32 %v520, %v653
        %v656 = vadd.f32 %v521, %v653
        %v657 = vadd.f32 %v522, %v653
        %v658 = vadd.f32 %v523, %v653
        %v659 = vadd.f32 %v524, %v653
        %v660 = vadd.f32 %v525, %v653
        %v661 = vadd.f32 %v526, %v653
        %v662 = vadd.f32 %v527, %v653
        %v663 = vadd.f32 %v528, %v653
        %v664 = vadd.f32 %v529, %v653
        %v665 = vadd.f32 %v530, %v653
        %v666 = vadd.f32 %v531, %v653
        %v667 = vadd.f32 %v532, %v653
        %v668 = vadd.f32 %v533, %v653
        %v669 = vadd.f32 %v534, %v653
        %v670 = vadd.f32 %v535, %v653
        %v671 = vadd.f32 %v536, %v653
        %v672 = vadd.f32 %v537, %v653
        %v673 = vadd.f32 %v538, %v653
        %v674 = vadd.f32 %v539, %v653
        %v675 = vadd.f32 %v540, %v653
        %v676 = vadd.f32 %v541, %v653
        %v677 = vadd.f32 %v542, %v653
        %v678 = vadd.f32 %v543, %v653
        %v679 = vadd.f32 %v544, %v653
        %v680 = vadd.f32 %v545, %v653
        %v681 = vadd.f32 %v546, %v653
        %v682 = vadd.f32 %v547, %v653
        %v683 = vadd.f32 %v548, %v653
        %v684 = vadd.f32 %v549, %v653
        %v685 = vadd.f32 %v550, %v653
        %v686 = vadd.f32 %v551, %v653
        %v687 = vadd.f32 %v552, %v653
        %v688 = vadd.f32 %v553, %v653
        %v689 = vadd.f32 %v554, %v653
        %v690 = vadd.f32 %v555, %v653
        %v691 = vadd.f32 %v556, %v653
        %v692 = vadd.f32 %v557, %v653
        %v693 = vadd.f32 %v558, %v653
        %v694 = vadd.f32 %v559, %v653
        %v695 = vadd.f32 %v560, %v653
        %v696 = vadd.f32 %v561, %v653
        %v697 = vadd.f32 %v562, %v653
        %v698 = vadd.f32 %v563, %v653
        %v699 = vadd.f32 %v564, %v653
        %v700 = vadd.f32 %v565, %v653
        %v701 = vadd.f32 %v566, %v653
        %v702 = vadd.f32 %v567, %v653
        %v703 = vadd.f32 %v568, %v653
        %v704 = vadd.f32 %v569, %v653
        %v705 = vadd.f32 %v570, %v653
        %v706 = vadd.f32 %v571, %v653
        %v707 = vadd.f32 %v572, %v653
        %v708 = vadd.f32 %v573, %v653
        %v709 = vadd.f32 %v574, %v653
        %v710 = vadd.f32 %v575, %v653
        %v711 = vadd.f32 %v576, %v653
        %v712 = vadd.f32 %v577, %v653
        %v713 = vadd.f32 %v578, %v653
        %v714 = vadd.f32 %v579, %v653
        %v715 = vadd.f32 %v580, %v653
        %v716 = vadd.f32 %v581, %v653
        %v717 = vadd.f32 %v582, %v653
        %v718 = vadd.f32 %v583, %v653
        %v719 = vadd.f32 %v584, %v653
        %v720 = vadd.f32 %v585, %v653
        %v721 = vadd.f32 %v586, %v653
        %v722 = vadd.f32 %v587, %v653
        %v723 = vadd.f32 %v588, %v653
        %v724 = vadd.f32 %v589, %v653
        %v725 = vadd.f32 %v590, %v653
        %v726 = vadd.f32 %v591, %v653
        %v727 = vadd.f32 %v592, %v653
        %v728 = vadd.f32 %v593, %v653
        %v729 = vadd.f32 %v594, %v653
        %v730 = vadd.f32 %v595, %v653
        %v731 = vadd.f32 %v596, %v653
        %v732 = vadd.f32 %v597, %v653
        %v733 = vadd.f32 %v598, %v653
        %v734 = vadd.f32 %v599, %v653
        %v735 = vadd.f32 %v600, %v653
        %v736 = vadd.f32 %v601, %v653
        %v737 = vadd.f32 %v602, %v653
        %v738 = vadd.f32 %v603, %v653
        %v739 = vadd.f32 %v604, %v653
        %v740 = vadd.f32 %v605, %v653
        %v741 = vadd.f32 %v606, %v653
        %v742 = vadd.f32 %v607, %v653
        %v743 = vadd.f32 %v608, %v653
        %v744 = vadd.f32 %v609, %v653
        %v745 = vadd.f32 %v610, %v653
        %v746 = vadd.f32 %v611, %v653
        %v747 = vadd.f32 %v612, %v653
        %v748 = vadd.f32 %v613, %v653
        %v749 = vadd.f32 %v614, %v653
        %v750 = vadd.f32 %v615, %v653
        %v751 = vadd.f32 %v616, %v653
        %v752 = vadd.f32 %v617, %v653
        %v753 = vadd.f32 %v618, %v653
        %v754 = vadd.f32 %v619, %v653
        %v755 = vadd.f32 %v620, %v653
        %v756 = vadd.f32 %v621, %v653
        %v757 = vadd.f32 %v622, %v653
        %v758 = vadd.f32 %v623, %v653
        %v759 = vadd.f32 %v624, %v653
        %v760 = vadd.f32 %v625, %v653
        %v761 = vadd.f32 %v626, %v653
        %v762 = vadd.f32 %v627, %v653
        %v763 = vadd.f32 %v628, %v653
        %v764 = vadd.f32 %v629, %v653
        %v765 = vadd.f32 %v630, %v653
        %v766 = vadd.f32 %v631, %v653
        %v767 = vadd.f32 %v632, %v653
        %v768 = vadd.f32 %v633, %v653
        %v769 = vadd.f32 %v634, %v653
        %v770 = vadd.f32 %v635, %v653
        %v771 = vadd.f32 %v636, %v653
        %v772 = vadd.f32 %v637, %v653
        %v773 = vadd.f32 %v638, %v653
        %v774 = vadd.f32 %v639, %v653
        %v775 = vadd.f32 %v640, %v653
        %v776 = vadd.f32 %v641, %v653
        %v777 = vadd.f32 %v642, %v653
        %v778 = vadd.f32 %v643, %v653
        %v779 = vadd.f32 %v644, %v653
        %v780 = vadd.f32 %v645, %v653
        %v781 = vadd.f32 %v646, %v653
        %v782 = vadd.f32 %v647, %v653
        %v783 = vmax.f32 %v655, 0.0
        %v784 = vmax.f32 %v656, 0.0
        %v785 = vmax.f32 %v657, 0.0
        %v786 = vmax.f32 %v658, 0.0
        %v787 = vmax.f32 %v659, 0.0
        %v788 = vmax.f32 %v660, 0.0
        %v789 = vmax.f32 %v661, 0.0
        %v790 = vmax.f32 %v662, 0.0
        %v791 = vmax.f32 %v663, 0.0
        %v792 = vmax.f32 %v664, 0.0
        %v793 = vmax.f32 %v665, 0.0
        %v794 = vmax.f32 %v666, 0.0
        %v795 = vmax.f32 %v667, 0.0
        %v796 = vmax.f32 %v668, 0.0
        %v797 = vmax.f32 %v669, 0.0
        %v798 = vmax.f32 %v670, 0.0
        %v799 = vmax.f32 %v671, 0.0
        %v800 = vmax.f32 %v672, 0.0
        %v801 = vmax.f32 %v673, 0.0
        %v802 = vmax.f32 %v674, 0.0
        %v803 = vmax.f32 %v675, 0.0
        %v804 = vmax.f32 %v676, 0.0
        %v805 = vmax.f32 %v677, 0.0
        %v806 = vmax.f32 %v678, 0.0
        %v807 = vmax.f32 %v679, 0.0
        %v808 = vmax.f32 %v680, 0.0
        %v809 = vmax.f32 %v681, 0.0
        %v810 = vmax.f32 %v682, 0.0
        %v811 = vmax.f32 %v683, 0.0
        %v812 = vmax.f32 %v684, 0.0
        %v813 = vmax.f32 %v685, 0.0
        %v814 = vmax.f32 %v686, 0.0
        %v815 = vmax.f32 %v687, 0.0
        %v816 = vmax.f32 %v688, 0.0
        %v817 = vmax.f32 %v689, 0.0
        %v818 = vmax.f32 %v690, 0.0
        %v819 = vmax.f32 %v691, 0.0
        %v820 = vmax.f32 %v692, 0.0
        %v821 = vmax.f32 %v693, 0.0
        %v822 = vmax.f32 %v694, 0.0
        %v823 = vmax.f32 %v695, 0.0
        %v824 = vmax.f32 %v696, 0.0
        %v825 = vmax.f32 %v697, 0.0
        %v826 = vmax.f32 %v698, 0.0
        %v827 = vmax.f32 %v699, 0.0
        %v828 = vmax.f32 %v700, 0.0
        %v829 = vmax.f32 %v701, 0.0
        %v830 = vmax.f32 %v702, 0.0
        %v831 = vmax.f32 %v703, 0.0
        %v832 = vmax.f32 %v704, 0.0
        %v833 = vmax.f32 %v705, 0.0
        %v834 = vmax.f32 %v706, 0.0
        %v835 = vmax.f32 %v707, 0.0
        %v836 = vmax.f32 %v708, 0.0
        %v837 = vmax.f32 %v709, 0.0
        %v838 = vmax.f32 %v710, 0.0
        %v839 = vmax.f32 %v711, 0.0
        %v840 = vmax.f32 %v712, 0.0
        %v841 = vmax.f32 %v713, 0.0
        %v842 = vmax.f32 %v714, 0.0
        %v843 = vmax.f32 %v715, 0.0
        %v844 = vmax.f32 %v716, 0.0
        %v845 = vmax.f32 %v717, 0.0
        %v846 = vmax.f32 %v718, 0.0
        %v847 = vmax.f32 %v719, 0.0
        %v848 = vmax.f32 %v720, 0.0
        %v849 = vmax.f32 %v721, 0.0
        %v850 = vmax.f32 %v722, 0.0
        %v851 = vmax.f32 %v723, 0.0
        %v852 = vmax.f32 %v724, 0.0
        %v853 = vmax.f32 %v725, 0.0
        %v854 = vmax.f32 %v726, 0.0
        %v855 = vmax.f32 %v727, 0.0
        %v856 = vmax.f32 %v728, 0.0
        %v857 = vmax.f32 %v729, 0.0
        %v858 = vmax.f32 %v730, 0.0
        %v859 = vmax.f32 %v731, 0.0
        %v860 = vmax.f32 %v732, 0.0
        %v861 = vmax.f32 %v733, 0.0
        %v862 = vmax.f32 %v734, 0.0
        %v863 = vmax.f32 %v735, 0.0
        %v864 = vmax.f32 %v736, 0.0
        %v865 = vmax.f32 %v737, 0.0
        %v866 = vmax.f32 %v738, 0.0
        %v867 = vmax.f32 %v739, 0.0
        %v868 = vmax.f32 %v740, 0.0
        %v869 = vmax.f32 %v741, 0.0
        %v870 = vmax.f32 %v742, 0.0
        %v871 = vmax.f32 %v743, 0.0
        %v872 = vmax.f32 %v744, 0.0
        %v873 = vmax.f32 %v745, 0.0
        %v874 = vmax.f32 %v746, 0.0
        %v875 = vmax.f32 %v747, 0.0
        %v876 = vmax.f32 %v748, 0.0
        %v877 = vmax.f32 %v749, 0.0
        %v878 = vmax.f32 %v750, 0.0
        %v879 = vmax.f32 %v751, 0.0
        %v880 = vmax.f32 %v752, 0.0
        %v881 = vmax.f32 %v753, 0.0
        %v882 = vmax.f32 %v754, 0.0
        %v883 = vmax.f32 %v755, 0.0
        %v884 = vmax.f32 %v756, 0.0
        %v885 = vmax.f32 %v757, 0.0
        %v886 = vmax.f32 %v758, 0.0
        %v887 = vmax.f32 %v759, 0.0
        %v888 = vmax.f32 %v760, 0.0
        %v889 = vmax.f32 %v761, 0.0
        %v890 = vmax.f32 %v762, 0.0
        %v891 = vmax.f32 %v763, 0.0
        %v892 = vmax.f32 %v764, 0.0
        %v893 = vmax.f32 %v765, 0.0
        %v894 = vmax.f32 %v766, 0.0
        %v895 = vmax.f32 %v767, 0.0
        %v896 = vmax.f32 %v768, 0.0
        %v897 = vmax.f32 %v769, 0.0
        %v898 = vmax.f32 %v770, 0.0
        %v899 = vmax.f32 %v771, 0.0
        %v900 = vmax.f32 %v772, 0.0
        %v901 = vmax.f32 %v773, 0.0
        %v902 = vmax.f32 %v774, 0.0
        %v903 = vmax.f32 %v775, 0.0
        %v904 = vmax.f32 %v776, 0.0
        %v905 = vmax.f32 %v777, 0.0
        %v906 = vmax.f32 %v778, 0.0
        %v907 = vmax.f32 %v779, 0.0
        %v908 = vmax.f32 %v780, 0.0
        %v909 = vmax.f32 %v781, 0.0
        %v910 = vmax.f32 %v782, 0.0
        %vm1040 = vcmask 1040384
        %v1041 = vrot.slane 0.0, 7
        %v1042 = vsel %vm1040, %v1041, %v1041
        %v1043 = vrot.slane %v783, 7
        %v1044 = vrot.slane %v784, 7
        %v1045 = vsel %vm1040, %v1043, %v1044
        %v1046 = vrot.slane %v785, 7
        %v1047 = vsel %vm1040, %v1044, %v1046
        %v1048 = vrot.slane %v786, 7
        %v1049 = vsel %vm1040, %v1046, %v1048
        %v1050 = vrot.slane %v787, 7
        %v1051 = vrot.slane %v788, 7
        %v1052 = vsel %vm1040, %v1050, %v1051
        %v1053 = vrot.slane %v789, 7
        %v1054 = vsel %vm1040, %v1051, %v1053
        %v1055 = vrot.slane %v790, 7
        %v1056 = vsel %vm1040, %v1053, %v1055
        %v1057 = vrot.slane %v791, 7
        %v1058 = vrot.slane %v792, 7
        %v1059 = vsel %vm1040, %v1057, %v1058
        %v1060 = vrot.slane %v793, 7
        %v1061 = vsel %vm1040, %v1058, %v1060
        %v1062 = vrot.slane %v794, 7
        %v1063 = vsel %vm1040, %v1060, %v1062
        %v1064 = vrot.slane %v795, 7
        %v1065 = vrot.slane %v796, 7
        %v1066 = vsel %vm1040, %v1064, %v1065
        %v1067 = vrot.slane %v797, 7
        %v1068 = vsel %vm1040, %v1065, %v1067
        %v1069 = vrot.slane %v798, 7
        %v1070 = vsel %vm1040, %v1067, %v1069
        %v1071 = vrot.slane %v799, 7
        %v1072 = vrot.slane %v800, 7
        %v1073 = vsel %vm1040, %v1071, %v1072
        %v1074 = vrot.slane %v801, 7
        %v1075 = vsel %vm1040, %v1072, %v1074
        %v1076 = vrot.slane %v802, 7
        %v1077 = vsel %vm1040, %v1074, %v1076
        %v1078 = vrot.slane %v803, 7
        %v1079 = vrot.slane %v804, 7
        %v1080 = vsel %vm1040, %v1078, %v1079
        %v1081 = vrot.slane %v805, 7
        %v1082 = vsel %vm1040, %v1079, %v1081
        %v1083 = vrot.slane %v806, 7
        %v1084 = vsel %vm1040, %v1081, %v1083
        %v1085 = vrot.slane %v807, 7
        %v1086 = vrot.slane %v808, 7
        %v1087 = vsel %vm1040, %v1085, %v1086
        %v1088 = vrot.slane %v809, 7
        %v1089 = vsel %vm1040, %v1086, %v1088
        %v1090 = vrot.slane %v810, 7
        %v1091 = vsel %vm1040, %v1088, %v1090
        %v1092 = vrot.slane %v811, 7
        %v1093 = vrot.slane %v812, 7
        %v1094 = vsel %vm1040, %v1092, %v1093
        %v1095 = vrot.slane %v813, 7
        %v1096 = vsel %vm1040, %v1093, %v1095
        %v1097 = vrot.slane %v814, 7
        %v1098 = vsel %vm1040, %v1095, %v1097
        %v1099 = vrot.slane %v815, 7
        %v1100 = vrot.slane %v816, 7
        %v1101 = vsel %vm1040, %v1099, %v1100
        %v1102 = vrot.slane %v817, 7
        %v1103 = vsel %vm1040, %v1100, %v1102
        %v1104 = vrot.slane %v818, 7
        %v1105 = vsel %vm1040, %v1102, %v1104
        %v1106 = vrot.slane %v819, 7
        %v1107 = vrot.slane %v820, 7
        %v1108 = vsel %vm1040, %v1106, %v1107
        %v1109 = vrot.slane %v821, 7
        %v1110 = vsel %vm1040, %v1107, %v1109
        %v1111 = vrot.slane %v822, 7
        %v1112 = vsel %vm1040, %v1109, %v1111
        %v1113 = vrot.slane %v823, 7
        %v1114 = vrot.slane %v824, 7
        %v1115 = vsel %vm1040, %v1113, %v1114
        %v1116 = vrot.slane %v825, 7
        %v1117 = vsel %vm1040, %v1114, %v1116
        %v1118 = vrot.slane %v826, 7
        %v1119 = vsel %vm1040, %v1116, %v1118
        %v1120 = vrot.slane %v827, 7
        %v1121 = vrot.slane %v828, 7
        %v1122 = vsel %vm1040, %v1120, %v1121
        %v1123 = vrot.slane %v829, 7
        %v1124 = vsel %vm1040, %v1121, %v1123
        %v1125 = vrot.slane %v830, 7
        %v1126 = vsel %vm1040, %v1123, %v1125
        %v1127 = vrot.slane %v831, 7
        %v1128 = vrot.slane %v832, 7
        %v1129 = vsel %vm1040, %v1127, %v1128
        %v1130 = vrot.slane %v833, 7
        %v1131 = vsel %vm1040, %v1128, %v1130
        %v1132 = vrot.slane %v834, 7
        %v1133 = vsel %vm1040, %v1130, %v1132
        %v1134 = vrot.slane %v835, 7
        %v1135 = vrot.slane %v836, 7
        %v1136 = vsel %vm1040, %v1134, %v1135
        %v1137 = vrot.slane %v837, 7
        %v1138 = vsel %vm1040, %v1135, %v1137
        %v1139 = vrot.slane %v838, 7
        %v1140 = vsel %vm1040, %v1137, %v1139
        %v1141 = vrot.slane %v839, 7
        %v1142 = vrot.slane %v840, 7
        %v1143 = vsel %vm1040, %v1141, %v1142
        %v1144 = vrot.slane %v841, 7
        %v1145 = vsel %vm1040, %v1142, %v1144
        %v1146 = vrot.slane %v842, 7
        %v1147 = vsel %vm1040, %v1144, %v1146
        %v1148 = vrot.slane %v843, 7
        %v1149 = vrot.slane %v844, 7
        %v1150 = vsel %vm1040, %v1148, %v1149
        %v1151 = vrot.slane %v845, 7
        %v1152 = vsel %vm1040, %v1149, %v1151
        %v1153 = vrot.slane %v846, 7
        %v1154 = vsel %vm1040, %v1151, %v1153
        %v1155 = vrot.slane %v847, 7
        %v1156 = vrot.slane %v848, 7
        %v1157 = vsel %vm1040, %v1155, %v1156
        %v1158 = vrot.slane %v849, 7
        %v1159 = vsel %vm1040, %v1156, %v1158
        %v1160 = vrot.slane %v850, 7
        %v1161 = vsel %vm1040, %v1158, %v1160
        %v1162 = vrot.slane %v851, 7
        %v1163 = vrot.slane %v852, 7
        %v1164 = vsel %vm1040, %v1162, %v1163
        %v1165 = vrot.slane %v853, 7
        %v1166 = vsel %vm1040, %v1163, %v1165
        %v1167 = vrot.slane %v854, 7
        %v1168 = vsel %vm1040, %v1165, %v1167
        %v1169 = vrot.slane %v855, 7
        %v1170 = vrot.slane %v856, 7
        %v1171 = vsel %vm1040, %v1169, %v1170
        %v1172 = vrot.slane %v857, 7
        %v1173 = vsel %vm1040, %v1170, %v1172
        %v1174 = vrot.slane %v858, 7
        %v1175 = vsel %vm1040, %v1172, %v1174
        %v1176 = vrot.slane %v859, 7
        %v1177 = vrot.slane %v860, 7
        %v1178 = vsel %vm1040, %v1176, %v1177
        %v1179 = vrot.slane %v861, 7
        %v1180 = vsel %vm1040, %v1177, %v1179
        %v1181 = vrot.slane %v862, 7
        %v1182 = vsel %vm1040, %v1179, %v1181
        %v1183 = vrot.slane %v863, 7
        %v1184 = vrot.slane %v864, 7
        %v1185 = vsel %vm1040, %v1183, %v1184
        %v1186 = vrot.slane %v865, 7
        %v1187 = vsel %vm1040, %v1184, %v1186
        %v1188 = vrot.slane %v866, 7
        %v1189 = vsel %vm1040, %v1186, %v1188
        %v1190 = vrot.slane %v867, 7
        %v1191 = vrot.slane %v868, 7
        %v1192 = vsel %vm1040, %v1190, %v1191
        %v1193 = vrot.slane %v869, 7
        %v1194 = vsel %vm1040, %v1191, %v1193
        %v1195 = vrot.slane %v870, 7
        %v1196 = vsel %vm1040, %v1193, %v1195
        %v1197 = vrot.slane %v871, 7
        %v1198 = vrot.slane %v872, 7
        %v1199 = vsel %vm1040, %v1197, %v1198
        %v1200 = vrot.slane %v873, 7
        %v1201 = vsel %vm1040, %v1198, %v1200
        %v1202 = vrot.slane %v874, 7
        %v1203 = vsel %vm1040, %v1200, %v1202
        %v1204 = vrot.slane %v875, 7
        %v1205 = vrot.slane %v876, 7
        %v1206 = vsel %vm1040, %v1204, %v1205
        %v1207 = vrot.slane %v877, 7
        %v1208 = vsel %vm1040, %v1205, %v1207
        %v1209 = vrot.slane %v878, 7
        %v1210 = vsel %vm1040, %v1207, %v1209
        %v1211 = vrot.slane %v879, 7
        %v1212 = vrot.slane %v880, 7
        %v1213 = vsel %vm1040, %v1211, %v1212
        %v1214 = vrot.slane %v881, 7
        %v1215 = vsel %vm1040, %v1212, %v1214
        %v1216 = vrot.slane %v882, 7
        %v1217 = vsel %vm1040, %v1214, %v1216
        %v1218 = vrot.slane %v883, 7
        %v1219 = vrot.slane %v884, 7
        %v1220 = vsel %vm1040, %v1218, %v1219
        %v1221 = vrot.slane %v885, 7
        %v1222 = vsel %vm1040, %v1219, %v1221
        %v1223 = vrot.slane %v886, 7
        %v1224 = vsel %vm1040, %v1221, %v1223
        %v1225 = vrot.slane %v887, 7
        %v1226 = vrot.slane %v888, 7
        %v1227 = vsel %vm1040, %v1225, %v1226
        %v1228 = vrot.slane %v889, 7
        %v1229 = vsel %vm1040, %v1226, %v1228
        %v1230 = vrot.slane %v890, 7
        %v1231 = vsel %vm1040, %v1228, %v1230
        %v1232 = vrot.slane %v891, 7
        %v1233 = vrot.slane %v892, 7
        %v1234 = vsel %vm1040, %v1232, %v1233
        %v1235 = vrot.slane %v893, 7
        %v1236 = vsel %vm1040, %v1233, %v1235
        %v1237 = vrot.slane %v894, 7
        %v1238 = vsel %vm1040, %v1235, %v1237
        %v1239 = vrot.slane %v895, 7
        %v1240 = vrot.slane %v896, 7
        %v1241 = vsel %vm1040, %v1239, %v1240
        %v1242 = vrot.slane %v897, 7
        %v1243 = vsel %vm1040, %v1240, %v1242
        %v1244 = vrot.slane %v898, 7
        %v1245 = vsel %vm1040, %v1242, %v1244
        %v1246 = vrot.slane %v899, 7
        %v1247 = vrot.slane %v900, 7
        %v1248 = vsel %vm1040, %v1246, %v1247
        %v1249 = vrot.slane %v901, 7
        %v1250 = vsel %vm1040, %v1247, %v1249
        %v1251 = vrot.slane %v902, 7
        %v1252 = vsel %vm1040, %v1249, %v1251
        %v1253 = vrot.slane %v903, 7
        %v1254 = vrot.slane %v904, 7
        %v1255 = vsel %vm1040, %v1253, %v1254
        %v1256 = vrot.slane %v905, 7
        %v1257 = vsel %vm1040, %v1254, %v1256
        %v1258 = vrot.slane %v906, 7
        %v1259 = vsel %vm1040, %v1256, %v1258
        %v1260 = vrot.slane %v907, 7
        %v1261 = vrot.slane %v908, 7
        %v1262 = vsel %vm1040, %v1260, %v1261
        %v1263 = vrot.slane %v909, 7
        %v1264 = vsel %vm1040, %v1261, %v1263
        %v1265 = vrot.slane %v910, 7
        %v1266 = vsel %vm1040, %v1263, %v1265
        %v1429 = vsel %vm1040, 0.0, %v1041
        %v1430 = vsel %vm1040, 0.0, %v1043
        %v1431 = vsel %vm1040, 0.0, %v1050
        %v1432 = vsel %vm1040, 0.0, %v1057
        %v1433 = vsel %vm1040, 0.0, %v1064
        %v1434 = vsel %vm1040, 0.0, %v1071
        %v1435 = vsel %vm1040, 0.0, %v1078
        %v1436 = vsel %vm1040, 0.0, %v1085
        %v1437 = vsel %vm1040, 0.0, %v1092
        %v1438 = vsel %vm1040, 0.0, %v1099
        %v1439 = vsel %vm1040, 0.0, %v1106
        %v1440 = vsel %vm1040, 0.0, %v1113
        %v1441 = vsel %vm1040, 0.0, %v1120
        %v1442 = vsel %vm1040, 0.0, %v1127
        %v1443 = vsel %vm1040, 0.0, %v1134
        %v1444 = vsel %vm1040, 0.0, %v1141
        %v1445 = vsel %vm1040, 0.0, %v1148
        %v1446 = vsel %vm1040, 0.0, %v1155
        %v1447 = vsel %vm1040, 0.0, %v1162
        %v1448 = vsel %vm1040, 0.0, %v1169
        %v1449 = vsel %vm1040, 0.0, %v1176
        %v1450 = vsel %vm1040, 0.0, %v1183
        %v1451 = vsel %vm1040, 0.0, %v1190
        %v1452 = vsel %vm1040, 0.0, %v1197
        %v1453 = vsel %vm1040, 0.0, %v1204
        %v1454 = vsel %vm1040, 0.0, %v1211
        %v1455 = vsel %vm1040, 0.0, %v1218
        %v1456 = vsel %vm1040, 0.0, %v1225
        %v1457 = vsel %vm1040, 0.0, %v1232
        %v1458 = vsel %vm1040, 0.0, %v1239
        %v1459 = vsel %vm1040, 0.0, %v1246
        %v1460 = vsel %vm1040, 0.0, %v1253
        %v1461 = vsel %vm1040, 0.0, %v1260
        %v1462 = vsel %vm1040, %v1041, 0.0
        %v1463 = vsel %vm1040, %v1048, 0.0
        %v1464 = vsel %vm1040, %v1055, 0.0
        %v1465 = vsel %vm1040, %v1062, 0.0
        %v1466 = vsel %vm1040, %v1069, 0.0
        %v1467 = vsel %vm1040, %v1076, 0.0
        %v1468 = vsel %vm1040, %v1083, 0.0
        %v1469 = vsel %vm1040, %v1090, 0.0
        %v1470 = vsel %vm1040, %v1097, 0.0
        %v1471 = vsel %vm1040, %v1104, 0.0
        %v1472 = vsel %vm1040, %v1111, 0.0
        %v1473 = vsel %vm1040, %v1118, 0.0
        %v1474 = vsel %vm1040, %v1125, 0.0
        %v1475 = vsel %vm1040, %v1132, 0.0
        %v1476 = vsel %vm1040, %v1139, 0.0
        %v1477 = vsel %vm1040, %v1146, 0.0
        %v1478 = vsel %vm1040, %v1153, 0.0
        %v1479 = vsel %vm1040, %v1160, 0.0
        %v1480 = vsel %vm1040, %v1167, 0.0
        %v1481 = vsel %vm1040, %v1174, 0.0
        %v1482 = vsel %vm1040, %v1181, 0.0
        %v1483 = vsel %vm1040, %v1188, 0.0
        %v1484 = vsel %vm1040, %v1195, 0.0
        %v1485 = vsel %vm1040, %v1202, 0.0
        %v1486 = vsel %vm1040, %v1209, 0.0
        %v1487 = vsel %vm1040, %v1216, 0.0
        %v1488 = vsel %vm1040, %v1223, 0.0
        %v1489 = vsel %vm1040, %v1230, 0.0
        %v1490 = vsel %vm1040, %v1237, 0.0
        %v1491 = vsel %vm1040, %v1244, 0.0
        %v1492 = vsel %vm1040, %v1251, 0.0
        %v1493 = vsel %vm1040, %v1258, 0.0
        %v1494 = vsel %vm1040, %v1265, 0.0
        %v1495 = vpack.c.bf16 %v1042, %v1429
        %v1496 = vpack.c.bf16 %v1042, %v1042
        %v1497 = vpack.c.bf16 %v1462, %v1462
        %v1498 = vpack.c.bf16 %v1045, %v1430
        %v1499 = vpack.c.bf16 %v1049, %v1047
        %v1500 = vpack.c.bf16 %v1463, %v1463
        %v1501 = vpack.c.bf16 %v1052, %v1431
        %v1502 = vpack.c.bf16 %v1056, %v1054
        %v1503 = vpack.c.bf16 %v1464, %v1464
        %v1504 = vpack.c.bf16 %v1059, %v1432
        %v1505 = vpack.c.bf16 %v1063, %v1061
        %v1506 = vpack.c.bf16 %v1465, %v1465
        %v1507 = vpack.c.bf16 %v1066, %v1433
        %v1508 = vpack.c.bf16 %v1070, %v1068
        %v1509 = vpack.c.bf16 %v1466, %v1466
        %v1510 = vpack.c.bf16 %v1073, %v1434
        %v1511 = vpack.c.bf16 %v1077, %v1075
        %v1512 = vpack.c.bf16 %v1467, %v1467
        %v1513 = vpack.c.bf16 %v1080, %v1435
        %v1514 = vpack.c.bf16 %v1084, %v1082
        %v1515 = vpack.c.bf16 %v1468, %v1468
        %v1516 = vpack.c.bf16 %v1087, %v1436
        %v1517 = vpack.c.bf16 %v1091, %v1089
        %v1518 = vpack.c.bf16 %v1469, %v1469
        %v1519 = vpack.c.bf16 %v1094, %v1437
        %v1520 = vpack.c.bf16 %v1098, %v1096
        %v1521 = vpack.c.bf16 %v1470, %v1470
        %v1522 = vpack.c.bf16 %v1101, %v1438
        %v1523 = vpack.c.bf16 %v1105, %v1103
        %v1524 = vpack.c.bf16 %v1471, %v1471
        %v1525 = vpack.c.bf16 %v1108, %v1439
        %v1526 = vpack.c.bf16 %v1112, %v1110
        %v1527 = vpack.c.bf16 %v1472, %v1472
        %v1528 = vpack.c.bf16 %v1115, %v1440
        %v1529 = vpack.c.bf16 %v1119, %v1117
        %v1530 = vpack.c.bf16 %v1473, %v1473
        %v1531 = vpack.c.bf16 %v1122, %v1441
        %v1532 = vpack.c.bf16 %v1126, %v1124
        %v1533 = vpack.c.bf16 %v1474, %v1474
        %v1534 = vpack.c.bf16 %v1129, %v1442
        %v1535 = vpack.c.bf16 %v1133, %v1131
        %v1536 = vpack.c.bf16 %v1475, %v1475
        %v1537 = vpack.c.bf16 %v1136, %v1443
        %v1538 = vpack.c.bf16 %v1140, %v1138
        %v1539 = vpack.c.bf16 %v1476, %v1476
        %v1540 = vpack.c.bf16 %v1143, %v1444
        %v1541 = vpack.c.bf16 %v1147, %v1145
        %v1542 = vpack.c.bf16 %v1477, %v1477
        %v1543 = vpack.c.bf16 %v1150, %v1445
        %v1544 = vpack.c.bf16 %v1154, %v1152
        %v1545 = vpack.c.bf16 %v1478, %v1478
        %v1546 = vpack.c.bf16 %v1157, %v1446
        %v1547 = vpack.c.bf16 %v1161, %v1159
        %v1548 = vpack.c.bf16 %v1479, %v1479
        %v1549 = vpack.c.bf16 %v1164, %v1447
        %v1550 = vpack.c.bf16 %v1168, %v1166
        %v1551 = vpack.c.bf16 %v1480, %v1480
        %v1552 = vpack.c.bf16 %v1171, %v1448
        %v1553 = vpack.c.bf16 %v1175, %v1173
        %v1554 = vpack.c.bf16 %v1481, %v1481
        %v1555 = vpack.c.bf16 %v1178, %v1449
        %v1556 = vpack.c.bf16 %v1182, %v1180
        %v1557 = vpack.c.bf16 %v1482, %v1482
        %v1558 = vpack.c.bf16 %v1185, %v1450
        %v1559 = vpack.c.bf16 %v1189, %v1187
        %v1560 = vpack.c.bf16 %v1483, %v1483
        %v1561 = vpack.c.bf16 %v1192, %v1451
        %v1562 = vpack.c.bf16 %v1196, %v1194
        %v1563 = vpack.c.bf16 %v1484, %v1484
        %v1564 = vpack.c.bf16 %v1199, %v1452
        %v1565 = vpack.c.bf16 %v1203, %v1201
        %v1566 = vpack.c.bf16 %v1485, %v1485
        %v1567 = vpack.c.bf16 %v1206, %v1453
        %v1568 = vpack.c.bf16 %v1210, %v1208
        %v1569 = vpack.c.bf16 %v1486, %v1486
        %v1570 = vpack.c.bf16 %v1213, %v1454
        %v1571 = vpack.c.bf16 %v1217, %v1215
        %v1572 = vpack.c.bf16 %v1487, %v1487
        %v1573 = vpack.c.bf16 %v1220, %v1455
        %v1574 = vpack.c.bf16 %v1224, %v1222
        %v1575 = vpack.c.bf16 %v1488, %v1488
        %v1576 = vpack.c.bf16 %v1227, %v1456
        %v1577 = vpack.c.bf16 %v1231, %v1229
        %v1578 = vpack.c.bf16 %v1489, %v1489
        %v1579 = vpack.c.bf16 %v1234, %v1457
        %v1580 = vpack.c.bf16 %v1238, %v1236
        %v1581 = vpack.c.bf16 %v1490, %v1490
        %v1582 = vpack.c.bf16 %v1241, %v1458
        %v1583 = vpack.c.bf16 %v1245, %v1243
        %v1584 = vpack.c.bf16 %v1491, %v1491
        %v1585 = vpack.c.bf16 %v1248, %v1459
        %v1586 = vpack.c.bf16 %v1252, %v1250
        %v1587 = vpack.c.bf16 %v1492, %v1492
        %v1588 = vpack.c.bf16 %v1255, %v1460
        %v1589 = vpack.c.bf16 %v1259, %v1257
        %v1590 = vpack.c.bf16 %v1493, %v1493
        %v1591 = vpack.c.bf16 %v1262, %v1461
        %v1592 = vpack.c.bf16 %v1266, %v1264
        %v1593 = vpack.c.bf16 %v1494, %v1494
        %vm1594 = vsmask.f32 7424
        %v1596 = vshrl.u32 %v1495, 16
        %v1598 = vshll.u32 %v1495, 16
        %v1600 = vrot.slane %v1598, 1
        %v1601 = vor.u32 %v1596, %v1600
        %v1603 = vshll.u32 %v1496, 16
        %v1605 = vrot.slane %v1603, 1
        %v1606 = vsel %vm1594, %v1601, %v1605
        %v1607 = vshrl.u32 %v1496, 16
        %v1609 = vor.u32 %v1607, %v1605
        %v1611 = vshll.u32 %v1497, 16
        %v1613 = vrot.slane %v1611, 1
        %v1614 = vsel %vm1594, %v1609, %v1613
        %v1616 = vshrl.u32 %v1498, 16
        %v1618 = vshll.u32 %v1498, 16
        %v1620 = vrot.slane %v1618, 1
        %v1621 = vor.u32 %v1616, %v1620
        %v1623 = vshll.u32 %v1499, 16
        %v1625 = vrot.slane %v1623, 1
        %v1626 = vsel %vm1594, %v1621, %v1625
        %v1627 = vshrl.u32 %v1499, 16
        %v1629 = vor.u32 %v1627, %v1625
        %v1631 = vshll.u32 %v1500, 16
        %v1633 = vrot.slane %v1631, 1
        %v1634 = vsel %vm1594, %v1629, %v1633
        %v1636 = vshrl.u32 %v1501, 16
        %v1638 = vshll.u32 %v1501, 16
        %v1640 = vrot.slane %v1638, 1
        %v1641 = vor.u32 %v1636, %v1640
        %v1643 = vshll.u32 %v1502, 16
        %v1645 = vrot.slane %v1643, 1
        %v1646 = vsel %vm1594, %v1641, %v1645
        %v1647 = vshrl.u32 %v1502, 16
        %v1649 = vor.u32 %v1647, %v1645
        %v1651 = vshll.u32 %v1503, 16
        %v1653 = vrot.slane %v1651, 1
        %v1654 = vsel %vm1594, %v1649, %v1653
        %v1656 = vshrl.u32 %v1504, 16
        %v1658 = vshll.u32 %v1504, 16
        %v1660 = vrot.slane %v1658, 1
        %v1661 = vor.u32 %v1656, %v1660
        %v1663 = vshll.u32 %v1505, 16
        %v1665 = vrot.slane %v1663, 1
        %v1666 = vsel %vm1594, %v1661, %v1665
        %v1667 = vshrl.u32 %v1505, 16
        %v1669 = vor.u32 %v1667, %v1665
        %v1671 = vshll.u32 %v1506, 16
        %v1673 = vrot.slane %v1671, 1
        %v1674 = vsel %vm1594, %v1669, %v1673
        %v1676 = vshrl.u32 %v1507, 16
        %v1678 = vshll.u32 %v1507, 16
        %v1680 = vrot.slane %v1678, 1
        %v1681 = vor.u32 %v1676, %v1680
        %v1683 = vshll.u32 %v1508, 16
        %v1685 = vrot.slane %v1683, 1
        %v1686 = vsel %vm1594, %v1681, %v1685
        %v1687 = vshrl.u32 %v1508, 16
        %v1689 = vor.u32 %v1687, %v1685
        %v1691 = vshll.u32 %v1509, 16
        %v1693 = vrot.slane %v1691, 1
        %v1694 = vsel %vm1594, %v1689, %v1693
        %v1696 = vshrl.u32 %v1510, 16
        %v1698 = vshll.u32 %v1510, 16
        %v1700 = vrot.slane %v1698, 1
        %v1701 = vor.u32 %v1696, %v1700
        %v1703 = vshll.u32 %v1511, 16
        %v1705 = vrot.slane %v1703, 1
        %v1706 = vsel %vm1594, %v1701, %v1705
        %v1707 = vshrl.u32 %v1511, 16
        %v1709 = vor.u32 %v1707, %v1705
        %v1711 = vshll.u32 %v1512, 16
        %v1713 = vrot.slane %v1711, 1
        %v1714 = vsel %vm1594, %v1709, %v1713
        %v1716 = vshrl.u32 %v1513, 16
        %v1718 = vshll.u32 %v1513, 16
        %v1720 = vrot.slane %v1718, 1
        %v1721 = vor.u32 %v1716, %v1720
        %v1723 = vshll.u32 %v1514, 16
        %v1725 = vrot.slane %v1723, 1
        %v1726 = vsel %vm1594, %v1721, %v1725
        %v1727 = vshrl.u32 %v1514, 16
        %v1729 = vor.u32 %v1727, %v1725
        %v1731 = vshll.u32 %v1515, 16
        %v1733 = vrot.slane %v1731, 1
        %v1734 = vsel %vm1594, %v1729, %v1733
        %v1736 = vshrl.u32 %v1516, 16
        %v1738 = vshll.u32 %v1516, 16
        %v1740 = vrot.slane %v1738, 1
        %v1741 = vor.u32 %v1736, %v1740
        %v1743 = vshll.u32 %v1517, 16
        %v1745 = vrot.slane %v1743, 1
        %v1746 = vsel %vm1594, %v1741, %v1745
        %v1747 = vshrl.u32 %v1517, 16
        %v1749 = vor.u32 %v1747, %v1745
        %v1751 = vshll.u32 %v1518, 16
        %v1753 = vrot.slane %v1751, 1
        %v1754 = vsel %vm1594, %v1749, %v1753
        %v1756 = vshrl.u32 %v1519, 16
        %v1758 = vshll.u32 %v1519, 16
        %v1760 = vrot.slane %v1758, 1
        %v1761 = vor.u32 %v1756, %v1760
        %v1763 = vshll.u32 %v1520, 16
        %v1765 = vrot.slane %v1763, 1
        %v1766 = vsel %vm1594, %v1761, %v1765
        %v1767 = vshrl.u32 %v1520, 16
        %v1769 = vor.u32 %v1767, %v1765
        %v1771 = vshll.u32 %v1521, 16
        %v1773 = vrot.slane %v1771, 1
        %v1774 = vsel %vm1594, %v1769, %v1773
        %v1776 = vshrl.u32 %v1522, 16
        %v1778 = vshll.u32 %v1522, 16
        %v1780 = vrot.slane %v1778, 1
        %v1781 = vor.u32 %v1776, %v1780
        %v1783 = vshll.u32 %v1523, 16
        %v1785 = vrot.slane %v1783, 1
        %v1786 = vsel %vm1594, %v1781, %v1785
        %v1787 = vshrl.u32 %v1523, 16
        %v1789 = vor.u32 %v1787, %v1785
        %v1791 = vshll.u32 %v1524, 16
        %v1793 = vrot.slane %v1791, 1
        %v1794 = vsel %vm1594, %v1789, %v1793
        %v1796 = vshrl.u32 %v1525, 16
        %v1798 = vshll.u32 %v1525, 16
        %v1800 = vrot.slane %v1798, 1
        %v1801 = vor.u32 %v1796, %v1800
        %v1803 = vshll.u32 %v1526, 16
        %v1805 = vrot.slane %v1803, 1
        %v1806 = vsel %vm1594, %v1801, %v1805
        %v1807 = vshrl.u32 %v1526, 16
        %v1809 = vor.u32 %v1807, %v1805
        %v1811 = vshll.u32 %v1527, 16
        %v1813 = vrot.slane %v1811, 1
        %v1814 = vsel %vm1594, %v1809, %v1813
        %v1816 = vshrl.u32 %v1528, 16
        %v1818 = vshll.u32 %v1528, 16
        %v1820 = vrot.slane %v1818, 1
        %v1821 = vor.u32 %v1816, %v1820
        %v1823 = vshll.u32 %v1529, 16
        %v1825 = vrot.slane %v1823, 1
        %v1826 = vsel %vm1594, %v1821, %v1825
        %v1827 = vshrl.u32 %v1529, 16
        %v1829 = vor.u32 %v1827, %v1825
        %v1831 = vshll.u32 %v1530, 16
        %v1833 = vrot.slane %v1831, 1
        %v1834 = vsel %vm1594, %v1829, %v1833
        %v1836 = vshrl.u32 %v1531, 16
        %v1838 = vshll.u32 %v1531, 16
        %v1840 = vrot.slane %v1838, 1
        %v1841 = vor.u32 %v1836, %v1840
        %v1843 = vshll.u32 %v1532, 16
        %v1845 = vrot.slane %v1843, 1
        %v1846 = vsel %vm1594, %v1841, %v1845
        %v1847 = vshrl.u32 %v1532, 16
        %v1849 = vor.u32 %v1847, %v1845
        %v1851 = vshll.u32 %v1533, 16
        %v1853 = vrot.slane %v1851, 1
        %v1854 = vsel %vm1594, %v1849, %v1853
        %v1856 = vshrl.u32 %v1534, 16
        %v1858 = vshll.u32 %v1534, 16
        %v1860 = vrot.slane %v1858, 1
        %v1861 = vor.u32 %v1856, %v1860
        %v1863 = vshll.u32 %v1535, 16
        %v1865 = vrot.slane %v1863, 1
        %v1866 = vsel %vm1594, %v1861, %v1865
        %v1867 = vshrl.u32 %v1535, 16
        %v1869 = vor.u32 %v1867, %v1865
        %v1871 = vshll.u32 %v1536, 16
        %v1873 = vrot.slane %v1871, 1
        %v1874 = vsel %vm1594, %v1869, %v1873
        %v1876 = vshrl.u32 %v1537, 16
        %v1878 = vshll.u32 %v1537, 16
        %v1880 = vrot.slane %v1878, 1
        %v1881 = vor.u32 %v1876, %v1880
        %v1883 = vshll.u32 %v1538, 16
        %v1885 = vrot.slane %v1883, 1
        %v1886 = vsel %vm1594, %v1881, %v1885
        %v1887 = vshrl.u32 %v1538, 16
        %v1889 = vor.u32 %v1887, %v1885
        %v1891 = vshll.u32 %v1539, 16
        %v1893 = vrot.slane %v1891, 1
        %v1894 = vsel %vm1594, %v1889, %v1893
        %v1896 = vshrl.u32 %v1540, 16
        %v1898 = vshll.u32 %v1540, 16
        %v1900 = vrot.slane %v1898, 1
        %v1901 = vor.u32 %v1896, %v1900
        %v1903 = vshll.u32 %v1541, 16
        %v1905 = vrot.slane %v1903, 1
        %v1906 = vsel %vm1594, %v1901, %v1905
        %v1907 = vshrl.u32 %v1541, 16
        %v1909 = vor.u32 %v1907, %v1905
        %v1911 = vshll.u32 %v1542, 16
        %v1913 = vrot.slane %v1911, 1
        %v1914 = vsel %vm1594, %v1909, %v1913
        %v1916 = vshrl.u32 %v1543, 16
        %v1918 = vshll.u32 %v1543, 16
        %v1920 = vrot.slane %v1918, 1
        %v1921 = vor.u32 %v1916, %v1920
        %v1923 = vshll.u32 %v1544, 16
        %v1925 = vrot.slane %v1923, 1
        %v1926 = vsel %vm1594, %v1921, %v1925
        %v1927 = vshrl.u32 %v1544, 16
        %v1929 = vor.u32 %v1927, %v1925
        %v1931 = vshll.u32 %v1545, 16
        %v1933 = vrot.slane %v1931, 1
        %v1934 = vsel %vm1594, %v1929, %v1933
        %v1936 = vshrl.u32 %v1546, 16
        %v1938 = vshll.u32 %v1546, 16
        %v1940 = vrot.slane %v1938, 1
        %v1941 = vor.u32 %v1936, %v1940
        %v1943 = vshll.u32 %v1547, 16
        %v1945 = vrot.slane %v1943, 1
        %v1946 = vsel %vm1594, %v1941, %v1945
        %v1947 = vshrl.u32 %v1547, 16
        %v1949 = vor.u32 %v1947, %v1945
        %v1951 = vshll.u32 %v1548, 16
        %v1953 = vrot.slane %v1951, 1
        %v1954 = vsel %vm1594, %v1949, %v1953
        %v1956 = vshrl.u32 %v1549, 16
        %v1958 = vshll.u32 %v1549, 16
        %v1960 = vrot.slane %v1958, 1
        %v1961 = vor.u32 %v1956, %v1960
        %v1963 = vshll.u32 %v1550, 16
        %v1965 = vrot.slane %v1963, 1
        %v1966 = vsel %vm1594, %v1961, %v1965
        %v1967 = vshrl.u32 %v1550, 16
        %v1969 = vor.u32 %v1967, %v1965
        %v1971 = vshll.u32 %v1551, 16
        %v1973 = vrot.slane %v1971, 1
        %v1974 = vsel %vm1594, %v1969, %v1973
        %v1976 = vshrl.u32 %v1552, 16
        %v1978 = vshll.u32 %v1552, 16
        %v1980 = vrot.slane %v1978, 1
        %v1981 = vor.u32 %v1976, %v1980
        %v1983 = vshll.u32 %v1553, 16
        %v1985 = vrot.slane %v1983, 1
        %v1986 = vsel %vm1594, %v1981, %v1985
        %v1987 = vshrl.u32 %v1553, 16
        %v1989 = vor.u32 %v1987, %v1985
        %v1991 = vshll.u32 %v1554, 16
        %v1993 = vrot.slane %v1991, 1
        %v1994 = vsel %vm1594, %v1989, %v1993
        %v1996 = vshrl.u32 %v1555, 16
        %v1998 = vshll.u32 %v1555, 16
        %v2000 = vrot.slane %v1998, 1
        %v2001 = vor.u32 %v1996, %v2000
        %v2003 = vshll.u32 %v1556, 16
        %v2005 = vrot.slane %v2003, 1
        %v2006 = vsel %vm1594, %v2001, %v2005
        %v2007 = vshrl.u32 %v1556, 16
        %v2009 = vor.u32 %v2007, %v2005
        %v2011 = vshll.u32 %v1557, 16
        %v2013 = vrot.slane %v2011, 1
        %v2014 = vsel %vm1594, %v2009, %v2013
        %v2016 = vshrl.u32 %v1558, 16
        %v2018 = vshll.u32 %v1558, 16
        %v2020 = vrot.slane %v2018, 1
        %v2021 = vor.u32 %v2016, %v2020
        %v2023 = vshll.u32 %v1559, 16
        %v2025 = vrot.slane %v2023, 1
        %v2026 = vsel %vm1594, %v2021, %v2025
        %v2027 = vshrl.u32 %v1559, 16
        %v2029 = vor.u32 %v2027, %v2025
        %v2031 = vshll.u32 %v1560, 16
        %v2033 = vrot.slane %v2031, 1
        %v2034 = vsel %vm1594, %v2029, %v2033
        %v2036 = vshrl.u32 %v1561, 16
        %v2038 = vshll.u32 %v1561, 16
        %v2040 = vrot.slane %v2038, 1
        %v2041 = vor.u32 %v2036, %v2040
        %v2043 = vshll.u32 %v1562, 16
        %v2045 = vrot.slane %v2043, 1
        %v2046 = vsel %vm1594, %v2041, %v2045
        %v2047 = vshrl.u32 %v1562, 16
        %v2049 = vor.u32 %v2047, %v2045
        %v2051 = vshll.u32 %v1563, 16
        %v2053 = vrot.slane %v2051, 1
        %v2054 = vsel %vm1594, %v2049, %v2053
        %v2056 = vshrl.u32 %v1564, 16
        %v2058 = vshll.u32 %v1564, 16
        %v2060 = vrot.slane %v2058, 1
        %v2061 = vor.u32 %v2056, %v2060
        %v2063 = vshll.u32 %v1565, 16
        %v2065 = vrot.slane %v2063, 1
        %v2066 = vsel %vm1594, %v2061, %v2065
        %v2067 = vshrl.u32 %v1565, 16
        %v2069 = vor.u32 %v2067, %v2065
        %v2071 = vshll.u32 %v1566, 16
        %v2073 = vrot.slane %v2071, 1
        %v2074 = vsel %vm1594, %v2069, %v2073
        %v2076 = vshrl.u32 %v1567, 16
        %v2078 = vshll.u32 %v1567, 16
        %v2080 = vrot.slane %v2078, 1
        %v2081 = vor.u32 %v2076, %v2080
        %v2083 = vshll.u32 %v1568, 16
        %v2085 = vrot.slane %v2083, 1
        %v2086 = vsel %vm1594, %v2081, %v2085
        %v2087 = vshrl.u32 %v1568, 16
        %v2089 = vor.u32 %v2087, %v2085
        %v2091 = vshll.u32 %v1569, 16
        %v2093 = vrot.slane %v2091, 1
        %v2094 = vsel %vm1594, %v2089, %v2093
        %v2096 = vshrl.u32 %v1570, 16
        %v2098 = vshll.u32 %v1570, 16
        %v2100 = vrot.slane %v2098, 1
        %v2101 = vor.u32 %v2096, %v2100
        %v2103 = vshll.u32 %v1571, 16
        %v2105 = vrot.slane %v2103, 1
        %v2106 = vsel %vm1594, %v2101, %v2105
        %v2107 = vshrl.u32 %v1571, 16
        %v2109 = vor.u32 %v2107, %v2105
        %v2111 = vshll.u32 %v1572, 16
        %v2113 = vrot.slane %v2111, 1
        %v2114 = vsel %vm1594, %v2109, %v2113
        %v2116 = vshrl.u32 %v1573, 16
        %v2118 = vshll.u32 %v1573, 16
        %v2120 = vrot.slane %v2118, 1
        %v2121 = vor.u32 %v2116, %v2120
        %v2123 = vshll.u32 %v1574, 16
        %v2125 = vrot.slane %v2123, 1
        %v2126 = vsel %vm1594, %v2121, %v2125
        %v2127 = vshrl.u32 %v1574, 16
        %v2129 = vor.u32 %v2127, %v2125
        %v2131 = vshll.u32 %v1575, 16
        %v2133 = vrot.slane %v2131, 1
        %v2134 = vsel %vm1594, %v2129, %v2133
        %v2136 = vshrl.u32 %v1576, 16
        %v2138 = vshll.u32 %v1576, 16
        %v2140 = vrot.slane %v2138, 1
        %v2141 = vor.u32 %v2136, %v2140
        %v2143 = vshll.u32 %v1577, 16
        %v2145 = vrot.slane %v2143, 1
        %v2146 = vsel %vm1594, %v2141, %v2145
        %v2147 = vshrl.u32 %v1577, 16
        %v2149 = vor.u32 %v2147, %v2145
        %v2151 = vshll.u32 %v1578, 16
        %v2153 = vrot.slane %v2151, 1
        %v2154 = vsel %vm1594, %v2149, %v2153
        %v2156 = vshrl.u32 %v1579, 16
        %v2158 = vshll.u32 %v1579, 16
        %v2160 = vrot.slane %v2158, 1
        %v2161 = vor.u32 %v2156, %v2160
        %v2163 = vshll.u32 %v1580, 16
        %v2165 = vrot.slane %v2163, 1
        %v2166 = vsel %vm1594, %v2161, %v2165
        %v2167 = vshrl.u32 %v1580, 16
        %v2169 = vor.u32 %v2167, %v2165
        %v2171 = vshll.u32 %v1581, 16
        %v2173 = vrot.slane %v2171, 1
        %v2174 = vsel %vm1594, %v2169, %v2173
        %v2176 = vshrl.u32 %v1582, 16
        %v2178 = vshll.u32 %v1582, 16
        %v2180 = vrot.slane %v2178, 1
        %v2181 = vor.u32 %v2176, %v2180
        %v2183 = vshll.u32 %v1583, 16
        %v2185 = vrot.slane %v2183, 1
        %v2186 = vsel %vm1594, %v2181, %v2185
        %v2187 = vshrl.u32 %v1583, 16
        %v2189 = vor.u32 %v2187, %v2185
        %v2191 = vshll.u32 %v1584, 16
        %v2193 = vrot.slane %v2191, 1
        %v2194 = vsel %vm1594, %v2189, %v2193
        %v2196 = vshrl.u32 %v1585, 16
        %v2198 = vshll.u32 %v1585, 16
        %v2200 = vrot.slane %v2198, 1
        %v2201 = vor.u32 %v2196, %v2200
        %v2203 = vshll.u32 %v1586, 16
        %v2205 = vrot.slane %v2203, 1
        %v2206 = vsel %vm1594, %v2201, %v2205
        %v2207 = vshrl.u32 %v1586, 16
        %v2209 = vor.u32 %v2207, %v2205
        %v2211 = vshll.u32 %v1587, 16
        %v2213 = vrot.slane %v2211, 1
        %v2214 = vsel %vm1594, %v2209, %v2213
        %v2216 = vshrl.u32 %v1588, 16
        %v2218 = vshll.u32 %v1588, 16
        %v2220 = vrot.slane %v2218, 1
        %v2221 = vor.u32 %v2216, %v2220
        %v2223 = vshll.u32 %v1589, 16
        %v2225 = vrot.slane %v2223, 1
        %v2226 = vsel %vm1594, %v2221, %v2225
        %v2227 = vshrl.u32 %v1589, 16
        %v2229 = vor.u32 %v2227, %v2225
        %v2231 = vshll.u32 %v1590, 16
        %v2233 = vrot.slane %v2231, 1
        %v2234 = vsel %vm1594, %v2229, %v2233
        %2235 = vrot.lane.b32.xlu0 %v1606, 8
        %v2236 = vpop.permute.xlu0 %2235
        %2237 = vrot.lane.b32.xlu0 %v1614, 8
        %v2238 = vpop.permute.xlu0 %2237
        %2239 = vrot.lane.b32.xlu0 %v1626, 8
        %v2240 = vpop.permute.xlu0 %2239
        %2241 = vrot.lane.b32.xlu0 %v1634, 8
        %v2242 = vpop.permute.xlu0 %2241
        %2243 = vrot.lane.b32.xlu0 %v1646, 8
        %v2244 = vpop.permute.xlu0 %2243
        %2245 = vrot.lane.b32.xlu0 %v1654, 8
        %v2246 = vpop.permute.xlu0 %2245
        %2247 = vrot.lane.b32.xlu0 %v1666, 8
        %v2248 = vpop.permute.xlu0 %2247
        %2249 = vrot.lane.b32.xlu0 %v1674, 8
        %v2250 = vpop.permute.xlu0 %2249
        %2251 = vrot.lane.b32.xlu0 %v1686, 8
        %v2252 = vpop.permute.xlu0 %2251
        %2253 = vrot.lane.b32.xlu0 %v1694, 8
        %v2254 = vpop.permute.xlu0 %2253
        %2255 = vrot.lane.b32.xlu0 %v1706, 8
        %v2256 = vpop.permute.xlu0 %2255
        %2257 = vrot.lane.b32.xlu0 %v1714, 8
        %v2258 = vpop.permute.xlu0 %2257
        %2259 = vrot.lane.b32.xlu0 %v1726, 8
        %v2260 = vpop.permute.xlu0 %2259
        %2261 = vrot.lane.b32.xlu0 %v1734, 8
        %v2262 = vpop.permute.xlu0 %2261
        %2263 = vrot.lane.b32.xlu0 %v1746, 8
        %v2264 = vpop.permute.xlu0 %2263
        %2265 = vrot.lane.b32.xlu0 %v1754, 8
        %v2266 = vpop.permute.xlu0 %2265
        %2267 = vrot.lane.b32.xlu0 %v1766, 8
        %v2268 = vpop.permute.xlu0 %2267
        %2269 = vrot.lane.b32.xlu0 %v1774, 8
        %v2270 = vpop.permute.xlu0 %2269
        %2271 = vrot.lane.b32.xlu0 %v1786, 8
        %v2272 = vpop.permute.xlu0 %2271
        %2273 = vrot.lane.b32.xlu0 %v1794, 8
        %v2274 = vpop.permute.xlu0 %2273
        %2275 = vrot.lane.b32.xlu0 %v1806, 8
        %v2276 = vpop.permute.xlu0 %2275
        %2277 = vrot.lane.b32.xlu0 %v1814, 8
        %v2278 = vpop.permute.xlu0 %2277
        %2279 = vrot.lane.b32.xlu0 %v1826, 8
        %v2280 = vpop.permute.xlu0 %2279
        %2281 = vrot.lane.b32.xlu0 %v1834, 8
        %v2282 = vpop.permute.xlu0 %2281
        %2283 = vrot.lane.b32.xlu0 %v1846, 8
        %v2284 = vpop.permute.xlu0 %2283
        %2285 = vrot.lane.b32.xlu0 %v1854, 8
        %v2286 = vpop.permute.xlu0 %2285
        %2287 = vrot.lane.b32.xlu0 %v1866, 8
        %v2288 = vpop.permute.xlu0 %2287
        %2289 = vrot.lane.b32.xlu0 %v1874, 8
        %v2290 = vpop.permute.xlu0 %2289
        %2291 = vrot.lane.b32.xlu0 %v1886, 8
        %v2292 = vpop.permute.xlu0 %2291
        %2293 = vrot.lane.b32.xlu0 %v1894, 8
        %v2294 = vpop.permute.xlu0 %2293
        %2295 = vrot.lane.b32.xlu0 %v1906, 8
        %v2296 = vpop.permute.xlu0 %2295
        %2297 = vrot.lane.b32.xlu0 %v1914, 8
        %v2298 = vpop.permute.xlu0 %2297
        %2299 = vrot.lane.b32.xlu0 %v1926, 8
        %v2300 = vpop.permute.xlu0 %2299
        %2301 = vrot.lane.b32.xlu0 %v1934, 8
        %v2302 = vpop.permute.xlu0 %2301
        %2303 = vrot.lane.b32.xlu0 %v1946, 8
        %v2304 = vpop.permute.xlu0 %2303
        %2305 = vrot.lane.b32.xlu0 %v1954, 8
        %v2306 = vpop.permute.xlu0 %2305
        %2307 = vrot.lane.b32.xlu0 %v1966, 8
        %v2308 = vpop.permute.xlu0 %2307
        %2309 = vrot.lane.b32.xlu0 %v1974, 8
        %v2310 = vpop.permute.xlu0 %2309
        %2311 = vrot.lane.b32.xlu0 %v1986, 8
        %v2312 = vpop.permute.xlu0 %2311
        %2313 = vrot.lane.b32.xlu0 %v1994, 8
        %v2314 = vpop.permute.xlu0 %2313
        %2315 = vrot.lane.b32.xlu0 %v2006, 8
        %v2316 = vpop.permute.xlu0 %2315
        %2317 = vrot.lane.b32.xlu0 %v2014, 8
        %v2318 = vpop.permute.xlu0 %2317
        %2319 = vrot.lane.b32.xlu0 %v2026, 8
        %v2320 = vpop.permute.xlu0 %2319
        %2321 = vrot.lane.b32.xlu0 %v2034, 8
        %v2322 = vpop.permute.xlu0 %2321
        %2323 = vrot.lane.b32.xlu0 %v2046, 8
        %v2324 = vpop.permute.xlu0 %2323
        %2325 = vrot.lane.b32.xlu0 %v2054, 8
        %v2326 = vpop.permute.xlu0 %2325
        %2327 = vrot.lane.b32.xlu0 %v2066, 8
        %v2328 = vpop.permute.xlu0 %2327
        %2329 = vrot.lane.b32.xlu0 %v2074, 8
        %v2330 = vpop.permute.xlu0 %2329
        %2331 = vrot.lane.b32.xlu0 %v2086, 8
        %v2332 = vpop.permute.xlu0 %2331
        %2333 = vrot.lane.b32.xlu0 %v2094, 8
        %v2334 = vpop.permute.xlu0 %2333
        %2335 = vrot.lane.b32.xlu0 %v2106, 8
        %v2336 = vpop.permute.xlu0 %2335
        %2337 = vrot.lane.b32.xlu0 %v2114, 8
        %v2338 = vpop.permute.xlu0 %2337
        %2339 = vrot.lane.b32.xlu0 %v2126, 8
        %v2340 = vpop.permute.xlu0 %2339
        %2341 = vrot.lane.b32.xlu0 %v2134, 8
        %v2342 = vpop.permute.xlu0 %2341
        %2343 = vrot.lane.b32.xlu0 %v2146, 8
        %v2344 = vpop.permute.xlu0 %2343
        %2345 = vrot.lane.b32.xlu0 %v2154, 8
        %v2346 = vpop.permute.xlu0 %2345
        %2347 = vrot.lane.b32.xlu0 %v2166, 8
        %v2348 = vpop.permute.xlu0 %2347
        %2349 = vrot.lane.b32.xlu0 %v2174, 8
        %v2350 = vpop.permute.xlu0 %2349
        %2351 = vrot.lane.b32.xlu0 %v2186, 8
        %v2352 = vpop.permute.xlu0 %2351
        %2353 = vrot.lane.b32.xlu0 %v2194, 8
        %v2354 = vpop.permute.xlu0 %2353
        %2355 = vrot.lane.b32.xlu0 %v2206, 8
        %v2356 = vpop.permute.xlu0 %2355
        %2357 = vrot.lane.b32.xlu0 %v2214, 8
        %v2358 = vpop.permute.xlu0 %2357
        %2359 = vrot.lane.b32.xlu0 %v2226, 8
        %v2360 = vpop.permute.xlu0 %2359
        %2361 = vrot.lane.b32.xlu0 %v2234, 8
        %v2362 = vpop.permute.xlu0 %2361
        %2427 = vrot.lane.b32.xlu0 %v1498, 16
        %v2428 = vpop.permute.xlu0 %2427
        %2429 = vrot.lane.b32.xlu0 %v1499, 16
        %v2430 = vpop.permute.xlu0 %2429
        %2431 = vrot.lane.b32.xlu0 %v1501, 16
        %v2432 = vpop.permute.xlu0 %2431
        %2433 = vrot.lane.b32.xlu0 %v1502, 16
        %v2434 = vpop.permute.xlu0 %2433
        %2435 = vrot.lane.b32.xlu0 %v1504, 16
        %v2436 = vpop.permute.xlu0 %2435
        %2437 = vrot.lane.b32.xlu0 %v1505, 16
        %v2438 = vpop.permute.xlu0 %2437
        %2439 = vrot.lane.b32.xlu0 %v1507, 16
        %v2440 = vpop.permute.xlu0 %2439
        %2441 = vrot.lane.b32.xlu0 %v1508, 16
        %v2442 = vpop.permute.xlu0 %2441
        %2443 = vrot.lane.b32.xlu0 %v1510, 16
        %v2444 = vpop.permute.xlu0 %2443
        %2445 = vrot.lane.b32.xlu0 %v1511, 16
        %v2446 = vpop.permute.xlu0 %2445
        %2447 = vrot.lane.b32.xlu0 %v1513, 16
        %v2448 = vpop.permute.xlu0 %2447
        %2449 = vrot.lane.b32.xlu0 %v1514, 16
        %v2450 = vpop.permute.xlu0 %2449
        %2451 = vrot.lane.b32.xlu0 %v1516, 16
        %v2452 = vpop.permute.xlu0 %2451
        %2453 = vrot.lane.b32.xlu0 %v1517, 16
        %v2454 = vpop.permute.xlu0 %2453
        %2455 = vrot.lane.b32.xlu0 %v1519, 16
        %v2456 = vpop.permute.xlu0 %2455
        %2457 = vrot.lane.b32.xlu0 %v1520, 16
        %v2458 = vpop.permute.xlu0 %2457
        %2459 = vrot.lane.b32.xlu0 %v1522, 16
        %v2460 = vpop.permute.xlu0 %2459
        %2461 = vrot.lane.b32.xlu0 %v1523, 16
        %v2462 = vpop.permute.xlu0 %2461
        %2463 = vrot.lane.b32.xlu0 %v1525, 16
        %v2464 = vpop.permute.xlu0 %2463
        %2465 = vrot.lane.b32.xlu0 %v1526, 16
        %v2466 = vpop.permute.xlu0 %2465
        %2467 = vrot.lane.b32.xlu0 %v1528, 16
        %v2468 = vpop.permute.xlu0 %2467
        %2469 = vrot.lane.b32.xlu0 %v1529, 16
        %v2470 = vpop.permute.xlu0 %2469
        %2471 = vrot.lane.b32.xlu0 %v1531, 16
        %v2472 = vpop.permute.xlu0 %2471
        %2473 = vrot.lane.b32.xlu0 %v1532, 16
        %v2474 = vpop.permute.xlu0 %2473
        %2475 = vrot.lane.b32.xlu0 %v1534, 16
        %v2476 = vpop.permute.xlu0 %2475
        %2477 = vrot.lane.b32.xlu0 %v1535, 16
        %v2478 = vpop.permute.xlu0 %2477
        %2479 = vrot.lane.b32.xlu0 %v1537, 16
        %v2480 = vpop.permute.xlu0 %2479
        %2481 = vrot.lane.b32.xlu0 %v1538, 16
        %v2482 = vpop.permute.xlu0 %2481
        %2483 = vrot.lane.b32.xlu0 %v1540, 16
        %v2484 = vpop.permute.xlu0 %2483
        %2485 = vrot.lane.b32.xlu0 %v1541, 16
        %v2486 = vpop.permute.xlu0 %2485
        %2487 = vrot.lane.b32.xlu0 %v1543, 16
        %v2488 = vpop.permute.xlu0 %2487
        %2489 = vrot.lane.b32.xlu0 %v1544, 16
        %v2490 = vpop.permute.xlu0 %2489
        %2491 = vrot.lane.b32.xlu0 %v1546, 16
        %v2492 = vpop.permute.xlu0 %2491
        %2493 = vrot.lane.b32.xlu0 %v1547, 16
        %v2494 = vpop.permute.xlu0 %2493
        %2495 = vrot.lane.b32.xlu0 %v1549, 16
        %v2496 = vpop.permute.xlu0 %2495
        %2497 = vrot.lane.b32.xlu0 %v1550, 16
        %v2498 = vpop.permute.xlu0 %2497
        %2499 = vrot.lane.b32.xlu0 %v1552, 16
        %v2500 = vpop.permute.xlu0 %2499
        %2501 = vrot.lane.b32.xlu0 %v1553, 16
        %v2502 = vpop.permute.xlu0 %2501
        %2503 = vrot.lane.b32.xlu0 %v1555, 16
        %v2504 = vpop.permute.xlu0 %2503
        %2505 = vrot.lane.b32.xlu0 %v1556, 16
        %v2506 = vpop.permute.xlu0 %2505
        %2507 = vrot.lane.b32.xlu0 %v1558, 16
        %v2508 = vpop.permute.xlu0 %2507
        %2509 = vrot.lane.b32.xlu0 %v1559, 16
        %v2510 = vpop.permute.xlu0 %2509
        %2511 = vrot.lane.b32.xlu0 %v1561, 16
        %v2512 = vpop.permute.xlu0 %2511
        %2513 = vrot.lane.b32.xlu0 %v1562, 16
        %v2514 = vpop.permute.xlu0 %2513
        %2515 = vrot.lane.b32.xlu0 %v1564, 16
        %v2516 = vpop.permute.xlu0 %2515
        %2517 = vrot.lane.b32.xlu0 %v1565, 16
        %v2518 = vpop.permute.xlu0 %2517
        %2519 = vrot.lane.b32.xlu0 %v1567, 16
        %v2520 = vpop.permute.xlu0 %2519
        %2521 = vrot.lane.b32.xlu0 %v1568, 16
        %v2522 = vpop.permute.xlu0 %2521
        %2523 = vrot.lane.b32.xlu0 %v1570, 16
        %v2524 = vpop.permute.xlu0 %2523
        %2525 = vrot.lane.b32.xlu0 %v1571, 16
        %v2526 = vpop.permute.xlu0 %2525
        %2527 = vrot.lane.b32.xlu0 %v1573, 16
        %v2528 = vpop.permute.xlu0 %2527
        %2529 = vrot.lane.b32.xlu0 %v1574, 16
        %v2530 = vpop.permute.xlu0 %2529
        %2531 = vrot.lane.b32.xlu0 %v1576, 16
        %v2532 = vpop.permute.xlu0 %2531
        %2533 = vrot.lane.b32.xlu0 %v1577, 16
        %v2534 = vpop.permute.xlu0 %2533
        %2535 = vrot.lane.b32.xlu0 %v1579, 16
        %v2536 = vpop.permute.xlu0 %2535
        %2537 = vrot.lane.b32.xlu0 %v1580, 16
        %v2538 = vpop.permute.xlu0 %2537
        %2539 = vrot.lane.b32.xlu0 %v1582, 16
        %v2540 = vpop.permute.xlu0 %2539
        %2541 = vrot.lane.b32.xlu0 %v1583, 16
        %v2542 = vpop.permute.xlu0 %2541
        %2543 = vrot.lane.b32.xlu0 %v1585, 16
        %v2544 = vpop.permute.xlu0 %2543
        %2545 = vrot.lane.b32.xlu0 %v1586, 16
        %v2546 = vpop.permute.xlu0 %2545
        %2547 = vrot.lane.b32.xlu0 %v1588, 16
        %v2548 = vpop.permute.xlu0 %2547
        %2549 = vrot.lane.b32.xlu0 %v1589, 16
        %v2550 = vpop.permute.xlu0 %2549
        %2551 = vrot.lane.b32.xlu0 %v1591, 16
        %v2552 = vpop.permute.xlu0 %2551
        %2553 = vrot.lane.b32.xlu0 %v1592, 16
        %v2554 = vpop.permute.xlu0 %2553
        %v2556 = vshrl.u32 %v1591, 16
        %v2558 = vshll.u32 %v1591, 16
        %v2560 = vrot.slane %v2558, 1
        %v2561 = vor.u32 %v2556, %v2560
        %v2563 = vshll.u32 %v1592, 16
        %v2565 = vrot.slane %v2563, 1
        %v2566 = vsel %vm1594, %v2561, %v2565
        %v2567 = vshrl.u32 %v1592, 16
        %v2569 = vor.u32 %v2567, %v2565
        %v2571 = vshll.u32 %v1593, 16
        %v2573 = vrot.slane %v2571, 1
        %v2574 = vsel %vm1594, %v2569, %v2573
        %2575 = vrot.lane.b32.xlu0 %v1626, 24
        %v2576 = vpop.permute.xlu0 %2575
        %2577 = vrot.lane.b32.xlu0 %v1634, 24
        %v2578 = vpop.permute.xlu0 %2577
        %2579 = vrot.lane.b32.xlu0 %v1646, 24
        %v2580 = vpop.permute.xlu0 %2579
        %2581 = vrot.lane.b32.xlu0 %v1654, 24
        %v2582 = vpop.permute.xlu0 %2581
        %2583 = vrot.lane.b32.xlu0 %v1666, 24
        %v2584 = vpop.permute.xlu0 %2583
        %2585 = vrot.lane.b32.xlu0 %v1674, 24
        %v2586 = vpop.permute.xlu0 %2585
        %2587 = vrot.lane.b32.xlu0 %v1686, 24
        %v2588 = vpop.permute.xlu0 %2587
        %2589 = vrot.lane.b32.xlu0 %v1694, 24
        %v2590 = vpop.permute.xlu0 %2589
        %2591 = vrot.lane.b32.xlu0 %v1706, 24
        %v2592 = vpop.permute.xlu0 %2591
        %2593 = vrot.lane.b32.xlu0 %v1714, 24
        %v2594 = vpop.permute.xlu0 %2593
        %2595 = vrot.lane.b32.xlu0 %v1726, 24
        %v2596 = vpop.permute.xlu0 %2595
        %2597 = vrot.lane.b32.xlu0 %v1734, 24
        %v2598 = vpop.permute.xlu0 %2597
        %2599 = vrot.lane.b32.xlu0 %v1746, 24
        %v2600 = vpop.permute.xlu0 %2599
        %2601 = vrot.lane.b32.xlu0 %v1754, 24
        %v2602 = vpop.permute.xlu0 %2601
        %2603 = vrot.lane.b32.xlu0 %v1766, 24
        %v2604 = vpop.permute.xlu0 %2603
        %2605 = vrot.lane.b32.xlu0 %v1774, 24
        %v2606 = vpop.permute.xlu0 %2605
        %2607 = vrot.lane.b32.xlu0 %v1786, 24
        %v2608 = vpop.permute.xlu0 %2607
        %2609 = vrot.lane.b32.xlu0 %v1794, 24
        %v2610 = vpop.permute.xlu0 %2609
        %2611 = vrot.lane.b32.xlu0 %v1806, 24
        %v2612 = vpop.permute.xlu0 %2611
        %2613 = vrot.lane.b32.xlu0 %v1814, 24
        %v2614 = vpop.permute.xlu0 %2613
        %2615 = vrot.lane.b32.xlu0 %v1826, 24
        %v2616 = vpop.permute.xlu0 %2615
        %2617 = vrot.lane.b32.xlu0 %v1834, 24
        %v2618 = vpop.permute.xlu0 %2617
        %2619 = vrot.lane.b32.xlu0 %v1846, 24
        %v2620 = vpop.permute.xlu0 %2619
        %2621 = vrot.lane.b32.xlu0 %v1854, 24
        %v2622 = vpop.permute.xlu0 %2621
        %2623 = vrot.lane.b32.xlu0 %v1866, 24
        %v2624 = vpop.permute.xlu0 %2623
        %2625 = vrot.lane.b32.xlu0 %v1874, 24
        %v2626 = vpop.permute.xlu0 %2625
        %2627 = vrot.lane.b32.xlu0 %v1886, 24
        %v2628 = vpop.permute.xlu0 %2627
        %2629 = vrot.lane.b32.xlu0 %v1894, 24
        %v2630 = vpop.permute.xlu0 %2629
        %2631 = vrot.lane.b32.xlu0 %v1906, 24
        %v2632 = vpop.permute.xlu0 %2631
        %2633 = vrot.lane.b32.xlu0 %v1914, 24
        %v2634 = vpop.permute.xlu0 %2633
        %2635 = vrot.lane.b32.xlu0 %v1926, 24
        %v2636 = vpop.permute.xlu0 %2635
        %2637 = vrot.lane.b32.xlu0 %v1934, 24
        %v2638 = vpop.permute.xlu0 %2637
        %2639 = vrot.lane.b32.xlu0 %v1946, 24
        %v2640 = vpop.permute.xlu0 %2639
        %2641 = vrot.lane.b32.xlu0 %v1954, 24
        %v2642 = vpop.permute.xlu0 %2641
        %2643 = vrot.lane.b32.xlu0 %v1966, 24
        %v2644 = vpop.permute.xlu0 %2643
        %2645 = vrot.lane.b32.xlu0 %v1974, 24
        %v2646 = vpop.permute.xlu0 %2645
        %2647 = vrot.lane.b32.xlu0 %v1986, 24
        %v2648 = vpop.permute.xlu0 %2647
        %2649 = vrot.lane.b32.xlu0 %v1994, 24
        %v2650 = vpop.permute.xlu0 %2649
        %2651 = vrot.lane.b32.xlu0 %v2006, 24
        %v2652 = vpop.permute.xlu0 %2651
        %2653 = vrot.lane.b32.xlu0 %v2014, 24
        %v2654 = vpop.permute.xlu0 %2653
        %2655 = vrot.lane.b32.xlu0 %v2026, 24
        %v2656 = vpop.permute.xlu0 %2655
        %2657 = vrot.lane.b32.xlu0 %v2034, 24
        %v2658 = vpop.permute.xlu0 %2657
        %2659 = vrot.lane.b32.xlu0 %v2046, 24
        %v2660 = vpop.permute.xlu0 %2659
        %2661 = vrot.lane.b32.xlu0 %v2054, 24
        %v2662 = vpop.permute.xlu0 %2661
        %2663 = vrot.lane.b32.xlu0 %v2066, 24
        %v2664 = vpop.permute.xlu0 %2663
        %2665 = vrot.lane.b32.xlu0 %v2074, 24
        %v2666 = vpop.permute.xlu0 %2665
        %2667 = vrot.lane.b32.xlu0 %v2086, 24
        %v2668 = vpop.permute.xlu0 %2667
        %2669 = vrot.lane.b32.xlu0 %v2094, 24
        %v2670 = vpop.permute.xlu0 %2669
        %2671 = vrot.lane.b32.xlu0 %v2106, 24
        %v2672 = vpop.permute.xlu0 %2671
        %2673 = vrot.lane.b32.xlu0 %v2114, 24
        %v2674 = vpop.permute.xlu0 %2673
        %2675 = vrot.lane.b32.xlu0 %v2126, 24
        %v2676 = vpop.permute.xlu0 %2675
        %2677 = vrot.lane.b32.xlu0 %v2134, 24
        %v2678 = vpop.permute.xlu0 %2677
        %2679 = vrot.lane.b32.xlu0 %v2146, 24
        %v2680 = vpop.permute.xlu0 %2679
        %2681 = vrot.lane.b32.xlu0 %v2154, 24
        %v2682 = vpop.permute.xlu0 %2681
        %2683 = vrot.lane.b32.xlu0 %v2166, 24
        %v2684 = vpop.permute.xlu0 %2683
        %2685 = vrot.lane.b32.xlu0 %v2174, 24
        %v2686 = vpop.permute.xlu0 %2685
        %2687 = vrot.lane.b32.xlu0 %v2186, 24
        %v2688 = vpop.permute.xlu0 %2687
        %2689 = vrot.lane.b32.xlu0 %v2194, 24
        %v2690 = vpop.permute.xlu0 %2689
        %2691 = vrot.lane.b32.xlu0 %v2206, 24
        %v2692 = vpop.permute.xlu0 %2691
        %2693 = vrot.lane.b32.xlu0 %v2214, 24
        %v2694 = vpop.permute.xlu0 %2693
        %2695 = vrot.lane.b32.xlu0 %v2226, 24
        %v2696 = vpop.permute.xlu0 %2695
        %2697 = vrot.lane.b32.xlu0 %v2234, 24
        %v2698 = vpop.permute.xlu0 %2697
        %2699 = vrot.lane.b32.xlu0 %v2566, 24
        %v2700 = vpop.permute.xlu0 %2699
        %2701 = vrot.lane.b32.xlu0 %v2574, 24
        %v2702 = vpop.permute.xlu0 %2701
        %vm2703 = vcmask 64512
        %v2705 = vsel %vm2703, %v1495, %v2236
        %v2707 = vsel %vm2703, %v1496, %v2238
        %v2709 = vsel %vm2703, %v1498, %v2240
        %v2711 = vsel %vm2703, %v1499, %v2242
        %v2713 = vsel %vm2703, %v1501, %v2244
        %v2715 = vsel %vm2703, %v1502, %v2246
        %v2717 = vsel %vm2703, %v1504, %v2248
        %v2719 = vsel %vm2703, %v1505, %v2250
        %v2721 = vsel %vm2703, %v1507, %v2252
        %v2723 = vsel %vm2703, %v1508, %v2254
        %v2725 = vsel %vm2703, %v1510, %v2256
        %v2727 = vsel %vm2703, %v1511, %v2258
        %v2729 = vsel %vm2703, %v1513, %v2260
        %v2731 = vsel %vm2703, %v1514, %v2262
        %v2733 = vsel %vm2703, %v1516, %v2264
        %v2735 = vsel %vm2703, %v1517, %v2266
        %v2737 = vsel %vm2703, %v1519, %v2268
        %v2739 = vsel %vm2703, %v1520, %v2270
        %v2741 = vsel %vm2703, %v1522, %v2272
        %v2743 = vsel %vm2703, %v1523, %v2274
        %v2745 = vsel %vm2703, %v1525, %v2276
        %v2747 = vsel %vm2703, %v1526, %v2278
        %v2749 = vsel %vm2703, %v1528, %v2280
        %v2751 = vsel %vm2703, %v1529, %v2282
        %v2753 = vsel %vm2703, %v1531, %v2284
        %v2755 = vsel %vm2703, %v1532, %v2286
        %v2757 = vsel %vm2703, %v1534, %v2288
        %v2759 = vsel %vm2703, %v1535, %v2290
        %v2761 = vsel %vm2703, %v1537, %v2292
        %v2763 = vsel %vm2703, %v1538, %v2294
        %v2765 = vsel %vm2703, %v1540, %v2296
        %v2767 = vsel %vm2703, %v1541, %v2298
        %v2769 = vsel %vm2703, %v1543, %v2300
        %v2771 = vsel %vm2703, %v1544, %v2302
        %v2773 = vsel %vm2703, %v1546, %v2304
        %v2775 = vsel %vm2703, %v1547, %v2306
        %v2777 = vsel %vm2703, %v1549, %v2308
        %v2779 = vsel %vm2703, %v1550, %v2310
        %v2781 = vsel %vm2703, %v1552, %v2312
        %v2783 = vsel %vm2703, %v1553, %v2314
        %v2785 = vsel %vm2703, %v1555, %v2316
        %v2787 = vsel %vm2703, %v1556, %v2318
        %v2789 = vsel %vm2703, %v1558, %v2320
        %v2791 = vsel %vm2703, %v1559, %v2322
        %v2793 = vsel %vm2703, %v1561, %v2324
        %v2795 = vsel %vm2703, %v1562, %v2326
        %v2797 = vsel %vm2703, %v1564, %v2328
        %v2799 = vsel %vm2703, %v1565, %v2330
        %v2801 = vsel %vm2703, %v1567, %v2332
        %v2803 = vsel %vm2703, %v1568, %v2334
        %v2805 = vsel %vm2703, %v1570, %v2336
        %v2807 = vsel %vm2703, %v1571, %v2338
        %v2809 = vsel %vm2703, %v1573, %v2340
        %v2811 = vsel %vm2703, %v1574, %v2342
        %v2813 = vsel %vm2703, %v1576, %v2344
        %v2815 = vsel %vm2703, %v1577, %v2346
        %v2817 = vsel %vm2703, %v1579, %v2348
        %v2819 = vsel %vm2703, %v1580, %v2350
        %v2821 = vsel %vm2703, %v1582, %v2352
        %v2823 = vsel %vm2703, %v1583, %v2354
        %v2825 = vsel %vm2703, %v1585, %v2356
        %v2827 = vsel %vm2703, %v1586, %v2358
        %v2829 = vsel %vm2703, %v1588, %v2360
        %v2831 = vsel %vm2703, %v1589, %v2362
        %vm2832 = vcmask 130048
        %v2834 = vsel %vm2832, %v2705, %v2428
        %v2836 = vsel %vm2832, %v2707, %v2430
        %v2838 = vsel %vm2832, %v2709, %v2432
        %v2840 = vsel %vm2832, %v2711, %v2434
        %v2842 = vsel %vm2832, %v2713, %v2436
        %v2844 = vsel %vm2832, %v2715, %v2438
        %v2846 = vsel %vm2832, %v2717, %v2440
        %v2848 = vsel %vm2832, %v2719, %v2442
        %v2850 = vsel %vm2832, %v2721, %v2444
        %v2852 = vsel %vm2832, %v2723, %v2446
        %v2854 = vsel %vm2832, %v2725, %v2448
        %v2856 = vsel %vm2832, %v2727, %v2450
        %v2858 = vsel %vm2832, %v2729, %v2452
        %v2860 = vsel %vm2832, %v2731, %v2454
        %v2862 = vsel %vm2832, %v2733, %v2456
        %v2864 = vsel %vm2832, %v2735, %v2458
        %v2866 = vsel %vm2832, %v2737, %v2460
        %v2868 = vsel %vm2832, %v2739, %v2462
        %v2870 = vsel %vm2832, %v2741, %v2464
        %v2872 = vsel %vm2832, %v2743, %v2466
        %v2874 = vsel %vm2832, %v2745, %v2468
        %v2876 = vsel %vm2832, %v2747, %v2470
        %v2878 = vsel %vm2832, %v2749, %v2472
        %v2880 = vsel %vm2832, %v2751, %v2474
        %v2882 = vsel %vm2832, %v2753, %v2476
        %v2884 = vsel %vm2832, %v2755, %v2478
        %v2886 = vsel %vm2832, %v2757, %v2480
        %v2888 = vsel %vm2832, %v2759, %v2482
        %v2890 = vsel %vm2832, %v2761, %v2484
        %v2892 = vsel %vm2832, %v2763, %v2486
        %v2894 = vsel %vm2832, %v2765, %v2488
        %v2896 = vsel %vm2832, %v2767, %v2490
        %v2898 = vsel %vm2832, %v2769, %v2492
        %v2900 = vsel %vm2832, %v2771, %v2494
        %v2902 = vsel %vm2832, %v2773, %v2496
        %v2904 = vsel %vm2832, %v2775, %v2498
        %v2906 = vsel %vm2832, %v2777, %v2500
        %v2908 = vsel %vm2832, %v2779, %v2502
        %v2910 = vsel %vm2832, %v2781, %v2504
        %v2912 = vsel %vm2832, %v2783, %v2506
        %v2914 = vsel %vm2832, %v2785, %v2508
        %v2916 = vsel %vm2832, %v2787, %v2510
        %v2918 = vsel %vm2832, %v2789, %v2512
        %v2920 = vsel %vm2832, %v2791, %v2514
        %v2922 = vsel %vm2832, %v2793, %v2516
        %v2924 = vsel %vm2832, %v2795, %v2518
        %v2926 = vsel %vm2832, %v2797, %v2520
        %v2928 = vsel %vm2832, %v2799, %v2522
        %v2930 = vsel %vm2832, %v2801, %v2524
        %v2932 = vsel %vm2832, %v2803, %v2526
        %v2934 = vsel %vm2832, %v2805, %v2528
        %v2936 = vsel %vm2832, %v2807, %v2530
        %v2938 = vsel %vm2832, %v2809, %v2532
        %v2940 = vsel %vm2832, %v2811, %v2534
        %v2942 = vsel %vm2832, %v2813, %v2536
        %v2944 = vsel %vm2832, %v2815, %v2538
        %v2946 = vsel %vm2832, %v2817, %v2540
        %v2948 = vsel %vm2832, %v2819, %v2542
        %v2950 = vsel %vm2832, %v2821, %v2544
        %v2952 = vsel %vm2832, %v2823, %v2546
        %v2954 = vsel %vm2832, %v2825, %v2548
        %v2956 = vsel %vm2832, %v2827, %v2550
        %v2958 = vsel %vm2832, %v2829, %v2552
        %v2960 = vsel %vm2832, %v2831, %v2554
        %vm2961 = vcmask 195584
        %v2963 = vsel %vm2961, %v2834, %v2576
        %v2965 = vsel %vm2961, %v2836, %v2578
        %v2967 = vsel %vm2961, %v2838, %v2580
        %v2969 = vsel %vm2961, %v2840, %v2582
        %v2971 = vsel %vm2961, %v2842, %v2584
        %v2973 = vsel %vm2961, %v2844, %v2586
        %v2975 = vsel %vm2961, %v2846, %v2588
        %v2977 = vsel %vm2961, %v2848, %v2590
        %v2979 = vsel %vm2961, %v2850, %v2592
        %v2981 = vsel %vm2961, %v2852, %v2594
        %v2983 = vsel %vm2961, %v2854, %v2596
        %v2985 = vsel %vm2961, %v2856, %v2598
        %v2987 = vsel %vm2961, %v2858, %v2600
        %v2989 = vsel %vm2961, %v2860, %v2602
        %v2991 = vsel %vm2961, %v2862, %v2604
        %v2993 = vsel %vm2961, %v2864, %v2606
        %v2995 = vsel %vm2961, %v2866, %v2608
        %v2997 = vsel %vm2961, %v2868, %v2610
        %v2999 = vsel %vm2961, %v2870, %v2612
        %v3001 = vsel %vm2961, %v2872, %v2614
        %v3003 = vsel %vm2961, %v2874, %v2616
        %v3005 = vsel %vm2961, %v2876, %v2618
        %v3007 = vsel %vm2961, %v2878, %v2620
        %v3009 = vsel %vm2961, %v2880, %v2622
        %v3011 = vsel %vm2961, %v2882, %v2624
        %v3013 = vsel %vm2961, %v2884, %v2626
        %v3015 = vsel %vm2961, %v2886, %v2628
        %v3017 = vsel %vm2961, %v2888, %v2630
        %v3019 = vsel %vm2961, %v2890, %v2632
        %v3021 = vsel %vm2961, %v2892, %v2634
        %v3023 = vsel %vm2961, %v2894, %v2636
        %v3025 = vsel %vm2961, %v2896, %v2638
        %v3027 = vsel %vm2961, %v2898, %v2640
        %v3029 = vsel %vm2961, %v2900, %v2642
        %v3031 = vsel %vm2961, %v2902, %v2644
        %v3033 = vsel %vm2961, %v2904, %v2646
        %v3035 = vsel %vm2961, %v2906, %v2648
        %v3037 = vsel %vm2961, %v2908, %v2650
        %v3039 = vsel %vm2961, %v2910, %v2652
        %v3041 = vsel %vm2961, %v2912, %v2654
        %v3043 = vsel %vm2961, %v2914, %v2656
        %v3045 = vsel %vm2961, %v2916, %v2658
        %v3047 = vsel %vm2961, %v2918, %v2660
        %v3049 = vsel %vm2961, %v2920, %v2662
        %v3051 = vsel %vm2961, %v2922, %v2664
        %v3053 = vsel %vm2961, %v2924, %v2666
        %v3055 = vsel %vm2961, %v2926, %v2668
        %v3057 = vsel %vm2961, %v2928, %v2670
        %v3059 = vsel %vm2961, %v2930, %v2672
        %v3061 = vsel %vm2961, %v2932, %v2674
        %v3063 = vsel %vm2961, %v2934, %v2676
        %v3065 = vsel %vm2961, %v2936, %v2678
        %v3067 = vsel %vm2961, %v2938, %v2680
        %v3069 = vsel %vm2961, %v2940, %v2682
        %v3071 = vsel %vm2961, %v2942, %v2684
        %v3073 = vsel %vm2961, %v2944, %v2686
        %v3075 = vsel %vm2961, %v2946, %v2688
        %v3077 = vsel %vm2961, %v2948, %v2690
        %v3079 = vsel %vm2961, %v2950, %v2692
        %v3081 = vsel %vm2961, %v2952, %v2694
        %v3083 = vsel %vm2961, %v2954, %v2696
        %v3085 = vsel %vm2961, %v2956, %v2698
        %v3087 = vsel %vm2961, %v2958, %v2700
        %v3089 = vsel %vm2961, %v2960, %v2702
        %v3090 = vld [vmem:[#allocation8] sm:$0x3]
        %vm3091 = vcmask 261120
        %v3093 = vsel %vm3091, %v3090, 0
        %v3095 = vsel %vm3091, %v2963, 0
        %v3097 = vsel %vm3091, %v2965, 0
        %v3099 = vsel %vm3091, %v2967, 0
        %v3101 = vsel %vm3091, %v2969, 0
        %v3103 = vsel %vm3091, %v2971, 0
        %v3105 = vsel %vm3091, %v2973, 0
        %v3107 = vsel %vm3091, %v2975, 0
        %v3109 = vsel %vm3091, %v2977, 0
        %v3111 = vsel %vm3091, %v2979, 0
        %v3113 = vsel %vm3091, %v2981, 0
        %v3115 = vsel %vm3091, %v2983, 0
        %v3117 = vsel %vm3091, %v2985, 0
        %v3119 = vsel %vm3091, %v2987, 0
        %v3121 = vsel %vm3091, %v2989, 0
        %v3123 = vsel %vm3091, %v2991, 0
        %v3125 = vsel %vm3091, %v2993, 0
        %v3127 = vsel %vm3091, %v2995, 0
        %v3129 = vsel %vm3091, %v2997, 0
        %v3131 = vsel %vm3091, %v2999, 0
        %v3133 = vsel %vm3091, %v3001, 0
        %v3135 = vsel %vm3091, %v3003, 0
        %v3137 = vsel %vm3091, %v3005, 0
        %v3139 = vsel %vm3091, %v3007, 0
        %v3141 = vsel %vm3091, %v3009, 0
        %v3143 = vsel %vm3091, %v3011, 0
        %v3145 = vsel %vm3091, %v3013, 0
        %v3147 = vsel %vm3091, %v3015, 0
        %v3149 = vsel %vm3091, %v3017, 0
        %v3151 = vsel %vm3091, %v3019, 0
        %v3153 = vsel %vm3091, %v3021, 0
        %v3155 = vsel %vm3091, %v3023, 0
        %v3157 = vsel %vm3091, %v3025, 0
        %v3159 = vsel %vm3091, %v3027, 0
        %v3161 = vsel %vm3091, %v3029, 0
        %v3163 = vsel %vm3091, %v3031, 0
        %v3165 = vsel %vm3091, %v3033, 0
        %v3167 = vsel %vm3091, %v3035, 0
        %v3169 = vsel %vm3091, %v3037, 0
        %v3171 = vsel %vm3091, %v3039, 0
        %v3173 = vsel %vm3091, %v3041, 0
        %v3175 = vsel %vm3091, %v3043, 0
        %v3177 = vsel %vm3091, %v3045, 0
        %v3179 = vsel %vm3091, %v3047, 0
        %v3181 = vsel %vm3091, %v3049, 0
        %v3183 = vsel %vm3091, %v3051, 0
        %v3185 = vsel %vm3091, %v3053, 0
        %v3187 = vsel %vm3091, %v3055, 0
        %v3189 = vsel %vm3091, %v3057, 0
        %v3191 = vsel %vm3091, %v3059, 0
        %v3193 = vsel %vm3091, %v3061, 0
        %v3195 = vsel %vm3091, %v3063, 0
        %v3197 = vsel %vm3091, %v3065, 0
        %v3199 = vsel %vm3091, %v3067, 0
        %v3201 = vsel %vm3091, %v3069, 0
        %v3203 = vsel %vm3091, %v3071, 0
        %v3205 = vsel %vm3091, %v3073, 0
        %v3207 = vsel %vm3091, %v3075, 0
        %v3209 = vsel %vm3091, %v3077, 0
        %v3211 = vsel %vm3091, %v3079, 0
        %v3213 = vsel %vm3091, %v3081, 0
        %v3215 = vsel %vm3091, %v3083, 0
        %v3217 = vsel %vm3091, %v3085, 0
        %v3219 = vsel %vm3091, %v3087, 0
        %v3221 = vsel %vm3091, %v3089, 0
        %3223 = vmatprep.subr.bf16.mxu0 0
        %3224 = vmatpush1.bf16.xpose.msra.mxu0 %v3095
        %3225 = vmatprep.subr.bf16.mxu0 0
        %3226 = vmatpush1.bf16.xpose.msra.mxu0 %v3097
        %3227 = vmatprep.subr.bf16.mxu0 0
        %3228 = vmatpush1.bf16.xpose.msra.mxu0 %v3099
        %3229 = vmatprep.subr.bf16.mxu0 0
        %3230 = vmatpush1.bf16.xpose.msra.mxu0 %v3101
        %3231 = vmatprep.subr.bf16.mxu0 0
        %3232 = vmatpush1.bf16.xpose.msra.mxu0 %v3103
        %3233 = vmatprep.subr.bf16.mxu0 0
        %3234 = vmatpush1.bf16.xpose.msra.mxu0 %v3105
        %3235 = vmatprep.subr.bf16.mxu0 0
        %3236 = vmatpush1.bf16.xpose.msra.mxu0 %v3107
        %3237 = vmatprep.subr.bf16.mxu0 0
        %3238 = vmatpush1.bf16.xpose.msra.mxu0 %v3109
        %3239 = vmatprep.subr.bf16.mxu0 0
        %3240 = vmatpush1.bf16.xpose.msra.mxu0 %v3111
        %3241 = vmatprep.subr.bf16.mxu0 0
        %3242 = vmatpush1.bf16.xpose.msra.mxu0 %v3113
        %3243 = vmatprep.subr.bf16.mxu0 0
        %3244 = vmatpush1.bf16.xpose.msra.mxu0 %v3115
        %3245 = vmatprep.subr.bf16.mxu0 0
        %3246 = vmatpush1.bf16.xpose.msra.mxu0 %v3117
        %3247 = vmatprep.subr.bf16.mxu0 0
        %3248 = vmatpush1.bf16.xpose.msra.mxu0 %v3119
        %3249 = vmatprep.subr.bf16.mxu0 0
        %3250 = vmatpush1.bf16.xpose.msra.mxu0 %v3121
        %3251 = vmatprep.subr.bf16.mxu0 0
        %3252 = vmatpush1.bf16.xpose.msra.mxu0 %v3123
        %3253 = vmatprep.subr.bf16.mxu0 0
        %3254 = vmatpush1.bf16.xpose.msra.mxu0 %v3125
        %3255 = vmatprep.mubr.bf16.mxu0 0
        %3256 = vmatmul.mubr.bf16.gmra.mrb[0].mxu0 %v3093
        %v3257 = vpop.f32.mrb[0].mxu0
        %v3258 = vadd.f32 0.0, %v3257
        %v3259 = vpop.f32.mrb[0].mxu0
        %v3260 = vadd.f32 0.0, %v3259
        %v3261 = vpop.f32.mrb[0].mxu0
        %v3262 = vpop.f32.mrb[0].mxu0
        %3263 = vdwg.mxu0
        %3264 = vmatprep.subr.bf16.mxu0 0
        %3265 = vmatpush1.bf16.xpose.msra.mxu0 %v3127
        %3266 = vmatprep.subr.bf16.mxu0 0
        %3267 = vmatpush1.bf16.xpose.msra.mxu0 %v3129
        %3268 = vmatprep.subr.bf16.mxu0 0
        %3269 = vmatpush1.bf16.xpose.msra.mxu0 %v3131
        %3270 = vmatprep.subr.bf16.mxu0 0
        %3271 = vmatpush1.bf16.xpose.msra.mxu0 %v3133
        %3272 = vmatprep.subr.bf16.mxu0 0
        %3273 = vmatpush1.bf16.xpose.msra.mxu0 %v3135
        %3274 = vmatprep.subr.bf16.mxu0 0
        %3275 = vmatpush1.bf16.xpose.msra.mxu0 %v3137
        %3276 = vmatprep.subr.bf16.mxu0 0
        %3277 = vmatpush1.bf16.xpose.msra.mxu0 %v3139
        %3278 = vmatprep.subr.bf16.mxu0 0
        %3279 = vmatpush1.bf16.xpose.msra.mxu0 %v3141
        %3280 = vmatprep.subr.bf16.mxu0 0
        %3281 = vmatpush1.bf16.xpose.msra.mxu0 %v3143
        %3282 = vmatprep.subr.bf16.mxu0 0
        %3283 = vmatpush1.bf16.xpose.msra.mxu0 %v3145
        %3284 = vmatprep.subr.bf16.mxu0 0
        %3285 = vmatpush1.bf16.xpose.msra.mxu0 %v3147
        %3286 = vmatprep.subr.bf16.mxu0 0
        %3287 = vmatpush1.bf16.xpose.msra.mxu0 %v3149
        %3288 = vmatprep.subr.bf16.mxu0 0
        %3289 = vmatpush1.bf16.xpose.msra.mxu0 %v3151
        %3290 = vmatprep.subr.bf16.mxu0 0
        %3291 = vmatpush1.bf16.xpose.msra.mxu0 %v3153
        %3292 = vmatprep.subr.bf16.mxu0 0
        %3293 = vmatpush1.bf16.xpose.msra.mxu0 %v3155
        %3294 = vmatprep.subr.bf16.mxu0 0
        %3295 = vmatpush1.bf16.xpose.msra.mxu0 %v3157
        %3296 = vmatprep.mubr.bf16.mxu0 0
        %3297 = vmatmul.mubr.bf16.gmra.mrb[0].mxu0 %v3093
        %v3298 = vpop.f32.mrb[0].mxu0
        %v3299 = vadd.f32 0.0, %v3298
        %v3300 = vpop.f32.mrb[0].mxu0
        %v3301 = vadd.f32 0.0, %v3300
        %v3302 = vpop.f32.mrb[0].mxu0
        %v3303 = vpop.f32.mrb[0].mxu0
        %3304 = vdwg.mxu0
        %3305 = vmatprep.subr.bf16.mxu0 0
        %3306 = vmatpush1.bf16.xpose.msra.mxu0 %v3159
        %3307 = vmatprep.subr.bf16.mxu0 0
        %3308 = vmatpush1.bf16.xpose.msra.mxu0 %v3161
        %3309 = vmatprep.subr.bf16.mxu0 0
        %3310 = vmatpush1.bf16.xpose.msra.mxu0 %v3163
        %3311 = vmatprep.subr.bf16.mxu0 0
        %3312 = vmatpush1.bf16.xpose.msra.mxu0 %v3165
        %3313 = vmatprep.subr.bf16.mxu0 0
        %3314 = vmatpush1.bf16.xpose.msra.mxu0 %v3167
        %3315 = vmatprep.subr.bf16.mxu0 0
        %3316 = vmatpush1.bf16.xpose.msra.mxu0 %v3169
        %3317 = vmatprep.subr.bf16.mxu0 0
        %3318 = vmatpush1.bf16.xpose.msra.mxu0 %v3171
        %3319 = vmatprep.subr.bf16.mxu0 0
        %3320 = vmatpush1.bf16.xpose.msra.mxu0 %v3173
        %3321 = vmatprep.subr.bf16.mxu0 0
        %3322 = vmatpush1.bf16.xpose.msra.mxu0 %v3175
        %3323 = vmatprep.subr.bf16.mxu0 0
        %3324 = vmatpush1.bf16.xpose.msra.mxu0 %v3177
        %3325 = vmatprep.subr.bf16.mxu0 0
        %3326 = vmatpush1.bf16.xpose.msra.mxu0 %v3179
        %3327 = vmatprep.subr.bf16.mxu0 0
        %3328 = vmatpush1.bf16.xpose.msra.mxu0 %v3181
        %3329 = vmatprep.subr.bf16.mxu0 0
        %3330 = vmatpush1.bf16.xpose.msra.mxu0 %v3183
        %3331 = vmatprep.subr.bf16.mxu0 0
        %3332 = vmatpush1.bf16.xpose.msra.mxu0 %v3185
        %3333 = vmatprep.subr.bf16.mxu0 0
        %3334 = vmatpush1.bf16.xpose.msra.mxu0 %v3187
        %3335 = vmatprep.subr.bf16.mxu0 0
        %3336 = vmatpush1.bf16.xpose.msra.mxu0 %v3189
        %3337 = vmatprep.mubr.bf16.mxu0 0
        %3338 = vmatmul.mubr.bf16.gmra.mrb[0].mxu0 %v3093
        %v3339 = vpop.f32.mrb[0].mxu0
        %v3340 = vadd.f32 0.0, %v3339
        %v3341 = vpop.f32.mrb[0].mxu0
        %v3342 = vadd.f32 0.0, %v3341
        %v3343 = vpop.f32.mrb[0].mxu0
        %v3344 = vpop.f32.mrb[0].mxu0
        %3345 = vdwg.mxu0
        %3346 = vmatprep.subr.bf16.mxu0 0
        %3347 = vmatpush1.bf16.xpose.msra.mxu0 %v3191
        %3348 = vmatprep.subr.bf16.mxu0 0
        %3349 = vmatpush1.bf16.xpose.msra.mxu0 %v3193
        %3350 = vmatprep.subr.bf16.mxu0 0
        %3351 = vmatpush1.bf16.xpose.msra.mxu0 %v3195
        %3352 = vmatprep.subr.bf16.mxu0 0
        %3353 = vmatpush1.bf16.xpose.msra.mxu0 %v3197
        %3354 = vmatprep.subr.bf16.mxu0 0
        %3355 = vmatpush1.bf16.xpose.msra.mxu0 %v3199
        %3356 = vmatprep.subr.bf16.mxu0 0
        %3357 = vmatpush1.bf16.xpose.msra.mxu0 %v3201
        %3358 = vmatprep.subr.bf16.mxu0 0
        %3359 = vmatpush1.bf16.xpose.msra.mxu0 %v3203
        %3360 = vmatprep.subr.bf16.mxu0 0
        %3361 = vmatpush1.bf16.xpose.msra.mxu0 %v3205
        %3362 = vmatprep.subr.bf16.mxu0 0
        %3363 = vmatpush1.bf16.xpose.msra.mxu0 %v3207
        %3364 = vmatprep.subr.bf16.mxu0 0
        %3365 = vmatpush1.bf16.xpose.msra.mxu0 %v3209
        %3366 = vmatprep.subr.bf16.mxu0 0
        %3367 = vmatpush1.bf16.xpose.msra.mxu0 %v3211
        %3368 = vmatprep.subr.bf16.mxu0 0
        %3369 = vmatpush1.bf16.xpose.msra.mxu0 %v3213
        %3370 = vmatprep.subr.bf16.mxu0 0
        %3371 = vmatpush1.bf16.xpose.msra.mxu0 %v3215
        %3372 = vmatprep.subr.bf16.mxu0 0
        %3373 = vmatpush1.bf16.xpose.msra.mxu0 %v3217
        %3374 = vmatprep.subr.bf16.mxu0 0
        %3375 = vmatpush1.bf16.xpose.msra.mxu0 %v3219
        %3376 = vmatprep.subr.bf16.mxu0 0
        %3377 = vmatpush1.bf16.xpose.msra.mxu0 %v3221
        %3378 = vmatprep.mubr.bf16.mxu0 0
        %3379 = vmatmul.mubr.bf16.gmra.mrb[0].mxu0 %v3093
        %v3380 = vpop.f32.mrb[0].mxu0
        %v3381 = vadd.f32 0.0, %v3380
        %v3382 = vpop.f32.mrb[0].mxu0
        %v3383 = vadd.f32 0.0, %v3382
        %v3384 = vpop.f32.mrb[0].mxu0
        %v3385 = vpop.f32.mrb[0].mxu0
        %3386 = vdwg.mxu0
        %v3387 = vtanh.pop %v3258
        %v3388 = vtanh.pop %v3260
        %v3389 = vtanh.pop %v3299
        %v3390 = vtanh.pop %v3301
        %v3391 = vtanh.pop %v3340
        %v3392 = vtanh.pop %v3342
        %v3393 = vtanh.pop %v3381
        %v3394 = vtanh.pop %v3383
        %v3403 = vcombine.low %v3387, %v3388
        %v3404 = vcombine.low %v3389, %v3390
        %v3405 = vcombine.low %v3391, %v3392
        %v3406 = vcombine.low %v3393, %v3394
        %3411 = vst [vmem:[%s255] sm:$0x77] %v3403
        %3412 = vst [vmem:[%s255 + $0x8] sm:$0x77] %v3404
        %3413 = vst [vmem:[%s255 + $0x10] sm:$0x77] %v3405
        %3414 = vst [vmem:[%s255 + $0x18] sm:$0x77] %v3406
        %v3415 = vshrl.u32 %v1497, 16
        %v3417 = vshrl.u32 %v1500, 16
        %v3419 = vshrl.u32 %v1503, 16
        %v3421 = vshrl.u32 %v1506, 16
        %v3423 = vshrl.u32 %v1509, 16
        %v3425 = vshrl.u32 %v1512, 16
        %v3427 = vshrl.u32 %v1515, 16
        %v3429 = vshrl.u32 %v1518, 16
        %v3431 = vshrl.u32 %v1521, 16
        %v3433 = vshrl.u32 %v1524, 16
        %v3435 = vshrl.u32 %v1527, 16
        %v3437 = vshrl.u32 %v1530, 16
        %v3439 = vshrl.u32 %v1533, 16
        %v3441 = vshrl.u32 %v1536, 16
        %v3443 = vshrl.u32 %v1539, 16
        %v3445 = vshrl.u32 %v1542, 16
        %v3447 = vshrl.u32 %v1545, 16
        %v3449 = vshrl.u32 %v1548, 16
        %v3451 = vshrl.u32 %v1551, 16
        %v3453 = vshrl.u32 %v1554, 16
        %v3455 = vshrl.u32 %v1557, 16
        %v3457 = vshrl.u32 %v1560, 16
        %v3459 = vshrl.u32 %v1563, 16
        %v3461 = vshrl.u32 %v1566, 16
        %v3463 = vshrl.u32 %v1569, 16
        %v3465 = vshrl.u32 %v1572, 16
        %v3467 = vshrl.u32 %v1575, 16
        %v3469 = vshrl.u32 %v1578, 16
        %v3471 = vshrl.u32 %v1581, 16
        %v3473 = vshrl.u32 %v1584, 16
        %v3475 = vshrl.u32 %v1587, 16
        %v3477 = vshrl.u32 %v1590, 16
        %3479 = vrot.lane.b32.xlu0 %v3415, 8
        %v3480 = vpop.permute.xlu0 %3479
        %3481 = vrot.lane.b32.xlu0 %v3417, 8
        %v3482 = vpop.permute.xlu0 %3481
        %3483 = vrot.lane.b32.xlu0 %v3419, 8
        %v3484 = vpop.permute.xlu0 %3483
        %3485 = vrot.lane.b32.xlu0 %v3421, 8
        %v3486 = vpop.permute.xlu0 %3485
        %3487 = vrot.lane.b32.xlu0 %v3423, 8
        %v3488 = vpop.permute.xlu0 %3487
        %3489 = vrot.lane.b32.xlu0 %v3425, 8
        %v3490 = vpop.permute.xlu0 %3489
        %3491 = vrot.lane.b32.xlu0 %v3427, 8
        %v3492 = vpop.permute.xlu0 %3491
        %3493 = vrot.lane.b32.xlu0 %v3429, 8
        %v3494 = vpop.permute.xlu0 %3493
        %3495 = vrot.lane.b32.xlu0 %v3431, 8
        %v3496 = vpop.permute.xlu0 %3495
        %3497 = vrot.lane.b32.xlu0 %v3433, 8
        %v3498 = vpop.permute.xlu0 %3497
        %3499 = vrot.lane.b32.xlu0 %v3435, 8
        %v3500 = vpop.permute.xlu0 %3499
        %3501 = vrot.lane.b32.xlu0 %v3437, 8
        %v3502 = vpop.permute.xlu0 %3501
        %3503 = vrot.lane.b32.xlu0 %v3439, 8
        %v3504 = vpop.permute.xlu0 %3503
        %3505 = vrot.lane.b32.xlu0 %v3441, 8
        %v3506 = vpop.permute.xlu0 %3505
        %3507 = vrot.lane.b32.xlu0 %v3443, 8
        %v3508 = vpop.permute.xlu0 %3507
        %3509 = vrot.lane.b32.xlu0 %v3445, 8
        %v3510 = vpop.permute.xlu0 %3509
        %3511 = vrot.lane.b32.xlu0 %v3447, 8
        %v3512 = vpop.permute.xlu0 %3511
        %3513 = vrot.lane.b32.xlu0 %v3449, 8
        %v3514 = vpop.permute.xlu0 %3513
        %3515 = vrot.lane.b32.xlu0 %v3451, 8
        %v3516 = vpop.permute.xlu0 %3515
        %3517 = vrot.lane.b32.xlu0 %v3453, 8
        %v3518 = vpop.permute.xlu0 %3517
        %3519 = vrot.lane.b32.xlu0 %v3455, 8
        %v3520 = vpop.permute.xlu0 %3519
        %3521 = vrot.lane.b32.xlu0 %v3457, 8
        %v3522 = vpop.permute.xlu0 %3521
        %3523 = vrot.lane.b32.xlu0 %v3459, 8
        %v3524 = vpop.permute.xlu0 %3523
        %3525 = vrot.lane.b32.xlu0 %v3461, 8
        %v3526 = vpop.permute.xlu0 %3525
        %3527 = vrot.lane.b32.xlu0 %v3463, 8
        %v3528 = vpop.permute.xlu0 %3527
        %3529 = vrot.lane.b32.xlu0 %v3465, 8
        %v3530 = vpop.permute.xlu0 %3529
        %3531 = vrot.lane.b32.xlu0 %v3467, 8
        %v3532 = vpop.permute.xlu0 %3531
        %3533 = vrot.lane.b32.xlu0 %v3469, 8
        %v3534 = vpop.permute.xlu0 %3533
        %3535 = vrot.lane.b32.xlu0 %v3471, 8
        %v3536 = vpop.permute.xlu0 %3535
        %3537 = vrot.lane.b32.xlu0 %v3473, 8
        %v3538 = vpop.permute.xlu0 %3537
        %3539 = vrot.lane.b32.xlu0 %v3475, 8
        %v3540 = vpop.permute.xlu0 %3539
        %3541 = vrot.lane.b32.xlu0 %v3477, 8
        %v3542 = vpop.permute.xlu0 %3541
        %3575 = vrot.lane.b32.xlu0 %v1500, 16
        %v3576 = vpop.permute.xlu0 %3575
        %3577 = vrot.lane.b32.xlu0 %v1503, 16
        %v3578 = vpop.permute.xlu0 %3577
        %3579 = vrot.lane.b32.xlu0 %v1506, 16
        %v3580 = vpop.permute.xlu0 %3579
        %3581 = vrot.lane.b32.xlu0 %v1509, 16
        %v3582 = vpop.permute.xlu0 %3581
        %3583 = vrot.lane.b32.xlu0 %v1512, 16
        %v3584 = vpop.permute.xlu0 %3583
        %3585 = vrot.lane.b32.xlu0 %v1515, 16
        %v3586 = vpop.permute.xlu0 %3585
        %3587 = vrot.lane.b32.xlu0 %v1518, 16
        %v3588 = vpop.permute.xlu0 %3587
        %3589 = vrot.lane.b32.xlu0 %v1521, 16
        %v3590 = vpop.permute.xlu0 %3589
        %3591 = vrot.lane.b32.xlu0 %v1524, 16
        %v3592 = vpop.permute.xlu0 %3591
        %3593 = vrot.lane.b32.xlu0 %v1527, 16
        %v3594 = vpop.permute.xlu0 %3593
        %3595 = vrot.lane.b32.xlu0 %v1530, 16
        %v3596 = vpop.permute.xlu0 %3595
        %3597 = vrot.lane.b32.xlu0 %v1533, 16
        %v3598 = vpop.permute.xlu0 %3597
        %3599 = vrot.lane.b32.xlu0 %v1536, 16
        %v3600 = vpop.permute.xlu0 %3599
        %3601 = vrot.lane.b32.xlu0 %v1539, 16
        %v3602 = vpop.permute.xlu0 %3601
        %3603 = vrot.lane.b32.xlu0 %v1542, 16
        %v3604 = vpop.permute.xlu0 %3603
        %3605 = vrot.lane.b32.xlu0 %v1545, 16
        %v3606 = vpop.permute.xlu0 %3605
        %3607 = vrot.lane.b32.xlu0 %v1548, 16
        %v3608 = vpop.permute.xlu0 %3607
        %3609 = vrot.lane.b32.xlu0 %v1551, 16
        %v3610 = vpop.permute.xlu0 %3609
        %3611 = vrot.lane.b32.xlu0 %v1554, 16
        %v3612 = vpop.permute.xlu0 %3611
        %3613 = vrot.lane.b32.xlu0 %v1557, 16
        %v3614 = vpop.permute.xlu0 %3613
        %3615 = vrot.lane.b32.xlu0 %v1560, 16
        %v3616 = vpop.permute.xlu0 %3615
        %3617 = vrot.lane.b32.xlu0 %v1563, 16
        %v3618 = vpop.permute.xlu0 %3617
        %3619 = vrot.lane.b32.xlu0 %v1566, 16
        %v3620 = vpop.permute.xlu0 %3619
        %3621 = vrot.lane.b32.xlu0 %v1569, 16
        %v3622 = vpop.permute.xlu0 %3621
        %3623 = vrot.lane.b32.xlu0 %v1572, 16
        %v3624 = vpop.permute.xlu0 %3623
        %3625 = vrot.lane.b32.xlu0 %v1575, 16
        %v3626 = vpop.permute.xlu0 %3625
        %3627 = vrot.lane.b32.xlu0 %v1578, 16
        %v3628 = vpop.permute.xlu0 %3627
        %3629 = vrot.lane.b32.xlu0 %v1581, 16
        %v3630 = vpop.permute.xlu0 %3629
        %3631 = vrot.lane.b32.xlu0 %v1584, 16
        %v3632 = vpop.permute.xlu0 %3631
        %3633 = vrot.lane.b32.xlu0 %v1587, 16
        %v3634 = vpop.permute.xlu0 %3633
        %3635 = vrot.lane.b32.xlu0 %v1590, 16
        %v3636 = vpop.permute.xlu0 %3635
        %3637 = vrot.lane.b32.xlu0 %v1593, 16
        %v3638 = vpop.permute.xlu0 %3637
        %v3639 = vshrl.u32 %v1593, 16
        %3641 = vrot.lane.b32.xlu0 %v3417, 24
        %v3642 = vpop.permute.xlu0 %3641
        %3643 = vrot.lane.b32.xlu0 %v3419, 24
        %v3644 = vpop.permute.xlu0 %3643
        %3645 = vrot.lane.b32.xlu0 %v3421, 24
        %v3646 = vpop.permute.xlu0 %3645
        %3647 = vrot.lane.b32.xlu0 %v3423, 24
        %v3648 = vpop.permute.xlu0 %3647
        %3649 = vrot.lane.b32.xlu0 %v3425, 24
        %v3650 = vpop.permute.xlu0 %3649
        %3651 = vrot.lane.b32.xlu0 %v3427, 24
        %v3652 = vpop.permute.xlu0 %3651
        %3653 = vrot.lane.b32.xlu0 %v3429, 24
        %v3654 = vpop.permute.xlu0 %3653
        %3655 = vrot.lane.b32.xlu0 %v3431, 24
        %v3656 = vpop.permute.xlu0 %3655
        %3657 = vrot.lane.b32.xlu0 %v3433, 24
        %v3658 = vpop.permute.xlu0 %3657
        %3659 = vrot.lane.b32.xlu0 %v3435, 24
        %v3660 = vpop.permute.xlu0 %3659
        %3661 = vrot.lane.b32.xlu0 %v3437, 24
        %v3662 = vpop.permute.xlu0 %3661
        %3663 = vrot.lane.b32.xlu0 %v3439, 24
        %v3664 = vpop.permute.xlu0 %3663
        %3665 = vrot.lane.b32.xlu0 %v3441, 24
        %v3666 = vpop.permute.xlu0 %3665
        %3667 = vrot.lane.b32.xlu0 %v3443, 24
        %v3668 = vpop.permute.xlu0 %3667
        %3669 = vrot.lane.b32.xlu0 %v3445, 24
        %v3670 = vpop.permute.xlu0 %3669
        %3671 = vrot.lane.b32.xlu0 %v3447, 24
        %v3672 = vpop.permute.xlu0 %3671
        %3673 = vrot.lane.b32.xlu0 %v3449, 24
        %v3674 = vpop.permute.xlu0 %3673
        %3675 = vrot.lane.b32.xlu0 %v3451, 24
        %v3676 = vpop.permute.xlu0 %3675
        %3677 = vrot.lane.b32.xlu0 %v3453, 24
        %v3678 = vpop.permute.xlu0 %3677
        %3679 = vrot.lane.b32.xlu0 %v3455, 24
        %v3680 = vpop.permute.xlu0 %3679
        %3681 = vrot.lane.b32.xlu0 %v3457, 24
        %v3682 = vpop.permute.xlu0 %3681
        %3683 = vrot.lane.b32.xlu0 %v3459, 24
        %v3684 = vpop.permute.xlu0 %3683
        %3685 = vrot.lane.b32.xlu0 %v3461, 24
        %v3686 = vpop.permute.xlu0 %3685
        %3687 = vrot.lane.b32.xlu0 %v3463, 24
        %v3688 = vpop.permute.xlu0 %3687
        %3689 = vrot.lane.b32.xlu0 %v3465, 24
        %v3690 = vpop.permute.xlu0 %3689
        %3691 = vrot.lane.b32.xlu0 %v3467, 24
        %v3692 = vpop.permute.xlu0 %3691
        %3693 = vrot.lane.b32.xlu0 %v3469, 24
        %v3694 = vpop.permute.xlu0 %3693
        %3695 = vrot.lane.b32.xlu0 %v3471, 24
        %v3696 = vpop.permute.xlu0 %3695
        %3697 = vrot.lane.b32.xlu0 %v3473, 24
        %v3698 = vpop.permute.xlu0 %3697
        %3699 = vrot.lane.b32.xlu0 %v3475, 24
        %v3700 = vpop.permute.xlu0 %3699
        %3701 = vrot.lane.b32.xlu0 %v3477, 24
        %v3702 = vpop.permute.xlu0 %3701
        %3703 = vrot.lane.b32.xlu0 %v3639, 24
        %v3704 = vpop.permute.xlu0 %3703
        %v3706 = vsel %vm2703, %v1497, %v3480
        %v3708 = vsel %vm2703, %v1500, %v3482
        %v3710 = vsel %vm2703, %v1503, %v3484
        %v3712 = vsel %vm2703, %v1506, %v3486
        %v3714 = vsel %vm2703, %v1509, %v3488
        %v3716 = vsel %vm2703, %v1512, %v3490
        %v3718 = vsel %vm2703, %v1515, %v3492
        %v3720 = vsel %vm2703, %v1518, %v3494
        %v3722 = vsel %vm2703, %v1521, %v3496
        %v3724 = vsel %vm2703, %v1524, %v3498
        %v3726 = vsel %vm2703, %v1527, %v3500
        %v3728 = vsel %vm2703, %v1530, %v3502
        %v3730 = vsel %vm2703, %v1533, %v3504
        %v3732 = vsel %vm2703, %v1536, %v3506
        %v3734 = vsel %vm2703, %v1539, %v3508
        %v3736 = vsel %vm2703, %v1542, %v3510
        %v3738 = vsel %vm2703, %v1545, %v3512
        %v3740 = vsel %vm2703, %v1548, %v3514
        %v3742 = vsel %vm2703, %v1551, %v3516
        %v3744 = vsel %vm2703, %v1554, %v3518
        %v3746 = vsel %vm2703, %v1557, %v3520
        %v3748 = vsel %vm2703, %v1560, %v3522
        %v3750 = vsel %vm2703, %v1563, %v3524
        %v3752 = vsel %vm2703, %v1566, %v3526
        %v3754 = vsel %vm2703, %v1569, %v3528
        %v3756 = vsel %vm2703, %v1572, %v3530
        %v3758 = vsel %vm2703, %v1575, %v3532
        %v3760 = vsel %vm2703, %v1578, %v3534
        %v3762 = vsel %vm2703, %v1581, %v3536
        %v3764 = vsel %vm2703, %v1584, %v3538
        %v3766 = vsel %vm2703, %v1587, %v3540
        %v3768 = vsel %vm2703, %v1590, %v3542
        %v3770 = vsel %vm2832, %v3706, %v3576
        %v3772 = vsel %vm2832, %v3708, %v3578
        %v3774 = vsel %vm2832, %v3710, %v3580
        %v3776 = vsel %vm2832, %v3712, %v3582
        %v3778 = vsel %vm2832, %v3714, %v3584
        %v3780 = vsel %vm2832, %v3716, %v3586
        %v3782 = vsel %vm2832, %v3718, %v3588
        %v3784 = vsel %vm2832, %v3720, %v3590
        %v3786 = vsel %vm2832, %v3722, %v3592
        %v3788 = vsel %vm2832, %v3724, %v3594
        %v3790 = vsel %vm2832, %v3726, %v3596
        %v3792 = vsel %vm2832, %v3728, %v3598
        %v3794 = vsel %vm2832, %v3730, %v3600
        %v3796 = vsel %vm2832, %v3732, %v3602
        %v3798 = vsel %vm2832, %v3734, %v3604
        %v3800 = vsel %vm2832, %v3736, %v3606
        %v3802 = vsel %vm2832, %v3738, %v3608
        %v3804 = vsel %vm2832, %v3740, %v3610
        %v3806 = vsel %vm2832, %v3742, %v3612
        %v3808 = vsel %vm2832, %v3744, %v3614
        %v3810 = vsel %vm2832, %v3746, %v3616
        %v3812 = vsel %vm2832, %v3748, %v3618
        %v3814 = vsel %vm2832, %v3750, %v3620
        %v3816 = vsel %vm2832, %v3752, %v3622
        %v3818 = vsel %vm2832, %v3754, %v3624
        %v3820 = vsel %vm2832, %v3756, %v3626
        %v3822 = vsel %vm2832, %v3758, %v3628
        %v3824 = vsel %vm2832, %v3760, %v3630
        %v3826 = vsel %vm2832, %v3762, %v3632
        %v3828 = vsel %vm2832, %v3764, %v3634
        %v3830 = vsel %vm2832, %v3766, %v3636
        %v3832 = vsel %vm2832, %v3768, %v3638
        %v3834 = vsel %vm2961, %v3770, %v3642
        %v3836 = vsel %vm2961, %v3772, %v3644
        %v3838 = vsel %vm2961, %v3774, %v3646
        %v3840 = vsel %vm2961, %v3776, %v3648
        %v3842 = vsel %vm2961, %v3778, %v3650
        %v3844 = vsel %vm2961, %v3780, %v3652
        %v3846 = vsel %vm2961, %v3782, %v3654
        %v3848 = vsel %vm2961, %v3784, %v3656
        %v3850 = vsel %vm2961, %v3786, %v3658
        %v3852 = vsel %vm2961, %v3788, %v3660
        %v3854 = vsel %vm2961, %v3790, %v3662
        %v3856 = vsel %vm2961, %v3792, %v3664
        %v3858 = vsel %vm2961, %v3794, %v3666
        %v3860 = vsel %vm2961, %v3796, %v3668
        %v3862 = vsel %vm2961, %v3798, %v3670
        %v3864 = vsel %vm2961, %v3800, %v3672
        %v3866 = vsel %vm2961, %v3802, %v3674
        %v3868 = vsel %vm2961, %v3804, %v3676
        %v3870 = vsel %vm2961, %v3806, %v3678
        %v3872 = vsel %vm2961, %v3808, %v3680
        %v3874 = vsel %vm2961, %v3810, %v3682
        %v3876 = vsel %vm2961, %v3812, %v3684
        %v3878 = vsel %vm2961, %v3814, %v3686
        %v3880 = vsel %vm2961, %v3816, %v3688
        %v3882 = vsel %vm2961, %v3818, %v3690
        %v3884 = vsel %vm2961, %v3820, %v3692
        %v3886 = vsel %vm2961, %v3822, %v3694
        %v3888 = vsel %vm2961, %v3824, %v3696
        %v3890 = vsel %vm2961, %v3826, %v3698
        %v3892 = vsel %vm2961, %v3828, %v3700
        %v3894 = vsel %vm2961, %v3830, %v3702
        %v3896 = vsel %vm2961, %v3832, %v3704
        %v3897 = vshrl.u32 %v2963, 16
        %v3899 = vshll.u32 %v2963, 16
        %v3901 = vrot.slane %v3899, 1
        %v3902 = vor.u32 %v3897, %v3901
        %v3903 = vshll.u32 %v2965, 16
        %v3905 = vrot.slane %v3903, 1
        %v3906 = vsel %vm1594, %v3902, %v3905
        %v3907 = vshrl.u32 %v2965, 16
        %v3909 = vor.u32 %v3907, %v3905
        %v3910 = vshll.u32 %v3834, 16
        %v3912 = vrot.slane %v3910, 1
        %v3913 = vsel %vm1594, %v3909, %v3912
        %v3914 = vshrl.u32 %v2967, 16
        %v3916 = vshll.u32 %v2967, 16
        %v3918 = vrot.slane %v3916, 1
        %v3919 = vor.u32 %v3914, %v3918
        %v3920 = vshll.u32 %v2969, 16
        %v3922 = vrot.slane %v3920, 1
        %v3923 = vsel %vm1594, %v3919, %v3922
        %v3924 = vshrl.u32 %v2969, 16
        %v3926 = vor.u32 %v3924, %v3922
        %v3927 = vshll.u32 %v3836, 16
        %v3929 = vrot.slane %v3927, 1
        %v3930 = vsel %vm1594, %v3926, %v3929
        %v3931 = vshrl.u32 %v2971, 16
        %v3933 = vshll.u32 %v2971, 16
        %v3935 = vrot.slane %v3933, 1
        %v3936 = vor.u32 %v3931, %v3935
        %v3937 = vshll.u32 %v2973, 16
        %v3939 = vrot.slane %v3937, 1
        %v3940 = vsel %vm1594, %v3936, %v3939
        %v3941 = vshrl.u32 %v2973, 16
        %v3943 = vor.u32 %v3941, %v3939
        %v3944 = vshll.u32 %v3838, 16
        %v3946 = vrot.slane %v3944, 1
        %v3947 = vsel %vm1594, %v3943, %v3946
        %v3948 = vshrl.u32 %v2975, 16
        %v3950 = vshll.u32 %v2975, 16
        %v3952 = vrot.slane %v3950, 1
        %v3953 = vor.u32 %v3948, %v3952
        %v3954 = vshll.u32 %v2977, 16
        %v3956 = vrot.slane %v3954, 1
        %v3957 = vsel %vm1594, %v3953, %v3956
        %v3958 = vshrl.u32 %v2977, 16
        %v3960 = vor.u32 %v3958, %v3956
        %v3961 = vshll.u32 %v3840, 16
        %v3963 = vrot.slane %v3961, 1
        %v3964 = vsel %vm1594, %v3960, %v3963
        %v3965 = vshrl.u32 %v2979, 16
        %v3967 = vshll.u32 %v2979, 16
        %v3969 = vrot.slane %v3967, 1
        %v3970 = vor.u32 %v3965, %v3969
        %v3971 = vshll.u32 %v2981, 16
        %v3973 = vrot.slane %v3971, 1
        %v3974 = vsel %vm1594, %v3970, %v3973
        %v3975 = vshrl.u32 %v2981, 16
        %v3977 = vor.u32 %v3975, %v3973
        %v3978 = vshll.u32 %v3842, 16
        %v3980 = vrot.slane %v3978, 1
        %v3981 = vsel %vm1594, %v3977, %v3980
        %v3982 = vshrl.u32 %v2983, 16
        %v3984 = vshll.u32 %v2983, 16
        %v3986 = vrot.slane %v3984, 1
        %v3987 = vor.u32 %v3982, %v3986
        %v3988 = vshll.u32 %v2985, 16
        %v3990 = vrot.slane %v3988, 1
        %v3991 = vsel %vm1594, %v3987, %v3990
        %v3992 = vshrl.u32 %v2985, 16
        %v3994 = vor.u32 %v3992, %v3990
        %v3995 = vshll.u32 %v3844, 16
        %v3997 = vrot.slane %v3995, 1
        %v3998 = vsel %vm1594, %v3994, %v3997
        %v3999 = vshrl.u32 %v2987, 16
        %v4001 = vshll.u32 %v2987, 16
        %v4003 = vrot.slane %v4001, 1
        %v4004 = vor.u32 %v3999, %v4003
        %v4005 = vshll.u32 %v2989, 16
        %v4007 = vrot.slane %v4005, 1
        %v4008 = vsel %vm1594, %v4004, %v4007
        %v4009 = vshrl.u32 %v2989, 16
        %v4011 = vor.u32 %v4009, %v4007
        %v4012 = vshll.u32 %v3846, 16
        %v4014 = vrot.slane %v4012, 1
        %v4015 = vsel %vm1594, %v4011, %v4014
        %v4016 = vshrl.u32 %v2991, 16
        %v4018 = vshll.u32 %v2991, 16
        %v4020 = vrot.slane %v4018, 1
        %v4021 = vor.u32 %v4016, %v4020
        %v4022 = vshll.u32 %v2993, 16
        %v4024 = vrot.slane %v4022, 1
        %v4025 = vsel %vm1594, %v4021, %v4024
        %v4026 = vshrl.u32 %v2993, 16
        %v4028 = vor.u32 %v4026, %v4024
        %v4029 = vshll.u32 %v3848, 16
        %v4031 = vrot.slane %v4029, 1
        %v4032 = vsel %vm1594, %v4028, %v4031
        %v4033 = vshrl.u32 %v2995, 16
        %v4035 = vshll.u32 %v2995, 16
        %v4037 = vrot.slane %v4035, 1
        %v4038 = vor.u32 %v4033, %v4037
        %v4039 = vshll.u32 %v2997, 16
        %v4041 = vrot.slane %v4039, 1
        %v4042 = vsel %vm1594, %v4038, %v4041
        %v4043 = vshrl.u32 %v2997, 16
        %v4045 = vor.u32 %v4043, %v4041
        %v4046 = vshll.u32 %v3850, 16
        %v4048 = vrot.slane %v4046, 1
        %v4049 = vsel %vm1594, %v4045, %v4048
        %v4050 = vshrl.u32 %v2999, 16
        %v4052 = vshll.u32 %v2999, 16
        %v4054 = vrot.slane %v4052, 1
        %v4055 = vor.u32 %v4050, %v4054
        %v4056 = vshll.u32 %v3001, 16
        %v4058 = vrot.slane %v4056, 1
        %v4059 = vsel %vm1594, %v4055, %v4058
        %v4060 = vshrl.u32 %v3001, 16
        %v4062 = vor.u32 %v4060, %v4058
        %v4063 = vshll.u32 %v3852, 16
        %v4065 = vrot.slane %v4063, 1
        %v4066 = vsel %vm1594, %v4062, %v4065
        %v4067 = vshrl.u32 %v3003, 16
        %v4069 = vshll.u32 %v3003, 16
        %v4071 = vrot.slane %v4069, 1
        %v4072 = vor.u32 %v4067, %v4071
        %v4073 = vshll.u32 %v3005, 16
        %v4075 = vrot.slane %v4073, 1
        %v4076 = vsel %vm1594, %v4072, %v4075
        %v4077 = vshrl.u32 %v3005, 16
        %v4079 = vor.u32 %v4077, %v4075
        %v4080 = vshll.u32 %v3854, 16
        %v4082 = vrot.slane %v4080, 1
        %v4083 = vsel %vm1594, %v4079, %v4082
        %v4084 = vshrl.u32 %v3007, 16
        %v4086 = vshll.u32 %v3007, 16
        %v4088 = vrot.slane %v4086, 1
        %v4089 = vor.u32 %v4084, %v4088
        %v4090 = vshll.u32 %v3009, 16
        %v4092 = vrot.slane %v4090, 1
        %v4093 = vsel %vm1594, %v4089, %v4092
        %v4094 = vshrl.u32 %v3009, 16
        %v4096 = vor.u32 %v4094, %v4092
        %v4097 = vshll.u32 %v3856, 16
        %v4099 = vrot.slane %v4097, 1
        %v4100 = vsel %vm1594, %v4096, %v4099
        %v4101 = vshrl.u32 %v3011, 16
        %v4103 = vshll.u32 %v3011, 16
        %v4105 = vrot.slane %v4103, 1
        %v4106 = vor.u32 %v4101, %v4105
        %v4107 = vshll.u32 %v3013, 16
        %v4109 = vrot.slane %v4107, 1
        %v4110 = vsel %vm1594, %v4106, %v4109
        %v4111 = vshrl.u32 %v3013, 16
        %v4113 = vor.u32 %v4111, %v4109
        %v4114 = vshll.u32 %v3858, 16
        %v4116 = vrot.slane %v4114, 1
        %v4117 = vsel %vm1594, %v4113, %v4116
        %v4118 = vshrl.u32 %v3015, 16
        %v4120 = vshll.u32 %v3015, 16
        %v4122 = vrot.slane %v4120, 1
        %v4123 = vor.u32 %v4118, %v4122
        %v4124 = vshll.u32 %v3017, 16
        %v4126 = vrot.slane %v4124, 1
        %v4127 = vsel %vm1594, %v4123, %v4126
        %v4128 = vshrl.u32 %v3017, 16
        %v4130 = vor.u32 %v4128, %v4126
        %v4131 = vshll.u32 %v3860, 16
        %v4133 = vrot.slane %v4131, 1
        %v4134 = vsel %vm1594, %v4130, %v4133
        %v4135 = vshrl.u32 %v3019, 16
        %v4137 = vshll.u32 %v3019, 16
        %v4139 = vrot.slane %v4137, 1
        %v4140 = vor.u32 %v4135, %v4139
        %v4141 = vshll.u32 %v3021, 16
        %v4143 = vrot.slane %v4141, 1
        %v4144 = vsel %vm1594, %v4140, %v4143
        %v4145 = vshrl.u32 %v3021, 16
        %v4147 = vor.u32 %v4145, %v4143
        %v4148 = vshll.u32 %v3862, 16
        %v4150 = vrot.slane %v4148, 1
        %v4151 = vsel %vm1594, %v4147, %v4150
        %v4152 = vshrl.u32 %v3023, 16
        %v4154 = vshll.u32 %v3023, 16
        %v4156 = vrot.slane %v4154, 1
        %v4157 = vor.u32 %v4152, %v4156
        %v4158 = vshll.u32 %v3025, 16
        %v4160 = vrot.slane %v4158, 1
        %v4161 = vsel %vm1594, %v4157, %v4160
        %v4162 = vshrl.u32 %v3025, 16
        %v4164 = vor.u32 %v4162, %v4160
        %v4165 = vshll.u32 %v3864, 16
        %v4167 = vrot.slane %v4165, 1
        %v4168 = vsel %vm1594, %v4164, %v4167
        %v4169 = vshrl.u32 %v3027, 16
        %v4171 = vshll.u32 %v3027, 16
        %v4173 = vrot.slane %v4171, 1
        %v4174 = vor.u32 %v4169, %v4173
        %v4175 = vshll.u32 %v3029, 16
        %v4177 = vrot.slane %v4175, 1
        %v4178 = vsel %vm1594, %v4174, %v4177
        %v4179 = vshrl.u32 %v3029, 16
        %v4181 = vor.u32 %v4179, %v4177
        %v4182 = vshll.u32 %v3866, 16
        %v4184 = vrot.slane %v4182, 1
        %v4185 = vsel %vm1594, %v4181, %v4184
        %v4186 = vshrl.u32 %v3031, 16
        %v4188 = vshll.u32 %v3031, 16
        %v4190 = vrot.slane %v4188, 1
        %v4191 = vor.u32 %v4186, %v4190
        %v4192 = vshll.u32 %v3033, 16
        %v4194 = vrot.slane %v4192, 1
        %v4195 = vsel %vm1594, %v4191, %v4194
        %v4196 = vshrl.u32 %v3033, 16
        %v4198 = vor.u32 %v4196, %v4194
        %v4199 = vshll.u32 %v3868, 16
        %v4201 = vrot.slane %v4199, 1
        %v4202 = vsel %vm1594, %v4198, %v4201
        %v4203 = vshrl.u32 %v3035, 16
        %v4205 = vshll.u32 %v3035, 16
        %v4207 = vrot.slane %v4205, 1
        %v4208 = vor.u32 %v4203, %v4207
        %v4209 = vshll.u32 %v3037, 16
        %v4211 = vrot.slane %v4209, 1
        %v4212 = vsel %vm1594, %v4208, %v4211
        %v4213 = vshrl.u32 %v3037, 16
        %v4215 = vor.u32 %v4213, %v4211
        %v4216 = vshll.u32 %v3870, 16
        %v4218 = vrot.slane %v4216, 1
        %v4219 = vsel %vm1594, %v4215, %v4218
        %v4220 = vshrl.u32 %v3039, 16
        %v4222 = vshll.u32 %v3039, 16
        %v4224 = vrot.slane %v4222, 1
        %v4225 = vor.u32 %v4220, %v4224
        %v4226 = vshll.u32 %v3041, 16
        %v4228 = vrot.slane %v4226, 1
        %v4229 = vsel %vm1594, %v4225, %v4228
        %v4230 = vshrl.u32 %v3041, 16
        %v4232 = vor.u32 %v4230, %v4228
        %v4233 = vshll.u32 %v3872, 16
        %v4235 = vrot.slane %v4233, 1
        %v4236 = vsel %vm1594, %v4232, %v4235
        %v4237 = vshrl.u32 %v3043, 16
        %v4239 = vshll.u32 %v3043, 16
        %v4241 = vrot.slane %v4239, 1
        %v4242 = vor.u32 %v4237, %v4241
        %v4243 = vshll.u32 %v3045, 16
        %v4245 = vrot.slane %v4243, 1
        %v4246 = vsel %vm1594, %v4242, %v4245
        %v4247 = vshrl.u32 %v3045, 16
        %v4249 = vor.u32 %v4247, %v4245
        %v4250 = vshll.u32 %v3874, 16
        %v4252 = vrot.slane %v4250, 1
        %v4253 = vsel %vm1594, %v4249, %v4252
        %v4254 = vshrl.u32 %v3047, 16
        %v4256 = vshll.u32 %v3047, 16
        %v4258 = vrot.slane %v4256, 1
        %v4259 = vor.u32 %v4254, %v4258
        %v4260 = vshll.u32 %v3049, 16
        %v4262 = vrot.slane %v4260, 1
        %v4263 = vsel %vm1594, %v4259, %v4262
        %v4264 = vshrl.u32 %v3049, 16
        %v4266 = vor.u32 %v4264, %v4262
        %v4267 = vshll.u32 %v3876, 16
        %v4269 = vrot.slane %v4267, 1
        %v4270 = vsel %vm1594, %v4266, %v4269
        %v4271 = vshrl.u32 %v3051, 16
        %v4273 = vshll.u32 %v3051, 16
        %v4275 = vrot.slane %v4273, 1
        %v4276 = vor.u32 %v4271, %v4275
        %v4277 = vshll.u32 %v3053, 16
        %v4279 = vrot.slane %v4277, 1
        %v4280 = vsel %vm1594, %v4276, %v4279
        %v4281 = vshrl.u32 %v3053, 16
        %v4283 = vor.u32 %v4281, %v4279
        %v4284 = vshll.u32 %v3878, 16
        %v4286 = vrot.slane %v4284, 1
        %v4287 = vsel %vm1594, %v4283, %v4286
        %v4288 = vshrl.u32 %v3055, 16
        %v4290 = vshll.u32 %v3055, 16
        %v4292 = vrot.slane %v4290, 1
        %v4293 = vor.u32 %v4288, %v4292
        %v4294 = vshll.u32 %v3057, 16
        %v4296 = vrot.slane %v4294, 1
        %v4297 = vsel %vm1594, %v4293, %v4296
        %v4298 = vshrl.u32 %v3057, 16
        %v4300 = vor.u32 %v4298, %v4296
        %v4301 = vshll.u32 %v3880, 16
        %v4303 = vrot.slane %v4301, 1
        %v4304 = vsel %vm1594, %v4300, %v4303
        %v4305 = vshrl.u32 %v3059, 16
        %v4307 = vshll.u32 %v3059, 16
        %v4309 = vrot.slane %v4307, 1
        %v4310 = vor.u32 %v4305, %v4309
        %v4311 = vshll.u32 %v3061, 16
        %v4313 = vrot.slane %v4311, 1
        %v4314 = vsel %vm1594, %v4310, %v4313
        %v4315 = vshrl.u32 %v3061, 16
        %v4317 = vor.u32 %v4315, %v4313
        %v4318 = vshll.u32 %v3882, 16
        %v4320 = vrot.slane %v4318, 1
        %v4321 = vsel %vm1594, %v4317, %v4320
        %v4322 = vshrl.u32 %v3063, 16
        %v4324 = vshll.u32 %v3063, 16
        %v4326 = vrot.slane %v4324, 1
        %v4327 = vor.u32 %v4322, %v4326
        %v4328 = vshll.u32 %v3065, 16
        %v4330 = vrot.slane %v4328, 1
        %v4331 = vsel %vm1594, %v4327, %v4330
        %v4332 = vshrl.u32 %v3065, 16
        %v4334 = vor.u32 %v4332, %v4330
        %v4335 = vshll.u32 %v3884, 16
        %v4337 = vrot.slane %v4335, 1
        %v4338 = vsel %vm1594, %v4334, %v4337
        %v4339 = vshrl.u32 %v3067, 16
        %v4341 = vshll.u32 %v3067, 16
        %v4343 = vrot.slane %v4341, 1
        %v4344 = vor.u32 %v4339, %v4343
        %v4345 = vshll.u32 %v3069, 16
        %v4347 = vrot.slane %v4345, 1
        %v4348 = vsel %vm1594, %v4344, %v4347
        %v4349 = vshrl.u32 %v3069, 16
        %v4351 = vor.u32 %v4349, %v4347
        %v4352 = vshll.u32 %v3886, 16
        %v4354 = vrot.slane %v4352, 1
        %v4355 = vsel %vm1594, %v4351, %v4354
        %v4356 = vshrl.u32 %v3071, 16
        %v4358 = vshll.u32 %v3071, 16
        %v4360 = vrot.slane %v4358, 1
        %v4361 = vor.u32 %v4356, %v4360
        %v4362 = vshll.u32 %v3073, 16
        %v4364 = vrot.slane %v4362, 1
        %v4365 = vsel %vm1594, %v4361, %v4364
        %v4366 = vshrl.u32 %v3073, 16
        %v4368 = vor.u32 %v4366, %v4364
        %v4369 = vshll.u32 %v3888, 16
        %v4371 = vrot.slane %v4369, 1
        %v4372 = vsel %vm1594, %v4368, %v4371
        %v4373 = vshrl.u32 %v3075, 16
        %v4375 = vshll.u32 %v3075, 16
        %v4377 = vrot.slane %v4375, 1
        %v4378 = vor.u32 %v4373, %v4377
        %v4379 = vshll.u32 %v3077, 16
        %v4381 = vrot.slane %v4379, 1
        %v4382 = vsel %vm1594, %v4378, %v4381
        %v4383 = vshrl.u32 %v3077, 16
        %v4385 = vor.u32 %v4383, %v4381
        %v4386 = vshll.u32 %v3890, 16
        %v4388 = vrot.slane %v4386, 1
        %v4389 = vsel %vm1594, %v4385, %v4388
        %v4390 = vshrl.u32 %v3079, 16
        %v4392 = vshll.u32 %v3079, 16
        %v4394 = vrot.slane %v4392, 1
        %v4395 = vor.u32 %v4390, %v4394
        %v4396 = vshll.u32 %v3081, 16
        %v4398 = vrot.slane %v4396, 1
        %v4399 = vsel %vm1594, %v4395, %v4398
        %v4400 = vshrl.u32 %v3081, 16
        %v4402 = vor.u32 %v4400, %v4398
        %v4403 = vshll.u32 %v3892, 16
        %v4405 = vrot.slane %v4403, 1
        %v4406 = vsel %vm1594, %v4402, %v4405
        %v4407 = vshrl.u32 %v3083, 16
        %v4409 = vshll.u32 %v3083, 16
        %v4411 = vrot.slane %v4409, 1
        %v4412 = vor.u32 %v4407, %v4411
        %v4413 = vshll.u32 %v3085, 16
        %v4415 = vrot.slane %v4413, 1
        %v4416 = vsel %vm1594, %v4412, %v4415
        %v4417 = vshrl.u32 %v3085, 16
        %v4419 = vor.u32 %v4417, %v4415
        %v4420 = vshll.u32 %v3894, 16
        %v4422 = vrot.slane %v4420, 1
        %v4423 = vsel %vm1594, %v4419, %v4422
        %v4424 = vshrl.u32 %v3087, 16
        %v4426 = vshll.u32 %v3087, 16
        %v4428 = vrot.slane %v4426, 1
        %v4429 = vor.u32 %v4424, %v4428
        %v4430 = vshll.u32 %v3089, 16
        %v4432 = vrot.slane %v4430, 1
        %v4433 = vsel %vm1594, %v4429, %v4432
        %v4434 = vshrl.u32 %v3089, 16
        %v4436 = vor.u32 %v4434, %v4432
        %v4437 = vshll.u32 %v3896, 16
        %v4439 = vrot.slane %v4437, 1
        %v4440 = vsel %vm1594, %v4436, %v4439
        %s4441 = scalar_lea.vmem [#allocation8], 2
        %v4442 = vld [vmem:[%s4441] sm:$0x3]
        %v4444 = vsel %vm3091, %v4442, 0
        %v4447 = vsel %vm3091, %v3906, 0
        %v4450 = vsel %vm3091, %v3913, 0
        %v4453 = vsel %vm3091, %v3923, 0
        %v4456 = vsel %vm3091, %v3930, 0
        %v4459 = vsel %vm3091, %v3940, 0
        %v4462 = vsel %vm3091, %v3947, 0
        %v4465 = vsel %vm3091, %v3957, 0
        %v4468 = vsel %vm3091, %v3964, 0
        %v4471 = vsel %vm3091, %v3974, 0
        %v4474 = vsel %vm3091, %v3981, 0
        %v4477 = vsel %vm3091, %v3991, 0
        %v4480 = vsel %vm3091, %v3998, 0
        %v4483 = vsel %vm3091, %v4008, 0
        %v4486 = vsel %vm3091, %v4015, 0
        %v4489 = vsel %vm3091, %v4025, 0
        %v4492 = vsel %vm3091, %v4032, 0
        %v4495 = vsel %vm3091, %v4042, 0
        %v4498 = vsel %vm3091, %v4049, 0
        %v4501 = vsel %vm3091, %v4059, 0
        %v4504 = vsel %vm3091, %v4066, 0
        %v4507 = vsel %vm3091, %v4076, 0
        %v4510 = vsel %vm3091, %v4083, 0
        %v4513 = vsel %vm3091, %v4093, 0
        %v4516 = vsel %vm3091, %v4100, 0
        %v4519 = vsel %vm3091, %v4110, 0
        %v4522 = vsel %vm3091, %v4117, 0
        %v4525 = vsel %vm3091, %v4127, 0
        %v4528 = vsel %vm3091, %v4134, 0
        %v4531 = vsel %vm3091, %v4144, 0
        %v4534 = vsel %vm3091, %v4151, 0
        %v4537 = vsel %vm3091, %v4161, 0
        %v4540 = vsel %vm3091, %v4168, 0
        %v4543 = vsel %vm3091, %v4178, 0
        %v4546 = vsel %vm3091, %v4185, 0
        %v4549 = vsel %vm3091, %v4195, 0
        %v4552 = vsel %vm3091, %v4202, 0
        %v4555 = vsel %vm3091, %v4212, 0
        %v4558 = vsel %vm3091, %v4219, 0
        %v4561 = vsel %vm3091, %v4229, 0
        %v4564 = vsel %vm3091, %v4236, 0
        %v4567 = vsel %vm3091, %v4246, 0
        %v4570 = vsel %vm3091, %v4253, 0
        %v4573 = vsel %vm3091, %v4263, 0
        %v4576 = vsel %vm3091, %v4270, 0
        %v4579 = vsel %vm3091, %v4280, 0
        %v4582 = vsel %vm3091, %v4287, 0
        %v4585 = vsel %vm3091, %v4297, 0
        %v4588 = vsel %vm3091, %v4304, 0
        %v4591 = vsel %vm3091, %v4314, 0
        %v4594 = vsel %vm3091, %v4321, 0
        %v4597 = vsel %vm3091, %v4331, 0
        %v4600 = vsel %vm3091, %v4338, 0
        %v4603 = vsel %vm3091, %v4348, 0
        %v4606 = vsel %vm3091, %v4355, 0
        %v4609 = vsel %vm3091, %v4365, 0
        %v4612 = vsel %vm3091, %v4372, 0
        %v4615 = vsel %vm3091, %v4382, 0
        %v4618 = vsel %vm3091, %v4389, 0
        %v4621 = vsel %vm3091, %v4399, 0
        %v4624 = vsel %vm3091, %v4406, 0
        %v4627 = vsel %vm3091, %v4416, 0
        %v4630 = vsel %vm3091, %v4423, 0
        %v4633 = vsel %vm3091, %v4433, 0
        %v4636 = vsel %vm3091, %v4440, 0
        %4638 = vmatprep.subr.bf16.mxu0 0
        %4639 = vmatpush1.bf16.xpose.msra.mxu0 %v4447
        %4640 = vmatprep.subr.bf16.mxu0 0
        %4641 = vmatpush1.bf16.xpose.msra.mxu0 %v4450
        %4642 = vmatprep.subr.bf16.mxu0 0
        %4643 = vmatpush1.bf16.xpose.msra.mxu0 %v4453
        %4644 = vmatprep.subr.bf16.mxu0 0
        %4645 = vmatpush1.bf16.xpose.msra.mxu0 %v4456
        %4646 = vmatprep.subr.bf16.mxu0 0
        %4647 = vmatpush1.bf16.xpose.msra.mxu0 %v4459
        %4648 = vmatprep.subr.bf16.mxu0 0
        %4649 = vmatpush1.bf16.xpose.msra.mxu0 %v4462
        %4650 = vmatprep.subr.bf16.mxu0 0
        %4651 = vmatpush1.bf16.xpose.msra.mxu0 %v4465
        %4652 = vmatprep.subr.bf16.mxu0 0
        %4653 = vmatpush1.bf16.xpose.msra.mxu0 %v4468
        %4654 = vmatprep.subr.bf16.mxu0 0
        %4655 = vmatpush1.bf16.xpose.msra.mxu0 %v4471
        %4656 = vmatprep.subr.bf16.mxu0 0
        %4657 = vmatpush1.bf16.xpose.msra.mxu0 %v4474
        %4658 = vmatprep.subr.bf16.mxu0 0
        %4659 = vmatpush1.bf16.xpose.msra.mxu0 %v4477
        %4660 = vmatprep.subr.bf16.mxu0 0
        %4661 = vmatpush1.bf16.xpose.msra.mxu0 %v4480
        %4662 = vmatprep.subr.bf16.mxu0 0
        %4663 = vmatpush1.bf16.xpose.msra.mxu0 %v4483
        %4664 = vmatprep.subr.bf16.mxu0 0
        %4665 = vmatpush1.bf16.xpose.msra.mxu0 %v4486
        %4666 = vmatprep.subr.bf16.mxu0 0
        %4667 = vmatpush1.bf16.xpose.msra.mxu0 %v4489
        %4668 = vmatprep.subr.bf16.mxu0 0
        %4669 = vmatpush1.bf16.xpose.msra.mxu0 %v4492
        %4670 = vmatprep.mubr.bf16.mxu0 0
        %4671 = vmatmul.mubr.bf16.gmra.mrb[0].mxu0 %v4444
        %v4672 = vpop.f32.mrb[0].mxu0
        %v4673 = vadd.f32 0.0, %v4672
        %v4674 = vpop.f32.mrb[0].mxu0
        %v4675 = vadd.f32 0.0, %v4674
        %v4676 = vpop.f32.mrb[0].mxu0
        %v4677 = vpop.f32.mrb[0].mxu0
        %4678 = vdwg.mxu0
        %4679 = vmatprep.subr.bf16.mxu0 0
        %4680 = vmatpush1.bf16.xpose.msra.mxu0 %v4495
        %4681 = vmatprep.subr.bf16.mxu0 0
        %4682 = vmatpush1.bf16.xpose.msra.mxu0 %v4498
        %4683 = vmatprep.subr.bf16.mxu0 0
        %4684 = vmatpush1.bf16.xpose.msra.mxu0 %v4501
        %4685 = vmatprep.subr.bf16.mxu0 0
        %4686 = vmatpush1.bf16.xpose.msra.mxu0 %v4504
        %4687 = vmatprep.subr.bf16.mxu0 0
        %4688 = vmatpush1.bf16.xpose.msra.mxu0 %v4507
        %4689 = vmatprep.subr.bf16.mxu0 0
        %4690 = vmatpush1.bf16.xpose.msra.mxu0 %v4510
        %4691 = vmatprep.subr.bf16.mxu0 0
        %4692 = vmatpush1.bf16.xpose.msra.mxu0 %v4513
        %4693 = vmatprep.subr.bf16.mxu0 0
        %4694 = vmatpush1.bf16.xpose.msra.mxu0 %v4516
        %4695 = vmatprep.subr.bf16.mxu0 0
        %4696 = vmatpush1.bf16.xpose.msra.mxu0 %v4519
        %4697 = vmatprep.subr.bf16.mxu0 0
        %4698 = vmatpush1.bf16.xpose.msra.mxu0 %v4522
        %4699 = vmatprep.subr.bf16.mxu0 0
        %4700 = vmatpush1.bf16.xpose.msra.mxu0 %v4525
        %4701 = vmatprep.subr.bf16.mxu0 0
        %4702 = vmatpush1.bf16.xpose.msra.mxu0 %v4528
        %4703 = vmatprep.subr.bf16.mxu0 0
        %4704 = vmatpush1.bf16.xpose.msra.mxu0 %v4531
        %4705 = vmatprep.subr.bf16.mxu0 0
        %4706 = vmatpush1.bf16.xpose.msra.mxu0 %v4534
        %4707 = vmatprep.subr.bf16.mxu0 0
        %4708 = vmatpush1.bf16.xpose.msra.mxu0 %v4537
        %4709 = vmatprep.subr.bf16.mxu0 0
        %4710 = vmatpush1.bf16.xpose.msra.mxu0 %v4540
        %4711 = vmatprep.mubr.bf16.mxu0 0
        %4712 = vmatmul.mubr.bf16.gmra.mrb[0].mxu0 %v4444
        %v4713 = vpop.f32.mrb[0].mxu0
        %v4714 = vadd.f32 0.0, %v4713
        %v4715 = vpop.f32.mrb[0].mxu0
        %v4716 = vadd.f32 0.0, %v4715
        %v4717 = vpop.f32.mrb[0].mxu0
        %v4718 = vpop.f32.mrb[0].mxu0
        %4719 = vdwg.mxu0
        %4720 = vmatprep.subr.bf16.mxu0 0
        %4721 = vmatpush1.bf16.xpose.msra.mxu0 %v4543
        %4722 = vmatprep.subr.bf16.mxu0 0
        %4723 = vmatpush1.bf16.xpose.msra.mxu0 %v4546
        %4724 = vmatprep.subr.bf16.mxu0 0
        %4725 = vmatpush1.bf16.xpose.msra.mxu0 %v4549
        %4726 = vmatprep.subr.bf16.mxu0 0
        %4727 = vmatpush1.bf16.xpose.msra.mxu0 %v4552
        %4728 = vmatprep.subr.bf16.mxu0 0
        %4729 = vmatpush1.bf16.xpose.msra.mxu0 %v4555
        %4730 = vmatprep.subr.bf16.mxu0 0
        %4731 = vmatpush1.bf16.xpose.msra.mxu0 %v4558
        %4732 = vmatprep.subr.bf16.mxu0 0
        %4733 = vmatpush1.bf16.xpose.msra.mxu0 %v4561
        %4734 = vmatprep.subr.bf16.mxu0 0
        %4735 = vmatpush1.bf16.xpose.msra.mxu0 %v4564
        %4736 = vmatprep.subr.bf16.mxu0 0
        %4737 = vmatpush1.bf16.xpose.msra.mxu0 %v4567
        %4738 = vmatprep.subr.bf16.mxu0 0
        %4739 = vmatpush1.bf16.xpose.msra.mxu0 %v4570
        %4740 = vmatprep.subr.bf16.mxu0 0
        %4741 = vmatpush1.bf16.xpose.msra.mxu0 %v4573
        %4742 = vmatprep.subr.bf16.mxu0 0
        %4743 = vmatpush1.bf16.xpose.msra.mxu0 %v4576
        %4744 = vmatprep.subr.bf16.mxu0 0
        %4745 = vmatpush1.bf16.xpose.msra.mxu0 %v4579
        %4746 = vmatprep.subr.bf16.mxu0 0
        %4747 = vmatpush1.bf16.xpose.msra.mxu0 %v4582
        %4748 = vmatprep.subr.bf16.mxu0 0
        %4749 = vmatpush1.bf16.xpose.msra.mxu0 %v4585
        %4750 = vmatprep.subr.bf16.mxu0 0
        %4751 = vmatpush1.bf16.xpose.msra.mxu0 %v4588
        %4752 = vmatprep.mubr.bf16.mxu0 0
        %4753 = vmatmul.mubr.bf16.gmra.mrb[0].mxu0 %v4444
        %v4754 = vpop.f32.mrb[0].mxu0
        %v4755 = vadd.f32 0.0, %v4754
        %v4756 = vpop.f32.mrb[0].mxu0
        %v4757 = vadd.f32 0.0, %v4756
        %v4758 = vpop.f32.mrb[0].mxu0
        %v4759 = vpop.f32.mrb[0].mxu0
        %4760 = vdwg.mxu0
        %4761 = vmatprep.subr.bf16.mxu0 0
        %4762 = vmatpush1.bf16.xpose.msra.mxu0 %v4591
        %4763 = vmatprep.subr.bf16.mxu0 0
        %4764 = vmatpush1.bf16.xpose.msra.mxu0 %v4594
        %4765 = vmatprep.subr.bf16.mxu0 0
        %4766 = vmatpush1.bf16.xpose.msra.mxu0 %v4597
        %4767 = vmatprep.subr.bf16.mxu0 0
        %4768 = vmatpush1.bf16.xpose.msra.mxu0 %v4600
        %4769 = vmatprep.subr.bf16.mxu0 0
        %4770 = vmatpush1.bf16.xpose.msra.mxu0 %v4603
        %4771 = vmatprep.subr.bf16.mxu0 0
        %4772 = vmatpush1.bf16.xpose.msra.mxu0 %v4606
        %4773 = vmatprep.subr.bf16.mxu0 0
        %4774 = vmatpush1.bf16.xpose.msra.mxu0 %v4609
        %4775 = vmatprep.subr.bf16.mxu0 0
        %4776 = vmatpush1.bf16.xpose.msra.mxu0 %v4612
        %4777 = vmatprep.subr.bf16.mxu0 0
        %4778 = vmatpush1.bf16.xpose.msra.mxu0 %v4615
        %4779 = vmatprep.subr.bf16.mxu0 0
        %4780 = vmatpush1.bf16.xpose.msra.mxu0 %v4618
        %4781 = vmatprep.subr.bf16.mxu0 0
        %4782 = vmatpush1.bf16.xpose.msra.mxu0 %v4621
        %4783 = vmatprep.subr.bf16.mxu0 0
        %4784 = vmatpush1.bf16.xpose.msra.mxu0 %v4624
        %4785 = vmatprep.subr.bf16.mxu0 0
        %4786 = vmatpush1.bf16.xpose.msra.mxu0 %v4627
        %4787 = vmatprep.subr.bf16.mxu0 0
        %4788 = vmatpush1.bf16.xpose.msra.mxu0 %v4630
        %4789 = vmatprep.subr.bf16.mxu0 0
        %4790 = vmatpush1.bf16.xpose.msra.mxu0 %v4633
        %4791 = vmatprep.subr.bf16.mxu0 0
        %4792 = vmatpush1.bf16.xpose.msra.mxu0 %v4636
        %4793 = vmatprep.mubr.bf16.mxu0 0
        %4794 = vmatmul.mubr.bf16.gmra.mrb[0].mxu0 %v4444
        %v4795 = vpop.f32.mrb[0].mxu0
        %v4796 = vadd.f32 0.0, %v4795
        %v4797 = vpop.f32.mrb[0].mxu0
        %v4798 = vadd.f32 0.0, %v4797
        %v4799 = vpop.f32.mrb[0].mxu0
        %v4800 = vpop.f32.mrb[0].mxu0
        %4801 = vdwg.mxu0
        %v4802 = vtanh.pop %v4673
        %v4803 = vtanh.pop %v4675
        %v4804 = vtanh.pop %v4714
        %v4805 = vtanh.pop %v4716
        %v4806 = vtanh.pop %v4755
        %v4807 = vtanh.pop %v4757
        %v4808 = vtanh.pop %v4796
        %v4809 = vtanh.pop %v4798
        %v4818 = vcombine.low %v4802, %v4803
        %v4819 = vcombine.low %v4804, %v4805
        %v4820 = vcombine.low %v4806, %v4807
        %v4821 = vcombine.low %v4808, %v4809
        %s4826 = scalar_lea.vmem %s255, 32 [#allocation10]
        %4827 = vst [vmem:[%s4826] sm:$0x77] %v4818
        %4828 = vst [vmem:[%s4826 + $0x8] sm:$0x77] %v4819
        %4829 = vst [vmem:[%s4826 + $0x10] sm:$0x77] %v4820
        %4830 = vst [vmem:[%s4826 + $0x18] sm:$0x77] %v4821
        %4831 = vrot.lane.b32.xlu0 %v2566, 8
        %v4832 = vpop.permute.xlu0 %4831
        %4833 = vrot.lane.b32.xlu0 %v2574, 8
        %v4834 = vpop.permute.xlu0 %4833
        %4837 = vrot.lane.b32.xlu0 %v1495, 16
        %v4838 = vpop.permute.xlu0 %4837
        %4839 = vrot.lane.b32.xlu0 %v1496, 16
        %v4840 = vpop.permute.xlu0 %4839
        %4841 = vrot.lane.b32.xlu0 %v1606, 24
        %v4842 = vpop.permute.xlu0 %4841
        %4843 = vrot.lane.b32.xlu0 %v1614, 24
        %v4844 = vpop.permute.xlu0 %4843
        %v4846 = vsel %vm2703, %v1591, %v4832
        %v4848 = vsel %vm2703, %v1592, %v4834
        %v4850 = vsel %vm2832, %v4846, %v4838
        %v4852 = vsel %vm2832, %v4848, %v4840
        %v4854 = vsel %vm2961, %v4850, %v4842
        %v4856 = vsel %vm2961, %v4852, %v4844
        %s4857 = scalar_lea.vmem [#allocation8], 4
        %v4858 = vld [vmem:[%s4857] sm:$0x3]
        %v4860 = vsel %vm3091, %v4858, 0
        %v4862 = vsel %vm3091, %v4854, 0
        %v4864 = vsel %vm3091, %v4856, 0
        %4866 = vmatprep.subr.bf16.mxu0 0
        %4867 = vmatpush1.bf16.xpose.msra.mxu0 %v3099
        %4868 = vmatprep.subr.bf16.mxu0 0
        %4869 = vmatpush1.bf16.xpose.msra.mxu0 %v3101
        %4870 = vmatprep.subr.bf16.mxu0 0
        %4871 = vmatpush1.bf16.xpose.msra.mxu0 %v3103
        %4872 = vmatprep.subr.bf16.mxu0 0
        %4873 = vmatpush1.bf16.xpose.msra.mxu0 %v3105
        %4874 = vmatprep.subr.bf16.mxu0 0
        %4875 = vmatpush1.bf16.xpose.msra.mxu0 %v3107
        %4876 = vmatprep.subr.bf16.mxu0 0
        %4877 = vmatpush1.bf16.xpose.msra.mxu0 %v3109
        %4878 = vmatprep.subr.bf16.mxu0 0
        %4879 = vmatpush1.bf16.xpose.msra.mxu0 %v3111
        %4880 = vmatprep.subr.bf16.mxu0 0
        %4881 = vmatpush1.bf16.xpose.msra.mxu0 %v3113
        %4882 = vmatprep.subr.bf16.mxu0 0
        %4883 = vmatpush1.bf16.xpose.msra.mxu0 %v3115
        %4884 = vmatprep.subr.bf16.mxu0 0
        %4885 = vmatpush1.bf16.xpose.msra.mxu0 %v3117
        %4886 = vmatprep.subr.bf16.mxu0 0
        %4887 = vmatpush1.bf16.xpose.msra.mxu0 %v3119
        %4888 = vmatprep.subr.bf16.mxu0 0
        %4889 = vmatpush1.bf16.xpose.msra.mxu0 %v3121
        %4890 = vmatprep.subr.bf16.mxu0 0
        %4891 = vmatpush1.bf16.xpose.msra.mxu0 %v3123
        %4892 = vmatprep.subr.bf16.mxu0 0
        %4893 = vmatpush1.bf16.xpose.msra.mxu0 %v3125
        %4894 = vmatprep.subr.bf16.mxu0 0
        %4895 = vmatpush1.bf16.xpose.msra.mxu0 %v3127
        %4896 = vmatprep.subr.bf16.mxu0 0
        %4897 = vmatpush1.bf16.xpose.msra.mxu0 %v3129
        %4898 = vmatprep.mubr.bf16.mxu0 0
        %4899 = vmatmul.mubr.bf16.gmra.mrb[0].mxu0 %v4860
        %v4900 = vpop.f32.mrb[0].mxu0
        %v4901 = vadd.f32 0.0, %v4900
        %v4902 = vpop.f32.mrb[0].mxu0
        %v4903 = vadd.f32 0.0, %v4902
        %v4904 = vpop.f32.mrb[0].mxu0
        %v4905 = vpop.f32.mrb[0].mxu0
        %4906 = vdwg.mxu0
        %4907 = vmatprep.subr.bf16.mxu0 0
        %4908 = vmatpush1.bf16.xpose.msra.mxu0 %v3131
        %4909 = vmatprep.subr.bf16.mxu0 0
        %4910 = vmatpush1.bf16.xpose.msra.mxu0 %v3133
        %4911 = vmatprep.subr.bf16.mxu0 0
        %4912 = vmatpush1.bf16.xpose.msra.mxu0 %v3135
        %4913 = vmatprep.subr.bf16.mxu0 0
        %4914 = vmatpush1.bf16.xpose.msra.mxu0 %v3137
        %4915 = vmatprep.subr.bf16.mxu0 0
        %4916 = vmatpush1.bf16.xpose.msra.mxu0 %v3139
        %4917 = vmatprep.subr.bf16.mxu0 0
        %4918 = vmatpush1.bf16.xpose.msra.mxu0 %v3141
        %4919 = vmatprep.subr.bf16.mxu0 0
        %4920 = vmatpush1.bf16.xpose.msra.mxu0 %v3143
        %4921 = vmatprep.subr.bf16.mxu0 0
        %4922 = vmatpush1.bf16.xpose.msra.mxu0 %v3145
        %4923 = vmatprep.subr.bf16.mxu0 0
        %4924 = vmatpush1.bf16.xpose.msra.mxu0 %v3147
        %4925 = vmatprep.subr.bf16.mxu0 0
        %4926 = vmatpush1.bf16.xpose.msra.mxu0 %v3149
        %4927 = vmatprep.subr.bf16.mxu0 0
        %4928 = vmatpush1.bf16.xpose.msra.mxu0 %v3151
        %4929 = vmatprep.subr.bf16.mxu0 0
        %4930 = vmatpush1.bf16.xpose.msra.mxu0 %v3153
        %4931 = vmatprep.subr.bf16.mxu0 0
        %4932 = vmatpush1.bf16.xpose.msra.mxu0 %v3155
        %4933 = vmatprep.subr.bf16.mxu0 0
        %4934 = vmatpush1.bf16.xpose.msra.mxu0 %v3157
        %4935 = vmatprep.subr.bf16.mxu0 0
        %4936 = vmatpush1.bf16.xpose.msra.mxu0 %v3159
        %4937 = vmatprep.subr.bf16.mxu0 0
        %4938 = vmatpush1.bf16.xpose.msra.mxu0 %v3161
        %4939 = vmatprep.mubr.bf16.mxu0 0
        %4940 = vmatmul.mubr.bf16.gmra.mrb[0].mxu0 %v4860
        %v4941 = vpop.f32.mrb[0].mxu0
        %v4942 = vadd.f32 0.0, %v4941
        %v4943 = vpop.f32.mrb[0].mxu0
        %v4944 = vadd.f32 0.0, %v4943
        %v4945 = vpop.f32.mrb[0].mxu0
        %v4946 = vpop.f32.mrb[0].mxu0
        %4947 = vdwg.mxu0
        %4948 = vmatprep.subr.bf16.mxu0 0
        %4949 = vmatpush1.bf16.xpose.msra.mxu0 %v3163
        %4950 = vmatprep.subr.bf16.mxu0 0
        %4951 = vmatpush1.bf16.xpose.msra.mxu0 %v3165
        %4952 = vmatprep.subr.bf16.mxu0 0
        %4953 = vmatpush1.bf16.xpose.msra.mxu0 %v3167
        %4954 = vmatprep.subr.bf16.mxu0 0
        %4955 = vmatpush1.bf16.xpose.msra.mxu0 %v3169
        %4956 = vmatprep.subr.bf16.mxu0 0
        %4957 = vmatpush1.bf16.xpose.msra.mxu0 %v3171
        %4958 = vmatprep.subr.bf16.mxu0 0
        %4959 = vmatpush1.bf16.xpose.msra.mxu0 %v3173
        %4960 = vmatprep.subr.bf16.mxu0 0
        %4961 = vmatpush1.bf16.xpose.msra.mxu0 %v3175
        %4962 = vmatprep.subr.bf16.mxu0 0
        %4963 = vmatpush1.bf16.xpose.msra.mxu0 %v3177
        %4964 = vmatprep.subr.bf16.mxu0 0
        %4965 = vmatpush1.bf16.xpose.msra.mxu0 %v3179
        %4966 = vmatprep.subr.bf16.mxu0 0
        %4967 = vmatpush1.bf16.xpose.msra.mxu0 %v3181
        %4968 = vmatprep.subr.bf16.mxu0 0
        %4969 = vmatpush1.bf16.xpose.msra.mxu0 %v3183
        %4970 = vmatprep.subr.bf16.mxu0 0
        %4971 = vmatpush1.bf16.xpose.msra.mxu0 %v3185
        %4972 = vmatprep.subr.bf16.mxu0 0
        %4973 = vmatpush1.bf16.xpose.msra.mxu0 %v3187
        %4974 = vmatprep.subr.bf16.mxu0 0
        %4975 = vmatpush1.bf16.xpose.msra.mxu0 %v3189
        %4976 = vmatprep.subr.bf16.mxu0 0
        %4977 = vmatpush1.bf16.xpose.msra.mxu0 %v3191
        %4978 = vmatprep.subr.bf16.mxu0 0
        %4979 = vmatpush1.bf16.xpose.msra.mxu0 %v3193
        %4980 = vmatprep.mubr.bf16.mxu0 0
        %4981 = vmatmul.mubr.bf16.gmra.mrb[0].mxu0 %v4860
        %v4982 = vpop.f32.mrb[0].mxu0
        %v4983 = vadd.f32 0.0, %v4982
        %v4984 = vpop.f32.mrb[0].mxu0
        %v4985 = vadd.f32 0.0, %v4984
        %v4986 = vpop.f32.mrb[0].mxu0
        %v4987 = vpop.f32.mrb[0].mxu0
        %4988 = vdwg.mxu0
        %4989 = vmatprep.subr.bf16.mxu0 0
        %4990 = vmatpush1.bf16.xpose.msra.mxu0 %v3195
        %4991 = vmatprep.subr.bf16.mxu0 0
        %4992 = vmatpush1.bf16.xpose.msra.mxu0 %v3197
        %4993 = vmatprep.subr.bf16.mxu0 0
        %4994 = vmatpush1.bf16.xpose.msra.mxu0 %v3199
        %4995 = vmatprep.subr.bf16.mxu0 0
        %4996 = vmatpush1.bf16.xpose.msra.mxu0 %v3201
        %4997 = vmatprep.subr.bf16.mxu0 0
        %4998 = vmatpush1.bf16.xpose.msra.mxu0 %v3203
        %4999 = vmatprep.subr.bf16.mxu0 0
        %5000 = vmatpush1.bf16.xpose.msra.mxu0 %v3205
        %5001 = vmatprep.subr.bf16.mxu0 0
        %5002 = vmatpush1.bf16.xpose.msra.mxu0 %v3207
        %5003 = vmatprep.subr.bf16.mxu0 0
        %5004 = vmatpush1.bf16.xpose.msra.mxu0 %v3209
        %5005 = vmatprep.subr.bf16.mxu0 0
        %5006 = vmatpush1.bf16.xpose.msra.mxu0 %v3211
        %5007 = vmatprep.subr.bf16.mxu0 0
        %5008 = vmatpush1.bf16.xpose.msra.mxu0 %v3213
        %5009 = vmatprep.subr.bf16.mxu0 0
        %5010 = vmatpush1.bf16.xpose.msra.mxu0 %v3215
        %5011 = vmatprep.subr.bf16.mxu0 0
        %5012 = vmatpush1.bf16.xpose.msra.mxu0 %v3217
        %5013 = vmatprep.subr.bf16.mxu0 0
        %5014 = vmatpush1.bf16.xpose.msra.mxu0 %v3219
        %5015 = vmatprep.subr.bf16.mxu0 0
        %5016 = vmatpush1.bf16.xpose.msra.mxu0 %v3221
        %5017 = vmatprep.subr.bf16.mxu0 0
        %5018 = vmatpush1.bf16.xpose.msra.mxu0 %v4862
        %5019 = vmatprep.subr.bf16.mxu0 0
        %5020 = vmatpush1.bf16.xpose.msra.mxu0 %v4864
        %5021 = vmatprep.mubr.bf16.mxu0 0
        %5022 = vmatmul.mubr.bf16.gmra.mrb[0].mxu0 %v4860
        %v5023 = vpop.f32.mrb[0].mxu0
        %v5024 = vadd.f32 0.0, %v5023
        %v5025 = vpop.f32.mrb[0].mxu0
        %v5026 = vadd.f32 0.0, %v5025
        %v5027 = vpop.f32.mrb[0].mxu0
        %v5028 = vpop.f32.mrb[0].mxu0
        %5029 = vdwg.mxu0
        %v5030 = vtanh.pop %v4901
        %v5031 = vtanh.pop %v4903
        %v5032 = vtanh.pop %v4942
        %v5033 = vtanh.pop %v4944
        %v5034 = vtanh.pop %v4983
        %v5035 = vtanh.pop %v4985
        %v5036 = vtanh.pop %v5024
        %v5037 = vtanh.pop %v5026
        %v5046 = vcombine.low %v5030, %v5031
        %v5047 = vcombine.low %v5032, %v5033
        %v5048 = vcombine.low %v5034, %v5035
        %v5049 = vcombine.low %v5036, %v5037
        %s5054 = scalar_lea.vmem %s255, 64 [#allocation10]
        %5055 = vst [vmem:[%s5054] sm:$0x77] %v5046
        %5056 = vst [vmem:[%s5054 + $0x8] sm:$0x77] %v5047
        %5057 = vst [vmem:[%s5054 + $0x10] sm:$0x77] %v5048
        %5058 = vst [vmem:[%s5054 + $0x18] sm:$0x77] %v5049
        %5059 = vrot.lane.b32.xlu0 %v3639, 8
        %v5060 = vpop.permute.xlu0 %5059
        %5062 = vrot.lane.b32.xlu0 %v1497, 16
        %v5063 = vpop.permute.xlu0 %5062
        %5064 = vrot.lane.b32.xlu0 %v3415, 24
        %v5065 = vpop.permute.xlu0 %5064
        %v5067 = vsel %vm2703, %v1593, %v5060
        %v5069 = vsel %vm2832, %v5067, %v5063
        %v5071 = vsel %vm2961, %v5069, %v5065
        %v5072 = vshrl.u32 %v4854, 16
        %v5074 = vshll.u32 %v4854, 16
        %v5076 = vrot.slane %v5074, 1
        %v5077 = vor.u32 %v5072, %v5076
        %v5078 = vshll.u32 %v4856, 16
        %v5080 = vrot.slane %v5078, 1
        %v5081 = vsel %vm1594, %v5077, %v5080
        %v5082 = vshrl.u32 %v4856, 16
        %v5084 = vor.u32 %v5082, %v5080
        %v5085 = vshll.u32 %v5071, 16
        %v5087 = vrot.slane %v5085, 1
        %v5088 = vsel %vm1594, %v5084, %v5087
        %s5089 = scalar_lea.vmem [#allocation8], 6
        %v5090 = vld [vmem:[%s5089] sm:$0x3]
        %v5092 = vsel %vm3091, %v5090, 0
        %v5095 = vsel %vm3091, %v5081, 0
        %v5098 = vsel %vm3091, %v5088, 0
        %5100 = vmatprep.subr.bf16.mxu0 0
        %5101 = vmatpush1.bf16.xpose.msra.mxu0 %v4453
        %5102 = vmatprep.subr.bf16.mxu0 0
        %5103 = vmatpush1.bf16.xpose.msra.mxu0 %v4456
        %5104 = vmatprep.subr.bf16.mxu0 0
        %5105 = vmatpush1.bf16.xpose.msra.mxu0 %v4459
        %5106 = vmatprep.subr.bf16.mxu0 0
        %5107 = vmatpush1.bf16.xpose.msra.mxu0 %v4462
        %5108 = vmatprep.subr.bf16.mxu0 0
        %5109 = vmatpush1.bf16.xpose.msra.mxu0 %v4465
        %5110 = vmatprep.subr.bf16.mxu0 0
        %5111 = vmatpush1.bf16.xpose.msra.mxu0 %v4468
        %5112 = vmatprep.subr.bf16.mxu0 0
        %5113 = vmatpush1.bf16.xpose.msra.mxu0 %v4471
        %5114 = vmatprep.subr.bf16.mxu0 0
        %5115 = vmatpush1.bf16.xpose.msra.mxu0 %v4474
        %5116 = vmatprep.subr.bf16.mxu0 0
        %5117 = vmatpush1.bf16.xpose.msra.mxu0 %v4477
        %5118 = vmatprep.subr.bf16.mxu0 0
        %5119 = vmatpush1.bf16.xpose.msra.mxu0 %v4480
        %5120 = vmatprep.subr.bf16.mxu0 0
        %5121 = vmatpush1.bf16.xpose.msra.mxu0 %v4483
        %5122 = vmatprep.subr.bf16.mxu0 0
        %5123 = vmatpush1.bf16.xpose.msra.mxu0 %v4486
        %5124 = vmatprep.subr.bf16.mxu0 0
        %5125 = vmatpush1.bf16.xpose.msra.mxu0 %v4489
        %5126 = vmatprep.subr.bf16.mxu0 0
        %5127 = vmatpush1.bf16.xpose.msra.mxu0 %v4492
        %5128 = vmatprep.subr.bf16.mxu0 0
        %5129 = vmatpush1.bf16.xpose.msra.mxu0 %v4495
        %5130 = vmatprep.subr.bf16.mxu0 0
        %5131 = vmatpush1.bf16.xpose.msra.mxu0 %v4498
        %5132 = vmatprep.mubr.bf16.mxu0 0
        %5133 = vmatmul.mubr.bf16.gmra.mrb[0].mxu0 %v5092
        %v5134 = vpop.f32.mrb[0].mxu0
        %v5135 = vadd.f32 0.0, %v5134
        %v5136 = vpop.f32.mrb[0].mxu0
        %v5137 = vadd.f32 0.0, %v5136
        %v5138 = vpop.f32.mrb[0].mxu0
        %v5139 = vpop.f32.mrb[0].mxu0
        %5140 = vdwg.mxu0
        %5141 = vmatprep.subr.bf16.mxu0 0
        %5142 = vmatpush1.bf16.xpose.msra.mxu0 %v4501
        %5143 = vmatprep.subr.bf16.mxu0 0
        %5144 = vmatpush1.bf16.xpose.msra.mxu0 %v4504
        %5145 = vmatprep.subr.bf16.mxu0 0
        %5146 = vmatpush1.bf16.xpose.msra.mxu0 %v4507
        %5147 = vmatprep.subr.bf16.mxu0 0
        %5148 = vmatpush1.bf16.xpose.msra.mxu0 %v4510
        %5149 = vmatprep.subr.bf16.mxu0 0
        %5150 = vmatpush1.bf16.xpose.msra.mxu0 %v4513
        %5151 = vmatprep.subr.bf16.mxu0 0
        %5152 = vmatpush1.bf16.xpose.msra.mxu0 %v4516
        %5153 = vmatprep.subr.bf16.mxu0 0
        %5154 = vmatpush1.bf16.xpose.msra.mxu0 %v4519
        %5155 = vmatprep.subr.bf16.mxu0 0
        %5156 = vmatpush1.bf16.xpose.msra.mxu0 %v4522
        %5157 = vmatprep.subr.bf16.mxu0 0
        %5158 = vmatpush1.bf16.xpose.msra.mxu0 %v4525
        %5159 = vmatprep.subr.bf16.mxu0 0
        %5160 = vmatpush1.bf16.xpose.msra.mxu0 %v4528
        %5161 = vmatprep.subr.bf16.mxu0 0
        %5162 = vmatpush1.bf16.xpose.msra.mxu0 %v4531
        %5163 = vmatprep.subr.bf16.mxu0 0
        %5164 = vmatpush1.bf16.xpose.msra.mxu0 %v4534
        %5165 = vmatprep.subr.bf16.mxu0 0
        %5166 = vmatpush1.bf16.xpose.msra.mxu0 %v4537
        %5167 = vmatprep.subr.bf16.mxu0 0
        %5168 = vmatpush1.bf16.xpose.msra.mxu0 %v4540
        %5169 = vmatprep.subr.bf16.mxu0 0
        %5170 = vmatpush1.bf16.xpose.msra.mxu0 %v4543
        %5171 = vmatprep.subr.bf16.mxu0 0
        %5172 = vmatpush1.bf16.xpose.msra.mxu0 %v4546
        %5173 = vmatprep.mubr.bf16.mxu0 0
        %5174 = vmatmul.mubr.bf16.gmra.mrb[0].mxu0 %v5092
        %v5175 = vpop.f32.mrb[0].mxu0
        %v5176 = vadd.f32 0.0, %v5175
        %v5177 = vpop.f32.mrb[0].mxu0
        %v5178 = vadd.f32 0.0, %v5177
        %v5179 = vpop.f32.mrb[0].mxu0
        %v5180 = vpop.f32.mrb[0].mxu0
        %5181 = vdwg.mxu0
        %5182 = vmatprep.subr.bf16.mxu0 0
        %5183 = vmatpush1.bf16.xpose.msra.mxu0 %v4549
        %5184 = vmatprep.subr.bf16.mxu0 0
        %5185 = vmatpush1.bf16.xpose.msra.mxu0 %v4552
        %5186 = vmatprep.subr.bf16.mxu0 0
        %5187 = vmatpush1.bf16.xpose.msra.mxu0 %v4555
        %5188 = vmatprep.subr.bf16.mxu0 0
        %5189 = vmatpush1.bf16.xpose.msra.mxu0 %v4558
        %5190 = vmatprep.subr.bf16.mxu0 0
        %5191 = vmatpush1.bf16.xpose.msra.mxu0 %v4561
        %5192 = vmatprep.subr.bf16.mxu0 0
        %5193 = vmatpush1.bf16.xpose.msra.mxu0 %v4564
        %5194 = vmatprep.subr.bf16.mxu0 0
        %5195 = vmatpush1.bf16.xpose.msra.mxu0 %v4567
        %5196 = vmatprep.subr.bf16.mxu0 0
        %5197 = vmatpush1.bf16.xpose.msra.mxu0 %v4570
        %5198 = vmatprep.subr.bf16.mxu0 0
        %5199 = vmatpush1.bf16.xpose.msra.mxu0 %v4573
        %5200 = vmatprep.subr.bf16.mxu0 0
        %5201 = vmatpush1.bf16.xpose.msra.mxu0 %v4576
        %5202 = vmatprep.subr.bf16.mxu0 0
        %5203 = vmatpush1.bf16.xpose.msra.mxu0 %v4579
        %5204 = vmatprep.subr.bf16.mxu0 0
        %5205 = vmatpush1.bf16.xpose.msra.mxu0 %v4582
        %5206 = vmatprep.subr.bf16.mxu0 0
        %5207 = vmatpush1.bf16.xpose.msra.mxu0 %v4585
        %5208 = vmatprep.subr.bf16.mxu0 0
        %5209 = vmatpush1.bf16.xpose.msra.mxu0 %v4588
        %5210 = vmatprep.subr.bf16.mxu0 0
        %5211 = vmatpush1.bf16.xpose.msra.mxu0 %v4591
        %5212 = vmatprep.subr.bf16.mxu0 0
        %5213 = vmatpush1.bf16.xpose.msra.mxu0 %v4594
        %5214 = vmatprep.mubr.bf16.mxu0 0
        %5215 = vmatmul.mubr.bf16.gmra.mrb[0].mxu0 %v5092
        %v5216 = vpop.f32.mrb[0].mxu0
        %v5217 = vadd.f32 0.0, %v5216
        %v5218 = vpop.f32.mrb[0].mxu0
        %v5219 = vadd.f32 0.0, %v5218
        %v5220 = vpop.f32.mrb[0].mxu0
        %v5221 = vpop.f32.mrb[0].mxu0
        %5222 = vdwg.mxu0
        %5223 = vmatprep.subr.bf16.mxu0 0
        %5224 = vmatpush1.bf16.xpose.msra.mxu0 %v4597
        %5225 = vmatprep.subr.bf16.mxu0 0
        %5226 = vmatpush1.bf16.xpose.msra.mxu0 %v4600
        %5227 = vmatprep.subr.bf16.mxu0 0
        %5228 = vmatpush1.bf16.xpose.msra.mxu0 %v4603
        %5229 = vmatprep.subr.bf16.mxu0 0
        %5230 = vmatpush1.bf16.xpose.msra.mxu0 %v4606
        %5231 = vmatprep.subr.bf16.mxu0 0
        %5232 = vmatpush1.bf16.xpose.msra.mxu0 %v4609
        %5233 = vmatprep.subr.bf16.mxu0 0
        %5234 = vmatpush1.bf16.xpose.msra.mxu0 %v4612
        %5235 = vmatprep.subr.bf16.mxu0 0
        %5236 = vmatpush1.bf16.xpose.msra.mxu0 %v4615
        %5237 = vmatprep.subr.bf16.mxu0 0
        %5238 = vmatpush1.bf16.xpose.msra.mxu0 %v4618
        %5239 = vmatprep.subr.bf16.mxu0 0
        %5240 = vmatpush1.bf16.xpose.msra.mxu0 %v4621
        %5241 = vmatprep.subr.bf16.mxu0 0
        %5242 = vmatpush1.bf16.xpose.msra.mxu0 %v4624
        %5243 = vmatprep.subr.bf16.mxu0 0
        %5244 = vmatpush1.bf16.xpose.msra.mxu0 %v4627
        %5245 = vmatprep.subr.bf16.mxu0 0
        %5246 = vmatpush1.bf16.xpose.msra.mxu0 %v4630
        %5247 = vmatprep.subr.bf16.mxu0 0
        %5248 = vmatpush1.bf16.xpose.msra.mxu0 %v4633
        %5249 = vmatprep.subr.bf16.mxu0 0
        %5250 = vmatpush1.bf16.xpose.msra.mxu0 %v4636
        %5251 = vmatprep.subr.bf16.mxu0 0
        %5252 = vmatpush1.bf16.xpose.msra.mxu0 %v5095
        %5253 = vmatprep.subr.bf16.mxu0 0
        %5254 = vmatpush1.bf16.xpose.msra.mxu0 %v5098
        %5255 = vmatprep.mubr.bf16.mxu0 0
        %5256 = vmatmul.mubr.bf16.gmra.mrb[0].mxu0 %v5092
        %v5257 = vpop.f32.mrb[0].mxu0
        %v5258 = vadd.f32 0.0, %v5257
        %v5259 = vpop.f32.mrb[0].mxu0
        %v5260 = vadd.f32 0.0, %v5259
        %v5261 = vpop.f32.mrb[0].mxu0
        %v5262 = vpop.f32.mrb[0].mxu0
        %5263 = vdwg.mxu0
        %v5264 = vtanh.pop %v5135
        %v5265 = vtanh.pop %v5137
        %v5266 = vtanh.pop %v5176
        %v5267 = vtanh.pop %v5178
        %v5268 = vtanh.pop %v5217
        %v5269 = vtanh.pop %v5219
        %v5270 = vtanh.pop %v5258
        %v5271 = vtanh.pop %v5260
        %v5280 = vcombine.low %v5264, %v5265
        %v5281 = vcombine.low %v5266, %v5267
        %v5282 = vcombine.low %v5268, %v5269
        %v5283 = vcombine.low %v5270, %v5271
        %s5288 = scalar_lea.vmem %s255, 96 [#allocation10]
        %5289 = vst [vmem:[%s5288] sm:$0x77] %v5280
        %5290 = vst [vmem:[%s5288 + $0x8] sm:$0x77] %v5281
        %5291 = vst [vmem:[%s5288 + $0x10] sm:$0x77] %v5282
        %5292 = vst [vmem:[%s5288 + $0x18] sm:$0x77] %v5283
        %s5293 = sand.u32 %s120, 1
        %s5294 = scalar_lea.sflag [#allocation4], %s5293
        %s5295 = sand.u32 %s120, 1
        %s5296 = smul.addr %s5295, 128
        %s5297 = scalar_lea.vmem [#allocation10], %s5296
        // Predicated region
        $region53: #{generator_forward.9} parent=35 // pred_check
          %p5298 = pneg %p130
        $region54: #{generator_forward.9} parent=35 // pred_check_branch
          %5300 = sbr.rel (%p5298) target = $region56
        $region55: #{generator_forward.9} parent=35 // pred_region
          %s5302 = ssub.s32 2048, 2048
          %5303 = vsyncadd %s5294, %s5302
          %s5304 = smul.addr %s23, 32
          %s5305 = smul.addr %s5304, 64
          %s5306 = scalar_lea.hbm %s4, %s5305
          %s5307 = sshll.u32 %s5297, 4
          %s5308 = int_to_ptr.vmem [resolvable:$true] %s5307
          %5313 = dma.vmem_to_hbm [thread:$0]  %s5308, 2048, %s5306, %s5294, 512, 512, 32
        $region56: #{generator_forward.9} parent=35 // pred_fallthru
          _
      $region36: #{generator_forward.9} parent=5 // pred_fallthru
        _
      %p5314 = scmp.le.s32.totalorder 2, %s18
      // Predicated region
      $region57: #{generator_forward.9} parent=5 // pred_check
        %p5315 = pneg %p5314
      $region58: #{generator_forward.9} parent=5 // pred_check_branch
        %5317 = sbr.rel (%p5315) target = $region60
      $region59: #{generator_forward.9} parent=5 // pred_region
        %s5318 = ssub.s32 %s18, 2
        // Predicated region
        $region61: #{generator_forward.9} parent=59 // pred_check
          %p5319 = pneg %p136
        $region62: #{generator_forward.9} parent=59 // pred_check_branch
          %5321 = sbr.rel (%p5319) target = $region64
        $region63: #{generator_forward.9} parent=59 // pred_region
          %s5322 = sand.u32 %s121, 1
          %s5323 = scalar_lea.sflag [#allocation4], %s5322
          %s5324 = sand.u32 %s121, 1
          %s5325 = smul.addr %s5324, 128
          %s5326 = scalar_lea.vmem [#allocation10], %s5325
          %5327 = dma.done %s5323, 2048
        $region64: #{generator_forward.9} parent=59 // pred_fallthru
          _
      $region60: #{generator_forward.9} parent=5 // pred_fallthru
        _
    $region6: #{generator_forward.9} parent=1 // loop_footer
      %s22 = sadd.s32 1, %s18
    $region7: #{generator_forward.9} parent=1 // loop_footer_branch
      %17 = sbr.rel target = $region3
    $region8: #{generator_forward.9} parent=1 // loop_exit
      _
    %5328 = vsyncpa [#allocation3], 1
    %s5329 = scalar_lea.sflag [#allocation3], 1
    %5330 = vsyncpa %s5329, 1
    %5331 = vsyncpa [#allocation6], 1
    %5332 = vsyncpa [#allocation9], 1
    %5333 = vsyncpa [#allocation4], 1
    %s5334 = scalar_lea.sflag [#allocation4], 1
    %5335 = vsyncpa %s5334, 1

</llo_original>
